<compile_context>
chip_gen: v6e
topology: v6e:2x2x1
jax: 0.10.0
libtpu: 0.0.40
codegen_flags: <defaults>
</compile_context>

<pallas_src>
import numpy as np
import jax
import jax.numpy as jnp
from jax import lax
from jax.experimental import pallas as pl
from jax.experimental.pallas import tpu as pltpu

EPS_MTT = 1.0  # MatrixTree() default eps


# --------------------------------------------------------------------------
# Pallas kernel: structured attention for a block of Nb batch elements
# --------------------------------------------------------------------------
def _struct_kernel(vsem_ref, vstr_ref, mask_ref, mrow_ref,
                   wtptc_ref, btptc_ref, wa_ref, wroot_ref,
                   remb_ref, wr_ref, br_ref,
                   nodes_ref):
    f32 = jnp.float32
    Nb, S, Dsem = vsem_ref.shape
    Dstr = vstr_ref.shape[2]
    NR = Nb * S

    vsem = vsem_ref[...]                      # (Nb, S, Dsem)
    vstr = vstr_ref[...]                      # (Nb, S, Dstr)
    m = mask_ref[...]                         # (Nb, S, 1)
    m_row = mrow_ref[...]                     # (Nb, 1, S)

    row_ids = lax.broadcasted_iota(jnp.int32, (S, S), 0)
    col_ids = lax.broadcasted_iota(jnp.int32, (S, S), 1)
    eye = row_ids == col_ids
    rvec = lax.broadcasted_iota(jnp.int32, (S, 1), 0)       # (S, 1)

    # ---- fused tp/tc projection on flattened rows (MXU-friendly) ----
    vstr2 = vstr.reshape(NR, Dstr)
    t = jnp.tanh(jnp.dot(vstr2, wtptc_ref[...], preferred_element_type=f32)
                 + btptc_ref[...])                           # (NR, 2*Dstr)
    tp2 = t[:, :Dstr]
    tc2 = t[:, Dstr:]
    tpw2 = jnp.dot(tp2, wa_ref[...], preferred_element_type=f32)   # (NR, Dstr)
    tpw = tpw2.reshape(Nb, S, Dstr)
    tc = tc2.reshape(Nb, S, Dstr)

    # ---- edge / root scores (both orientations so no transpose op is needed) ----
    mask_sq = m * m_row                                      # (Nb, S, S), symmetric
    s = jnp.einsum('bsd,btd->bst', tpw, tc, preferred_element_type=f32)
    sT = jnp.einsum('bsd,btd->bst', tc, tpw, preferred_element_type=f32)
    # TODO(synk): plain exp (no max-subtraction) to match the PyTorch module exactly.
    A = jnp.where(eye, 0.0, jnp.exp(s) * mask_sq)            # (Nb, S, S)
    AT = jnp.where(eye, 0.0, jnp.exp(sT) * mask_sq)          # == A transposed
    r = jnp.exp(jnp.sum(vstr * wroot_ref[...], axis=-1, keepdims=True)) * m  # (Nb,S,1)

    # ---- matrix-tree Laplacian, built in both orientations ----
    colsum_row = jnp.sum(A, axis=1, keepdims=True)           # (Nb, 1, S)
    colsum_col = jnp.sum(AT, axis=2, keepdims=True)          # (Nb, S, 1)
    r_row = jnp.sum(jnp.where(eye, r, 0.0), axis=1, keepdims=True)   # (Nb, 1, S)

    LL = jnp.where(eye, colsum_row, -A)
    LL = jnp.where(row_ids == 0, r_row, LL)                  # row 0 <- r
    LL = jnp.where(jnp.logical_and(eye, LL == 0.0), EPS_MTT, LL)

    LLT = jnp.where(eye, colsum_col, -AT)
    LLT = jnp.where(col_ids == 0, r, LLT)                    # column 0 <- r
    LLT = jnp.where(jnp.logical_and(eye, LLT == 0.0), EPS_MTT, LLT)

    # ---- batched Gauss-Jordan inverse over the stacked [LL ; LL^T] ----
    # (no pivoting: the eps-regularized Laplacian diagonal is strictly positive)
    # TODO(synk): for large S switch to lax.fori_loop + pl.ds to bound code size.
    M = jnp.concatenate([LL, LLT], axis=0)                   # (2*Nb, S, S)
    Inv = jnp.broadcast_to(jnp.where(eye, 1.0, 0.0).astype(f32), (2 * Nb, S, S))
    for k in range(S):
        pivot_row = M[:, k:k + 1, :]                         # (2Nb, 1, S)
        inv_p = 1.0 / pivot_row[:, :, k:k + 1]               # (2Nb, 1, 1)
        norm_row = pivot_row * inv_p
        inv_row = Inv[:, k:k + 1, :] * inv_p
        factor = jnp.where(rvec == k, 0.0, M[:, :, k:k + 1])
        M = jnp.where(rvec == k, norm_row, M - factor * norm_row)
        Inv = jnp.where(rvec == k, inv_row, Inv - factor * inv_row)
    LL_inv = Inv[:Nb]                                        # inv(LL)
    IT = Inv[Nb:]                                            # inv(LL^T) == inv(LL)^T

    # ---- marginals d0, d (and d^T, so both contexts use standard matmuls) ----
    d0 = r * LL_inv[:, :, 0:1]                                           # (Nb,S,1)
    inv_diag_row = jnp.sum(jnp.where(eye, LL_inv, 0.0), axis=1, keepdims=True)  # (Nb,1,S)
    inv_diag_col = jnp.sum(jnp.where(eye, LL_inv, 0.0), axis=2, keepdims=True)  # (Nb,S,1)
    d = (jnp.where(col_ids == 0, 0.0, A * inv_diag_row)
         - jnp.where(row_ids == 0, 0.0, A * IT))                         # (Nb,S,S)
    dT = (jnp.where(row_ids == 0, 0.0, AT * inv_diag_col)
          - jnp.where(col_ids == 0, 0.0, AT * LL_inv))                   # == d^T

    # ---- attention-weighted contexts ----
    c = jnp.einsum('bst,btd->bsd', d, vsem, preferred_element_type=f32)
    p = d0 * remb_ref[...] + jnp.einsum('bst,btd->bsd', dT, vsem,
                                        preferred_element_type=f32)

    # ---- fused output projection: [vsem, p, c] @ W_r + b_r ----
    cat = jnp.concatenate([vsem.reshape(NR, Dsem),
                           p.reshape(NR, Dsem),
                           c.reshape(NR, Dsem)], axis=-1)    # (NR, 3*Dsem)
    out = jnp.tanh(jnp.dot(cat, wr_ref[...], preferred_element_type=f32)
                   + br_ref[...])
    out = out * m.reshape(NR, 1)
    nodes_ref[...] = out


def _pick_block_b(B, S):
    """>=128 flattened rows per grid step for MXU fill, but keep >=2 grid steps
    when possible so both v7x TensorCores get work."""
    nb = max(1, min(B, pl.cdiv(128, max(S, 1))))
    if nb >= B and B >= 2:
        nb = max(1, B // 2)
    return nb


def struct_atten_pallas(vec_sema, vec_stru, mask, params, block_b=None):
    (W_tp, b_tp, W_tc, b_tc, w_a, w_root, root_emb, W_r, b_r) = params
    B, S, Dsem = vec_sema.shape
    Dstr = vec_stru.shape[-1]

    # Fuse projection weights/biases (wrapper-side, free).
    W_tptc = jnp.concatenate([W_tp, W_tc], axis=1)           # (Dstr, 2*Dstr)
    b_tptc = jnp.concatenate([b_tp, b_tc], axis=1)           # (1, 2*Dstr)

    nb = block_b if block_b is not None else _pick_block_b(B, S)
    B_pad = pl.cdiv(B, nb) * nb
    if B_pad != B:  # zero-padded batches (zero mask) are numerically safe
        pad = B_pad - B
        vec_sema = jnp.pad(vec_sema, ((0, pad), (0, 0), (0, 0)))
        vec_stru = jnp.pad(vec_stru, ((0, pad), (0, 0), (0, 0)))
        mask = jnp.pad(mask, ((0, pad), (0, 0), (0, 0)))
    mask_row = jnp.swapaxes(mask, 1, 2)                      # (B_pad, 1, S)

    grid_spec = pltpu.PrefetchScalarGridSpec(
        num_scalar_prefetch=0,
        grid=(B_pad // nb,),
        in_specs=[
            pl.BlockSpec((nb, S, Dsem), lambda b: (b, 0, 0)),     # vec_sema
            pl.BlockSpec((nb, S, Dstr), lambda b: (b, 0, 0)),     # vec_stru
            pl.BlockSpec((nb, S, 1), lambda b: (b, 0, 0)),        # mask
            pl.BlockSpec((nb, 1, S), lambda b: (b, 0, 0)),        # mask^T
            # parameters: constant index_map -> kept resident across grid steps
            pl.BlockSpec((Dstr, 2 * Dstr), lambda b: (0, 0)),     # [W_tp | W_tc]
            pl.BlockSpec((1, 2 * Dstr), lambda b: (0, 0)),        # [b_tp | b_tc]
            pl.BlockSpec((Dstr, Dstr), lambda b: (0, 0)),         # w_a
            pl.BlockSpec((1, Dstr), lambda b: (0, 0)),            # w_root
            pl.BlockSpec((1, Dsem), lambda b: (0, 0)),            # root_emb
            pl.BlockSpec((3 * Dsem, Dsem), lambda b: (0, 0)),     # W_r
            pl.BlockSpec((1, Dsem), lambda b: (0, 0)),            # b_r
        ],
        out_specs=pl.BlockSpec((nb * S, Dsem), lambda b: (b, 0)),  # nodes (flat rows)
    )
    nodes_flat = pl.pallas_call(
        _struct_kernel,
        out_shape=jax.ShapeDtypeStruct((B_pad * S, Dsem), jnp.float32),
        grid_spec=grid_spec,
        compiler_params=pltpu.CompilerParams(dimension_semantics=("parallel",)),
    )(vec_sema, vec_stru, mask, mask_row,
      W_tptc, b_tptc, w_a, w_root, root_emb, W_r, b_r)

    nodes = nodes_flat.reshape(B_pad, S, Dsem)[:B]
    h = jnp.max(nodes, axis=1)   # tiny, mem-bound max-pool: plain JAX
    return {"h": h, "nodes": nodes}


# --------------------------------------------------------------------------
# Plain-JAX glue: BiLSTM (PyTorch gate order i, f, g, o)
# --------------------------------------------------------------------------
def init_lstm_params(key, input_size, hidden_size):
    k1, k2, k3, k4 = jax.random.split(key, 4)
    s = 1.0 / np.sqrt(hidden_size)
    wih = jax.random.uniform(k1, (4 * hidden_size, input_size), jnp.float32, -s, s)
    whh = jax.random.uniform(k2, (4 * hidden_size, hidden_size), jnp.float32, -s, s)
    bih = jax.random.uniform(k3, (4 * hidden_size,), jnp.float32, -s, s)
    bhh = jax.random.uniform(k4, (4 * hidden_size,), jnp.float32, -s, s)
    return wih, whh, bih, bhh


def lstm_scan(params, xs):  # xs: (S, B, D) -> (S, B, H)
    wih, whh, bih, bhh = params
    H = whh.shape[1]
    B = xs.shape[1]

    def step(carry, xt):
        h, c = carry
        gates = xt @ wih.T + bih + h @ whh.T + bhh
        i, f, g, o = jnp.split(gates, 4, axis=-1)
        i = jax.nn.sigmoid(i)
        f = jax.nn.sigmoid(f)
        g = jnp.tanh(g)
        o = jax.nn.sigmoid(o)
        c = f * c + i * g
        h = o * jnp.tanh(c)
        return (h, c), h

    init = (jnp.zeros((B, H), jnp.float32), jnp.zeros((B, H), jnp.float32))
    _, hs = lax.scan(step, init, xs)
    return hs


def run_bilstm(x, fwd_params, bwd_params):  # x: (B, S, D)
    xs = jnp.swapaxes(x, 0, 1)                       # (S, B, D)
    hf = lstm_scan(fwd_params, xs)                   # (S, B, H)
    hb = lstm_scan(bwd_params, xs[::-1])[::-1]       # (S, B, H)
    out = jnp.concatenate([hf, hb], axis=-1)
    return jnp.swapaxes(out, 0, 1)                   # (B, S, 2H)


# --------------------------------------------------------------------------
# Pure-JAX reference of the structured-attention path (for validation)
# --------------------------------------------------------------------------
def matrix_tree_ref(A, r, eps=EPS_MTT):
    B, S, _ = A.shape
    idx = jnp.arange(S)
    L = -A
    L = L.at[:, idx, idx].set(jnp.sum(A, axis=1))
    LL = jnp.concatenate([jnp.transpose(r, (0, 2, 1)), L[:, 1:, :]], axis=1)
    ll_d = LL[:, idx, idx]
    ll_d = jnp.where(ll_d == 0.0, eps, ll_d)
    LL = LL.at[:, idx, idx].set(ll_d)
    LL_inv = jnp.linalg.inv(LL)
    d0 = (r[..., 0] * LL_inv[:, :, 0])[:, None, :]
    inv_diag = LL_inv[:, idx, idx][:, :, None]
    term1 = jnp.transpose(jnp.transpose(A, (0, 2, 1)) * inv_diag, (0, 2, 1))
    term2 = A * jnp.transpose(LL_inv, (0, 2, 1))
    term1 = term1.at[:, :, 0].set(0.0)
    term2 = term2.at[:, 0, :].set(0.0)
    return d0, term1 - term2


def struct_ref(vec_sema, vec_stru, mask, params):
    (W_tp, b_tp, W_tc, b_tc, w_a, w_root, root_emb, W_r, b_r) = params
    B, S, _ = vec_sema.shape
    idx = jnp.arange(S)
    tp = jnp.tanh(vec_stru @ W_tp + b_tp)
    tc = jnp.tanh(vec_stru @ W_tc + b_tc)
    mask_sq = mask @ jnp.transpose(mask, (0, 2, 1))
    f = tp @ w_a @ jnp.transpose(tc, (0, 2, 1))
    f_r = vec_stru @ w_root.T
    f = jnp.exp(f) * mask_sq
    f_r = jnp.exp(f_r) * mask
    f = f.at[:, idx, idx].set(0.0)
    a0, a = matrix_tree_ref(f, f_r)
    a_p = jnp.transpose(jnp.concatenate([a0, a], axis=1), (0, 2, 1))
    root_embs = jnp.broadcast_to(root_emb[None, :, :], (B, 1, root_emb.shape[-1]))
    vec_sem_root = jnp.concatenate([root_embs, vec_sema], axis=1)
    c = a @ vec_sema
    p = a_p @ vec_sem_root
    out = jnp.tanh(jnp.concatenate([vec_sema, p, c], axis=-1) @ W_r + b_r)
    out = out * mask
    return {"h": jnp.max(out, axis=1), "nodes": out}


# --------------------------------------------------------------------------
if __name__ == "__main__":
    B, S, word_dim, hidden_dim = 16, 8, 16, 48
    half = hidden_dim // 2          # 24
    sema_dim = hidden_dim // 3 * 2  # 32
    stru_dim = hidden_dim // 3      # 16

    key = jax.random.PRNGKey(0)
    (kx, kf, kb, k1, k2, k3, k4, k5, k6, k7, k8, k9) = jax.random.split(key, 12)

    x = jax.random.normal(kx, (B, S, word_dim), jnp.float32)
    mask = jnp.ones((B, S, 1), jnp.float32)   # full-length sequences (see TODO above)

    fwd_params = init_lstm_params(kf, word_dim, half)
    bwd_params = init_lstm_params(kb, word_dim, half)

    # Structured-attention parameters (deterministic synthetic init)
    W_tp = 0.1 * jax.random.normal(k1, (stru_dim, stru_dim), jnp.float32)
    b_tp = 0.1 * jax.random.normal(k2, (1, stru_dim), jnp.float32)
    W_tc = 0.1 * jax.random.normal(k3, (stru_dim, stru_dim), jnp.float32)
    b_tc = 0.1 * jax.random.normal(k4, (1, stru_dim), jnp.float32)
    w_a = 0.1 * jax.random.normal(k5, (stru_dim, stru_dim), jnp.float32)
    w_root = 0.1 * jax.random.normal(k6, (1, stru_dim), jnp.float32)
    root_emb = 0.1 * jax.random.normal(k7, (1, sema_dim), jnp.float32)
    W_r = 0.1 * jax.random.normal(k8, (3 * sema_dim, sema_dim), jnp.float32)
    b_r = 0.1 * jax.random.normal(k9, (1, sema_dim), jnp.float32)
    params = (W_tp, b_tp, W_tc, b_tc, w_a, w_root, root_emb, W_r, b_r)

    # BiLSTM + feature split (plain-JAX glue)
    out = run_bilstm(x, fwd_params, bwd_params)          # (B, S, hidden_dim)
    fw, bw = out[:, :, :half], out[:, :, half:]
    vec_sema = jnp.concatenate([fw[:, :, :sema_dim // 2], bw[:, :, :sema_dim // 2]], -1)
    vec_stru = jnp.concatenate([fw[:, :, sema_dim // 2:], bw[:, :, sema_dim // 2:]], -1)

    # Pallas structured-attention kernel
    res = struct_atten_pallas(vec_sema, vec_stru, mask, params)
    jax.block_until_ready(res)

    # Validate against pure-JAX reference
    ref = struct_ref(vec_sema, vec_stru, mask, params)
    assert np.all(np.isfinite(np.asarray(res["nodes"]))) and np.all(np.isfinite(np.asarray(res["h"])))
    np.testing.assert_allclose(np.asarray(res["nodes"]), np.asarray(ref["nodes"]),
                               rtol=2e-2, atol=2e-2)
    np.testing.assert_allclose(np.asarray(res["h"]), np.asarray(ref["h"]),
                               rtol=2e-2, atol=2e-2)
    print("KERNEL_OK")
</pallas_src>

<mosaic_0001>
module attributes {stable_mosaic.version = 11 : i64} {
  func.func @_struct_kernel(%arg0: i32, %arg1: memref<8x8x32xf32, #tpu.memory_space<vmem>>, %arg2: memref<8x8x16xf32, #tpu.memory_space<vmem>>, %arg3: memref<8x8x1xf32, #tpu.memory_space<vmem>>, %arg4: memref<8x1x8xf32, #tpu.memory_space<vmem>>, %arg5: memref<16x32xf32, #tpu.memory_space<vmem>>, %arg6: memref<1x32xf32, #tpu.memory_space<vmem>>, %arg7: memref<16x16xf32, #tpu.memory_space<vmem>>, %arg8: memref<1x16xf32, #tpu.memory_space<vmem>>, %arg9: memref<1x32xf32, #tpu.memory_space<vmem>>, %arg10: memref<96x32xf32, #tpu.memory_space<vmem>>, %arg11: memref<1x32xf32, #tpu.memory_space<vmem>>, %arg12: memref<64x32xf32, #tpu.memory_space<vmem>>) attributes {dimension_semantics = [#tpu.dimension_semantics<parallel>], iteration_bounds = array<i64: 2>, scalar_prefetch = 0 : i64, scratch_operands = 0 : i64, tpu.core_type = #tpu.core_type<tc>, window_params = [{transform_indices = @transform_0, window_bounds = array<i64: 8, 8, 32>}, {transform_indices = @transform_1, window_bounds = array<i64: 8, 8, 16>}, {transform_indices = @transform_2, window_bounds = array<i64: 8, 8, 1>}, {transform_indices = @transform_3, window_bounds = array<i64: 8, 1, 8>}, {pipeline_mode = #tpu.pipeline_mode<synchronous>, transform_indices = @transform_4, window_bounds = array<i64: 16, 32>}, {pipeline_mode = #tpu.pipeline_mode<synchronous>, transform_indices = @transform_5, window_bounds = array<i64: 1, 32>}, {pipeline_mode = #tpu.pipeline_mode<synchronous>, transform_indices = @transform_6, window_bounds = array<i64: 16, 16>}, {pipeline_mode = #tpu.pipeline_mode<synchronous>, transform_indices = @transform_7, window_bounds = array<i64: 1, 16>}, {pipeline_mode = #tpu.pipeline_mode<synchronous>, transform_indices = @transform_8, window_bounds = array<i64: 1, 32>}, {pipeline_mode = #tpu.pipeline_mode<synchronous>, transform_indices = @transform_9, window_bounds = array<i64: 96, 32>}, {pipeline_mode = #tpu.pipeline_mode<synchronous>, transform_indices = @transform_10, window_bounds = array<i64: 1, 32>}, {transform_indices = @transform_11, window_bounds = array<i64: 64, 32>}]} {
    %c0 = arith.constant 0 : index
    %c0_0 = arith.constant 0 : index
    %c0_1 = arith.constant 0 : index
    %0 = vector.load %arg1[%c0, %c0_0, %c0_1] : memref<8x8x32xf32, #tpu.memory_space<vmem>>, vector<8x8x32xf32>
    %c0_2 = arith.constant 0 : index
    %c0_3 = arith.constant 0 : index
    %c0_4 = arith.constant 0 : index
    %1 = vector.load %arg2[%c0_2, %c0_3, %c0_4] : memref<8x8x16xf32, #tpu.memory_space<vmem>>, vector<8x8x16xf32>
    %c0_5 = arith.constant 0 : index
    %c0_6 = arith.constant 0 : index
    %c0_7 = arith.constant 0 : index
    %2 = vector.load %arg3[%c0_5, %c0_6, %c0_7] : memref<8x8x1xf32, #tpu.memory_space<vmem>>, vector<8x8x1xf32>
    %c0_8 = arith.constant 0 : index
    %c0_9 = arith.constant 0 : index
    %c0_10 = arith.constant 0 : index
    %3 = vector.load %arg4[%c0_8, %c0_9, %c0_10] : memref<8x1x8xf32, #tpu.memory_space<vmem>>, vector<8x1x8xf32>
    %4 = tpu.iota {dimensions = array<i32: 0>} : vector<8x8xi32>
    %5 = tpu.iota {dimensions = array<i32: 1>} : vector<8x8xi32>
    %6 = arith.cmpi eq, %4, %5 : vector<8x8xi32>
    %7 = tpu.iota {dimensions = array<i32: 0>} : vector<8x1xi32>
    %8 = vector.shape_cast %1 : vector<8x8x16xf32> to vector<64x16xf32>
    %c0_11 = arith.constant 0 : index
    %c0_12 = arith.constant 0 : index
    %9 = vector.load %arg5[%c0_11, %c0_12] : memref<16x32xf32, #tpu.memory_space<vmem>>, vector<16x32xf32>
    %cst = arith.constant dense<0.000000e+00> : vector<64x32xf32>
    %10 = tpu.matmul %8, %9, %cst {dimension_numbers = #tpu.dot_dimension_numbers<[1], [0], [0], [1], [0, 0, 1, 1], [], []>} : vector<64x16xf32>, vector<16x32xf32>, vector<64x32xf32> -> vector<64x32xf32>
    %c0_13 = arith.constant 0 : index
    %c0_14 = arith.constant 0 : index
    %11 = vector.load %arg6[%c0_13, %c0_14] : memref<1x32xf32, #tpu.memory_space<vmem>>, vector<1x32xf32>
    %12 = vector.broadcast %11 : vector<1x32xf32> to vector<64x32xf32>
    %13 = arith.addf %10, %12 : vector<64x32xf32>
    %14 = math.tanh %13 : vector<64x32xf32>
    %15 = vector.extract_strided_slice %14 {offsets = [0, 0], sizes = [64, 16], strides = [1, 1]} : vector<64x32xf32> to vector<64x16xf32>
    %16 = vector.extract_strided_slice %14 {offsets = [0, 16], sizes = [64, 16], strides = [1, 1]} : vector<64x32xf32> to vector<64x16xf32>
    %c0_15 = arith.constant 0 : index
    %c0_16 = arith.constant 0 : index
    %17 = vector.load %arg7[%c0_15, %c0_16] : memref<16x16xf32, #tpu.memory_space<vmem>>, vector<16x16xf32>
    %cst_17 = arith.constant dense<0.000000e+00> : vector<64x16xf32>
    %18 = tpu.matmul %15, %17, %cst_17 {dimension_numbers = #tpu.dot_dimension_numbers<[1], [0], [0], [1], [0, 0, 1, 1], [], []>} : vector<64x16xf32>, vector<16x16xf32>, vector<64x16xf32> -> vector<64x16xf32>
    %19 = vector.shape_cast %18 : vector<64x16xf32> to vector<8x8x16xf32>
    %20 = vector.shape_cast %16 : vector<64x16xf32> to vector<8x8x16xf32>
    %21 = vector.broadcast %2 : vector<8x8x1xf32> to vector<8x8x8xf32>
    %22 = vector.broadcast %3 : vector<8x1x8xf32> to vector<8x8x8xf32>
    %23 = arith.mulf %21, %22 : vector<8x8x8xf32>
    "tpu.trace_start"() <{level = 10 : i32, message = "bsd,btd->bst"}> : () -> ()
    %cst_18 = arith.constant dense<0.000000e+00> : vector<8x8x8xf32>
    %24 = tpu.matmul %19, %20, %cst_18 {dimension_numbers = #tpu.dot_dimension_numbers<[2], [2], [1], [1], [0, 0, 0, 1, 1, 1], [0], [0]>} : vector<8x8x16xf32>, vector<8x8x16xf32>, vector<8x8x8xf32> -> vector<8x8x8xf32>
    %cst_19 = arith.constant dense<0.000000e+00> : vector<8x8x8xf32>
    %25 = tpu.matmul %20, %19, %cst_19 {dimension_numbers = #tpu.dot_dimension_numbers<[2], [2], [1], [1], [0, 0, 0, 1, 1, 1], [0], [0]>} : vector<8x8x16xf32>, vector<8x8x16xf32>, vector<8x8x8xf32> -> vector<8x8x8xf32>
    "tpu.trace_stop"() : () -> ()
    %26 = math.exp %24 : vector<8x8x8xf32>
    %27 = arith.mulf %26, %23 : vector<8x8x8xf32>
    %cst_20 = arith.constant 0.000000e+00 : f32
    %28 = vector.shape_cast %6 : vector<8x8xi1> to vector<1x8x8xi1>
    %29 = vector.broadcast %28 : vector<1x8x8xi1> to vector<8x8x8xi1>
    %30 = vector.broadcast %cst_20 : f32 to vector<8x8x8xf32>
    %31 = arith.select %29, %30, %27 : vector<8x8x8xi1>, vector<8x8x8xf32>
    %32 = math.exp %25 : vector<8x8x8xf32>
    %33 = arith.mulf %32, %23 : vector<8x8x8xf32>
    %cst_21 = arith.constant 0.000000e+00 : f32
    %34 = vector.shape_cast %6 : vector<8x8xi1> to vector<1x8x8xi1>
    %35 = vector.broadcast %34 : vector<1x8x8xi1> to vector<8x8x8xi1>
    %36 = vector.broadcast %cst_21 : f32 to vector<8x8x8xf32>
    %37 = arith.select %35, %36, %33 : vector<8x8x8xi1>, vector<8x8x8xf32>
    %c0_22 = arith.constant 0 : index
    %c0_23 = arith.constant 0 : index
    %38 = vector.load %arg8[%c0_22, %c0_23] : memref<1x16xf32, #tpu.memory_space<vmem>>, vector<1x16xf32>
    %39 = vector.shape_cast %38 : vector<1x16xf32> to vector<1x1x16xf32>
    %40 = vector.broadcast %39 : vector<1x1x16xf32> to vector<8x8x16xf32>
    %41 = arith.mulf %1, %40 : vector<8x8x16xf32>
    %cst_24 = arith.constant dense<0.000000e+00> : vector<8x8xf32>
    %42 = vector.multi_reduction <add>, %41, %cst_24 [2] : vector<8x8x16xf32> to vector<8x8xf32>
    %43 = vector.shape_cast %42 : vector<8x8xf32> to vector<8x8x1xf32>
    %44 = math.exp %43 : vector<8x8x1xf32>
    %45 = arith.mulf %44, %2 : vector<8x8x1xf32>
    %cst_25 = arith.constant dense<0.000000e+00> : vector<8x8xf32>
    %46 = vector.multi_reduction <add>, %31, %cst_25 [1] : vector<8x8x8xf32> to vector<8x8xf32>
    %47 = vector.shape_cast %46 : vector<8x8xf32> to vector<8x1x8xf32>
    %cst_26 = arith.constant dense<0.000000e+00> : vector<8x8xf32>
    %48 = vector.multi_reduction <add>, %37, %cst_26 [2] : vector<8x8x8xf32> to vector<8x8xf32>
    %49 = vector.shape_cast %48 : vector<8x8xf32> to vector<8x8x1xf32>
    %cst_27 = arith.constant 0.000000e+00 : f32
    %50 = vector.shape_cast %6 : vector<8x8xi1> to vector<1x8x8xi1>
    %51 = vector.broadcast %50 : vector<1x8x8xi1> to vector<8x8x8xi1>
    %52 = vector.shape_cast %45 : vector<8x8x1xf32> to vector<8x8x1xf32>
    %53 = vector.broadcast %52 : vector<8x8x1xf32> to vector<8x8x8xf32>
    %54 = vector.broadcast %cst_27 : f32 to vector<8x8x8xf32>
    %55 = arith.select %51, %53, %54 : vector<8x8x8xi1>, vector<8x8x8xf32>
    %cst_28 = arith.constant dense<0.000000e+00> : vector<8x8xf32>
    %56 = vector.multi_reduction <add>, %55, %cst_28 [1] : vector<8x8x8xf32> to vector<8x8xf32>
    %57 = vector.shape_cast %56 : vector<8x8xf32> to vector<8x1x8xf32>
    %cst_29 = arith.constant 0.000000e+00 : f32
    %58 = vector.broadcast %cst_29 : f32 to vector<8x8x8xf32>
    %59 = arith.subf %58, %31 : vector<8x8x8xf32>
    %60 = vector.shape_cast %6 : vector<8x8xi1> to vector<1x8x8xi1>
    %61 = vector.broadcast %60 : vector<1x8x8xi1> to vector<8x8x8xi1>
    %62 = vector.shape_cast %47 : vector<8x1x8xf32> to vector<8x1x8xf32>
    %63 = vector.broadcast %62 : vector<8x1x8xf32> to vector<8x8x8xf32>
    %64 = arith.select %61, %63, %59 : vector<8x8x8xi1>, vector<8x8x8xf32>
    %c0_i32 = arith.constant 0 : i32
    %65 = vector.broadcast %c0_i32 : i32 to vector<8x8xi32>
    %66 = arith.cmpi eq, %4, %65 : vector<8x8xi32>
    %67 = vector.shape_cast %66 : vector<8x8xi1> to vector<1x8x8xi1>
    %68 = vector.broadcast %67 : vector<1x8x8xi1> to vector<8x8x8xi1>
    %69 = vector.shape_cast %57 : vector<8x1x8xf32> to vector<8x1x8xf32>
    %70 = vector.broadcast %69 : vector<8x1x8xf32> to vector<8x8x8xf32>
    %71 = arith.select %68, %70, %64 : vector<8x8x8xi1>, vector<8x8x8xf32>
    %cst_30 = arith.constant 0.000000e+00 : f32
    %72 = vector.broadcast %cst_30 : f32 to vector<8x8x8xf32>
    %73 = arith.cmpf oeq, %71, %72 : vector<8x8x8xf32>
    %74 = vector.shape_cast %6 : vector<8x8xi1> to vector<1x8x8xi1>
    %75 = vector.broadcast %74 : vector<1x8x8xi1> to vector<8x8x8xi1>
    %76 = arith.andi %75, %73 : vector<8x8x8xi1>
    %cst_31 = arith.constant 1.000000e+00 : f32
    %77 = vector.broadcast %cst_31 : f32 to vector<8x8x8xf32>
    %78 = arith.select %76, %77, %71 : vector<8x8x8xi1>, vector<8x8x8xf32>
    %cst_32 = arith.constant 0.000000e+00 : f32
    %79 = vector.broadcast %cst_32 : f32 to vector<8x8x8xf32>
    %80 = arith.subf %79, %37 : vector<8x8x8xf32>
    %81 = vector.shape_cast %6 : vector<8x8xi1> to vector<1x8x8xi1>
    %82 = vector.broadcast %81 : vector<1x8x8xi1> to vector<8x8x8xi1>
    %83 = vector.shape_cast %49 : vector<8x8x1xf32> to vector<8x8x1xf32>
    %84 = vector.broadcast %83 : vector<8x8x1xf32> to vector<8x8x8xf32>
    %85 = arith.select %82, %84, %80 : vector<8x8x8xi1>, vector<8x8x8xf32>
    %c0_i32_33 = arith.constant 0 : i32
    %86 = vector.broadcast %c0_i32_33 : i32 to vector<8x8xi32>
    %87 = arith.cmpi eq, %5, %86 : vector<8x8xi32>
    %88 = vector.shape_cast %87 : vector<8x8xi1> to vector<1x8x8xi1>
    %89 = vector.broadcast %88 : vector<1x8x8xi1> to vector<8x8x8xi1>
    %90 = vector.shape_cast %45 : vector<8x8x1xf32> to vector<8x8x1xf32>
    %91 = vector.broadcast %90 : vector<8x8x1xf32> to vector<8x8x8xf32>
    %92 = arith.select %89, %91, %85 : vector<8x8x8xi1>, vector<8x8x8xf32>
    %cst_34 = arith.constant 0.000000e+00 : f32
    %93 = vector.broadcast %cst_34 : f32 to vector<8x8x8xf32>
    %94 = arith.cmpf oeq, %92, %93 : vector<8x8x8xf32>
    %95 = vector.shape_cast %6 : vector<8x8xi1> to vector<1x8x8xi1>
    %96 = vector.broadcast %95 : vector<1x8x8xi1> to vector<8x8x8xi1>
    %97 = arith.andi %96, %94 : vector<8x8x8xi1>
    %cst_35 = arith.constant 1.000000e+00 : f32
    %98 = vector.broadcast %cst_35 : f32 to vector<8x8x8xf32>
    %99 = arith.select %97, %98, %92 : vector<8x8x8xi1>, vector<8x8x8xf32>
    %100 = tpu.concatenate %78, %99 in 0 : vector<8x8x8xf32>, vector<8x8x8xf32> -> vector<16x8x8xf32>
    %cst_36 = arith.constant 1.000000e+00 : f32
    %cst_37 = arith.constant 0.000000e+00 : f32
    %101 = vector.broadcast %cst_36 : f32 to vector<8x8xf32>
    %102 = vector.broadcast %cst_37 : f32 to vector<8x8xf32>
    %103 = arith.select %6, %101, %102 : vector<8x8xi1>, vector<8x8xf32>
    %104 = vector.shape_cast %103 : vector<8x8xf32> to vector<1x8x8xf32>
    %105 = vector.broadcast %104 : vector<1x8x8xf32> to vector<16x8x8xf32>
    %106 = vector.extract_strided_slice %100 {offsets = [0, 0, 0], sizes = [16, 1, 8], strides = [1, 1, 1]} : vector<16x8x8xf32> to vector<16x1x8xf32>
    %107 = vector.extract_strided_slice %106 {offsets = [0, 0, 0], sizes = [16, 1, 1], strides = [1, 1, 1]} : vector<16x1x8xf32> to vector<16x1x1xf32>
    %cst_38 = arith.constant 1.000000e+00 : f32
    %108 = vector.broadcast %cst_38 : f32 to vector<16x1x1xf32>
    %109 = arith.divf %108, %107 : vector<16x1x1xf32>
    %110 = vector.broadcast %109 : vector<16x1x1xf32> to vector<16x1x8xf32>
    %111 = arith.mulf %106, %110 : vector<16x1x8xf32>
    %112 = vector.extract_strided_slice %105 {offsets = [0, 0, 0], sizes = [16, 1, 8], strides = [1, 1, 1]} : vector<16x8x8xf32> to vector<16x1x8xf32>
    %113 = vector.broadcast %109 : vector<16x1x1xf32> to vector<16x1x8xf32>
    %114 = arith.mulf %112, %113 : vector<16x1x8xf32>
    %c0_i32_39 = arith.constant 0 : i32
    %115 = vector.broadcast %c0_i32_39 : i32 to vector<8x1xi32>
    %116 = arith.cmpi eq, %7, %115 : vector<8x1xi32>
    %117 = vector.extract_strided_slice %100 {offsets = [0, 0, 0], sizes = [16, 8, 1], strides = [1, 1, 1]} : vector<16x8x8xf32> to vector<16x8x1xf32>
    %cst_40 = arith.constant 0.000000e+00 : f32
    %118 = vector.shape_cast %116 : vector<8x1xi1> to vector<1x8x1xi1>
    %119 = vector.broadcast %118 : vector<1x8x1xi1> to vector<16x8x1xi1>
    %120 = vector.broadcast %cst_40 : f32 to vector<16x8x1xf32>
    %121 = arith.select %119, %120, %117 : vector<16x8x1xi1>, vector<16x8x1xf32>
    %c0_i32_41 = arith.constant 0 : i32
    %122 = vector.broadcast %c0_i32_41 : i32 to vector<8x1xi32>
    %123 = arith.cmpi eq, %7, %122 : vector<8x1xi32>
    %124 = vector.broadcast %121 : vector<16x8x1xf32> to vector<16x8x8xf32>
    %125 = vector.broadcast %111 : vector<16x1x8xf32> to vector<16x8x8xf32>
    %126 = arith.mulf %124, %125 : vector<16x8x8xf32>
    %127 = arith.subf %100, %126 : vector<16x8x8xf32>
    %128 = vector.shape_cast %123 : vector<8x1xi1> to vector<1x8x1xi1>
    %129 = vector.broadcast %128 : vector<1x8x1xi1> to vector<16x8x8xi1>
    %130 = vector.shape_cast %111 : vector<16x1x8xf32> to vector<16x1x8xf32>
    %131 = vector.broadcast %130 : vector<16x1x8xf32> to vector<16x8x8xf32>
    %132 = arith.select %129, %131, %127 : vector<16x8x8xi1>, vector<16x8x8xf32>
    %c0_i32_42 = arith.constant 0 : i32
    %133 = vector.broadcast %c0_i32_42 : i32 to vector<8x1xi32>
    %134 = arith.cmpi eq, %7, %133 : vector<8x1xi32>
    %135 = vector.broadcast %121 : vector<16x8x1xf32> to vector<16x8x8xf32>
    %136 = vector.broadcast %114 : vector<16x1x8xf32> to vector<16x8x8xf32>
    %137 = arith.mulf %135, %136 : vector<16x8x8xf32>
    %138 = arith.subf %105, %137 : vector<16x8x8xf32>
    %139 = vector.shape_cast %134 : vector<8x1xi1> to vector<1x8x1xi1>
    %140 = vector.broadcast %139 : vector<1x8x1xi1> to vector<16x8x8xi1>
    %141 = vector.shape_cast %114 : vector<16x1x8xf32> to vector<16x1x8xf32>
    %142 = vector.broadcast %141 : vector<16x1x8xf32> to vector<16x8x8xf32>
    %143 = arith.select %140, %142, %138 : vector<16x8x8xi1>, vector<16x8x8xf32>
    %144 = vector.extract_strided_slice %132 {offsets = [0, 1, 0], sizes = [16, 1, 8], strides = [1, 1, 1]} : vector<16x8x8xf32> to vector<16x1x8xf32>
    %145 = vector.extract_strided_slice %144 {offsets = [0, 0, 1], sizes = [16, 1, 1], strides = [1, 1, 1]} : vector<16x1x8xf32> to vector<16x1x1xf32>
    %cst_43 = arith.constant 1.000000e+00 : f32
    %146 = vector.broadcast %cst_43 : f32 to vector<16x1x1xf32>
    %147 = arith.divf %146, %145 : vector<16x1x1xf32>
    %148 = vector.broadcast %147 : vector<16x1x1xf32> to vector<16x1x8xf32>
    %149 = arith.mulf %144, %148 : vector<16x1x8xf32>
    %150 = vector.extract_strided_slice %143 {offsets = [0, 1, 0], sizes = [16, 1, 8], strides = [1, 1, 1]} : vector<16x8x8xf32> to vector<16x1x8xf32>
    %151 = vector.broadcast %147 : vector<16x1x1xf32> to vector<16x1x8xf32>
    %152 = arith.mulf %150, %151 : vector<16x1x8xf32>
    %c1_i32 = arith.constant 1 : i32
    %153 = vector.broadcast %c1_i32 : i32 to vector<8x1xi32>
    %154 = arith.cmpi eq, %7, %153 : vector<8x1xi32>
    %155 = vector.extract_strided_slice %132 {offsets = [0, 0, 1], sizes = [16, 8, 1], strides = [1, 1, 1]} : vector<16x8x8xf32> to vector<16x8x1xf32>
    %cst_44 = arith.constant 0.000000e+00 : f32
    %156 = vector.shape_cast %154 : vector<8x1xi1> to vector<1x8x1xi1>
    %157 = vector.broadcast %156 : vector<1x8x1xi1> to vector<16x8x1xi1>
    %158 = vector.broadcast %cst_44 : f32 to vector<16x8x1xf32>
    %159 = arith.select %157, %158, %155 : vector<16x8x1xi1>, vector<16x8x1xf32>
    %c1_i32_45 = arith.constant 1 : i32
    %160 = vector.broadcast %c1_i32_45 : i32 to vector<8x1xi32>
    %161 = arith.cmpi eq, %7, %160 : vector<8x1xi32>
    %162 = vector.broadcast %159 : vector<16x8x1xf32> to vector<16x8x8xf32>
    %163 = vector.broadcast %149 : vector<16x1x8xf32> to vector<16x8x8xf32>
    %164 = arith.mulf %162, %163 : vector<16x8x8xf32>
    %165 = arith.subf %132, %164 : vector<16x8x8xf32>
    %166 = vector.shape_cast %161 : vector<8x1xi1> to vector<1x8x1xi1>
    %167 = vector.broadcast %166 : vector<1x8x1xi1> to vector<16x8x8xi1>
    %168 = vector.shape_cast %149 : vector<16x1x8xf32> to vector<16x1x8xf32>
    %169 = vector.broadcast %168 : vector<16x1x8xf32> to vector<16x8x8xf32>
    %170 = arith.select %167, %169, %165 : vector<16x8x8xi1>, vector<16x8x8xf32>
    %c1_i32_46 = arith.constant 1 : i32
    %171 = vector.broadcast %c1_i32_46 : i32 to vector<8x1xi32>
    %172 = arith.cmpi eq, %7, %171 : vector<8x1xi32>
    %173 = vector.broadcast %159 : vector<16x8x1xf32> to vector<16x8x8xf32>
    %174 = vector.broadcast %152 : vector<16x1x8xf32> to vector<16x8x8xf32>
    %175 = arith.mulf %173, %174 : vector<16x8x8xf32>
    %176 = arith.subf %143, %175 : vector<16x8x8xf32>
    %177 = vector.shape_cast %172 : vector<8x1xi1> to vector<1x8x1xi1>
    %178 = vector.broadcast %177 : vector<1x8x1xi1> to vector<16x8x8xi1>
    %179 = vector.shape_cast %152 : vector<16x1x8xf32> to vector<16x1x8xf32>
    %180 = vector.broadcast %179 : vector<16x1x8xf32> to vector<16x8x8xf32>
    %181 = arith.select %178, %180, %176 : vector<16x8x8xi1>, vector<16x8x8xf32>
    %182 = vector.extract_strided_slice %170 {offsets = [0, 2, 0], sizes = [16, 1, 8], strides = [1, 1, 1]} : vector<16x8x8xf32> to vector<16x1x8xf32>
    %183 = vector.extract_strided_slice %182 {offsets = [0, 0, 2], sizes = [16, 1, 1], strides = [1, 1, 1]} : vector<16x1x8xf32> to vector<16x1x1xf32>
    %cst_47 = arith.constant 1.000000e+00 : f32
    %184 = vector.broadcast %cst_47 : f32 to vector<16x1x1xf32>
    %185 = arith.divf %184, %183 : vector<16x1x1xf32>
    %186 = vector.broadcast %185 : vector<16x1x1xf32> to vector<16x1x8xf32>
    %187 = arith.mulf %182, %186 : vector<16x1x8xf32>
    %188 = vector.extract_strided_slice %181 {offsets = [0, 2, 0], sizes = [16, 1, 8], strides = [1, 1, 1]} : vector<16x8x8xf32> to vector<16x1x8xf32>
    %189 = vector.broadcast %185 : vector<16x1x1xf32> to vector<16x1x8xf32>
    %190 = arith.mulf %188, %189 : vector<16x1x8xf32>
    %c2_i32 = arith.constant 2 : i32
    %191 = vector.broadcast %c2_i32 : i32 to vector<8x1xi32>
    %192 = arith.cmpi eq, %7, %191 : vector<8x1xi32>
    %193 = vector.extract_strided_slice %170 {offsets = [0, 0, 2], sizes = [16, 8, 1], strides = [1, 1, 1]} : vector<16x8x8xf32> to vector<16x8x1xf32>
    %cst_48 = arith.constant 0.000000e+00 : f32
    %194 = vector.shape_cast %192 : vector<8x1xi1> to vector<1x8x1xi1>
    %195 = vector.broadcast %194 : vector<1x8x1xi1> to vector<16x8x1xi1>
    %196 = vector.broadcast %cst_48 : f32 to vector<16x8x1xf32>
    %197 = arith.select %195, %196, %193 : vector<16x8x1xi1>, vector<16x8x1xf32>
    %c2_i32_49 = arith.constant 2 : i32
    %198 = vector.broadcast %c2_i32_49 : i32 to vector<8x1xi32>
    %199 = arith.cmpi eq, %7, %198 : vector<8x1xi32>
    %200 = vector.broadcast %197 : vector<16x8x1xf32> to vector<16x8x8xf32>
    %201 = vector.broadcast %187 : vector<16x1x8xf32> to vector<16x8x8xf32>
    %202 = arith.mulf %200, %201 : vector<16x8x8xf32>
    %203 = arith.subf %170, %202 : vector<16x8x8xf32>
    %204 = vector.shape_cast %199 : vector<8x1xi1> to vector<1x8x1xi1>
    %205 = vector.broadcast %204 : vector<1x8x1xi1> to vector<16x8x8xi1>
    %206 = vector.shape_cast %187 : vector<16x1x8xf32> to vector<16x1x8xf32>
    %207 = vector.broadcast %206 : vector<16x1x8xf32> to vector<16x8x8xf32>
    %208 = arith.select %205, %207, %203 : vector<16x8x8xi1>, vector<16x8x8xf32>
    %c2_i32_50 = arith.constant 2 : i32
    %209 = vector.broadcast %c2_i32_50 : i32 to vector<8x1xi32>
    %210 = arith.cmpi eq, %7, %209 : vector<8x1xi32>
    %211 = vector.broadcast %197 : vector<16x8x1xf32> to vector<16x8x8xf32>
    %212 = vector.broadcast %190 : vector<16x1x8xf32> to vector<16x8x8xf32>
    %213 = arith.mulf %211, %212 : vector<16x8x8xf32>
    %214 = arith.subf %181, %213 : vector<16x8x8xf32>
    %215 = vector.shape_cast %210 : vector<8x1xi1> to vector<1x8x1xi1>
    %216 = vector.broadcast %215 : vector<1x8x1xi1> to vector<16x8x8xi1>
    %217 = vector.shape_cast %190 : vector<16x1x8xf32> to vector<16x1x8xf32>
    %218 = vector.broadcast %217 : vector<16x1x8xf32> to vector<16x8x8xf32>
    %219 = arith.select %216, %218, %214 : vector<16x8x8xi1>, vector<16x8x8xf32>
    %220 = vector.extract_strided_slice %208 {offsets = [0, 3, 0], sizes = [16, 1, 8], strides = [1, 1, 1]} : vector<16x8x8xf32> to vector<16x1x8xf32>
    %221 = vector.extract_strided_slice %220 {offsets = [0, 0, 3], sizes = [16, 1, 1], strides = [1, 1, 1]} : vector<16x1x8xf32> to vector<16x1x1xf32>
    %cst_51 = arith.constant 1.000000e+00 : f32
    %222 = vector.broadcast %cst_51 : f32 to vector<16x1x1xf32>
    %223 = arith.divf %222, %221 : vector<16x1x1xf32>
    %224 = vector.broadcast %223 : vector<16x1x1xf32> to vector<16x1x8xf32>
    %225 = arith.mulf %220, %224 : vector<16x1x8xf32>
    %226 = vector.extract_strided_slice %219 {offsets = [0, 3, 0], sizes = [16, 1, 8], strides = [1, 1, 1]} : vector<16x8x8xf32> to vector<16x1x8xf32>
    %227 = vector.broadcast %223 : vector<16x1x1xf32> to vector<16x1x8xf32>
    %228 = arith.mulf %226, %227 : vector<16x1x8xf32>
    %c3_i32 = arith.constant 3 : i32
    %229 = vector.broadcast %c3_i32 : i32 to vector<8x1xi32>
    %230 = arith.cmpi eq, %7, %229 : vector<8x1xi32>
    %231 = vector.extract_strided_slice %208 {offsets = [0, 0, 3], sizes = [16, 8, 1], strides = [1, 1, 1]} : vector<16x8x8xf32> to vector<16x8x1xf32>
    %cst_52 = arith.constant 0.000000e+00 : f32
    %232 = vector.shape_cast %230 : vector<8x1xi1> to vector<1x8x1xi1>
    %233 = vector.broadcast %232 : vector<1x8x1xi1> to vector<16x8x1xi1>
    %234 = vector.broadcast %cst_52 : f32 to vector<16x8x1xf32>
    %235 = arith.select %233, %234, %231 : vector<16x8x1xi1>, vector<16x8x1xf32>
    %c3_i32_53 = arith.constant 3 : i32
    %236 = vector.broadcast %c3_i32_53 : i32 to vector<8x1xi32>
    %237 = arith.cmpi eq, %7, %236 : vector<8x1xi32>
    %238 = vector.broadcast %235 : vector<16x8x1xf32> to vector<16x8x8xf32>
    %239 = vector.broadcast %225 : vector<16x1x8xf32> to vector<16x8x8xf32>
    %240 = arith.mulf %238, %239 : vector<16x8x8xf32>
    %241 = arith.subf %208, %240 : vector<16x8x8xf32>
    %242 = vector.shape_cast %237 : vector<8x1xi1> to vector<1x8x1xi1>
    %243 = vector.broadcast %242 : vector<1x8x1xi1> to vector<16x8x8xi1>
    %244 = vector.shape_cast %225 : vector<16x1x8xf32> to vector<16x1x8xf32>
    %245 = vector.broadcast %244 : vector<16x1x8xf32> to vector<16x8x8xf32>
    %246 = arith.select %243, %245, %241 : vector<16x8x8xi1>, vector<16x8x8xf32>
    %c3_i32_54 = arith.constant 3 : i32
    %247 = vector.broadcast %c3_i32_54 : i32 to vector<8x1xi32>
    %248 = arith.cmpi eq, %7, %247 : vector<8x1xi32>
    %249 = vector.broadcast %235 : vector<16x8x1xf32> to vector<16x8x8xf32>
    %250 = vector.broadcast %228 : vector<16x1x8xf32> to vector<16x8x8xf32>
    %251 = arith.mulf %249, %250 : vector<16x8x8xf32>
    %252 = arith.subf %219, %251 : vector<16x8x8xf32>
    %253 = vector.shape_cast %248 : vector<8x1xi1> to vector<1x8x1xi1>
    %254 = vector.broadcast %253 : vector<1x8x1xi1> to vector<16x8x8xi1>
    %255 = vector.shape_cast %228 : vector<16x1x8xf32> to vector<16x1x8xf32>
    %256 = vector.broadcast %255 : vector<16x1x8xf32> to vector<16x8x8xf32>
    %257 = arith.select %254, %256, %252 : vector<16x8x8xi1>, vector<16x8x8xf32>
    %258 = vector.extract_strided_slice %246 {offsets = [0, 4, 0], sizes = [16, 1, 8], strides = [1, 1, 1]} : vector<16x8x8xf32> to vector<16x1x8xf32>
    %259 = vector.extract_strided_slice %258 {offsets = [0, 0, 4], sizes = [16, 1, 1], strides = [1, 1, 1]} : vector<16x1x8xf32> to vector<16x1x1xf32>
    %cst_55 = arith.constant 1.000000e+00 : f32
    %260 = vector.broadcast %cst_55 : f32 to vector<16x1x1xf32>
    %261 = arith.divf %260, %259 : vector<16x1x1xf32>
    %262 = vector.broadcast %261 : vector<16x1x1xf32> to vector<16x1x8xf32>
    %263 = arith.mulf %258, %262 : vector<16x1x8xf32>
    %264 = vector.extract_strided_slice %257 {offsets = [0, 4, 0], sizes = [16, 1, 8], strides = [1, 1, 1]} : vector<16x8x8xf32> to vector<16x1x8xf32>
    %265 = vector.broadcast %261 : vector<16x1x1xf32> to vector<16x1x8xf32>
    %266 = arith.mulf %264, %265 : vector<16x1x8xf32>
    %c4_i32 = arith.constant 4 : i32
    %267 = vector.broadcast %c4_i32 : i32 to vector<8x1xi32>
    %268 = arith.cmpi eq, %7, %267 : vector<8x1xi32>
    %269 = vector.extract_strided_slice %246 {offsets = [0, 0, 4], sizes = [16, 8, 1], strides = [1, 1, 1]} : vector<16x8x8xf32> to vector<16x8x1xf32>
    %cst_56 = arith.constant 0.000000e+00 : f32
    %270 = vector.shape_cast %268 : vector<8x1xi1> to vector<1x8x1xi1>
    %271 = vector.broadcast %270 : vector<1x8x1xi1> to vector<16x8x1xi1>
    %272 = vector.broadcast %cst_56 : f32 to vector<16x8x1xf32>
    %273 = arith.select %271, %272, %269 : vector<16x8x1xi1>, vector<16x8x1xf32>
    %c4_i32_57 = arith.constant 4 : i32
    %274 = vector.broadcast %c4_i32_57 : i32 to vector<8x1xi32>
    %275 = arith.cmpi eq, %7, %274 : vector<8x1xi32>
    %276 = vector.broadcast %273 : vector<16x8x1xf32> to vector<16x8x8xf32>
    %277 = vector.broadcast %263 : vector<16x1x8xf32> to vector<16x8x8xf32>
    %278 = arith.mulf %276, %277 : vector<16x8x8xf32>
    %279 = arith.subf %246, %278 : vector<16x8x8xf32>
    %280 = vector.shape_cast %275 : vector<8x1xi1> to vector<1x8x1xi1>
    %281 = vector.broadcast %280 : vector<1x8x1xi1> to vector<16x8x8xi1>
    %282 = vector.shape_cast %263 : vector<16x1x8xf32> to vector<16x1x8xf32>
    %283 = vector.broadcast %282 : vector<16x1x8xf32> to vector<16x8x8xf32>
    %284 = arith.select %281, %283, %279 : vector<16x8x8xi1>, vector<16x8x8xf32>
    %c4_i32_58 = arith.constant 4 : i32
    %285 = vector.broadcast %c4_i32_58 : i32 to vector<8x1xi32>
    %286 = arith.cmpi eq, %7, %285 : vector<8x1xi32>
    %287 = vector.broadcast %273 : vector<16x8x1xf32> to vector<16x8x8xf32>
    %288 = vector.broadcast %266 : vector<16x1x8xf32> to vector<16x8x8xf32>
    %289 = arith.mulf %287, %288 : vector<16x8x8xf32>
    %290 = arith.subf %257, %289 : vector<16x8x8xf32>
    %291 = vector.shape_cast %286 : vector<8x1xi1> to vector<1x8x1xi1>
    %292 = vector.broadcast %291 : vector<1x8x1xi1> to vector<16x8x8xi1>
    %293 = vector.shape_cast %266 : vector<16x1x8xf32> to vector<16x1x8xf32>
    %294 = vector.broadcast %293 : vector<16x1x8xf32> to vector<16x8x8xf32>
    %295 = arith.select %292, %294, %290 : vector<16x8x8xi1>, vector<16x8x8xf32>
    %296 = vector.extract_strided_slice %284 {offsets = [0, 5, 0], sizes = [16, 1, 8], strides = [1, 1, 1]} : vector<16x8x8xf32> to vector<16x1x8xf32>
    %297 = vector.extract_strided_slice %296 {offsets = [0, 0, 5], sizes = [16, 1, 1], strides = [1, 1, 1]} : vector<16x1x8xf32> to vector<16x1x1xf32>
    %cst_59 = arith.constant 1.000000e+00 : f32
    %298 = vector.broadcast %cst_59 : f32 to vector<16x1x1xf32>
    %299 = arith.divf %298, %297 : vector<16x1x1xf32>
    %300 = vector.broadcast %299 : vector<16x1x1xf32> to vector<16x1x8xf32>
    %301 = arith.mulf %296, %300 : vector<16x1x8xf32>
    %302 = vector.extract_strided_slice %295 {offsets = [0, 5, 0], sizes = [16, 1, 8], strides = [1, 1, 1]} : vector<16x8x8xf32> to vector<16x1x8xf32>
    %303 = vector.broadcast %299 : vector<16x1x1xf32> to vector<16x1x8xf32>
    %304 = arith.mulf %302, %303 : vector<16x1x8xf32>
    %c5_i32 = arith.constant 5 : i32
    %305 = vector.broadcast %c5_i32 : i32 to vector<8x1xi32>
    %306 = arith.cmpi eq, %7, %305 : vector<8x1xi32>
    %307 = vector.extract_strided_slice %284 {offsets = [0, 0, 5], sizes = [16, 8, 1], strides = [1, 1, 1]} : vector<16x8x8xf32> to vector<16x8x1xf32>
    %cst_60 = arith.constant 0.000000e+00 : f32
    %308 = vector.shape_cast %306 : vector<8x1xi1> to vector<1x8x1xi1>
    %309 = vector.broadcast %308 : vector<1x8x1xi1> to vector<16x8x1xi1>
    %310 = vector.broadcast %cst_60 : f32 to vector<16x8x1xf32>
    %311 = arith.select %309, %310, %307 : vector<16x8x1xi1>, vector<16x8x1xf32>
    %c5_i32_61 = arith.constant 5 : i32
    %312 = vector.broadcast %c5_i32_61 : i32 to vector<8x1xi32>
    %313 = arith.cmpi eq, %7, %312 : vector<8x1xi32>
    %314 = vector.broadcast %311 : vector<16x8x1xf32> to vector<16x8x8xf32>
    %315 = vector.broadcast %301 : vector<16x1x8xf32> to vector<16x8x8xf32>
    %316 = arith.mulf %314, %315 : vector<16x8x8xf32>
    %317 = arith.subf %284, %316 : vector<16x8x8xf32>
    %318 = vector.shape_cast %313 : vector<8x1xi1> to vector<1x8x1xi1>
    %319 = vector.broadcast %318 : vector<1x8x1xi1> to vector<16x8x8xi1>
    %320 = vector.shape_cast %301 : vector<16x1x8xf32> to vector<16x1x8xf32>
    %321 = vector.broadcast %320 : vector<16x1x8xf32> to vector<16x8x8xf32>
    %322 = arith.select %319, %321, %317 : vector<16x8x8xi1>, vector<16x8x8xf32>
    %c5_i32_62 = arith.constant 5 : i32
    %323 = vector.broadcast %c5_i32_62 : i32 to vector<8x1xi32>
    %324 = arith.cmpi eq, %7, %323 : vector<8x1xi32>
    %325 = vector.broadcast %311 : vector<16x8x1xf32> to vector<16x8x8xf32>
    %326 = vector.broadcast %304 : vector<16x1x8xf32> to vector<16x8x8xf32>
    %327 = arith.mulf %325, %326 : vector<16x8x8xf32>
    %328 = arith.subf %295, %327 : vector<16x8x8xf32>
    %329 = vector.shape_cast %324 : vector<8x1xi1> to vector<1x8x1xi1>
    %330 = vector.broadcast %329 : vector<1x8x1xi1> to vector<16x8x8xi1>
    %331 = vector.shape_cast %304 : vector<16x1x8xf32> to vector<16x1x8xf32>
    %332 = vector.broadcast %331 : vector<16x1x8xf32> to vector<16x8x8xf32>
    %333 = arith.select %330, %332, %328 : vector<16x8x8xi1>, vector<16x8x8xf32>
    %334 = vector.extract_strided_slice %322 {offsets = [0, 6, 0], sizes = [16, 1, 8], strides = [1, 1, 1]} : vector<16x8x8xf32> to vector<16x1x8xf32>
    %335 = vector.extract_strided_slice %334 {offsets = [0, 0, 6], sizes = [16, 1, 1], strides = [1, 1, 1]} : vector<16x1x8xf32> to vector<16x1x1xf32>
    %cst_63 = arith.constant 1.000000e+00 : f32
    %336 = vector.broadcast %cst_63 : f32 to vector<16x1x1xf32>
    %337 = arith.divf %336, %335 : vector<16x1x1xf32>
    %338 = vector.broadcast %337 : vector<16x1x1xf32> to vector<16x1x8xf32>
    %339 = arith.mulf %334, %338 : vector<16x1x8xf32>
    %340 = vector.extract_strided_slice %333 {offsets = [0, 6, 0], sizes = [16, 1, 8], strides = [1, 1, 1]} : vector<16x8x8xf32> to vector<16x1x8xf32>
    %341 = vector.broadcast %337 : vector<16x1x1xf32> to vector<16x1x8xf32>
    %342 = arith.mulf %340, %341 : vector<16x1x8xf32>
    %c6_i32 = arith.constant 6 : i32
    %343 = vector.broadcast %c6_i32 : i32 to vector<8x1xi32>
    %344 = arith.cmpi eq, %7, %343 : vector<8x1xi32>
    %345 = vector.extract_strided_slice %322 {offsets = [0, 0, 6], sizes = [16, 8, 1], strides = [1, 1, 1]} : vector<16x8x8xf32> to vector<16x8x1xf32>
    %cst_64 = arith.constant 0.000000e+00 : f32
    %346 = vector.shape_cast %344 : vector<8x1xi1> to vector<1x8x1xi1>
    %347 = vector.broadcast %346 : vector<1x8x1xi1> to vector<16x8x1xi1>
    %348 = vector.broadcast %cst_64 : f32 to vector<16x8x1xf32>
    %349 = arith.select %347, %348, %345 : vector<16x8x1xi1>, vector<16x8x1xf32>
    %c6_i32_65 = arith.constant 6 : i32
    %350 = vector.broadcast %c6_i32_65 : i32 to vector<8x1xi32>
    %351 = arith.cmpi eq, %7, %350 : vector<8x1xi32>
    %352 = vector.broadcast %349 : vector<16x8x1xf32> to vector<16x8x8xf32>
    %353 = vector.broadcast %339 : vector<16x1x8xf32> to vector<16x8x8xf32>
    %354 = arith.mulf %352, %353 : vector<16x8x8xf32>
    %355 = arith.subf %322, %354 : vector<16x8x8xf32>
    %356 = vector.shape_cast %351 : vector<8x1xi1> to vector<1x8x1xi1>
    %357 = vector.broadcast %356 : vector<1x8x1xi1> to vector<16x8x8xi1>
    %358 = vector.shape_cast %339 : vector<16x1x8xf32> to vector<16x1x8xf32>
    %359 = vector.broadcast %358 : vector<16x1x8xf32> to vector<16x8x8xf32>
    %360 = arith.select %357, %359, %355 : vector<16x8x8xi1>, vector<16x8x8xf32>
    %c6_i32_66 = arith.constant 6 : i32
    %361 = vector.broadcast %c6_i32_66 : i32 to vector<8x1xi32>
    %362 = arith.cmpi eq, %7, %361 : vector<8x1xi32>
    %363 = vector.broadcast %349 : vector<16x8x1xf32> to vector<16x8x8xf32>
    %364 = vector.broadcast %342 : vector<16x1x8xf32> to vector<16x8x8xf32>
    %365 = arith.mulf %363, %364 : vector<16x8x8xf32>
    %366 = arith.subf %333, %365 : vector<16x8x8xf32>
    %367 = vector.shape_cast %362 : vector<8x1xi1> to vector<1x8x1xi1>
    %368 = vector.broadcast %367 : vector<1x8x1xi1> to vector<16x8x8xi1>
    %369 = vector.shape_cast %342 : vector<16x1x8xf32> to vector<16x1x8xf32>
    %370 = vector.broadcast %369 : vector<16x1x8xf32> to vector<16x8x8xf32>
    %371 = arith.select %368, %370, %366 : vector<16x8x8xi1>, vector<16x8x8xf32>
    %372 = vector.extract_strided_slice %360 {offsets = [0, 7, 0], sizes = [16, 1, 8], strides = [1, 1, 1]} : vector<16x8x8xf32> to vector<16x1x8xf32>
    %373 = vector.extract_strided_slice %372 {offsets = [0, 0, 7], sizes = [16, 1, 1], strides = [1, 1, 1]} : vector<16x1x8xf32> to vector<16x1x1xf32>
    %cst_67 = arith.constant 1.000000e+00 : f32
    %374 = vector.broadcast %cst_67 : f32 to vector<16x1x1xf32>
    %375 = arith.divf %374, %373 : vector<16x1x1xf32>
    %376 = vector.extract_strided_slice %371 {offsets = [0, 7, 0], sizes = [16, 1, 8], strides = [1, 1, 1]} : vector<16x8x8xf32> to vector<16x1x8xf32>
    %377 = vector.broadcast %375 : vector<16x1x1xf32> to vector<16x1x8xf32>
    %378 = arith.mulf %376, %377 : vector<16x1x8xf32>
    %c7_i32 = arith.constant 7 : i32
    %379 = vector.broadcast %c7_i32 : i32 to vector<8x1xi32>
    %380 = arith.cmpi eq, %7, %379 : vector<8x1xi32>
    %381 = vector.extract_strided_slice %360 {offsets = [0, 0, 7], sizes = [16, 8, 1], strides = [1, 1, 1]} : vector<16x8x8xf32> to vector<16x8x1xf32>
    %cst_68 = arith.constant 0.000000e+00 : f32
    %382 = vector.shape_cast %380 : vector<8x1xi1> to vector<1x8x1xi1>
    %383 = vector.broadcast %382 : vector<1x8x1xi1> to vector<16x8x1xi1>
    %384 = vector.broadcast %cst_68 : f32 to vector<16x8x1xf32>
    %385 = arith.select %383, %384, %381 : vector<16x8x1xi1>, vector<16x8x1xf32>
    %c7_i32_69 = arith.constant 7 : i32
    %386 = vector.broadcast %c7_i32_69 : i32 to vector<8x1xi32>
    %387 = arith.cmpi eq, %7, %386 : vector<8x1xi32>
    %388 = vector.broadcast %385 : vector<16x8x1xf32> to vector<16x8x8xf32>
    %389 = vector.broadcast %378 : vector<16x1x8xf32> to vector<16x8x8xf32>
    %390 = arith.mulf %388, %389 : vector<16x8x8xf32>
    %391 = arith.subf %371, %390 : vector<16x8x8xf32>
    %392 = vector.shape_cast %387 : vector<8x1xi1> to vector<1x8x1xi1>
    %393 = vector.broadcast %392 : vector<1x8x1xi1> to vector<16x8x8xi1>
    %394 = vector.shape_cast %378 : vector<16x1x8xf32> to vector<16x1x8xf32>
    %395 = vector.broadcast %394 : vector<16x1x8xf32> to vector<16x8x8xf32>
    %396 = arith.select %393, %395, %391 : vector<16x8x8xi1>, vector<16x8x8xf32>
    %397 = vector.extract_strided_slice %396 {offsets = [0, 0, 0], sizes = [8, 8, 8], strides = [1, 1, 1]} : vector<16x8x8xf32> to vector<8x8x8xf32>
    %398 = vector.extract_strided_slice %396 {offsets = [8, 0, 0], sizes = [8, 8, 8], strides = [1, 1, 1]} : vector<16x8x8xf32> to vector<8x8x8xf32>
    %399 = vector.extract_strided_slice %397 {offsets = [0, 0, 0], sizes = [8, 8, 1], strides = [1, 1, 1]} : vector<8x8x8xf32> to vector<8x8x1xf32>
    %400 = arith.mulf %45, %399 : vector<8x8x1xf32>
    %cst_70 = arith.constant 0.000000e+00 : f32
    %401 = vector.shape_cast %6 : vector<8x8xi1> to vector<1x8x8xi1>
    %402 = vector.broadcast %401 : vector<1x8x8xi1> to vector<8x8x8xi1>
    %403 = vector.broadcast %cst_70 : f32 to vector<8x8x8xf32>
    %404 = arith.select %402, %397, %403 : vector<8x8x8xi1>, vector<8x8x8xf32>
    %cst_71 = arith.constant dense<0.000000e+00> : vector<8x8xf32>
    %405 = vector.multi_reduction <add>, %404, %cst_71 [1] : vector<8x8x8xf32> to vector<8x8xf32>
    %406 = vector.shape_cast %405 : vector<8x8xf32> to vector<8x1x8xf32>
    %cst_72 = arith.constant 0.000000e+00 : f32
    %407 = vector.shape_cast %6 : vector<8x8xi1> to vector<1x8x8xi1>
    %408 = vector.broadcast %407 : vector<1x8x8xi1> to vector<8x8x8xi1>
    %409 = vector.broadcast %cst_72 : f32 to vector<8x8x8xf32>
    %410 = arith.select %408, %397, %409 : vector<8x8x8xi1>, vector<8x8x8xf32>
    %cst_73 = arith.constant dense<0.000000e+00> : vector<8x8xf32>
    %411 = vector.multi_reduction <add>, %410, %cst_73 [2] : vector<8x8x8xf32> to vector<8x8xf32>
    %412 = vector.shape_cast %411 : vector<8x8xf32> to vector<8x8x1xf32>
    %c0_i32_74 = arith.constant 0 : i32
    %413 = vector.broadcast %c0_i32_74 : i32 to vector<8x8xi32>
    %414 = arith.cmpi eq, %5, %413 : vector<8x8xi32>
    %415 = vector.broadcast %406 : vector<8x1x8xf32> to vector<8x8x8xf32>
    %416 = arith.mulf %31, %415 : vector<8x8x8xf32>
    %cst_75 = arith.constant 0.000000e+00 : f32
    %417 = vector.shape_cast %414 : vector<8x8xi1> to vector<1x8x8xi1>
    %418 = vector.broadcast %417 : vector<1x8x8xi1> to vector<8x8x8xi1>
    %419 = vector.broadcast %cst_75 : f32 to vector<8x8x8xf32>
    %420 = arith.select %418, %419, %416 : vector<8x8x8xi1>, vector<8x8x8xf32>
    %c0_i32_76 = arith.constant 0 : i32
    %421 = vector.broadcast %c0_i32_76 : i32 to vector<8x8xi32>
    %422 = arith.cmpi eq, %4, %421 : vector<8x8xi32>
    %423 = arith.mulf %31, %398 : vector<8x8x8xf32>
    %cst_77 = arith.constant 0.000000e+00 : f32
    %424 = vector.shape_cast %422 : vector<8x8xi1> to vector<1x8x8xi1>
    %425 = vector.broadcast %424 : vector<1x8x8xi1> to vector<8x8x8xi1>
    %426 = vector.broadcast %cst_77 : f32 to vector<8x8x8xf32>
    %427 = arith.select %425, %426, %423 : vector<8x8x8xi1>, vector<8x8x8xf32>
    %428 = arith.subf %420, %427 : vector<8x8x8xf32>
    %c0_i32_78 = arith.constant 0 : i32
    %429 = vector.broadcast %c0_i32_78 : i32 to vector<8x8xi32>
    %430 = arith.cmpi eq, %4, %429 : vector<8x8xi32>
    %431 = vector.broadcast %412 : vector<8x8x1xf32> to vector<8x8x8xf32>
    %432 = arith.mulf %37, %431 : vector<8x8x8xf32>
    %cst_79 = arith.constant 0.000000e+00 : f32
    %433 = vector.shape_cast %430 : vector<8x8xi1> to vector<1x8x8xi1>
    %434 = vector.broadcast %433 : vector<1x8x8xi1> to vector<8x8x8xi1>
    %435 = vector.broadcast %cst_79 : f32 to vector<8x8x8xf32>
    %436 = arith.select %434, %435, %432 : vector<8x8x8xi1>, vector<8x8x8xf32>
    %c0_i32_80 = arith.constant 0 : i32
    %437 = vector.broadcast %c0_i32_80 : i32 to vector<8x8xi32>
    %438 = arith.cmpi eq, %5, %437 : vector<8x8xi32>
    %439 = arith.mulf %37, %397 : vector<8x8x8xf32>
    %cst_81 = arith.constant 0.000000e+00 : f32
    %440 = vector.shape_cast %438 : vector<8x8xi1> to vector<1x8x8xi1>
    %441 = vector.broadcast %440 : vector<1x8x8xi1> to vector<8x8x8xi1>
    %442 = vector.broadcast %cst_81 : f32 to vector<8x8x8xf32>
    %443 = arith.select %441, %442, %439 : vector<8x8x8xi1>, vector<8x8x8xf32>
    %444 = arith.subf %436, %443 : vector<8x8x8xf32>
    "tpu.trace_start"() <{level = 10 : i32, message = "bst,btd->bsd"}> : () -> ()
    %cst_82 = arith.constant dense<0.000000e+00> : vector<8x8x32xf32>
    %445 = tpu.matmul %428, %0, %cst_82 {dimension_numbers = #tpu.dot_dimension_numbers<[2], [1], [1], [2], [0, 0, 0, 1, 1, 2], [0], [0]>} : vector<8x8x8xf32>, vector<8x8x32xf32>, vector<8x8x32xf32> -> vector<8x8x32xf32>
    "tpu.trace_stop"() : () -> ()
    %c0_83 = arith.constant 0 : index
    %c0_84 = arith.constant 0 : index
    %446 = vector.load %arg9[%c0_83, %c0_84] : memref<1x32xf32, #tpu.memory_space<vmem>>, vector<1x32xf32>
    %447 = vector.shape_cast %446 : vector<1x32xf32> to vector<1x1x32xf32>
    %448 = vector.broadcast %400 : vector<8x8x1xf32> to vector<8x8x32xf32>
    %449 = vector.broadcast %447 : vector<1x1x32xf32> to vector<8x8x32xf32>
    %450 = arith.mulf %448, %449 : vector<8x8x32xf32>
    "tpu.trace_start"() <{level = 10 : i32, message = "bst,btd->bsd"}> : () -> ()
    %cst_85 = arith.constant dense<0.000000e+00> : vector<8x8x32xf32>
    %451 = tpu.matmul %444, %0, %cst_85 {dimension_numbers = #tpu.dot_dimension_numbers<[2], [1], [1], [2], [0, 0, 0, 1, 1, 2], [0], [0]>} : vector<8x8x8xf32>, vector<8x8x32xf32>, vector<8x8x32xf32> -> vector<8x8x32xf32>
    "tpu.trace_stop"() : () -> ()
    %452 = arith.addf %450, %451 : vector<8x8x32xf32>
    %453 = vector.shape_cast %0 : vector<8x8x32xf32> to vector<64x32xf32>
    %454 = vector.shape_cast %452 : vector<8x8x32xf32> to vector<64x32xf32>
    %455 = vector.shape_cast %445 : vector<8x8x32xf32> to vector<64x32xf32>
    %456 = tpu.concatenate %453, %454, %455 in 1 : vector<64x32xf32>, vector<64x32xf32>, vector<64x32xf32> -> vector<64x96xf32>
    %c0_86 = arith.constant 0 : index
    %c0_87 = arith.constant 0 : index
    %457 = vector.load %arg10[%c0_86, %c0_87] : memref<96x32xf32, #tpu.memory_space<vmem>>, vector<96x32xf32>
    %cst_88 = arith.constant dense<0.000000e+00> : vector<64x32xf32>
    %458 = tpu.matmul %456, %457, %cst_88 {dimension_numbers = #tpu.dot_dimension_numbers<[1], [0], [0], [1], [0, 0, 1, 1], [], []>} : vector<64x96xf32>, vector<96x32xf32>, vector<64x32xf32> -> vector<64x32xf32>
    %c0_89 = arith.constant 0 : index
    %c0_90 = arith.constant 0 : index
    %459 = vector.load %arg11[%c0_89, %c0_90] : memref<1x32xf32, #tpu.memory_space<vmem>>, vector<1x32xf32>
    %460 = vector.broadcast %459 : vector<1x32xf32> to vector<64x32xf32>
    %461 = arith.addf %458, %460 : vector<64x32xf32>
    %462 = math.tanh %461 : vector<64x32xf32>
    %463 = vector.shape_cast %2 : vector<8x8x1xf32> to vector<64x1xf32>
    %464 = vector.broadcast %463 : vector<64x1xf32> to vector<64x32xf32>
    %465 = arith.mulf %462, %464 : vector<64x32xf32>
    %c0_91 = arith.constant 0 : index
    %c0_92 = arith.constant 0 : index
    %466 = vector.load %arg12[%c0_91, %c0_92] : memref<64x32xf32, #tpu.memory_space<vmem>>, vector<64x32xf32>
    tpu.vector_store %arg12[%c0_91, %c0_92], %465 {strides = array<i32>} : memref<64x32xf32, #tpu.memory_space<vmem>>, vector<64x32xf32>,
    return
  }
  func.func @transform_0(%arg0: i32) -> (i32, i32, i32) {
    %c0_i32 = arith.constant 0 : i32
    %c0_i32_0 = arith.constant 0 : i32
    %c0_i32_1 = arith.constant 0 : i32
    return %arg0, %c0_i32, %c0_i32_0 : i32, i32, i32
  }
  func.func @transform_1(%arg0: i32) -> (i32, i32, i32) {
    %c0_i32 = arith.constant 0 : i32
    %c0_i32_0 = arith.constant 0 : i32
    %c0_i32_1 = arith.constant 0 : i32
    return %arg0, %c0_i32, %c0_i32_0 : i32, i32, i32
  }
  func.func @transform_2(%arg0: i32) -> (i32, i32, i32) {
    %c0_i32 = arith.constant 0 : i32
    %c0_i32_0 = arith.constant 0 : i32
    %c0_i32_1 = arith.constant 0 : i32
    return %arg0, %c0_i32, %c0_i32_0 : i32, i32, i32
  }
  func.func @transform_3(%arg0: i32) -> (i32, i32, i32) {
    %c0_i32 = arith.constant 0 : i32
    %c0_i32_0 = arith.constant 0 : i32
    %c0_i32_1 = arith.constant 0 : i32
    return %arg0, %c0_i32, %c0_i32_0 : i32, i32, i32
  }
  func.func @transform_4(%arg0: i32) -> (i32, i32) {
    %c0_i32 = arith.constant 0 : i32
    %c0_i32_0 = arith.constant 0 : i32
    %c0_i32_1 = arith.constant 0 : i32
    return %c0_i32, %c0_i32_0 : i32, i32
  }
  func.func @transform_5(%arg0: i32) -> (i32, i32) {
    %c0_i32 = arith.constant 0 : i32
    %c0_i32_0 = arith.constant 0 : i32
    %c0_i32_1 = arith.constant 0 : i32
    return %c0_i32, %c0_i32_0 : i32, i32
  }
  func.func @transform_6(%arg0: i32) -> (i32, i32) {
    %c0_i32 = arith.constant 0 : i32
    %c0_i32_0 = arith.constant 0 : i32
    %c0_i32_1 = arith.constant 0 : i32
    return %c0_i32, %c0_i32_0 : i32, i32
  }
  func.func @transform_7(%arg0: i32) -> (i32, i32) {
    %c0_i32 = arith.constant 0 : i32
    %c0_i32_0 = arith.constant 0 : i32
    %c0_i32_1 = arith.constant 0 : i32
    return %c0_i32, %c0_i32_0 : i32, i32
  }
  func.func @transform_8(%arg0: i32) -> (i32, i32) {
    %c0_i32 = arith.constant 0 : i32
    %c0_i32_0 = arith.constant 0 : i32
    %c0_i32_1 = arith.constant 0 : i32
    return %c0_i32, %c0_i32_0 : i32, i32
  }
  func.func @transform_9(%arg0: i32) -> (i32, i32) {
    %c0_i32 = arith.constant 0 : i32
    %c0_i32_0 = arith.constant 0 : i32
    %c0_i32_1 = arith.constant 0 : i32
    return %c0_i32, %c0_i32_0 : i32, i32
  }
  func.func @transform_10(%arg0: i32) -> (i32, i32) {
    %c0_i32 = arith.constant 0 : i32
    %c0_i32_0 = arith.constant 0 : i32
    %c0_i32_1 = arith.constant 0 : i32
    return %c0_i32, %c0_i32_0 : i32, i32
  }
  func.func @transform_11(%arg0: i32) -> (i32, i32) {
    %c0_i32 = arith.constant 0 : i32
    %c0_i32_0 = arith.constant 0 : i32
    return %arg0, %c0_i32 : i32, i32
  }
}

</mosaic_0001>

<llo_original>
// kernel: tpu_custom_call.1
$region0: #{tpu_custom_call.1}
  #allocation0 [shape = 'u32[]', space=smem, size = 0x4, offset = 0x4, fixed_abs, tag = 'smem constant byte address 0x4 - core index']
  #allocation1 [shape = 'u32[144,128]{1,0:T(1,128)}', space=vmem, size = 0x12000, scoped, tag = 'internal scratch']
  %s0 = inlined_call_operand.vmem [shape: f32[16,8,32], index: 0, kind: input, shape index: {}]
  %s1 = inlined_call_operand.vmem [shape: f32[16,8,16], index: 1, kind: input, shape index: {}]
  %s2 = inlined_call_operand.vmem [shape: f32[16,8,1], index: 2, kind: input, shape index: {}]
  %s3 = inlined_call_operand.vmem [shape: f32[16,1,8], index: 3, kind: input, shape index: {}]
  %s4 = inlined_call_operand.vmem [shape: f32[16,32], index: 4, kind: input, shape index: {}]
  %s5 = inlined_call_operand.hbm [shape: f32[1,32], index: 5, kind: input, shape index: {}]
  %s6 = inlined_call_operand.hbm [shape: f32[16,16], index: 6, kind: input, shape index: {}]
  %s7 = inlined_call_operand.hbm [shape: f32[1,16], index: 7, kind: input, shape index: {}]
  %s8 = inlined_call_operand.hbm [shape: f32[1,32], index: 8, kind: input, shape index: {}]
  %s9 = inlined_call_operand.vmem [shape: f32[96,32], index: 9, kind: input, shape index: {}]
  %s10 = inlined_call_operand.vmem [shape: f32[1,32], index: 10, kind: input, shape index: {}]
  %s11 = inlined_call_operand.vmem [shape: f32[128,32], index: 11, kind: output, shape index: {}]
  %s12 = sld [smem:[#allocation0]]
  $region93: #{tpu_custom_call.1} parent=0
    _
  %s14 = ssub.s32 1, %s12
  %s15 = scalar_select 0, %s14, %s12
  $region1: #{tpu_custom_call.1} parent=0
    #allocation2 [shape = 'u8[512]{0}', space=vmem, size = 0x400, scoped, tag = 'input window, operand 5, single buffered']
    #allocation3 [shape = 's32[2]{0}', space=sflag, size = 0x8, scoped, tag = 'scoped memory for tpu_custom_call.1']
    #allocation4 [shape = 'u8[8192]{0}', space=vmem, size = 0x2000, scoped, tag = 'input window, operand 6, single buffered']
    #allocation5 [shape = 's32[1]{0}', space=sflag, size = 0x4, scoped, tag = 'scoped memory for tpu_custom_call.1']
    #allocation6 [shape = 'u8[512]{0}', space=vmem, size = 0x400, scoped, tag = 'input window, operand 7, single buffered']
    #allocation7 [shape = 'u8[512]{0}', space=vmem, size = 0x400, scoped, tag = 'input window, operand 8, single buffered']
    #allocation8 [shape = 's32[1]{0}', space=sflag, size = 0x4, scoped, tag = 'scoped memory for tpu_custom_call.1']
    %16 = vsyncpa [#allocation3], 0
    %17 = vsyncpa [#allocation5], 0
    %18 = vsyncpa [#allocation8], 0
    loop: start=0, step=1, limit=4
    $region2: #{tpu_custom_call.1} parent=1 // loop_pre_header
      _
    $region3: #{tpu_custom_call.1} parent=1 // loop_header
      %s20 = sphi 0, %s24
      %p21 = scmp.ge.s32.totalorder %s20, 4
      %s30 = sphi 0, %s32
      %s33 = sphi 0, %s30
      %s34 = sphi 0, %s33
      %s50 = sphi 0, %s34
      %s56 = sphi 0, %s58
      %s59 = sphi 0, %s56
      %s60 = sphi 0, %s59
      %s76 = sphi 0, %s60
      %s82 = sphi 0, %s84
      %s85 = sphi 0, %s82
      %s86 = sphi 0, %s85
      %s102 = sphi 0, %s86
      %s108 = sphi 0, %s110
      %s111 = sphi 0, %s108
      %s112 = sphi 0, %s111
      %s128 = sphi 0, %s112
      %s132 = sphi 0, %s132
      %s134 = sphi 0, %s132
      %s135 = sphi 0, %s134
      %s149 = sphi 0, %s135
      %s153 = sphi 0, %s153
      %s155 = sphi 0, %s153
      %s156 = sphi 0, %s155
      %s170 = sphi 0, %s156
      %s174 = sphi 0, %s174
      %s176 = sphi 0, %s174
      %s177 = sphi 0, %s176
      %s191 = sphi 0, %s177
      %s195 = sphi 0, %s195
      %s197 = sphi 0, %s195
      %s198 = sphi 0, %s197
      %s212 = sphi 0, %s198
      %s216 = sphi 0, %s216
      %s218 = sphi 0, %s216
      %s219 = sphi 0, %s218
      %s233 = sphi 0, %s219
      %s237 = sphi 0, %s237
      %s239 = sphi 0, %s237
      %s240 = sphi 0, %s239
      %s254 = sphi 0, %s240
      %s258 = sphi 0, %s258
      %s260 = sphi 0, %s258
      %s261 = sphi 0, %s260
      %s275 = sphi 0, %s261
      %s281 = sphi 0, %s283
      %s284 = sphi 0, %s281
      %s285 = sphi 0, %s284
      %s301 = sphi 0, %s285
    $region4: #{tpu_custom_call.1} parent=1 // loop_header_branch
      %23 = sbr.rel (%p21) target = $region8
    $region5: #{tpu_custom_call.1} parent=1 // loop_body
      %s25 = ssub.s32 %s20, 1
      %s26 = ssub.s32 %s20, 2
      %s27 = sadd.s32 %s20, 1
      %s28 = ssub.s32 %s20, %s27
      %p29 = scmp.eq.s32.totalorder %s28, 0
      %s31 = sadd.s32 %s30, 1
      %s32 = scalar_select %p29, %s30, %s31
      %p35 = pneg %p29
      %p36 = scmp.eq.s32.totalorder %s20, 1
      %p37 = por %p35, %p36
      %p38 = scmp.ne.s32.totalorder %s30, %s33
      %p39 = scmp.eq.s32.totalorder %s20, 0
      %p40 = por %p38, %p39
      %p41 = scmp.ne.s32.totalorder %s30, %s33
      %p42 = scmp.eq.s32.totalorder %s25, 1
      %p43 = por %p41, %p42
      %p44 = scmp.ne.s32.totalorder %s33, %s34
      %p45 = scmp.eq.s32.totalorder %s25, 0
      %p46 = por %p44, %p45
      %p47 = scmp.ne.s32.totalorder %s33, %s34
      %p48 = scmp.eq.s32.totalorder %s26, 1
      %p49 = por %p47, %p48
      %p51 = scmp.ne.s32.totalorder %s34, %s50
      %p52 = scmp.eq.s32.totalorder %s26, 0
      %p53 = por %p51, %p52
      %s54 = ssub.s32 %s20, %s27
      %p55 = scmp.eq.s32.totalorder %s54, 0
      %s57 = sadd.s32 %s56, 1
      %s58 = scalar_select %p55, %s56, %s57
      %p61 = pneg %p55
      %p62 = scmp.eq.s32.totalorder %s20, 1
      %p63 = por %p61, %p62
      %p64 = scmp.ne.s32.totalorder %s56, %s59
      %p65 = scmp.eq.s32.totalorder %s20, 0
      %p66 = por %p64, %p65
      %p67 = scmp.ne.s32.totalorder %s56, %s59
      %p68 = scmp.eq.s32.totalorder %s25, 1
      %p69 = por %p67, %p68
      %p70 = scmp.ne.s32.totalorder %s59, %s60
      %p71 = scmp.eq.s32.totalorder %s25, 0
      %p72 = por %p70, %p71
      %p73 = scmp.ne.s32.totalorder %s59, %s60
      %p74 = scmp.eq.s32.totalorder %s26, 1
      %p75 = por %p73, %p74
      %p77 = scmp.ne.s32.totalorder %s60, %s76
      %p78 = scmp.eq.s32.totalorder %s26, 0
      %p79 = por %p77, %p78
      %s80 = ssub.s32 %s20, %s27
      %p81 = scmp.eq.s32.totalorder %s80, 0
      %s83 = sadd.s32 %s82, 1
      %s84 = scalar_select %p81, %s82, %s83
      %p87 = pneg %p81
      %p88 = scmp.eq.s32.totalorder %s20, 1
      %p89 = por %p87, %p88
      %p90 = scmp.ne.s32.totalorder %s82, %s85
      %p91 = scmp.eq.s32.totalorder %s20, 0
      %p92 = por %p90, %p91
      %p93 = scmp.ne.s32.totalorder %s82, %s85
      %p94 = scmp.eq.s32.totalorder %s25, 1
      %p95 = por %p93, %p94
      %p96 = scmp.ne.s32.totalorder %s85, %s86
      %p97 = scmp.eq.s32.totalorder %s25, 0
      %p98 = por %p96, %p97
      %p99 = scmp.ne.s32.totalorder %s85, %s86
      %p100 = scmp.eq.s32.totalorder %s26, 1
      %p101 = por %p99, %p100
      %p103 = scmp.ne.s32.totalorder %s86, %s102
      %p104 = scmp.eq.s32.totalorder %s26, 0
      %p105 = por %p103, %p104
      %s106 = ssub.s32 %s20, %s27
      %p107 = scmp.eq.s32.totalorder %s106, 0
      %s109 = sadd.s32 %s108, 1
      %s110 = scalar_select %p107, %s108, %s109
      %p113 = pneg %p107
      %p114 = scmp.eq.s32.totalorder %s20, 1
      %p115 = por %p113, %p114
      %p116 = scmp.ne.s32.totalorder %s108, %s111
      %p117 = scmp.eq.s32.totalorder %s20, 0
      %p118 = por %p116, %p117
      %p119 = scmp.ne.s32.totalorder %s108, %s111
      %p120 = scmp.eq.s32.totalorder %s25, 1
      %p121 = por %p119, %p120
      %p122 = scmp.ne.s32.totalorder %s111, %s112
      %p123 = scmp.eq.s32.totalorder %s25, 0
      %p124 = por %p122, %p123
      %p125 = scmp.ne.s32.totalorder %s111, %s112
      %p126 = scmp.eq.s32.totalorder %s26, 1
      %p127 = por %p125, %p126
      %p129 = scmp.ne.s32.totalorder %s112, %s128
      %p130 = scmp.eq.s32.totalorder %s26, 0
      %p131 = por %p129, %p130
      %s133 = sadd.s32 %s132, 1
      %p136 = scmp.eq.s32.totalorder %s20, 1
      %p137 = scmp.ne.s32.totalorder %s132, %s134
      %p138 = scmp.eq.s32.totalorder %s20, 0
      %p139 = por %p137, %p138
      %p140 = scmp.ne.s32.totalorder %s132, %s134
      %p141 = scmp.eq.s32.totalorder %s25, 1
      %p142 = por %p140, %p141
      %p143 = scmp.ne.s32.totalorder %s134, %s135
      %p144 = scmp.eq.s32.totalorder %s25, 0
      %p145 = por %p143, %p144
      %p146 = scmp.ne.s32.totalorder %s134, %s135
      %p147 = scmp.eq.s32.totalorder %s26, 1
      %p148 = por %p146, %p147
      %p150 = scmp.ne.s32.totalorder %s135, %s149
      %p151 = scmp.eq.s32.totalorder %s26, 0
      %p152 = por %p150, %p151
      %s154 = sadd.s32 %s153, 1
      %p157 = scmp.eq.s32.totalorder %s20, 1
      %p158 = scmp.ne.s32.totalorder %s153, %s155
      %p159 = scmp.eq.s32.totalorder %s20, 0
      %p160 = por %p158, %p159
      %p161 = scmp.ne.s32.totalorder %s153, %s155
      %p162 = scmp.eq.s32.totalorder %s25, 1
      %p163 = por %p161, %p162
      %p164 = scmp.ne.s32.totalorder %s155, %s156
      %p165 = scmp.eq.s32.totalorder %s25, 0
      %p166 = por %p164, %p165
      %p167 = scmp.ne.s32.totalorder %s155, %s156
      %p168 = scmp.eq.s32.totalorder %s26, 1
      %p169 = por %p167, %p168
      %p171 = scmp.ne.s32.totalorder %s156, %s170
      %p172 = scmp.eq.s32.totalorder %s26, 0
      %p173 = por %p171, %p172
      %s175 = sadd.s32 %s174, 1
      %p178 = scmp.eq.s32.totalorder %s20, 1
      %p179 = scmp.ne.s32.totalorder %s174, %s176
      %p180 = scmp.eq.s32.totalorder %s20, 0
      %p181 = por %p179, %p180
      %p182 = scmp.ne.s32.totalorder %s174, %s176
      %p183 = scmp.eq.s32.totalorder %s25, 1
      %p184 = por %p182, %p183
      %p185 = scmp.ne.s32.totalorder %s176, %s177
      %p186 = scmp.eq.s32.totalorder %s25, 0
      %p187 = por %p185, %p186
      %p188 = scmp.ne.s32.totalorder %s176, %s177
      %p189 = scmp.eq.s32.totalorder %s26, 1
      %p190 = por %p188, %p189
      %p192 = scmp.ne.s32.totalorder %s177, %s191
      %p193 = scmp.eq.s32.totalorder %s26, 0
      %p194 = por %p192, %p193
      %s196 = sadd.s32 %s195, 1
      %p199 = scmp.eq.s32.totalorder %s20, 1
      %p200 = scmp.ne.s32.totalorder %s195, %s197
      %p201 = scmp.eq.s32.totalorder %s20, 0
      %p202 = por %p200, %p201
      %p203 = scmp.ne.s32.totalorder %s195, %s197
      %p204 = scmp.eq.s32.totalorder %s25, 1
      %p205 = por %p203, %p204
      %p206 = scmp.ne.s32.totalorder %s197, %s198
      %p207 = scmp.eq.s32.totalorder %s25, 0
      %p208 = por %p206, %p207
      %p209 = scmp.ne.s32.totalorder %s197, %s198
      %p210 = scmp.eq.s32.totalorder %s26, 1
      %p211 = por %p209, %p210
      %p213 = scmp.ne.s32.totalorder %s198, %s212
      %p214 = scmp.eq.s32.totalorder %s26, 0
      %p215 = por %p213, %p214
      %s217 = sadd.s32 %s216, 1
      %p220 = scmp.eq.s32.totalorder %s20, 1
      %p221 = scmp.ne.s32.totalorder %s216, %s218
      %p222 = scmp.eq.s32.totalorder %s20, 0
      %p223 = por %p221, %p222
      %p224 = scmp.ne.s32.totalorder %s216, %s218
      %p225 = scmp.eq.s32.totalorder %s25, 1
      %p226 = por %p224, %p225
      %p227 = scmp.ne.s32.totalorder %s218, %s219
      %p228 = scmp.eq.s32.totalorder %s25, 0
      %p229 = por %p227, %p228
      %p230 = scmp.ne.s32.totalorder %s218, %s219
      %p231 = scmp.eq.s32.totalorder %s26, 1
      %p232 = por %p230, %p231
      %p234 = scmp.ne.s32.totalorder %s219, %s233
      %p235 = scmp.eq.s32.totalorder %s26, 0
      %p236 = por %p234, %p235
      %s238 = sadd.s32 %s237, 1
      %p241 = scmp.eq.s32.totalorder %s20, 1
      %p242 = scmp.ne.s32.totalorder %s237, %s239
      %p243 = scmp.eq.s32.totalorder %s20, 0
      %p244 = por %p242, %p243
      %p245 = scmp.ne.s32.totalorder %s237, %s239
      %p246 = scmp.eq.s32.totalorder %s25, 1
      %p247 = por %p245, %p246
      %p248 = scmp.ne.s32.totalorder %s239, %s240
      %p249 = scmp.eq.s32.totalorder %s25, 0
      %p250 = por %p248, %p249
      %p251 = scmp.ne.s32.totalorder %s239, %s240
      %p252 = scmp.eq.s32.totalorder %s26, 1
      %p253 = por %p251, %p252
      %p255 = scmp.ne.s32.totalorder %s240, %s254
      %p256 = scmp.eq.s32.totalorder %s26, 0
      %p257 = por %p255, %p256
      %s259 = sadd.s32 %s258, 1
      %p262 = scmp.eq.s32.totalorder %s20, 1
      %p263 = scmp.ne.s32.totalorder %s258, %s260
      %p264 = scmp.eq.s32.totalorder %s20, 0
      %p265 = por %p263, %p264
      %p266 = scmp.ne.s32.totalorder %s258, %s260
      %p267 = scmp.eq.s32.totalorder %s25, 1
      %p268 = por %p266, %p267
      %p269 = scmp.ne.s32.totalorder %s260, %s261
      %p270 = scmp.eq.s32.totalorder %s25, 0
      %p271 = por %p269, %p270
      %p272 = scmp.ne.s32.totalorder %s260, %s261
      %p273 = scmp.eq.s32.totalorder %s26, 1
      %p274 = por %p272, %p273
      %p276 = scmp.ne.s32.totalorder %s261, %s275
      %p277 = scmp.eq.s32.totalorder %s26, 0
      %p278 = por %p276, %p277
      %s279 = ssub.s32 %s20, %s27
      %p280 = scmp.eq.s32.totalorder %s279, 0
      %s282 = sadd.s32 %s281, 1
      %s283 = scalar_select %p280, %s281, %s282
      %p286 = pneg %p280
      %p287 = scmp.eq.s32.totalorder %s20, 1
      %p288 = por %p286, %p287
      %p289 = scmp.ne.s32.totalorder %s281, %s284
      %p290 = scmp.eq.s32.totalorder %s20, 0
      %p291 = por %p289, %p290
      %p292 = scmp.ne.s32.totalorder %s281, %s284
      %p293 = scmp.eq.s32.totalorder %s25, 1
      %p294 = por %p292, %p293
      %p295 = scmp.ne.s32.totalorder %s284, %s285
      %p296 = scmp.eq.s32.totalorder %s25, 0
      %p297 = por %p295, %p296
      %p298 = scmp.ne.s32.totalorder %s284, %s285
      %p299 = scmp.eq.s32.totalorder %s26, 1
      %p300 = por %p298, %p299
      %p302 = scmp.ne.s32.totalorder %s285, %s301
      %p303 = scmp.eq.s32.totalorder %s26, 0
      %p304 = por %p302, %p303
      %p305 = scmp.le.s32.totalorder 1, %s20
      %p306 = scmp.lt.s32.totalorder %s20, 3
      %p307 = pnand %p305, %p306
      %p308 = pneg %p307
      // Predicated region
      $region9: #{tpu_custom_call.1} parent=5 // pred_check
        _
      $region10: #{tpu_custom_call.1} parent=5 // pred_check_branch
        %310 = sbr.rel (%p307) target = $region12
      $region11: #{tpu_custom_call.1} parent=5 // pred_region
        %s311 = ssub.s32 %s20, 1
        // Predicated region
        $region13: #{tpu_custom_call.1} parent=11 // pred_check
          %p312 = pneg %p145
        $region14: #{tpu_custom_call.1} parent=11 // pred_check_branch
          %314 = sbr.rel (%p312) target = $region16
        $region15: #{tpu_custom_call.1} parent=11 // pred_region
          _
        $region16: #{tpu_custom_call.1} parent=11 // pred_fallthru
          _
        // Predicated region
        $region17: #{tpu_custom_call.1} parent=11 // pred_check
          %p315 = pneg %p166
        $region18: #{tpu_custom_call.1} parent=11 // pred_check_branch
          %317 = sbr.rel (%p315) target = $region20
        $region19: #{tpu_custom_call.1} parent=11 // pred_region
          %s319 = ssub.s32 16, 16
          %320 = vsyncadd [#allocation3], %s319
          %s322 = sshll.u32 [#allocation2], 4
          %s323 = int_to_ptr.vmem [resolvable:$true] %s322
          %325 = dma.hbm_to_vmem [thread:$0]  %s5, 16, %s323, [#allocation3]
        $region20: #{tpu_custom_call.1} parent=11 // pred_fallthru
          _
        // Predicated region
        $region21: #{tpu_custom_call.1} parent=11 // pred_check
          %p326 = pneg %p187
        $region22: #{tpu_custom_call.1} parent=11 // pred_check_branch
          %328 = sbr.rel (%p326) target = $region24
        $region23: #{tpu_custom_call.1} parent=11 // pred_region
          %s330 = ssub.s32 256, 256
          %331 = vsyncadd [#allocation5], %s330
          %s332 = sshll.u32 [#allocation4], 4
          %s333 = int_to_ptr.vmem [resolvable:$true] %s332
          %338 = dma.hbm_to_vmem [thread:$0]  %s6, 256, %s333, [#allocation5], 128, 128, 8
        $region24: #{tpu_custom_call.1} parent=11 // pred_fallthru
          _
        // Predicated region
        $region25: #{tpu_custom_call.1} parent=11 // pred_check
          %p339 = pneg %p208
        $region26: #{tpu_custom_call.1} parent=11 // pred_check_branch
          %341 = sbr.rel (%p339) target = $region28
        $region27: #{tpu_custom_call.1} parent=11 // pred_region
          %s343 = ssub.s32 16, 16
          %344 = vsyncadd [#allocation5], %s343
          %s346 = sshll.u32 [#allocation6], 4
          %s347 = int_to_ptr.vmem [resolvable:$true] %s346
          %349 = dma.hbm_to_vmem [thread:$0]  %s7, 16, %s347, [#allocation5]
        $region28: #{tpu_custom_call.1} parent=11 // pred_fallthru
          _
        // Predicated region
        $region29: #{tpu_custom_call.1} parent=11 // pred_check
          %p350 = pneg %p229
        $region30: #{tpu_custom_call.1} parent=11 // pred_check_branch
          %352 = sbr.rel (%p350) target = $region32
        $region31: #{tpu_custom_call.1} parent=11 // pred_region
          %s354 = ssub.s32 16, 16
          %355 = vsyncadd [#allocation8], %s354
          %s357 = sshll.u32 [#allocation7], 4
          %s358 = int_to_ptr.vmem [resolvable:$true] %s357
          %360 = dma.hbm_to_vmem [thread:$0]  %s8, 16, %s358, [#allocation8]
        $region32: #{tpu_custom_call.1} parent=11 // pred_fallthru
          _
        // Predicated region
        $region33: #{tpu_custom_call.1} parent=11 // pred_check
          %p361 = pneg %p250
        $region34: #{tpu_custom_call.1} parent=11 // pred_check_branch
          %363 = sbr.rel (%p361) target = $region36
        $region35: #{tpu_custom_call.1} parent=11 // pred_region
          _
        $region36: #{tpu_custom_call.1} parent=11 // pred_fallthru
          _
        // Predicated region
        $region37: #{tpu_custom_call.1} parent=11 // pred_check
          %p364 = pneg %p271
        $region38: #{tpu_custom_call.1} parent=11 // pred_check_branch
          %366 = sbr.rel (%p364) target = $region40
        $region39: #{tpu_custom_call.1} parent=11 // pred_region
          _
        $region40: #{tpu_custom_call.1} parent=11 // pred_fallthru
          _
      $region12: #{tpu_custom_call.1} parent=5 // pred_fallthru
        _
      %p367 = scmp.lt.s32.totalorder %s20, 2
      // Predicated region
      $region41: #{tpu_custom_call.1} parent=5 // pred_check
        %p368 = pneg %p367
      $region42: #{tpu_custom_call.1} parent=5 // pred_check_branch
        %370 = sbr.rel (%p368) target = $region44
      $region43: #{tpu_custom_call.1} parent=5 // pred_region
        // Predicated region
        $region45: #{tpu_custom_call.1} parent=43 // pred_check
          %p371 = pneg %p40
        $region46: #{tpu_custom_call.1} parent=43 // pred_check_branch
          %373 = sbr.rel (%p371) target = $region48
        $region47: #{tpu_custom_call.1} parent=43 // pred_region
          %s374 = smul.u32 8, %s20
          %p375 = scmp.lt.s32.totalorder %s374, 15
          %s376 = scalar_select %p375, %s374, 15
          %s377 = smul.addr %s376, 8
          %s378 = scalar_lea.vmem %s0, %s377
          %s379 = smul.u32 8, %s20
        $region48: #{tpu_custom_call.1} parent=43 // pred_fallthru
          _
        // Predicated region
        $region49: #{tpu_custom_call.1} parent=43 // pred_check
          %p380 = pneg %p66
        $region50: #{tpu_custom_call.1} parent=43 // pred_check_branch
          %382 = sbr.rel (%p380) target = $region52
        $region51: #{tpu_custom_call.1} parent=43 // pred_region
          %s383 = smul.u32 8, %s20
          %p384 = scmp.lt.s32.totalorder %s383, 15
          %s385 = scalar_select %p384, %s383, 15
          %s386 = smul.addr %s385, 8
          %s387 = scalar_lea.vmem %s1, %s386
          %s388 = smul.u32 8, %s20
        $region52: #{tpu_custom_call.1} parent=43 // pred_fallthru
          _
        // Predicated region
        $region53: #{tpu_custom_call.1} parent=43 // pred_check
          %p389 = pneg %p92
        $region54: #{tpu_custom_call.1} parent=43 // pred_check_branch
          %391 = sbr.rel (%p389) target = $region56
        $region55: #{tpu_custom_call.1} parent=43 // pred_region
          %s392 = smul.u32 8, %s20
          %p393 = scmp.lt.s32.totalorder %s392, 15
          %s394 = scalar_select %p393, %s392, 15
          %s395 = smul.addr %s394, 8
          %s396 = scalar_lea.vmem %s2, %s395
          %s397 = smul.u32 8, %s20
        $region56: #{tpu_custom_call.1} parent=43 // pred_fallthru
          _
        // Predicated region
        $region57: #{tpu_custom_call.1} parent=43 // pred_check
          %p398 = pneg %p118
        $region58: #{tpu_custom_call.1} parent=43 // pred_check_branch
          %400 = sbr.rel (%p398) target = $region60
        $region59: #{tpu_custom_call.1} parent=43 // pred_region
          %s401 = smul.u32 8, %s20
          %p402 = scmp.lt.s32.totalorder %s401, 15
          %s403 = scalar_select %p402, %s401, 15
          %s404 = scalar_lea.vmem %s3, %s403
          %s405 = smul.u32 8, %s20
        $region60: #{tpu_custom_call.1} parent=43 // pred_fallthru
          _
      $region44: #{tpu_custom_call.1} parent=5 // pred_fallthru
        _
      %p406 = scmp.le.s32.totalorder 1, %s20
      %p407 = scmp.lt.s32.totalorder %s20, 3
      %p408 = pnand %p406, %p407
      %p409 = pneg %p408
      // Predicated region
      $region61: #{tpu_custom_call.1} parent=5 // pred_check
        _
      $region62: #{tpu_custom_call.1} parent=5 // pred_check_branch
        %411 = sbr.rel (%p408) target = $region64
      $region63: #{tpu_custom_call.1} parent=5 // pred_region
        %s412 = ssub.s32 %s20, 1
        // Predicated region
        $region65: #{tpu_custom_call.1} parent=63 // pred_check
          %p413 = pneg %p166
        $region66: #{tpu_custom_call.1} parent=63 // pred_check_branch
          %415 = sbr.rel (%p413) target = $region68
        $region67: #{tpu_custom_call.1} parent=63 // pred_region
          %416 = dma.done [#allocation3], 16
        $region68: #{tpu_custom_call.1} parent=63 // pred_fallthru
          _
        // Predicated region
        $region69: #{tpu_custom_call.1} parent=63 // pred_check
          %p417 = pneg %p187
        $region70: #{tpu_custom_call.1} parent=63 // pred_check_branch
          %419 = sbr.rel (%p417) target = $region72
        $region71: #{tpu_custom_call.1} parent=63 // pred_region
          %420 = dma.done [#allocation5], 256
        $region72: #{tpu_custom_call.1} parent=63 // pred_fallthru
          _
        // Predicated region
        $region73: #{tpu_custom_call.1} parent=63 // pred_check
          %p421 = pneg %p208
        $region74: #{tpu_custom_call.1} parent=63 // pred_check_branch
          %423 = sbr.rel (%p421) target = $region76
        $region75: #{tpu_custom_call.1} parent=63 // pred_region
          %424 = dma.done [#allocation5], 16
        $region76: #{tpu_custom_call.1} parent=63 // pred_fallthru
          _
        // Predicated region
        $region77: #{tpu_custom_call.1} parent=63 // pred_check
          %p425 = pneg %p229
        $region78: #{tpu_custom_call.1} parent=63 // pred_check_branch
          %427 = sbr.rel (%p425) target = $region80
        $region79: #{tpu_custom_call.1} parent=63 // pred_region
          %428 = dma.done [#allocation8], 16
        $region80: #{tpu_custom_call.1} parent=63 // pred_fallthru
          _
        %s429 = smul.u32 8, %s25
        %p430 = scmp.lt.s32.totalorder %s429, 15
        %s431 = scalar_select %p430, %s429, 15
        %s432 = smul.addr %s431, 8
        %s433 = scalar_lea.vmem %s0, %s432
        %p434 = pneg %p46
        %p435 = pneg %p43
        %s436 = smul.u32 8, %s25
        %p437 = scmp.lt.s32.totalorder %s436, 15
        %s438 = scalar_select %p437, %s436, 15
        %s439 = smul.addr %s438, 8
        %s440 = scalar_lea.vmem %s1, %s439
        %p441 = pneg %p72
        %p442 = pneg %p69
        %s443 = smul.u32 8, %s25
        %p444 = scmp.lt.s32.totalorder %s443, 15
        %s445 = scalar_select %p444, %s443, 15
        %s446 = smul.addr %s445, 8
        %s447 = scalar_lea.vmem %s2, %s446
        %p448 = pneg %p98
        %p449 = pneg %p95
        %s450 = smul.u32 8, %s25
        %p451 = scmp.lt.s32.totalorder %s450, 15
        %s452 = scalar_select %p451, %s450, 15
        %s453 = scalar_lea.vmem %s3, %s452
        %p454 = pneg %p124
        %p455 = pneg %p121
        %p456 = pneg %p145
        %p457 = pneg %p142
        %p458 = pneg %p166
        %p459 = pneg %p163
        %p460 = pneg %p187
        %p461 = pneg %p184
        %p462 = pneg %p208
        %p463 = pneg %p205
        %p464 = pneg %p229
        %p465 = pneg %p226
        %p466 = pneg %p250
        %p467 = pneg %p247
        %p468 = pneg %p271
        %p469 = pneg %p268
        %p470 = pneg %p297
        %p471 = pneg %p294
        %s472 = smul.u32 8, %s25
        %p473 = scmp.lt.s32.totalorder %s472, 15
        %s474 = scalar_select %p473, %s472, 15
        %s475 = smul.addr %s474, 8
        %s476 = scalar_lea.vmem %s11, %s475
        %s477 = smul.u32 8, %s25
        %p478 = scmp.lt.s32.totalorder %s477, 15
        %s479 = scalar_select %p478, %s477, 15
        %s480 = smul.addr %s479, 8
        %s481 = scalar_lea.vmem %s0, %s480
        %s482 = smul.u32 8, %s25
        %s483 = smul.u32 8, %s25
        %p484 = scmp.lt.s32.totalorder %s483, 15
        %s485 = scalar_select %p484, %s483, 15
        %s486 = smul.addr %s485, 8
        %s487 = scalar_lea.vmem %s1, %s486
        %s488 = smul.u32 8, %s25
        %s489 = smul.u32 8, %s25
        %p490 = scmp.lt.s32.totalorder %s489, 15
        %s491 = scalar_select %p490, %s489, 15
        %s492 = smul.addr %s491, 8
        %s493 = scalar_lea.vmem %s2, %s492
        %s494 = smul.u32 8, %s25
        %s495 = smul.u32 8, %s25
        %p496 = scmp.lt.s32.totalorder %s495, 15
        %s497 = scalar_select %p496, %s495, 15
        %s498 = scalar_lea.vmem %s3, %s497
        %s499 = smul.u32 8, %s25
        %s500 = smul.u32 8, %s25
        %p501 = scmp.lt.s32.totalorder %s500, 15
        %s502 = scalar_select %p501, %s500, 15
        %s503 = smul.addr %s502, 8
        %s504 = scalar_lea.vmem %s11, %s503
        %s505 = smul.u32 8, %s25
        %v506 = vld [vmem:[%s481] sm:$0xff]
        %v507 = vld [vmem:[%s481 + $0x8] sm:$0xff]
        %v508 = vld [vmem:[%s481 + $0x10] sm:$0xff]
        %v509 = vld [vmem:[%s481 + $0x18] sm:$0xff]
        %v510 = vld [vmem:[%s481 + $0x20] sm:$0xff]
        %v511 = vld [vmem:[%s481 + $0x28] sm:$0xff]
        %v512 = vld [vmem:[%s481 + $0x30] sm:$0xff]
        %v513 = vld [vmem:[%s481 + $0x38] sm:$0xff]
        %v514 = vld [vmem:[%s487] sm:$0xff]
        %v515 = vld [vmem:[%s487 + $0x8] sm:$0xff]
        %v516 = vld [vmem:[%s487 + $0x10] sm:$0xff]
        %v517 = vld [vmem:[%s487 + $0x18] sm:$0xff]
        %v518 = vld [vmem:[%s487 + $0x20] sm:$0xff]
        %v519 = vld [vmem:[%s487 + $0x28] sm:$0xff]
        %v520 = vld [vmem:[%s487 + $0x30] sm:$0xff]
        %v521 = vld [vmem:[%s487 + $0x38] sm:$0xff]
        %v522 = vld [vmem:[%s493] sm:$0xff]
        %v523 = vld [vmem:[%s493 + $0x8] sm:$0xff]
        %v524 = vld [vmem:[%s493 + $0x10] sm:$0xff]
        %v525 = vld [vmem:[%s493 + $0x18] sm:$0xff]
        %v526 = vld [vmem:[%s493 + $0x20] sm:$0xff]
        %v527 = vld [vmem:[%s493 + $0x28] sm:$0xff]
        %v528 = vld [vmem:[%s493 + $0x30] sm:$0xff]
        %v529 = vld [vmem:[%s493 + $0x38] sm:$0xff]
        %v530 = vld [vmem:[%s498] sm:$0x1]
        %v531 = vld [vmem:[%s498 + $0x1] sm:$0x1]
        %v532 = vld [vmem:[%s498 + $0x2] sm:$0x1]
        %v533 = vld [vmem:[%s498 + $0x3] sm:$0x1]
        %v534 = vld [vmem:[%s498 + $0x4] sm:$0x1]
        %v535 = vld [vmem:[%s498 + $0x5] sm:$0x1]
        %v536 = vld [vmem:[%s498 + $0x6] sm:$0x1]
        %v537 = vld [vmem:[%s498 + $0x7] sm:$0x1]
        %v538 = vlaneseq
        %v539 = vshrl.u32 %v538, 7
        %v540 = vlaneseq
        %v541 = vand.u32 %v540, 127
        %vm542 = vcmp.eq.s32.totalorder %v539, %v541
        %v543 = vld [vmem:[%s4] sm:$0xff]
        %v544 = vld [vmem:[%s4 + $0x8] sm:$0xff]
        %v545 = vld [vmem:[#allocation2] sm:$0x1]
        %v547 = vlaneseq
        %v548 = vshrl.u32 %v547, 7
        %v549 = vsub.s32 0, %v548
        %v550 = vrot.slane %v545, %v549
        %vm552 = vcmask 130048
        %v554 = vsel %vm552, %v514, 0
        %v557 = vsel %vm552, %v515, 0
        %v560 = vsel %vm552, %v516, 0
        %v563 = vsel %vm552, %v517, 0
        %v566 = vsel %vm552, %v518, 0
        %v569 = vsel %vm552, %v519, 0
        %v572 = vsel %vm552, %v520, 0
        %v575 = vsel %vm552, %v521, 0
        %577 = vmatprep.subr.mxu0 0.0
        %578 = vmatpush1.msra.mxu0 0.0
        %579 = vmatprep.subr.mxu0 0.0
        %580 = vmatpush1.msra.mxu0 0.0
        %581 = vmatprep.subr.mxu0 0.0
        %582 = vmatpush1.msra.mxu0 0.0
        %583 = vmatprep.subr.mxu0 0.0
        %584 = vmatpush1.msra.mxu0 0.0
        %585 = vmatprep.subr.mxu0 0.0
        %586 = vmatpush1.msra.mxu0 0.0
        %587 = vmatprep.subr.mxu0 0.0
        %588 = vmatpush1.msra.mxu0 0.0
        %589 = vmatprep.subr.mxu0 0.0
        %590 = vmatpush1.msra.mxu0 0.0
        %591 = vmatprep.subr.mxu0 0.0
        %592 = vmatpush1.msra.mxu0 0.0
        %593 = vmatprep.subr.mxu0 0.0
        %594 = vmatpush1.msra.mxu0 0.0
        %595 = vmatprep.subr.mxu0 0.0
        %596 = vmatpush1.msra.mxu0 0.0
        %597 = vmatprep.subr.mxu0 0.0
        %598 = vmatpush1.msra.mxu0 0.0
        %599 = vmatprep.subr.mxu0 0.0
        %600 = vmatpush1.msra.mxu0 0.0
        %601 = vmatprep.subr.mxu0 0.0
        %602 = vmatpush1.msra.mxu0 0.0
        %603 = vmatprep.subr.mxu0 0.0
        %604 = vmatpush1.msra.mxu0 0.0
        %605 = vmatprep.subr.mxu0 0.0
        %606 = vmatpush1.msra.mxu0 %v544
        %607 = vmatprep.subr.mxu0 0.0
        %608 = vmatpush1.msra.mxu0 %v543
        %609 = vmatprep.subr.mxu0 0.0
        %610 = vmatpush2.msra.mxu0 0.0
        %611 = vmatprep.subr.mxu0 0.0
        %612 = vmatpush2.msra.mxu0 0.0
        %613 = vmatprep.subr.mxu0 0.0
        %614 = vmatpush2.msra.mxu0 0.0
        %615 = vmatprep.subr.mxu0 0.0
        %616 = vmatpush2.msra.mxu0 0.0
        %617 = vmatprep.subr.mxu0 0.0
        %618 = vmatpush2.msra.mxu0 0.0
        %619 = vmatprep.subr.mxu0 0.0
        %620 = vmatpush2.msra.mxu0 0.0
        %621 = vmatprep.subr.mxu0 0.0
        %622 = vmatpush2.msra.mxu0 0.0
        %623 = vmatprep.subr.mxu0 0.0
        %624 = vmatpush2.msra.mxu0 0.0
        %625 = vmatprep.subr.mxu0 0.0
        %626 = vmatpush2.msra.mxu0 0.0
        %627 = vmatprep.subr.mxu0 0.0
        %628 = vmatpush2.msra.mxu0 0.0
        %629 = vmatprep.subr.mxu0 0.0
        %630 = vmatpush2.msra.mxu0 0.0
        %631 = vmatprep.subr.mxu0 0.0
        %632 = vmatpush2.msra.mxu0 0.0
        %633 = vmatprep.subr.mxu0 0.0
        %634 = vmatpush2.msra.mxu0 0.0
        %635 = vmatprep.subr.mxu0 0.0
        %636 = vmatpush2.msra.mxu0 0.0
        %637 = vmatprep.subr.mxu0 0.0
        %638 = vmatpush2.msra.mxu0 0.0
        %639 = vmatprep.subr.mxu0 0.0
        %640 = vmatpush2.msra.mxu0 0.0
        %641 = vmatprep.mubr.f32.mxu0 0.0
        %642 = vmatmul.mubr.f32.gmra.mxu0 %v554
        %v643 = vpop.f32.mrf.mxu0
        %v644 = vadd.f32 %v550, %v643
        %v645 = vpop.f32.mrf.mxu0
        %646 = vmatprep.mubr.f32.mxu0 0.0
        %647 = vmatmul.mubr.f32.gmra.mxu0 %v557
        %v648 = vpop.f32.mrf.mxu0
        %v649 = vadd.f32 %v550, %v648
        %v650 = vpop.f32.mrf.mxu0
        %651 = vmatprep.mubr.f32.mxu0 0.0
        %652 = vmatmul.mubr.f32.gmra.mxu0 %v560
        %v653 = vpop.f32.mrf.mxu0
        %v654 = vadd.f32 %v550, %v653
        %v655 = vpop.f32.mrf.mxu0
        %656 = vmatprep.mubr.f32.mxu0 0.0
        %657 = vmatmul.mubr.f32.gmra.mxu0 %v563
        %v658 = vpop.f32.mrf.mxu0
        %v659 = vadd.f32 %v550, %v658
        %v660 = vpop.f32.mrf.mxu0
        %661 = vmatprep.mubr.f32.mxu0 0.0
        %662 = vmatmul.mubr.f32.gmra.mxu0 %v566
        %v663 = vpop.f32.mrf.mxu0
        %v664 = vadd.f32 %v550, %v663
        %v665 = vpop.f32.mrf.mxu0
        %666 = vmatprep.mubr.f32.mxu0 0.0
        %667 = vmatmul.mubr.f32.gmra.mxu0 %v569
        %v668 = vpop.f32.mrf.mxu0
        %v669 = vadd.f32 %v550, %v668
        %v670 = vpop.f32.mrf.mxu0
        %671 = vmatprep.mubr.f32.mxu0 0.0
        %672 = vmatmul.mubr.f32.gmra.mxu0 %v572
        %v673 = vpop.f32.mrf.mxu0
        %v674 = vadd.f32 %v550, %v673
        %v675 = vpop.f32.mrf.mxu0
        %676 = vmatprep.mubr.f32.mxu0 0.0
        %677 = vmatmul.mubr.f32.gmra.mxu0 %v575
        %v678 = vpop.f32.mrf.mxu0
        %v679 = vadd.f32 %v550, %v678
        %v680 = vpop.f32.mrf.mxu0
        %681 = vdwg.mxu0
        %v682 = vtanh.pop %v644
        %v683 = vtanh.pop %v649
        %v684 = vtanh.pop %v654
        %v685 = vtanh.pop %v659
        %v686 = vtanh.pop %v664
        %v687 = vtanh.pop %v669
        %v688 = vtanh.pop %v674
        %v689 = vtanh.pop %v679
        %v690 = vld [vmem:[#allocation4] sm:$0xff]
        %v691 = vld [vmem:[#allocation4 + $0x8] sm:$0xff]
        %v693 = vsel %vm552, %v682, 0
        %v696 = vsel %vm552, %v683, 0
        %v699 = vsel %vm552, %v684, 0
        %v702 = vsel %vm552, %v685, 0
        %v705 = vsel %vm552, %v686, 0
        %v708 = vsel %vm552, %v687, 0
        %v711 = vsel %vm552, %v688, 0
        %v714 = vsel %vm552, %v689, 0
        %716 = vmatprep.subr.mxu0 0.0
        %717 = vmatpush1.msra.mxu0 0.0
        %718 = vmatprep.subr.mxu0 0.0
        %719 = vmatpush1.msra.mxu0 0.0
        %720 = vmatprep.subr.mxu0 0.0
        %721 = vmatpush1.msra.mxu0 0.0
        %722 = vmatprep.subr.mxu0 0.0
        %723 = vmatpush1.msra.mxu0 0.0
        %724 = vmatprep.subr.mxu0 0.0
        %725 = vmatpush1.msra.mxu0 0.0
        %726 = vmatprep.subr.mxu0 0.0
        %727 = vmatpush1.msra.mxu0 0.0
        %728 = vmatprep.subr.mxu0 0.0
        %729 = vmatpush1.msra.mxu0 0.0
        %730 = vmatprep.subr.mxu0 0.0
        %731 = vmatpush1.msra.mxu0 0.0
        %732 = vmatprep.subr.mxu0 0.0
        %733 = vmatpush1.msra.mxu0 0.0
        %734 = vmatprep.subr.mxu0 0.0
        %735 = vmatpush1.msra.mxu0 0.0
        %736 = vmatprep.subr.mxu0 0.0
        %737 = vmatpush1.msra.mxu0 0.0
        %738 = vmatprep.subr.mxu0 0.0
        %739 = vmatpush1.msra.mxu0 0.0
        %740 = vmatprep.subr.mxu0 0.0
        %741 = vmatpush1.msra.mxu0 0.0
        %742 = vmatprep.subr.mxu0 0.0
        %743 = vmatpush1.msra.mxu0 0.0
        %744 = vmatprep.subr.mxu0 0.0
        %745 = vmatpush1.msra.mxu0 %v691
        %746 = vmatprep.subr.mxu0 0.0
        %747 = vmatpush1.msra.mxu0 %v690
        %748 = vmatprep.subr.mxu0 0.0
        %749 = vmatpush2.msra.mxu0 0.0
        %750 = vmatprep.subr.mxu0 0.0
        %751 = vmatpush2.msra.mxu0 0.0
        %752 = vmatprep.subr.mxu0 0.0
        %753 = vmatpush2.msra.mxu0 0.0
        %754 = vmatprep.subr.mxu0 0.0
        %755 = vmatpush2.msra.mxu0 0.0
        %756 = vmatprep.subr.mxu0 0.0
        %757 = vmatpush2.msra.mxu0 0.0
        %758 = vmatprep.subr.mxu0 0.0
        %759 = vmatpush2.msra.mxu0 0.0
        %760 = vmatprep.subr.mxu0 0.0
        %761 = vmatpush2.msra.mxu0 0.0
        %762 = vmatprep.subr.mxu0 0.0
        %763 = vmatpush2.msra.mxu0 0.0
        %764 = vmatprep.subr.mxu0 0.0
        %765 = vmatpush2.msra.mxu0 0.0
        %766 = vmatprep.subr.mxu0 0.0
        %767 = vmatpush2.msra.mxu0 0.0
        %768 = vmatprep.subr.mxu0 0.0
        %769 = vmatpush2.msra.mxu0 0.0
        %770 = vmatprep.subr.mxu0 0.0
        %771 = vmatpush2.msra.mxu0 0.0
        %772 = vmatprep.subr.mxu0 0.0
        %773 = vmatpush2.msra.mxu0 0.0
        %774 = vmatprep.subr.mxu0 0.0
        %775 = vmatpush2.msra.mxu0 0.0
        %776 = vmatprep.subr.mxu0 0.0
        %777 = vmatpush2.msra.mxu0 0.0
        %778 = vmatprep.subr.mxu0 0.0
        %779 = vmatpush2.msra.mxu0 0.0
        %780 = vmatprep.mubr.f32.mxu0 0.0
        %781 = vmatmul.mubr.f32.gmra.mxu0 %v693
        %v782 = vpop.f32.mrf.mxu0
        %v783 = vadd.f32 0.0, %v782
        %v784 = vpop.f32.mrf.mxu0
        %785 = vmatprep.mubr.f32.mxu0 0.0
        %786 = vmatmul.mubr.f32.gmra.mxu0 %v696
        %v787 = vpop.f32.mrf.mxu0
        %v788 = vadd.f32 0.0, %v787
        %v789 = vpop.f32.mrf.mxu0
        %790 = vmatprep.mubr.f32.mxu0 0.0
        %791 = vmatmul.mubr.f32.gmra.mxu0 %v699
        %v792 = vpop.f32.mrf.mxu0
        %v793 = vadd.f32 0.0, %v792
        %v794 = vpop.f32.mrf.mxu0
        %795 = vmatprep.mubr.f32.mxu0 0.0
        %796 = vmatmul.mubr.f32.gmra.mxu0 %v702
        %v797 = vpop.f32.mrf.mxu0
        %v798 = vadd.f32 0.0, %v797
        %v799 = vpop.f32.mrf.mxu0
        %800 = vmatprep.mubr.f32.mxu0 0.0
        %801 = vmatmul.mubr.f32.gmra.mxu0 %v705
        %v802 = vpop.f32.mrf.mxu0
        %v803 = vadd.f32 0.0, %v802
        %v804 = vpop.f32.mrf.mxu0
        %805 = vmatprep.mubr.f32.mxu0 0.0
        %806 = vmatmul.mubr.f32.gmra.mxu0 %v708
        %v807 = vpop.f32.mrf.mxu0
        %v808 = vadd.f32 0.0, %v807
        %v809 = vpop.f32.mrf.mxu0
        %810 = vmatprep.mubr.f32.mxu0 0.0
        %811 = vmatmul.mubr.f32.gmra.mxu0 %v711
        %v812 = vpop.f32.mrf.mxu0
        %v813 = vadd.f32 0.0, %v812
        %v814 = vpop.f32.mrf.mxu0
        %815 = vmatprep.mubr.f32.mxu0 0.0
        %816 = vmatmul.mubr.f32.gmra.mxu0 %v714
        %v817 = vpop.f32.mrf.mxu0
        %v818 = vadd.f32 0.0, %v817
        %v819 = vpop.f32.mrf.mxu0
        %820 = vdwg.mxu0
        %822 = vset.pattern.permute.xlu0 0
        %823 = vperm.xlu0 %822, %v522
        %v824 = vpop.permute.xlu0 %823
        %827 = vset.pattern.permute.xlu0 0
        %828 = vperm.xlu0 %827, %v523
        %v829 = vpop.permute.xlu0 %828
        %832 = vset.pattern.permute.xlu0 0
        %833 = vperm.xlu0 %832, %v524
        %v834 = vpop.permute.xlu0 %833
        %837 = vset.pattern.permute.xlu0 0
        %838 = vperm.xlu0 %837, %v525
        %v839 = vpop.permute.xlu0 %838
        %842 = vset.pattern.permute.xlu0 0
        %843 = vperm.xlu0 %842, %v526
        %v844 = vpop.permute.xlu0 %843
        %847 = vset.pattern.permute.xlu0 0
        %848 = vperm.xlu0 %847, %v527
        %v849 = vpop.permute.xlu0 %848
        %852 = vset.pattern.permute.xlu0 0
        %853 = vperm.xlu0 %852, %v528
        %v854 = vpop.permute.xlu0 %853
        %857 = vset.pattern.permute.xlu0 0
        %858 = vperm.xlu0 %857, %v529
        %v859 = vpop.permute.xlu0 %858
        %v869 = vlaneseq
        %v870 = vshrl.u32 %v869, 7
        %v871 = vsub.s32 0, %v870
        %v872 = vrot.slane %v530, %v871
        %v873 = vlaneseq
        %v874 = vshrl.u32 %v873, 7
        %v875 = vsub.s32 0, %v874
        %v876 = vrot.slane %v531, %v875
        %v877 = vlaneseq
        %v878 = vshrl.u32 %v877, 7
        %v879 = vsub.s32 0, %v878
        %v880 = vrot.slane %v532, %v879
        %v881 = vlaneseq
        %v882 = vshrl.u32 %v881, 7
        %v883 = vsub.s32 0, %v882
        %v884 = vrot.slane %v533, %v883
        %v885 = vlaneseq
        %v886 = vshrl.u32 %v885, 7
        %v887 = vsub.s32 0, %v886
        %v888 = vrot.slane %v534, %v887
        %v889 = vlaneseq
        %v890 = vshrl.u32 %v889, 7
        %v891 = vsub.s32 0, %v890
        %v892 = vrot.slane %v535, %v891
        %v893 = vlaneseq
        %v894 = vshrl.u32 %v893, 7
        %v895 = vsub.s32 0, %v894
        %v896 = vrot.slane %v536, %v895
        %v897 = vlaneseq
        %v898 = vshrl.u32 %v897, 7
        %v899 = vsub.s32 0, %v898
        %v900 = vrot.slane %v537, %v899
        %v909 = vmul.f32 %v824, %v872
        %v910 = vmul.f32 %v829, %v876
        %v911 = vmul.f32 %v834, %v880
        %v912 = vmul.f32 %v839, %v884
        %v913 = vmul.f32 %v844, %v888
        %v914 = vmul.f32 %v849, %v892
        %v915 = vmul.f32 %v854, %v896
        %v916 = vmul.f32 %v859, %v900
        %917 = vrot.lane.b32.xlu0 %v682, 112
        %v918 = vpop.permute.xlu0 %917
        %v920 = vsel %vm552, %v783, 0
        %v922 = vsel %vm552, %v918, 0
        %924 = vmatprep.subr.mxu0 0.0
        %925 = vmatpush1.xpose.msra.mxu0 0.0
        %926 = vmatprep.subr.mxu0 0.0
        %927 = vmatpush1.xpose.msra.mxu0 0.0
        %928 = vmatprep.subr.mxu0 0.0
        %929 = vmatpush1.xpose.msra.mxu0 0.0
        %930 = vmatprep.subr.mxu0 0.0
        %931 = vmatpush1.xpose.msra.mxu0 0.0
        %932 = vmatprep.subr.mxu0 0.0
        %933 = vmatpush1.xpose.msra.mxu0 0.0
        %934 = vmatprep.subr.mxu0 0.0
        %935 = vmatpush1.xpose.msra.mxu0 0.0
        %936 = vmatprep.subr.mxu0 0.0
        %937 = vmatpush1.xpose.msra.mxu0 0.0
        %938 = vmatprep.subr.mxu0 0.0
        %939 = vmatpush1.xpose.msra.mxu0 0.0
        %940 = vmatprep.subr.mxu0 0.0
        %941 = vmatpush1.xpose.msra.mxu0 0.0
        %942 = vmatprep.subr.mxu0 0.0
        %943 = vmatpush1.xpose.msra.mxu0 0.0
        %944 = vmatprep.subr.mxu0 0.0
        %945 = vmatpush1.xpose.msra.mxu0 0.0
        %946 = vmatprep.subr.mxu0 0.0
        %947 = vmatpush1.xpose.msra.mxu0 0.0
        %948 = vmatprep.subr.mxu0 0.0
        %949 = vmatpush1.xpose.msra.mxu0 0.0
        %950 = vmatprep.subr.mxu0 0.0
        %951 = vmatpush1.xpose.msra.mxu0 0.0
        %952 = vmatprep.subr.mxu0 0.0
        %953 = vmatpush1.xpose.msra.mxu0 0.0
        %954 = vmatprep.subr.mxu0 0.0
        %955 = vmatpush1.xpose.msra.mxu0 %v922
        %956 = vmatprep.subr.mxu0 0.0
        %957 = vmatpush2.xpose.msra.mxu0 0.0
        %958 = vmatprep.subr.mxu0 0.0
        %959 = vmatpush2.xpose.msra.mxu0 0.0
        %960 = vmatprep.subr.mxu0 0.0
        %961 = vmatpush2.xpose.msra.mxu0 0.0
        %962 = vmatprep.subr.mxu0 0.0
        %963 = vmatpush2.xpose.msra.mxu0 0.0
        %964 = vmatprep.subr.mxu0 0.0
        %965 = vmatpush2.xpose.msra.mxu0 0.0
        %966 = vmatprep.subr.mxu0 0.0
        %967 = vmatpush2.xpose.msra.mxu0 0.0
        %968 = vmatprep.subr.mxu0 0.0
        %969 = vmatpush2.xpose.msra.mxu0 0.0
        %970 = vmatprep.subr.mxu0 0.0
        %971 = vmatpush2.xpose.msra.mxu0 0.0
        %972 = vmatprep.subr.mxu0 0.0
        %973 = vmatpush2.xpose.msra.mxu0 0.0
        %974 = vmatprep.subr.mxu0 0.0
        %975 = vmatpush2.xpose.msra.mxu0 0.0
        %976 = vmatprep.subr.mxu0 0.0
        %977 = vmatpush2.xpose.msra.mxu0 0.0
        %978 = vmatprep.subr.mxu0 0.0
        %979 = vmatpush2.xpose.msra.mxu0 0.0
        %980 = vmatprep.subr.mxu0 0.0
        %981 = vmatpush2.xpose.msra.mxu0 0.0
        %982 = vmatprep.subr.mxu0 0.0
        %983 = vmatpush2.xpose.msra.mxu0 0.0
        %984 = vmatprep.subr.mxu0 0.0
        %985 = vmatpush2.xpose.msra.mxu0 0.0
        %986 = vmatprep.subr.mxu0 0.0
        %987 = vmatpush2.xpose.msra.mxu0 0.0
        %988 = vmatprep.mubr.f32.mxu0 0.0
        %989 = vmatmul.mubr.f32.gmra.mxu0 %v920
        %v990 = vpop.f32.mrf.mxu0
        %v991 = vadd.f32 0.0, %v990
        %v992 = vpop.f32.mrf.mxu0
        %993 = vdwg.mxu0
        %994 = vrot.lane.b32.xlu0 %v683, 112
        %v995 = vpop.permute.xlu0 %994
        %v997 = vsel %vm552, %v788, 0
        %v999 = vsel %vm552, %v995, 0
        %1001 = vmatprep.subr.mxu0 0.0
        %1002 = vmatpush1.xpose.msra.mxu0 0.0
        %1003 = vmatprep.subr.mxu0 0.0
        %1004 = vmatpush1.xpose.msra.mxu0 0.0
        %1005 = vmatprep.subr.mxu0 0.0
        %1006 = vmatpush1.xpose.msra.mxu0 0.0
        %1007 = vmatprep.subr.mxu0 0.0
        %1008 = vmatpush1.xpose.msra.mxu0 0.0
        %1009 = vmatprep.subr.mxu0 0.0
        %1010 = vmatpush1.xpose.msra.mxu0 0.0
        %1011 = vmatprep.subr.mxu0 0.0
        %1012 = vmatpush1.xpose.msra.mxu0 0.0
        %1013 = vmatprep.subr.mxu0 0.0
        %1014 = vmatpush1.xpose.msra.mxu0 0.0
        %1015 = vmatprep.subr.mxu0 0.0
        %1016 = vmatpush1.xpose.msra.mxu0 0.0
        %1017 = vmatprep.subr.mxu0 0.0
        %1018 = vmatpush1.xpose.msra.mxu0 0.0
        %1019 = vmatprep.subr.mxu0 0.0
        %1020 = vmatpush1.xpose.msra.mxu0 0.0
        %1021 = vmatprep.subr.mxu0 0.0
        %1022 = vmatpush1.xpose.msra.mxu0 0.0
        %1023 = vmatprep.subr.mxu0 0.0
        %1024 = vmatpush1.xpose.msra.mxu0 0.0
        %1025 = vmatprep.subr.mxu0 0.0
        %1026 = vmatpush1.xpose.msra.mxu0 0.0
        %1027 = vmatprep.subr.mxu0 0.0
        %1028 = vmatpush1.xpose.msra.mxu0 0.0
        %1029 = vmatprep.subr.mxu0 0.0
        %1030 = vmatpush1.xpose.msra.mxu0 0.0
        %1031 = vmatprep.subr.mxu0 0.0
        %1032 = vmatpush1.xpose.msra.mxu0 %v999
        %1033 = vmatprep.subr.mxu0 0.0
        %1034 = vmatpush2.xpose.msra.mxu0 0.0
        %1035 = vmatprep.subr.mxu0 0.0
        %1036 = vmatpush2.xpose.msra.mxu0 0.0
        %1037 = vmatprep.subr.mxu0 0.0
        %1038 = vmatpush2.xpose.msra.mxu0 0.0
        %1039 = vmatprep.subr.mxu0 0.0
        %1040 = vmatpush2.xpose.msra.mxu0 0.0
        %1041 = vmatprep.subr.mxu0 0.0
        %1042 = vmatpush2.xpose.msra.mxu0 0.0
        %1043 = vmatprep.subr.mxu0 0.0
        %1044 = vmatpush2.xpose.msra.mxu0 0.0
        %1045 = vmatprep.subr.mxu0 0.0
        %1046 = vmatpush2.xpose.msra.mxu0 0.0
        %1047 = vmatprep.subr.mxu0 0.0
        %1048 = vmatpush2.xpose.msra.mxu0 0.0
        %1049 = vmatprep.subr.mxu0 0.0
        %1050 = vmatpush2.xpose.msra.mxu0 0.0
        %1051 = vmatprep.subr.mxu0 0.0
        %1052 = vmatpush2.xpose.msra.mxu0 0.0
        %1053 = vmatprep.subr.mxu0 0.0
        %1054 = vmatpush2.xpose.msra.mxu0 0.0
        %1055 = vmatprep.subr.mxu0 0.0
        %1056 = vmatpush2.xpose.msra.mxu0 0.0
        %1057 = vmatprep.subr.mxu0 0.0
        %1058 = vmatpush2.xpose.msra.mxu0 0.0
        %1059 = vmatprep.subr.mxu0 0.0
        %1060 = vmatpush2.xpose.msra.mxu0 0.0
        %1061 = vmatprep.subr.mxu0 0.0
        %1062 = vmatpush2.xpose.msra.mxu0 0.0
        %1063 = vmatprep.subr.mxu0 0.0
        %1064 = vmatpush2.xpose.msra.mxu0 0.0
        %1065 = vmatprep.mubr.f32.mxu0 0.0
        %1066 = vmatmul.mubr.f32.gmra.mxu0 %v997
        %v1067 = vpop.f32.mrf.mxu0
        %v1068 = vadd.f32 0.0, %v1067
        %v1069 = vpop.f32.mrf.mxu0
        %1070 = vdwg.mxu0
        %1071 = vrot.lane.b32.xlu0 %v684, 112
        %v1072 = vpop.permute.xlu0 %1071
        %v1074 = vsel %vm552, %v793, 0
        %v1076 = vsel %vm552, %v1072, 0
        %1078 = vmatprep.subr.mxu0 0.0
        %1079 = vmatpush1.xpose.msra.mxu0 0.0
        %1080 = vmatprep.subr.mxu0 0.0
        %1081 = vmatpush1.xpose.msra.mxu0 0.0
        %1082 = vmatprep.subr.mxu0 0.0
        %1083 = vmatpush1.xpose.msra.mxu0 0.0
        %1084 = vmatprep.subr.mxu0 0.0
        %1085 = vmatpush1.xpose.msra.mxu0 0.0
        %1086 = vmatprep.subr.mxu0 0.0
        %1087 = vmatpush1.xpose.msra.mxu0 0.0
        %1088 = vmatprep.subr.mxu0 0.0
        %1089 = vmatpush1.xpose.msra.mxu0 0.0
        %1090 = vmatprep.subr.mxu0 0.0
        %1091 = vmatpush1.xpose.msra.mxu0 0.0
        %1092 = vmatprep.subr.mxu0 0.0
        %1093 = vmatpush1.xpose.msra.mxu0 0.0
        %1094 = vmatprep.subr.mxu0 0.0
        %1095 = vmatpush1.xpose.msra.mxu0 0.0
        %1096 = vmatprep.subr.mxu0 0.0
        %1097 = vmatpush1.xpose.msra.mxu0 0.0
        %1098 = vmatprep.subr.mxu0 0.0
        %1099 = vmatpush1.xpose.msra.mxu0 0.0
        %1100 = vmatprep.subr.mxu0 0.0
        %1101 = vmatpush1.xpose.msra.mxu0 0.0
        %1102 = vmatprep.subr.mxu0 0.0
        %1103 = vmatpush1.xpose.msra.mxu0 0.0
        %1104 = vmatprep.subr.mxu0 0.0
        %1105 = vmatpush1.xpose.msra.mxu0 0.0
        %1106 = vmatprep.subr.mxu0 0.0
        %1107 = vmatpush1.xpose.msra.mxu0 0.0
        %1108 = vmatprep.subr.mxu0 0.0
        %1109 = vmatpush1.xpose.msra.mxu0 %v1076
        %1110 = vmatprep.subr.mxu0 0.0
        %1111 = vmatpush2.xpose.msra.mxu0 0.0
        %1112 = vmatprep.subr.mxu0 0.0
        %1113 = vmatpush2.xpose.msra.mxu0 0.0
        %1114 = vmatprep.subr.mxu0 0.0
        %1115 = vmatpush2.xpose.msra.mxu0 0.0
        %1116 = vmatprep.subr.mxu0 0.0
        %1117 = vmatpush2.xpose.msra.mxu0 0.0
        %1118 = vmatprep.subr.mxu0 0.0
        %1119 = vmatpush2.xpose.msra.mxu0 0.0
        %1120 = vmatprep.subr.mxu0 0.0
        %1121 = vmatpush2.xpose.msra.mxu0 0.0
        %1122 = vmatprep.subr.mxu0 0.0
        %1123 = vmatpush2.xpose.msra.mxu0 0.0
        %1124 = vmatprep.subr.mxu0 0.0
        %1125 = vmatpush2.xpose.msra.mxu0 0.0
        %1126 = vmatprep.subr.mxu0 0.0
        %1127 = vmatpush2.xpose.msra.mxu0 0.0
        %1128 = vmatprep.subr.mxu0 0.0
        %1129 = vmatpush2.xpose.msra.mxu0 0.0
        %1130 = vmatprep.subr.mxu0 0.0
        %1131 = vmatpush2.xpose.msra.mxu0 0.0
        %1132 = vmatprep.subr.mxu0 0.0
        %1133 = vmatpush2.xpose.msra.mxu0 0.0
        %1134 = vmatprep.subr.mxu0 0.0
        %1135 = vmatpush2.xpose.msra.mxu0 0.0
        %1136 = vmatprep.subr.mxu0 0.0
        %1137 = vmatpush2.xpose.msra.mxu0 0.0
        %1138 = vmatprep.subr.mxu0 0.0
        %1139 = vmatpush2.xpose.msra.mxu0 0.0
        %1140 = vmatprep.subr.mxu0 0.0
        %1141 = vmatpush2.xpose.msra.mxu0 0.0
        %1142 = vmatprep.mubr.f32.mxu0 0.0
        %1143 = vmatmul.mubr.f32.gmra.mxu0 %v1074
        %v1144 = vpop.f32.mrf.mxu0
        %v1145 = vadd.f32 0.0, %v1144
        %v1146 = vpop.f32.mrf.mxu0
        %1147 = vdwg.mxu0
        %1148 = vrot.lane.b32.xlu0 %v685, 112
        %v1149 = vpop.permute.xlu0 %1148
        %v1151 = vsel %vm552, %v798, 0
        %v1153 = vsel %vm552, %v1149, 0
        %1155 = vmatprep.subr.mxu0 0.0
        %1156 = vmatpush1.xpose.msra.mxu0 0.0
        %1157 = vmatprep.subr.mxu0 0.0
        %1158 = vmatpush1.xpose.msra.mxu0 0.0
        %1159 = vmatprep.subr.mxu0 0.0
        %1160 = vmatpush1.xpose.msra.mxu0 0.0
        %1161 = vmatprep.subr.mxu0 0.0
        %1162 = vmatpush1.xpose.msra.mxu0 0.0
        %1163 = vmatprep.subr.mxu0 0.0
        %1164 = vmatpush1.xpose.msra.mxu0 0.0
        %1165 = vmatprep.subr.mxu0 0.0
        %1166 = vmatpush1.xpose.msra.mxu0 0.0
        %1167 = vmatprep.subr.mxu0 0.0
        %1168 = vmatpush1.xpose.msra.mxu0 0.0
        %1169 = vmatprep.subr.mxu0 0.0
        %1170 = vmatpush1.xpose.msra.mxu0 0.0
        %1171 = vmatprep.subr.mxu0 0.0
        %1172 = vmatpush1.xpose.msra.mxu0 0.0
        %1173 = vmatprep.subr.mxu0 0.0
        %1174 = vmatpush1.xpose.msra.mxu0 0.0
        %1175 = vmatprep.subr.mxu0 0.0
        %1176 = vmatpush1.xpose.msra.mxu0 0.0
        %1177 = vmatprep.subr.mxu0 0.0
        %1178 = vmatpush1.xpose.msra.mxu0 0.0
        %1179 = vmatprep.subr.mxu0 0.0
        %1180 = vmatpush1.xpose.msra.mxu0 0.0
        %1181 = vmatprep.subr.mxu0 0.0
        %1182 = vmatpush1.xpose.msra.mxu0 0.0
        %1183 = vmatprep.subr.mxu0 0.0
        %1184 = vmatpush1.xpose.msra.mxu0 0.0
        %1185 = vmatprep.subr.mxu0 0.0
        %1186 = vmatpush1.xpose.msra.mxu0 %v1153
        %1187 = vmatprep.subr.mxu0 0.0
        %1188 = vmatpush2.xpose.msra.mxu0 0.0
        %1189 = vmatprep.subr.mxu0 0.0
        %1190 = vmatpush2.xpose.msra.mxu0 0.0
        %1191 = vmatprep.subr.mxu0 0.0
        %1192 = vmatpush2.xpose.msra.mxu0 0.0
        %1193 = vmatprep.subr.mxu0 0.0
        %1194 = vmatpush2.xpose.msra.mxu0 0.0
        %1195 = vmatprep.subr.mxu0 0.0
        %1196 = vmatpush2.xpose.msra.mxu0 0.0
        %1197 = vmatprep.subr.mxu0 0.0
        %1198 = vmatpush2.xpose.msra.mxu0 0.0
        %1199 = vmatprep.subr.mxu0 0.0
        %1200 = vmatpush2.xpose.msra.mxu0 0.0
        %1201 = vmatprep.subr.mxu0 0.0
        %1202 = vmatpush2.xpose.msra.mxu0 0.0
        %1203 = vmatprep.subr.mxu0 0.0
        %1204 = vmatpush2.xpose.msra.mxu0 0.0
        %1205 = vmatprep.subr.mxu0 0.0
        %1206 = vmatpush2.xpose.msra.mxu0 0.0
        %1207 = vmatprep.subr.mxu0 0.0
        %1208 = vmatpush2.xpose.msra.mxu0 0.0
        %1209 = vmatprep.subr.mxu0 0.0
        %1210 = vmatpush2.xpose.msra.mxu0 0.0
        %1211 = vmatprep.subr.mxu0 0.0
        %1212 = vmatpush2.xpose.msra.mxu0 0.0
        %1213 = vmatprep.subr.mxu0 0.0
        %1214 = vmatpush2.xpose.msra.mxu0 0.0
        %1215 = vmatprep.subr.mxu0 0.0
        %1216 = vmatpush2.xpose.msra.mxu0 0.0
        %1217 = vmatprep.subr.mxu0 0.0
        %1218 = vmatpush2.xpose.msra.mxu0 0.0
        %1219 = vmatprep.mubr.f32.mxu0 0.0
        %1220 = vmatmul.mubr.f32.gmra.mxu0 %v1151
        %v1221 = vpop.f32.mrf.mxu0
        %v1222 = vadd.f32 0.0, %v1221
        %v1223 = vpop.f32.mrf.mxu0
        %1224 = vdwg.mxu0
        %1225 = vrot.lane.b32.xlu0 %v686, 112
        %v1226 = vpop.permute.xlu0 %1225
        %v1228 = vsel %vm552, %v803, 0
        %v1230 = vsel %vm552, %v1226, 0
        %1232 = vmatprep.subr.mxu0 0.0
        %1233 = vmatpush1.xpose.msra.mxu0 0.0
        %1234 = vmatprep.subr.mxu0 0.0
        %1235 = vmatpush1.xpose.msra.mxu0 0.0
        %1236 = vmatprep.subr.mxu0 0.0
        %1237 = vmatpush1.xpose.msra.mxu0 0.0
        %1238 = vmatprep.subr.mxu0 0.0
        %1239 = vmatpush1.xpose.msra.mxu0 0.0
        %1240 = vmatprep.subr.mxu0 0.0
        %1241 = vmatpush1.xpose.msra.mxu0 0.0
        %1242 = vmatprep.subr.mxu0 0.0
        %1243 = vmatpush1.xpose.msra.mxu0 0.0
        %1244 = vmatprep.subr.mxu0 0.0
        %1245 = vmatpush1.xpose.msra.mxu0 0.0
        %1246 = vmatprep.subr.mxu0 0.0
        %1247 = vmatpush1.xpose.msra.mxu0 0.0
        %1248 = vmatprep.subr.mxu0 0.0
        %1249 = vmatpush1.xpose.msra.mxu0 0.0
        %1250 = vmatprep.subr.mxu0 0.0
        %1251 = vmatpush1.xpose.msra.mxu0 0.0
        %1252 = vmatprep.subr.mxu0 0.0
        %1253 = vmatpush1.xpose.msra.mxu0 0.0
        %1254 = vmatprep.subr.mxu0 0.0
        %1255 = vmatpush1.xpose.msra.mxu0 0.0
        %1256 = vmatprep.subr.mxu0 0.0
        %1257 = vmatpush1.xpose.msra.mxu0 0.0
        %1258 = vmatprep.subr.mxu0 0.0
        %1259 = vmatpush1.xpose.msra.mxu0 0.0
        %1260 = vmatprep.subr.mxu0 0.0
        %1261 = vmatpush1.xpose.msra.mxu0 0.0
        %1262 = vmatprep.subr.mxu0 0.0
        %1263 = vmatpush1.xpose.msra.mxu0 %v1230
        %1264 = vmatprep.subr.mxu0 0.0
        %1265 = vmatpush2.xpose.msra.mxu0 0.0
        %1266 = vmatprep.subr.mxu0 0.0
        %1267 = vmatpush2.xpose.msra.mxu0 0.0
        %1268 = vmatprep.subr.mxu0 0.0
        %1269 = vmatpush2.xpose.msra.mxu0 0.0
        %1270 = vmatprep.subr.mxu0 0.0
        %1271 = vmatpush2.xpose.msra.mxu0 0.0
        %1272 = vmatprep.subr.mxu0 0.0
        %1273 = vmatpush2.xpose.msra.mxu0 0.0
        %1274 = vmatprep.subr.mxu0 0.0
        %1275 = vmatpush2.xpose.msra.mxu0 0.0
        %1276 = vmatprep.subr.mxu0 0.0
        %1277 = vmatpush2.xpose.msra.mxu0 0.0
        %1278 = vmatprep.subr.mxu0 0.0
        %1279 = vmatpush2.xpose.msra.mxu0 0.0
        %1280 = vmatprep.subr.mxu0 0.0
        %1281 = vmatpush2.xpose.msra.mxu0 0.0
        %1282 = vmatprep.subr.mxu0 0.0
        %1283 = vmatpush2.xpose.msra.mxu0 0.0
        %1284 = vmatprep.subr.mxu0 0.0
        %1285 = vmatpush2.xpose.msra.mxu0 0.0
        %1286 = vmatprep.subr.mxu0 0.0
        %1287 = vmatpush2.xpose.msra.mxu0 0.0
        %1288 = vmatprep.subr.mxu0 0.0
        %1289 = vmatpush2.xpose.msra.mxu0 0.0
        %1290 = vmatprep.subr.mxu0 0.0
        %1291 = vmatpush2.xpose.msra.mxu0 0.0
        %1292 = vmatprep.subr.mxu0 0.0
        %1293 = vmatpush2.xpose.msra.mxu0 0.0
        %1294 = vmatprep.subr.mxu0 0.0
        %1295 = vmatpush2.xpose.msra.mxu0 0.0
        %1296 = vmatprep.mubr.f32.mxu0 0.0
        %1297 = vmatmul.mubr.f32.gmra.mxu0 %v1228
        %v1298 = vpop.f32.mrf.mxu0
        %v1299 = vadd.f32 0.0, %v1298
        %v1300 = vpop.f32.mrf.mxu0
        %1301 = vdwg.mxu0
        %1302 = vrot.lane.b32.xlu0 %v687, 112
        %v1303 = vpop.permute.xlu0 %1302
        %v1305 = vsel %vm552, %v808, 0
        %v1307 = vsel %vm552, %v1303, 0
        %1309 = vmatprep.subr.mxu0 0.0
        %1310 = vmatpush1.xpose.msra.mxu0 0.0
        %1311 = vmatprep.subr.mxu0 0.0
        %1312 = vmatpush1.xpose.msra.mxu0 0.0
        %1313 = vmatprep.subr.mxu0 0.0
        %1314 = vmatpush1.xpose.msra.mxu0 0.0
        %1315 = vmatprep.subr.mxu0 0.0
        %1316 = vmatpush1.xpose.msra.mxu0 0.0
        %1317 = vmatprep.subr.mxu0 0.0
        %1318 = vmatpush1.xpose.msra.mxu0 0.0
        %1319 = vmatprep.subr.mxu0 0.0
        %1320 = vmatpush1.xpose.msra.mxu0 0.0
        %1321 = vmatprep.subr.mxu0 0.0
        %1322 = vmatpush1.xpose.msra.mxu0 0.0
        %1323 = vmatprep.subr.mxu0 0.0
        %1324 = vmatpush1.xpose.msra.mxu0 0.0
        %1325 = vmatprep.subr.mxu0 0.0
        %1326 = vmatpush1.xpose.msra.mxu0 0.0
        %1327 = vmatprep.subr.mxu0 0.0
        %1328 = vmatpush1.xpose.msra.mxu0 0.0
        %1329 = vmatprep.subr.mxu0 0.0
        %1330 = vmatpush1.xpose.msra.mxu0 0.0
        %1331 = vmatprep.subr.mxu0 0.0
        %1332 = vmatpush1.xpose.msra.mxu0 0.0
        %1333 = vmatprep.subr.mxu0 0.0
        %1334 = vmatpush1.xpose.msra.mxu0 0.0
        %1335 = vmatprep.subr.mxu0 0.0
        %1336 = vmatpush1.xpose.msra.mxu0 0.0
        %1337 = vmatprep.subr.mxu0 0.0
        %1338 = vmatpush1.xpose.msra.mxu0 0.0
        %1339 = vmatprep.subr.mxu0 0.0
        %1340 = vmatpush1.xpose.msra.mxu0 %v1307
        %1341 = vmatprep.subr.mxu0 0.0
        %1342 = vmatpush2.xpose.msra.mxu0 0.0
        %1343 = vmatprep.subr.mxu0 0.0
        %1344 = vmatpush2.xpose.msra.mxu0 0.0
        %1345 = vmatprep.subr.mxu0 0.0
        %1346 = vmatpush2.xpose.msra.mxu0 0.0
        %1347 = vmatprep.subr.mxu0 0.0
        %1348 = vmatpush2.xpose.msra.mxu0 0.0
        %1349 = vmatprep.subr.mxu0 0.0
        %1350 = vmatpush2.xpose.msra.mxu0 0.0
        %1351 = vmatprep.subr.mxu0 0.0
        %1352 = vmatpush2.xpose.msra.mxu0 0.0
        %1353 = vmatprep.subr.mxu0 0.0
        %1354 = vmatpush2.xpose.msra.mxu0 0.0
        %1355 = vmatprep.subr.mxu0 0.0
        %1356 = vmatpush2.xpose.msra.mxu0 0.0
        %1357 = vmatprep.subr.mxu0 0.0
        %1358 = vmatpush2.xpose.msra.mxu0 0.0
        %1359 = vmatprep.subr.mxu0 0.0
        %1360 = vmatpush2.xpose.msra.mxu0 0.0
        %1361 = vmatprep.subr.mxu0 0.0
        %1362 = vmatpush2.xpose.msra.mxu0 0.0
        %1363 = vmatprep.subr.mxu0 0.0
        %1364 = vmatpush2.xpose.msra.mxu0 0.0
        %1365 = vmatprep.subr.mxu0 0.0
        %1366 = vmatpush2.xpose.msra.mxu0 0.0
        %1367 = vmatprep.subr.mxu0 0.0
        %1368 = vmatpush2.xpose.msra.mxu0 0.0
        %1369 = vmatprep.subr.mxu0 0.0
        %1370 = vmatpush2.xpose.msra.mxu0 0.0
        %1371 = vmatprep.subr.mxu0 0.0
        %1372 = vmatpush2.xpose.msra.mxu0 0.0
        %1373 = vmatprep.mubr.f32.mxu0 0.0
        %1374 = vmatmul.mubr.f32.gmra.mxu0 %v1305
        %v1375 = vpop.f32.mrf.mxu0
        %v1376 = vadd.f32 0.0, %v1375
        %v1377 = vpop.f32.mrf.mxu0
        %1378 = vdwg.mxu0
        %1379 = vrot.lane.b32.xlu0 %v688, 112
        %v1380 = vpop.permute.xlu0 %1379
        %v1382 = vsel %vm552, %v813, 0
        %v1384 = vsel %vm552, %v1380, 0
        %1386 = vmatprep.subr.mxu0 0.0
        %1387 = vmatpush1.xpose.msra.mxu0 0.0
        %1388 = vmatprep.subr.mxu0 0.0
        %1389 = vmatpush1.xpose.msra.mxu0 0.0
        %1390 = vmatprep.subr.mxu0 0.0
        %1391 = vmatpush1.xpose.msra.mxu0 0.0
        %1392 = vmatprep.subr.mxu0 0.0
        %1393 = vmatpush1.xpose.msra.mxu0 0.0
        %1394 = vmatprep.subr.mxu0 0.0
        %1395 = vmatpush1.xpose.msra.mxu0 0.0
        %1396 = vmatprep.subr.mxu0 0.0
        %1397 = vmatpush1.xpose.msra.mxu0 0.0
        %1398 = vmatprep.subr.mxu0 0.0
        %1399 = vmatpush1.xpose.msra.mxu0 0.0
        %1400 = vmatprep.subr.mxu0 0.0
        %1401 = vmatpush1.xpose.msra.mxu0 0.0
        %1402 = vmatprep.subr.mxu0 0.0
        %1403 = vmatpush1.xpose.msra.mxu0 0.0
        %1404 = vmatprep.subr.mxu0 0.0
        %1405 = vmatpush1.xpose.msra.mxu0 0.0
        %1406 = vmatprep.subr.mxu0 0.0
        %1407 = vmatpush1.xpose.msra.mxu0 0.0
        %1408 = vmatprep.subr.mxu0 0.0
        %1409 = vmatpush1.xpose.msra.mxu0 0.0
        %1410 = vmatprep.subr.mxu0 0.0
        %1411 = vmatpush1.xpose.msra.mxu0 0.0
        %1412 = vmatprep.subr.mxu0 0.0
        %1413 = vmatpush1.xpose.msra.mxu0 0.0
        %1414 = vmatprep.subr.mxu0 0.0
        %1415 = vmatpush1.xpose.msra.mxu0 0.0
        %1416 = vmatprep.subr.mxu0 0.0
        %1417 = vmatpush1.xpose.msra.mxu0 %v1384
        %1418 = vmatprep.subr.mxu0 0.0
        %1419 = vmatpush2.xpose.msra.mxu0 0.0
        %1420 = vmatprep.subr.mxu0 0.0
        %1421 = vmatpush2.xpose.msra.mxu0 0.0
        %1422 = vmatprep.subr.mxu0 0.0
        %1423 = vmatpush2.xpose.msra.mxu0 0.0
        %1424 = vmatprep.subr.mxu0 0.0
        %1425 = vmatpush2.xpose.msra.mxu0 0.0
        %1426 = vmatprep.subr.mxu0 0.0
        %1427 = vmatpush2.xpose.msra.mxu0 0.0
        %1428 = vmatprep.subr.mxu0 0.0
        %1429 = vmatpush2.xpose.msra.mxu0 0.0
        %1430 = vmatprep.subr.mxu0 0.0
        %1431 = vmatpush2.xpose.msra.mxu0 0.0
        %1432 = vmatprep.subr.mxu0 0.0
        %1433 = vmatpush2.xpose.msra.mxu0 0.0
        %1434 = vmatprep.subr.mxu0 0.0
        %1435 = vmatpush2.xpose.msra.mxu0 0.0
        %1436 = vmatprep.subr.mxu0 0.0
        %1437 = vmatpush2.xpose.msra.mxu0 0.0
        %1438 = vmatprep.subr.mxu0 0.0
        %1439 = vmatpush2.xpose.msra.mxu0 0.0
        %1440 = vmatprep.subr.mxu0 0.0
        %1441 = vmatpush2.xpose.msra.mxu0 0.0
        %1442 = vmatprep.subr.mxu0 0.0
        %1443 = vmatpush2.xpose.msra.mxu0 0.0
        %1444 = vmatprep.subr.mxu0 0.0
        %1445 = vmatpush2.xpose.msra.mxu0 0.0
        %1446 = vmatprep.subr.mxu0 0.0
        %1447 = vmatpush2.xpose.msra.mxu0 0.0
        %1448 = vmatprep.subr.mxu0 0.0
        %1449 = vmatpush2.xpose.msra.mxu0 0.0
        %1450 = vmatprep.mubr.f32.mxu0 0.0
        %1451 = vmatmul.mubr.f32.gmra.mxu0 %v1382
        %v1452 = vpop.f32.mrf.mxu0
        %v1453 = vadd.f32 0.0, %v1452
        %v1454 = vpop.f32.mrf.mxu0
        %1455 = vdwg.mxu0
        %1456 = vrot.lane.b32.xlu0 %v689, 112
        %v1457 = vpop.permute.xlu0 %1456
        %v1459 = vsel %vm552, %v818, 0
        %v1461 = vsel %vm552, %v1457, 0
        %1463 = vmatprep.subr.mxu0 0.0
        %1464 = vmatpush1.xpose.msra.mxu0 0.0
        %1465 = vmatprep.subr.mxu0 0.0
        %1466 = vmatpush1.xpose.msra.mxu0 0.0
        %1467 = vmatprep.subr.mxu0 0.0
        %1468 = vmatpush1.xpose.msra.mxu0 0.0
        %1469 = vmatprep.subr.mxu0 0.0
        %1470 = vmatpush1.xpose.msra.mxu0 0.0
        %1471 = vmatprep.subr.mxu0 0.0
        %1472 = vmatpush1.xpose.msra.mxu0 0.0
        %1473 = vmatprep.subr.mxu0 0.0
        %1474 = vmatpush1.xpose.msra.mxu0 0.0
        %1475 = vmatprep.subr.mxu0 0.0
        %1476 = vmatpush1.xpose.msra.mxu0 0.0
        %1477 = vmatprep.subr.mxu0 0.0
        %1478 = vmatpush1.xpose.msra.mxu0 0.0
        %1479 = vmatprep.subr.mxu0 0.0
        %1480 = vmatpush1.xpose.msra.mxu0 0.0
        %1481 = vmatprep.subr.mxu0 0.0
        %1482 = vmatpush1.xpose.msra.mxu0 0.0
        %1483 = vmatprep.subr.mxu0 0.0
        %1484 = vmatpush1.xpose.msra.mxu0 0.0
        %1485 = vmatprep.subr.mxu0 0.0
        %1486 = vmatpush1.xpose.msra.mxu0 0.0
        %1487 = vmatprep.subr.mxu0 0.0
        %1488 = vmatpush1.xpose.msra.mxu0 0.0
        %1489 = vmatprep.subr.mxu0 0.0
        %1490 = vmatpush1.xpose.msra.mxu0 0.0
        %1491 = vmatprep.subr.mxu0 0.0
        %1492 = vmatpush1.xpose.msra.mxu0 0.0
        %1493 = vmatprep.subr.mxu0 0.0
        %1494 = vmatpush1.xpose.msra.mxu0 %v1461
        %1495 = vmatprep.subr.mxu0 0.0
        %1496 = vmatpush2.xpose.msra.mxu0 0.0
        %1497 = vmatprep.subr.mxu0 0.0
        %1498 = vmatpush2.xpose.msra.mxu0 0.0
        %1499 = vmatprep.subr.mxu0 0.0
        %1500 = vmatpush2.xpose.msra.mxu0 0.0
        %1501 = vmatprep.subr.mxu0 0.0
        %1502 = vmatpush2.xpose.msra.mxu0 0.0
        %1503 = vmatprep.subr.mxu0 0.0
        %1504 = vmatpush2.xpose.msra.mxu0 0.0
        %1505 = vmatprep.subr.mxu0 0.0
        %1506 = vmatpush2.xpose.msra.mxu0 0.0
        %1507 = vmatprep.subr.mxu0 0.0
        %1508 = vmatpush2.xpose.msra.mxu0 0.0
        %1509 = vmatprep.subr.mxu0 0.0
        %1510 = vmatpush2.xpose.msra.mxu0 0.0
        %1511 = vmatprep.subr.mxu0 0.0
        %1512 = vmatpush2.xpose.msra.mxu0 0.0
        %1513 = vmatprep.subr.mxu0 0.0
        %1514 = vmatpush2.xpose.msra.mxu0 0.0
        %1515 = vmatprep.subr.mxu0 0.0
        %1516 = vmatpush2.xpose.msra.mxu0 0.0
        %1517 = vmatprep.subr.mxu0 0.0
        %1518 = vmatpush2.xpose.msra.mxu0 0.0
        %1519 = vmatprep.subr.mxu0 0.0
        %1520 = vmatpush2.xpose.msra.mxu0 0.0
        %1521 = vmatprep.subr.mxu0 0.0
        %1522 = vmatpush2.xpose.msra.mxu0 0.0
        %1523 = vmatprep.subr.mxu0 0.0
        %1524 = vmatpush2.xpose.msra.mxu0 0.0
        %1525 = vmatprep.subr.mxu0 0.0
        %1526 = vmatpush2.xpose.msra.mxu0 0.0
        %1527 = vmatprep.mubr.f32.mxu0 0.0
        %1528 = vmatmul.mubr.f32.gmra.mxu0 %v1459
        %v1529 = vpop.f32.mrf.mxu0
        %v1530 = vadd.f32 0.0, %v1529
        %v1531 = vpop.f32.mrf.mxu0
        %1532 = vdwg.mxu0
        %1533 = vmatprep.subr.mxu0 0.0
        %1534 = vmatpush1.xpose.msra.mxu0 0.0
        %1535 = vmatprep.subr.mxu0 0.0
        %1536 = vmatpush1.xpose.msra.mxu0 0.0
        %1537 = vmatprep.subr.mxu0 0.0
        %1538 = vmatpush1.xpose.msra.mxu0 0.0
        %1539 = vmatprep.subr.mxu0 0.0
        %1540 = vmatpush1.xpose.msra.mxu0 0.0
        %1541 = vmatprep.subr.mxu0 0.0
        %1542 = vmatpush1.xpose.msra.mxu0 0.0
        %1543 = vmatprep.subr.mxu0 0.0
        %1544 = vmatpush1.xpose.msra.mxu0 0.0
        %1545 = vmatprep.subr.mxu0 0.0
        %1546 = vmatpush1.xpose.msra.mxu0 0.0
        %1547 = vmatprep.subr.mxu0 0.0
        %1548 = vmatpush1.xpose.msra.mxu0 0.0
        %1549 = vmatprep.subr.mxu0 0.0
        %1550 = vmatpush1.xpose.msra.mxu0 0.0
        %1551 = vmatprep.subr.mxu0 0.0
        %1552 = vmatpush1.xpose.msra.mxu0 0.0
        %1553 = vmatprep.subr.mxu0 0.0
        %1554 = vmatpush1.xpose.msra.mxu0 0.0
        %1555 = vmatprep.subr.mxu0 0.0
        %1556 = vmatpush1.xpose.msra.mxu0 0.0
        %1557 = vmatprep.subr.mxu0 0.0
        %1558 = vmatpush1.xpose.msra.mxu0 0.0
        %1559 = vmatprep.subr.mxu0 0.0
        %1560 = vmatpush1.xpose.msra.mxu0 0.0
        %1561 = vmatprep.subr.mxu0 0.0
        %1562 = vmatpush1.xpose.msra.mxu0 0.0
        %1563 = vmatprep.subr.mxu0 0.0
        %1564 = vmatpush1.xpose.msra.mxu0 %v920
        %1565 = vmatprep.subr.mxu0 0.0
        %1566 = vmatpush2.xpose.msra.mxu0 0.0
        %1567 = vmatprep.subr.mxu0 0.0
        %1568 = vmatpush2.xpose.msra.mxu0 0.0
        %1569 = vmatprep.subr.mxu0 0.0
        %1570 = vmatpush2.xpose.msra.mxu0 0.0
        %1571 = vmatprep.subr.mxu0 0.0
        %1572 = vmatpush2.xpose.msra.mxu0 0.0
        %1573 = vmatprep.subr.mxu0 0.0
        %1574 = vmatpush2.xpose.msra.mxu0 0.0
        %1575 = vmatprep.subr.mxu0 0.0
        %1576 = vmatpush2.xpose.msra.mxu0 0.0
        %1577 = vmatprep.subr.mxu0 0.0
        %1578 = vmatpush2.xpose.msra.mxu0 0.0
        %1579 = vmatprep.subr.mxu0 0.0
        %1580 = vmatpush2.xpose.msra.mxu0 0.0
        %1581 = vmatprep.subr.mxu0 0.0
        %1582 = vmatpush2.xpose.msra.mxu0 0.0
        %1583 = vmatprep.subr.mxu0 0.0
        %1584 = vmatpush2.xpose.msra.mxu0 0.0
        %1585 = vmatprep.subr.mxu0 0.0
        %1586 = vmatpush2.xpose.msra.mxu0 0.0
        %1587 = vmatprep.subr.mxu0 0.0
        %1588 = vmatpush2.xpose.msra.mxu0 0.0
        %1589 = vmatprep.subr.mxu0 0.0
        %1590 = vmatpush2.xpose.msra.mxu0 0.0
        %1591 = vmatprep.subr.mxu0 0.0
        %1592 = vmatpush2.xpose.msra.mxu0 0.0
        %1593 = vmatprep.subr.mxu0 0.0
        %1594 = vmatpush2.xpose.msra.mxu0 0.0
        %1595 = vmatprep.subr.mxu0 0.0
        %1596 = vmatpush2.xpose.msra.mxu0 0.0
        %1597 = vmatprep.mubr.f32.mxu0 0.0
        %1598 = vmatmul.mubr.f32.gmra.mxu0 %v922
        %v1599 = vpop.f32.mrf.mxu0
        %v1600 = vadd.f32 0.0, %v1599
        %v1601 = vpop.f32.mrf.mxu0
        %1602 = vdwg.mxu0
        %1603 = vmatprep.subr.mxu0 0.0
        %1604 = vmatpush1.xpose.msra.mxu0 0.0
        %1605 = vmatprep.subr.mxu0 0.0
        %1606 = vmatpush1.xpose.msra.mxu0 0.0
        %1607 = vmatprep.subr.mxu0 0.0
        %1608 = vmatpush1.xpose.msra.mxu0 0.0
        %1609 = vmatprep.subr.mxu0 0.0
        %1610 = vmatpush1.xpose.msra.mxu0 0.0
        %1611 = vmatprep.subr.mxu0 0.0
        %1612 = vmatpush1.xpose.msra.mxu0 0.0
        %1613 = vmatprep.subr.mxu0 0.0
        %1614 = vmatpush1.xpose.msra.mxu0 0.0
        %1615 = vmatprep.subr.mxu0 0.0
        %1616 = vmatpush1.xpose.msra.mxu0 0.0
        %1617 = vmatprep.subr.mxu0 0.0
        %1618 = vmatpush1.xpose.msra.mxu0 0.0
        %1619 = vmatprep.subr.mxu0 0.0
        %1620 = vmatpush1.xpose.msra.mxu0 0.0
        %1621 = vmatprep.subr.mxu0 0.0
        %1622 = vmatpush1.xpose.msra.mxu0 0.0
        %1623 = vmatprep.subr.mxu0 0.0
        %1624 = vmatpush1.xpose.msra.mxu0 0.0
        %1625 = vmatprep.subr.mxu0 0.0
        %1626 = vmatpush1.xpose.msra.mxu0 0.0
        %1627 = vmatprep.subr.mxu0 0.0
        %1628 = vmatpush1.xpose.msra.mxu0 0.0
        %1629 = vmatprep.subr.mxu0 0.0
        %1630 = vmatpush1.xpose.msra.mxu0 0.0
        %1631 = vmatprep.subr.mxu0 0.0
        %1632 = vmatpush1.xpose.msra.mxu0 0.0
        %1633 = vmatprep.subr.mxu0 0.0
        %1634 = vmatpush1.xpose.msra.mxu0 %v997
        %1635 = vmatprep.subr.mxu0 0.0
        %1636 = vmatpush2.xpose.msra.mxu0 0.0
        %1637 = vmatprep.subr.mxu0 0.0
        %1638 = vmatpush2.xpose.msra.mxu0 0.0
        %1639 = vmatprep.subr.mxu0 0.0
        %1640 = vmatpush2.xpose.msra.mxu0 0.0
        %1641 = vmatprep.subr.mxu0 0.0
        %1642 = vmatpush2.xpose.msra.mxu0 0.0
        %1643 = vmatprep.subr.mxu0 0.0
        %1644 = vmatpush2.xpose.msra.mxu0 0.0
        %1645 = vmatprep.subr.mxu0 0.0
        %1646 = vmatpush2.xpose.msra.mxu0 0.0
        %1647 = vmatprep.subr.mxu0 0.0
        %1648 = vmatpush2.xpose.msra.mxu0 0.0
        %1649 = vmatprep.subr.mxu0 0.0
        %1650 = vmatpush2.xpose.msra.mxu0 0.0
        %1651 = vmatprep.subr.mxu0 0.0
        %1652 = vmatpush2.xpose.msra.mxu0 0.0
        %1653 = vmatprep.subr.mxu0 0.0
        %1654 = vmatpush2.xpose.msra.mxu0 0.0
        %1655 = vmatprep.subr.mxu0 0.0
        %1656 = vmatpush2.xpose.msra.mxu0 0.0
        %1657 = vmatprep.subr.mxu0 0.0
        %1658 = vmatpush2.xpose.msra.mxu0 0.0
        %1659 = vmatprep.subr.mxu0 0.0
        %1660 = vmatpush2.xpose.msra.mxu0 0.0
        %1661 = vmatprep.subr.mxu0 0.0
        %1662 = vmatpush2.xpose.msra.mxu0 0.0
        %1663 = vmatprep.subr.mxu0 0.0
        %1664 = vmatpush2.xpose.msra.mxu0 0.0
        %1665 = vmatprep.subr.mxu0 0.0
        %1666 = vmatpush2.xpose.msra.mxu0 0.0
        %1667 = vmatprep.mubr.f32.mxu0 0.0
        %1668 = vmatmul.mubr.f32.gmra.mxu0 %v999
        %v1669 = vpop.f32.mrf.mxu0
        %v1670 = vadd.f32 0.0, %v1669
        %v1671 = vpop.f32.mrf.mxu0
        %1672 = vdwg.mxu0
        %1673 = vmatprep.subr.mxu0 0.0
        %1674 = vmatpush1.xpose.msra.mxu0 0.0
        %1675 = vmatprep.subr.mxu0 0.0
        %1676 = vmatpush1.xpose.msra.mxu0 0.0
        %1677 = vmatprep.subr.mxu0 0.0
        %1678 = vmatpush1.xpose.msra.mxu0 0.0
        %1679 = vmatprep.subr.mxu0 0.0
        %1680 = vmatpush1.xpose.msra.mxu0 0.0
        %1681 = vmatprep.subr.mxu0 0.0
        %1682 = vmatpush1.xpose.msra.mxu0 0.0
        %1683 = vmatprep.subr.mxu0 0.0
        %1684 = vmatpush1.xpose.msra.mxu0 0.0
        %1685 = vmatprep.subr.mxu0 0.0
        %1686 = vmatpush1.xpose.msra.mxu0 0.0
        %1687 = vmatprep.subr.mxu0 0.0
        %1688 = vmatpush1.xpose.msra.mxu0 0.0
        %1689 = vmatprep.subr.mxu0 0.0
        %1690 = vmatpush1.xpose.msra.mxu0 0.0
        %1691 = vmatprep.subr.mxu0 0.0
        %1692 = vmatpush1.xpose.msra.mxu0 0.0
        %1693 = vmatprep.subr.mxu0 0.0
        %1694 = vmatpush1.xpose.msra.mxu0 0.0
        %1695 = vmatprep.subr.mxu0 0.0
        %1696 = vmatpush1.xpose.msra.mxu0 0.0
        %1697 = vmatprep.subr.mxu0 0.0
        %1698 = vmatpush1.xpose.msra.mxu0 0.0
        %1699 = vmatprep.subr.mxu0 0.0
        %1700 = vmatpush1.xpose.msra.mxu0 0.0
        %1701 = vmatprep.subr.mxu0 0.0
        %1702 = vmatpush1.xpose.msra.mxu0 0.0
        %1703 = vmatprep.subr.mxu0 0.0
        %1704 = vmatpush1.xpose.msra.mxu0 %v1074
        %1705 = vmatprep.subr.mxu0 0.0
        %1706 = vmatpush2.xpose.msra.mxu0 0.0
        %1707 = vmatprep.subr.mxu0 0.0
        %1708 = vmatpush2.xpose.msra.mxu0 0.0
        %1709 = vmatprep.subr.mxu0 0.0
        %1710 = vmatpush2.xpose.msra.mxu0 0.0
        %1711 = vmatprep.subr.mxu0 0.0
        %1712 = vmatpush2.xpose.msra.mxu0 0.0
        %1713 = vmatprep.subr.mxu0 0.0
        %1714 = vmatpush2.xpose.msra.mxu0 0.0
        %1715 = vmatprep.subr.mxu0 0.0
        %1716 = vmatpush2.xpose.msra.mxu0 0.0
        %1717 = vmatprep.subr.mxu0 0.0
        %1718 = vmatpush2.xpose.msra.mxu0 0.0
        %1719 = vmatprep.subr.mxu0 0.0
        %1720 = vmatpush2.xpose.msra.mxu0 0.0
        %1721 = vmatprep.subr.mxu0 0.0
        %1722 = vmatpush2.xpose.msra.mxu0 0.0
        %1723 = vmatprep.subr.mxu0 0.0
        %1724 = vmatpush2.xpose.msra.mxu0 0.0
        %1725 = vmatprep.subr.mxu0 0.0
        %1726 = vmatpush2.xpose.msra.mxu0 0.0
        %1727 = vmatprep.subr.mxu0 0.0
        %1728 = vmatpush2.xpose.msra.mxu0 0.0
        %1729 = vmatprep.subr.mxu0 0.0
        %1730 = vmatpush2.xpose.msra.mxu0 0.0
        %1731 = vmatprep.subr.mxu0 0.0
        %1732 = vmatpush2.xpose.msra.mxu0 0.0
        %1733 = vmatprep.subr.mxu0 0.0
        %1734 = vmatpush2.xpose.msra.mxu0 0.0
        %1735 = vmatprep.subr.mxu0 0.0
        %1736 = vmatpush2.xpose.msra.mxu0 0.0
        %1737 = vmatprep.mubr.f32.mxu0 0.0
        %1738 = vmatmul.mubr.f32.gmra.mxu0 %v1076
        %v1739 = vpop.f32.mrf.mxu0
        %v1740 = vadd.f32 0.0, %v1739
        %v1741 = vpop.f32.mrf.mxu0
        %1742 = vdwg.mxu0
        %1743 = vmatprep.subr.mxu0 0.0
        %1744 = vmatpush1.xpose.msra.mxu0 0.0
        %1745 = vmatprep.subr.mxu0 0.0
        %1746 = vmatpush1.xpose.msra.mxu0 0.0
        %1747 = vmatprep.subr.mxu0 0.0
        %1748 = vmatpush1.xpose.msra.mxu0 0.0
        %1749 = vmatprep.subr.mxu0 0.0
        %1750 = vmatpush1.xpose.msra.mxu0 0.0
        %1751 = vmatprep.subr.mxu0 0.0
        %1752 = vmatpush1.xpose.msra.mxu0 0.0
        %1753 = vmatprep.subr.mxu0 0.0
        %1754 = vmatpush1.xpose.msra.mxu0 0.0
        %1755 = vmatprep.subr.mxu0 0.0
        %1756 = vmatpush1.xpose.msra.mxu0 0.0
        %1757 = vmatprep.subr.mxu0 0.0
        %1758 = vmatpush1.xpose.msra.mxu0 0.0
        %1759 = vmatprep.subr.mxu0 0.0
        %1760 = vmatpush1.xpose.msra.mxu0 0.0
        %1761 = vmatprep.subr.mxu0 0.0
        %1762 = vmatpush1.xpose.msra.mxu0 0.0
        %1763 = vmatprep.subr.mxu0 0.0
        %1764 = vmatpush1.xpose.msra.mxu0 0.0
        %1765 = vmatprep.subr.mxu0 0.0
        %1766 = vmatpush1.xpose.msra.mxu0 0.0
        %1767 = vmatprep.subr.mxu0 0.0
        %1768 = vmatpush1.xpose.msra.mxu0 0.0
        %1769 = vmatprep.subr.mxu0 0.0
        %1770 = vmatpush1.xpose.msra.mxu0 0.0
        %1771 = vmatprep.subr.mxu0 0.0
        %1772 = vmatpush1.xpose.msra.mxu0 0.0
        %1773 = vmatprep.subr.mxu0 0.0
        %1774 = vmatpush1.xpose.msra.mxu0 %v1151
        %1775 = vmatprep.subr.mxu0 0.0
        %1776 = vmatpush2.xpose.msra.mxu0 0.0
        %1777 = vmatprep.subr.mxu0 0.0
        %1778 = vmatpush2.xpose.msra.mxu0 0.0
        %1779 = vmatprep.subr.mxu0 0.0
        %1780 = vmatpush2.xpose.msra.mxu0 0.0
        %1781 = vmatprep.subr.mxu0 0.0
        %1782 = vmatpush2.xpose.msra.mxu0 0.0
        %1783 = vmatprep.subr.mxu0 0.0
        %1784 = vmatpush2.xpose.msra.mxu0 0.0
        %1785 = vmatprep.subr.mxu0 0.0
        %1786 = vmatpush2.xpose.msra.mxu0 0.0
        %1787 = vmatprep.subr.mxu0 0.0
        %1788 = vmatpush2.xpose.msra.mxu0 0.0
        %1789 = vmatprep.subr.mxu0 0.0
        %1790 = vmatpush2.xpose.msra.mxu0 0.0
        %1791 = vmatprep.subr.mxu0 0.0
        %1792 = vmatpush2.xpose.msra.mxu0 0.0
        %1793 = vmatprep.subr.mxu0 0.0
        %1794 = vmatpush2.xpose.msra.mxu0 0.0
        %1795 = vmatprep.subr.mxu0 0.0
        %1796 = vmatpush2.xpose.msra.mxu0 0.0
        %1797 = vmatprep.subr.mxu0 0.0
        %1798 = vmatpush2.xpose.msra.mxu0 0.0
        %1799 = vmatprep.subr.mxu0 0.0
        %1800 = vmatpush2.xpose.msra.mxu0 0.0
        %1801 = vmatprep.subr.mxu0 0.0
        %1802 = vmatpush2.xpose.msra.mxu0 0.0
        %1803 = vmatprep.subr.mxu0 0.0
        %1804 = vmatpush2.xpose.msra.mxu0 0.0
        %1805 = vmatprep.subr.mxu0 0.0
        %1806 = vmatpush2.xpose.msra.mxu0 0.0
        %1807 = vmatprep.mubr.f32.mxu0 0.0
        %1808 = vmatmul.mubr.f32.gmra.mxu0 %v1153
        %v1809 = vpop.f32.mrf.mxu0
        %v1810 = vadd.f32 0.0, %v1809
        %v1811 = vpop.f32.mrf.mxu0
        %1812 = vdwg.mxu0
        %1813 = vmatprep.subr.mxu0 0.0
        %1814 = vmatpush1.xpose.msra.mxu0 0.0
        %1815 = vmatprep.subr.mxu0 0.0
        %1816 = vmatpush1.xpose.msra.mxu0 0.0
        %1817 = vmatprep.subr.mxu0 0.0
        %1818 = vmatpush1.xpose.msra.mxu0 0.0
        %1819 = vmatprep.subr.mxu0 0.0
        %1820 = vmatpush1.xpose.msra.mxu0 0.0
        %1821 = vmatprep.subr.mxu0 0.0
        %1822 = vmatpush1.xpose.msra.mxu0 0.0
        %1823 = vmatprep.subr.mxu0 0.0
        %1824 = vmatpush1.xpose.msra.mxu0 0.0
        %1825 = vmatprep.subr.mxu0 0.0
        %1826 = vmatpush1.xpose.msra.mxu0 0.0
        %1827 = vmatprep.subr.mxu0 0.0
        %1828 = vmatpush1.xpose.msra.mxu0 0.0
        %1829 = vmatprep.subr.mxu0 0.0
        %1830 = vmatpush1.xpose.msra.mxu0 0.0
        %1831 = vmatprep.subr.mxu0 0.0
        %1832 = vmatpush1.xpose.msra.mxu0 0.0
        %1833 = vmatprep.subr.mxu0 0.0
        %1834 = vmatpush1.xpose.msra.mxu0 0.0
        %1835 = vmatprep.subr.mxu0 0.0
        %1836 = vmatpush1.xpose.msra.mxu0 0.0
        %1837 = vmatprep.subr.mxu0 0.0
        %1838 = vmatpush1.xpose.msra.mxu0 0.0
        %1839 = vmatprep.subr.mxu0 0.0
        %1840 = vmatpush1.xpose.msra.mxu0 0.0
        %1841 = vmatprep.subr.mxu0 0.0
        %1842 = vmatpush1.xpose.msra.mxu0 0.0
        %1843 = vmatprep.subr.mxu0 0.0
        %1844 = vmatpush1.xpose.msra.mxu0 %v1228
        %1845 = vmatprep.subr.mxu0 0.0
        %1846 = vmatpush2.xpose.msra.mxu0 0.0
        %1847 = vmatprep.subr.mxu0 0.0
        %1848 = vmatpush2.xpose.msra.mxu0 0.0
        %1849 = vmatprep.subr.mxu0 0.0
        %1850 = vmatpush2.xpose.msra.mxu0 0.0
        %1851 = vmatprep.subr.mxu0 0.0
        %1852 = vmatpush2.xpose.msra.mxu0 0.0
        %1853 = vmatprep.subr.mxu0 0.0
        %1854 = vmatpush2.xpose.msra.mxu0 0.0
        %1855 = vmatprep.subr.mxu0 0.0
        %1856 = vmatpush2.xpose.msra.mxu0 0.0
        %1857 = vmatprep.subr.mxu0 0.0
        %1858 = vmatpush2.xpose.msra.mxu0 0.0
        %1859 = vmatprep.subr.mxu0 0.0
        %1860 = vmatpush2.xpose.msra.mxu0 0.0
        %1861 = vmatprep.subr.mxu0 0.0
        %1862 = vmatpush2.xpose.msra.mxu0 0.0
        %1863 = vmatprep.subr.mxu0 0.0
        %1864 = vmatpush2.xpose.msra.mxu0 0.0
        %1865 = vmatprep.subr.mxu0 0.0
        %1866 = vmatpush2.xpose.msra.mxu0 0.0
        %1867 = vmatprep.subr.mxu0 0.0
        %1868 = vmatpush2.xpose.msra.mxu0 0.0
        %1869 = vmatprep.subr.mxu0 0.0
        %1870 = vmatpush2.xpose.msra.mxu0 0.0
        %1871 = vmatprep.subr.mxu0 0.0
        %1872 = vmatpush2.xpose.msra.mxu0 0.0
        %1873 = vmatprep.subr.mxu0 0.0
        %1874 = vmatpush2.xpose.msra.mxu0 0.0
        %1875 = vmatprep.subr.mxu0 0.0
        %1876 = vmatpush2.xpose.msra.mxu0 0.0
        %1877 = vmatprep.mubr.f32.mxu0 0.0
        %1878 = vmatmul.mubr.f32.gmra.mxu0 %v1230
        %v1879 = vpop.f32.mrf.mxu0
        %v1880 = vadd.f32 0.0, %v1879
        %v1881 = vpop.f32.mrf.mxu0
        %1882 = vdwg.mxu0
        %1883 = vmatprep.subr.mxu0 0.0
        %1884 = vmatpush1.xpose.msra.mxu0 0.0
        %1885 = vmatprep.subr.mxu0 0.0
        %1886 = vmatpush1.xpose.msra.mxu0 0.0
        %1887 = vmatprep.subr.mxu0 0.0
        %1888 = vmatpush1.xpose.msra.mxu0 0.0
        %1889 = vmatprep.subr.mxu0 0.0
        %1890 = vmatpush1.xpose.msra.mxu0 0.0
        %1891 = vmatprep.subr.mxu0 0.0
        %1892 = vmatpush1.xpose.msra.mxu0 0.0
        %1893 = vmatprep.subr.mxu0 0.0
        %1894 = vmatpush1.xpose.msra.mxu0 0.0
        %1895 = vmatprep.subr.mxu0 0.0
        %1896 = vmatpush1.xpose.msra.mxu0 0.0
        %1897 = vmatprep.subr.mxu0 0.0
        %1898 = vmatpush1.xpose.msra.mxu0 0.0
        %1899 = vmatprep.subr.mxu0 0.0
        %1900 = vmatpush1.xpose.msra.mxu0 0.0
        %1901 = vmatprep.subr.mxu0 0.0
        %1902 = vmatpush1.xpose.msra.mxu0 0.0
        %1903 = vmatprep.subr.mxu0 0.0
        %1904 = vmatpush1.xpose.msra.mxu0 0.0
        %1905 = vmatprep.subr.mxu0 0.0
        %1906 = vmatpush1.xpose.msra.mxu0 0.0
        %1907 = vmatprep.subr.mxu0 0.0
        %1908 = vmatpush1.xpose.msra.mxu0 0.0
        %1909 = vmatprep.subr.mxu0 0.0
        %1910 = vmatpush1.xpose.msra.mxu0 0.0
        %1911 = vmatprep.subr.mxu0 0.0
        %1912 = vmatpush1.xpose.msra.mxu0 0.0
        %1913 = vmatprep.subr.mxu0 0.0
        %1914 = vmatpush1.xpose.msra.mxu0 %v1305
        %1915 = vmatprep.subr.mxu0 0.0
        %1916 = vmatpush2.xpose.msra.mxu0 0.0
        %1917 = vmatprep.subr.mxu0 0.0
        %1918 = vmatpush2.xpose.msra.mxu0 0.0
        %1919 = vmatprep.subr.mxu0 0.0
        %1920 = vmatpush2.xpose.msra.mxu0 0.0
        %1921 = vmatprep.subr.mxu0 0.0
        %1922 = vmatpush2.xpose.msra.mxu0 0.0
        %1923 = vmatprep.subr.mxu0 0.0
        %1924 = vmatpush2.xpose.msra.mxu0 0.0
        %1925 = vmatprep.subr.mxu0 0.0
        %1926 = vmatpush2.xpose.msra.mxu0 0.0
        %1927 = vmatprep.subr.mxu0 0.0
        %1928 = vmatpush2.xpose.msra.mxu0 0.0
        %1929 = vmatprep.subr.mxu0 0.0
        %1930 = vmatpush2.xpose.msra.mxu0 0.0
        %1931 = vmatprep.subr.mxu0 0.0
        %1932 = vmatpush2.xpose.msra.mxu0 0.0
        %1933 = vmatprep.subr.mxu0 0.0
        %1934 = vmatpush2.xpose.msra.mxu0 0.0
        %1935 = vmatprep.subr.mxu0 0.0
        %1936 = vmatpush2.xpose.msra.mxu0 0.0
        %1937 = vmatprep.subr.mxu0 0.0
        %1938 = vmatpush2.xpose.msra.mxu0 0.0
        %1939 = vmatprep.subr.mxu0 0.0
        %1940 = vmatpush2.xpose.msra.mxu0 0.0
        %1941 = vmatprep.subr.mxu0 0.0
        %1942 = vmatpush2.xpose.msra.mxu0 0.0
        %1943 = vmatprep.subr.mxu0 0.0
        %1944 = vmatpush2.xpose.msra.mxu0 0.0
        %1945 = vmatprep.subr.mxu0 0.0
        %1946 = vmatpush2.xpose.msra.mxu0 0.0
        %1947 = vmatprep.mubr.f32.mxu0 0.0
        %1948 = vmatmul.mubr.f32.gmra.mxu0 %v1307
        %v1949 = vpop.f32.mrf.mxu0
        %v1950 = vadd.f32 0.0, %v1949
        %v1951 = vpop.f32.mrf.mxu0
        %1952 = vdwg.mxu0
        %1953 = vmatprep.subr.mxu0 0.0
        %1954 = vmatpush1.xpose.msra.mxu0 0.0
        %1955 = vmatprep.subr.mxu0 0.0
        %1956 = vmatpush1.xpose.msra.mxu0 0.0
        %1957 = vmatprep.subr.mxu0 0.0
        %1958 = vmatpush1.xpose.msra.mxu0 0.0
        %1959 = vmatprep.subr.mxu0 0.0
        %1960 = vmatpush1.xpose.msra.mxu0 0.0
        %1961 = vmatprep.subr.mxu0 0.0
        %1962 = vmatpush1.xpose.msra.mxu0 0.0
        %1963 = vmatprep.subr.mxu0 0.0
        %1964 = vmatpush1.xpose.msra.mxu0 0.0
        %1965 = vmatprep.subr.mxu0 0.0
        %1966 = vmatpush1.xpose.msra.mxu0 0.0
        %1967 = vmatprep.subr.mxu0 0.0
        %1968 = vmatpush1.xpose.msra.mxu0 0.0
        %1969 = vmatprep.subr.mxu0 0.0
        %1970 = vmatpush1.xpose.msra.mxu0 0.0
        %1971 = vmatprep.subr.mxu0 0.0
        %1972 = vmatpush1.xpose.msra.mxu0 0.0
        %1973 = vmatprep.subr.mxu0 0.0
        %1974 = vmatpush1.xpose.msra.mxu0 0.0
        %1975 = vmatprep.subr.mxu0 0.0
        %1976 = vmatpush1.xpose.msra.mxu0 0.0
        %1977 = vmatprep.subr.mxu0 0.0
        %1978 = vmatpush1.xpose.msra.mxu0 0.0
        %1979 = vmatprep.subr.mxu0 0.0
        %1980 = vmatpush1.xpose.msra.mxu0 0.0
        %1981 = vmatprep.subr.mxu0 0.0
        %1982 = vmatpush1.xpose.msra.mxu0 0.0
        %1983 = vmatprep.subr.mxu0 0.0
        %1984 = vmatpush1.xpose.msra.mxu0 %v1382
        %1985 = vmatprep.subr.mxu0 0.0
        %1986 = vmatpush2.xpose.msra.mxu0 0.0
        %1987 = vmatprep.subr.mxu0 0.0
        %1988 = vmatpush2.xpose.msra.mxu0 0.0
        %1989 = vmatprep.subr.mxu0 0.0
        %1990 = vmatpush2.xpose.msra.mxu0 0.0
        %1991 = vmatprep.subr.mxu0 0.0
        %1992 = vmatpush2.xpose.msra.mxu0 0.0
        %1993 = vmatprep.subr.mxu0 0.0
        %1994 = vmatpush2.xpose.msra.mxu0 0.0
        %1995 = vmatprep.subr.mxu0 0.0
        %1996 = vmatpush2.xpose.msra.mxu0 0.0
        %1997 = vmatprep.subr.mxu0 0.0
        %1998 = vmatpush2.xpose.msra.mxu0 0.0
        %1999 = vmatprep.subr.mxu0 0.0
        %2000 = vmatpush2.xpose.msra.mxu0 0.0
        %2001 = vmatprep.subr.mxu0 0.0
        %2002 = vmatpush2.xpose.msra.mxu0 0.0
        %2003 = vmatprep.subr.mxu0 0.0
        %2004 = vmatpush2.xpose.msra.mxu0 0.0
        %2005 = vmatprep.subr.mxu0 0.0
        %2006 = vmatpush2.xpose.msra.mxu0 0.0
        %2007 = vmatprep.subr.mxu0 0.0
        %2008 = vmatpush2.xpose.msra.mxu0 0.0
        %2009 = vmatprep.subr.mxu0 0.0
        %2010 = vmatpush2.xpose.msra.mxu0 0.0
        %2011 = vmatprep.subr.mxu0 0.0
        %2012 = vmatpush2.xpose.msra.mxu0 0.0
        %2013 = vmatprep.subr.mxu0 0.0
        %2014 = vmatpush2.xpose.msra.mxu0 0.0
        %2015 = vmatprep.subr.mxu0 0.0
        %2016 = vmatpush2.xpose.msra.mxu0 0.0
        %2017 = vmatprep.mubr.f32.mxu0 0.0
        %2018 = vmatmul.mubr.f32.gmra.mxu0 %v1384
        %v2019 = vpop.f32.mrf.mxu0
        %v2020 = vadd.f32 0.0, %v2019
        %v2021 = vpop.f32.mrf.mxu0
        %2022 = vdwg.mxu0
        %2023 = vmatprep.subr.mxu0 0.0
        %2024 = vmatpush1.xpose.msra.mxu0 0.0
        %2025 = vmatprep.subr.mxu0 0.0
        %2026 = vmatpush1.xpose.msra.mxu0 0.0
        %2027 = vmatprep.subr.mxu0 0.0
        %2028 = vmatpush1.xpose.msra.mxu0 0.0
        %2029 = vmatprep.subr.mxu0 0.0
        %2030 = vmatpush1.xpose.msra.mxu0 0.0
        %2031 = vmatprep.subr.mxu0 0.0
        %2032 = vmatpush1.xpose.msra.mxu0 0.0
        %2033 = vmatprep.subr.mxu0 0.0
        %2034 = vmatpush1.xpose.msra.mxu0 0.0
        %2035 = vmatprep.subr.mxu0 0.0
        %2036 = vmatpush1.xpose.msra.mxu0 0.0
        %2037 = vmatprep.subr.mxu0 0.0
        %2038 = vmatpush1.xpose.msra.mxu0 0.0
        %2039 = vmatprep.subr.mxu0 0.0
        %2040 = vmatpush1.xpose.msra.mxu0 0.0
        %2041 = vmatprep.subr.mxu0 0.0
        %2042 = vmatpush1.xpose.msra.mxu0 0.0
        %2043 = vmatprep.subr.mxu0 0.0
        %2044 = vmatpush1.xpose.msra.mxu0 0.0
        %2045 = vmatprep.subr.mxu0 0.0
        %2046 = vmatpush1.xpose.msra.mxu0 0.0
        %2047 = vmatprep.subr.mxu0 0.0
        %2048 = vmatpush1.xpose.msra.mxu0 0.0
        %2049 = vmatprep.subr.mxu0 0.0
        %2050 = vmatpush1.xpose.msra.mxu0 0.0
        %2051 = vmatprep.subr.mxu0 0.0
        %2052 = vmatpush1.xpose.msra.mxu0 0.0
        %2053 = vmatprep.subr.mxu0 0.0
        %2054 = vmatpush1.xpose.msra.mxu0 %v1459
        %2055 = vmatprep.subr.mxu0 0.0
        %2056 = vmatpush2.xpose.msra.mxu0 0.0
        %2057 = vmatprep.subr.mxu0 0.0
        %2058 = vmatpush2.xpose.msra.mxu0 0.0
        %2059 = vmatprep.subr.mxu0 0.0
        %2060 = vmatpush2.xpose.msra.mxu0 0.0
        %2061 = vmatprep.subr.mxu0 0.0
        %2062 = vmatpush2.xpose.msra.mxu0 0.0
        %2063 = vmatprep.subr.mxu0 0.0
        %2064 = vmatpush2.xpose.msra.mxu0 0.0
        %2065 = vmatprep.subr.mxu0 0.0
        %2066 = vmatpush2.xpose.msra.mxu0 0.0
        %2067 = vmatprep.subr.mxu0 0.0
        %2068 = vmatpush2.xpose.msra.mxu0 0.0
        %2069 = vmatprep.subr.mxu0 0.0
        %2070 = vmatpush2.xpose.msra.mxu0 0.0
        %2071 = vmatprep.subr.mxu0 0.0
        %2072 = vmatpush2.xpose.msra.mxu0 0.0
        %2073 = vmatprep.subr.mxu0 0.0
        %2074 = vmatpush2.xpose.msra.mxu0 0.0
        %2075 = vmatprep.subr.mxu0 0.0
        %2076 = vmatpush2.xpose.msra.mxu0 0.0
        %2077 = vmatprep.subr.mxu0 0.0
        %2078 = vmatpush2.xpose.msra.mxu0 0.0
        %2079 = vmatprep.subr.mxu0 0.0
        %2080 = vmatpush2.xpose.msra.mxu0 0.0
        %2081 = vmatprep.subr.mxu0 0.0
        %2082 = vmatpush2.xpose.msra.mxu0 0.0
        %2083 = vmatprep.subr.mxu0 0.0
        %2084 = vmatpush2.xpose.msra.mxu0 0.0
        %2085 = vmatprep.subr.mxu0 0.0
        %2086 = vmatpush2.xpose.msra.mxu0 0.0
        %2087 = vmatprep.mubr.f32.mxu0 0.0
        %2088 = vmatmul.mubr.f32.gmra.mxu0 %v1461
        %v2089 = vpop.f32.mrf.mxu0
        %v2090 = vadd.f32 0.0, %v2089
        %v2091 = vpop.f32.mrf.mxu0
        %2092 = vdwg.mxu0
        %v2093 = vmul.f32 %v991, 1.442695
        %v2094 = vpow.pop %v2093
        %v2095 = vmul.f32 %v1068, 1.442695
        %v2096 = vpow.pop %v2095
        %v2097 = vmul.f32 %v1145, 1.442695
        %v2098 = vpow.pop %v2097
        %v2099 = vmul.f32 %v1222, 1.442695
        %v2100 = vpow.pop %v2099
        %v2101 = vmul.f32 %v1299, 1.442695
        %v2102 = vpow.pop %v2101
        %v2103 = vmul.f32 %v1376, 1.442695
        %v2104 = vpow.pop %v2103
        %v2105 = vmul.f32 %v1453, 1.442695
        %v2106 = vpow.pop %v2105
        %v2107 = vmul.f32 %v1530, 1.442695
        %v2108 = vpow.pop %v2107
        %v2109 = vmul.f32 %v2094, %v909
        %v2110 = vmul.f32 %v2096, %v910
        %v2111 = vmul.f32 %v2098, %v911
        %v2112 = vmul.f32 %v2100, %v912
        %v2113 = vmul.f32 %v2102, %v913
        %v2114 = vmul.f32 %v2104, %v914
        %v2115 = vmul.f32 %v2106, %v915
        %v2116 = vmul.f32 %v2108, %v916
        %v2117 = vsel %vm542, 1, 0
        %vm2118 = vcmp.eq.s32.totalorder %v2117, 1
        %v2119 = vsel %vm2118, 0.0, %v2109
        %v2120 = vsel %vm2118, 0.0, %v2110
        %v2121 = vsel %vm2118, 0.0, %v2111
        %v2122 = vsel %vm2118, 0.0, %v2112
        %v2123 = vsel %vm2118, 0.0, %v2113
        %v2124 = vsel %vm2118, 0.0, %v2114
        %v2125 = vsel %vm2118, 0.0, %v2115
        %v2126 = vsel %vm2118, 0.0, %v2116
        %v2127 = vmul.f32 %v1600, 1.442695
        %v2128 = vpow.pop %v2127
        %v2129 = vmul.f32 %v1670, 1.442695
        %v2130 = vpow.pop %v2129
        %v2131 = vmul.f32 %v1740, 1.442695
        %v2132 = vpow.pop %v2131
        %v2133 = vmul.f32 %v1810, 1.442695
        %v2134 = vpow.pop %v2133
        %v2135 = vmul.f32 %v1880, 1.442695
        %v2136 = vpow.pop %v2135
        %v2137 = vmul.f32 %v1950, 1.442695
        %v2138 = vpow.pop %v2137
        %v2139 = vmul.f32 %v2020, 1.442695
        %v2140 = vpow.pop %v2139
        %v2141 = vmul.f32 %v2090, 1.442695
        %v2142 = vpow.pop %v2141
        %v2143 = vmul.f32 %v2128, %v909
        %v2144 = vmul.f32 %v2130, %v910
        %v2145 = vmul.f32 %v2132, %v911
        %v2146 = vmul.f32 %v2134, %v912
        %v2147 = vmul.f32 %v2136, %v913
        %v2148 = vmul.f32 %v2138, %v914
        %v2149 = vmul.f32 %v2140, %v915
        %v2150 = vmul.f32 %v2142, %v916
        %v2151 = vsel %vm2118, 0.0, %v2143
        %v2152 = vsel %vm2118, 0.0, %v2144
        %v2153 = vsel %vm2118, 0.0, %v2145
        %v2154 = vsel %vm2118, 0.0, %v2146
        %v2155 = vsel %vm2118, 0.0, %v2147
        %v2156 = vsel %vm2118, 0.0, %v2148
        %v2157 = vsel %vm2118, 0.0, %v2149
        %v2158 = vsel %vm2118, 0.0, %v2150
        %v2159 = vld [vmem:[#allocation6] sm:$0x1]
        %v2161 = vlaneseq
        %v2162 = vshrl.u32 %v2161, 7
        %v2163 = vsub.s32 0, %v2162
        %v2164 = vrot.slane %v2159, %v2163
        %v2166 = vmul.f32 %v514, %v2164
        %v2167 = vmul.f32 %v515, %v2164
        %v2168 = vmul.f32 %v516, %v2164
        %v2169 = vmul.f32 %v517, %v2164
        %v2170 = vmul.f32 %v518, %v2164
        %v2171 = vmul.f32 %v519, %v2164
        %v2172 = vmul.f32 %v520, %v2164
        %v2173 = vmul.f32 %v521, %v2164
        %v2174 = vsel %vm552, %v2166, 0.0
        %2175 = vadd.xlane.f32.xlu0 %v2174
        %v2176 = vpop.xlane.xlu0 %2175
        %v2177 = vsel %vm552, %v2167, 0.0
        %2178 = vadd.xlane.f32.xlu0 %v2177
        %v2179 = vpop.xlane.xlu0 %2178
        %v2180 = vsel %vm552, %v2168, 0.0
        %2181 = vadd.xlane.f32.xlu0 %v2180
        %v2182 = vpop.xlane.xlu0 %2181
        %v2183 = vsel %vm552, %v2169, 0.0
        %2184 = vadd.xlane.f32.xlu0 %v2183
        %v2185 = vpop.xlane.xlu0 %2184
        %v2186 = vsel %vm552, %v2170, 0.0
        %2187 = vadd.xlane.f32.xlu0 %v2186
        %v2188 = vpop.xlane.xlu0 %2187
        %v2189 = vsel %vm552, %v2171, 0.0
        %2190 = vadd.xlane.f32.xlu0 %v2189
        %v2191 = vpop.xlane.xlu0 %2190
        %v2192 = vsel %vm552, %v2172, 0.0
        %2193 = vadd.xlane.f32.xlu0 %v2192
        %v2194 = vpop.xlane.xlu0 %2193
        %v2195 = vsel %vm552, %v2173, 0.0
        %2196 = vadd.xlane.f32.xlu0 %v2195
        %v2197 = vpop.xlane.xlu0 %2196
        %v2198 = vmul.f32 %v2176, 1.442695
        %v2199 = vpow.pop %v2198
        %v2200 = vmul.f32 %v2179, 1.442695
        %v2201 = vpow.pop %v2200
        %v2202 = vmul.f32 %v2182, 1.442695
        %v2203 = vpow.pop %v2202
        %v2204 = vmul.f32 %v2185, 1.442695
        %v2205 = vpow.pop %v2204
        %v2206 = vmul.f32 %v2188, 1.442695
        %v2207 = vpow.pop %v2206
        %v2208 = vmul.f32 %v2191, 1.442695
        %v2209 = vpow.pop %v2208
        %v2210 = vmul.f32 %v2194, 1.442695
        %v2211 = vpow.pop %v2210
        %v2212 = vmul.f32 %v2197, 1.442695
        %v2213 = vpow.pop %v2212
        %v2214 = vmul.f32 %v2199, %v522
        %v2215 = vmul.f32 %v2201, %v523
        %v2216 = vmul.f32 %v2203, %v524
        %v2217 = vmul.f32 %v2205, %v525
        %v2218 = vmul.f32 %v2207, %v526
        %v2219 = vmul.f32 %v2209, %v527
        %v2220 = vmul.f32 %v2211, %v528
        %v2221 = vmul.f32 %v2213, %v529
        %vm2222 = vcmask 64512
        %v2223 = vsel %vm2222, %v2119, 0.0
        %v2224 = vrot.slane %v2223, 4
        %v2225 = vadd.f32 %v2223, %v2224
        %v2226 = vrot.slane %v2225, 2
        %v2227 = vadd.f32 %v2225, %v2226
        %v2228 = vrot.slane %v2227, 1
        %v2229 = vadd.f32 %v2227, %v2228
        %v2230 = vsel %vm2222, %v2120, 0.0
        %v2231 = vrot.slane %v2230, 4
        %v2232 = vadd.f32 %v2230, %v2231
        %v2233 = vrot.slane %v2232, 2
        %v2234 = vadd.f32 %v2232, %v2233
        %v2235 = vrot.slane %v2234, 1
        %v2236 = vadd.f32 %v2234, %v2235
        %v2237 = vsel %vm2222, %v2121, 0.0
        %v2238 = vrot.slane %v2237, 4
        %v2239 = vadd.f32 %v2237, %v2238
        %v2240 = vrot.slane %v2239, 2
        %v2241 = vadd.f32 %v2239, %v2240
        %v2242 = vrot.slane %v2241, 1
        %v2243 = vadd.f32 %v2241, %v2242
        %v2244 = vsel %vm2222, %v2122, 0.0
        %v2245 = vrot.slane %v2244, 4
        %v2246 = vadd.f32 %v2244, %v2245
        %v2247 = vrot.slane %v2246, 2
        %v2248 = vadd.f32 %v2246, %v2247
        %v2249 = vrot.slane %v2248, 1
        %v2250 = vadd.f32 %v2248, %v2249
        %v2251 = vsel %vm2222, %v2123, 0.0
        %v2252 = vrot.slane %v2251, 4
        %v2253 = vadd.f32 %v2251, %v2252
        %v2254 = vrot.slane %v2253, 2
        %v2255 = vadd.f32 %v2253, %v2254
        %v2256 = vrot.slane %v2255, 1
        %v2257 = vadd.f32 %v2255, %v2256
        %v2258 = vsel %vm2222, %v2124, 0.0
        %v2259 = vrot.slane %v2258, 4
        %v2260 = vadd.f32 %v2258, %v2259
        %v2261 = vrot.slane %v2260, 2
        %v2262 = vadd.f32 %v2260, %v2261
        %v2263 = vrot.slane %v2262, 1
        %v2264 = vadd.f32 %v2262, %v2263
        %v2265 = vsel %vm2222, %v2125, 0.0
        %v2266 = vrot.slane %v2265, 4
        %v2267 = vadd.f32 %v2265, %v2266
        %v2268 = vrot.slane %v2267, 2
        %v2269 = vadd.f32 %v2267, %v2268
        %v2270 = vrot.slane %v2269, 1
        %v2271 = vadd.f32 %v2269, %v2270
        %v2272 = vsel %vm2222, %v2126, 0.0
        %v2273 = vrot.slane %v2272, 4
        %v2274 = vadd.f32 %v2272, %v2273
        %v2275 = vrot.slane %v2274, 2
        %v2276 = vadd.f32 %v2274, %v2275
        %v2277 = vrot.slane %v2276, 1
        %v2278 = vadd.f32 %v2276, %v2277
        %v2279 = vsel %vm2222, %v2151, 0.0
        %2280 = vadd.xlane.f32.xlu0 %v2279
        %v2281 = vpop.xlane.xlu0 %2280
        %v2282 = vsel %vm2222, %v2152, 0.0
        %2283 = vadd.xlane.f32.xlu0 %v2282
        %v2284 = vpop.xlane.xlu0 %2283
        %v2285 = vsel %vm2222, %v2153, 0.0
        %2286 = vadd.xlane.f32.xlu0 %v2285
        %v2287 = vpop.xlane.xlu0 %2286
        %v2288 = vsel %vm2222, %v2154, 0.0
        %2289 = vadd.xlane.f32.xlu0 %v2288
        %v2290 = vpop.xlane.xlu0 %2289
        %v2291 = vsel %vm2222, %v2155, 0.0
        %2292 = vadd.xlane.f32.xlu0 %v2291
        %v2293 = vpop.xlane.xlu0 %2292
        %v2294 = vsel %vm2222, %v2156, 0.0
        %2295 = vadd.xlane.f32.xlu0 %v2294
        %v2296 = vpop.xlane.xlu0 %2295
        %v2297 = vsel %vm2222, %v2157, 0.0
        %2298 = vadd.xlane.f32.xlu0 %v2297
        %v2299 = vpop.xlane.xlu0 %2298
        %v2300 = vsel %vm2222, %v2158, 0.0
        %2301 = vadd.xlane.f32.xlu0 %v2300
        %v2302 = vpop.xlane.xlu0 %2301
        %2304 = vset.pattern.permute.xlu0 0
        %2305 = vperm.xlu0 %2304, %v2214
        %v2306 = vpop.permute.xlu0 %2305
        %2309 = vset.pattern.permute.xlu0 0
        %2310 = vperm.xlu0 %2309, %v2215
        %v2311 = vpop.permute.xlu0 %2310
        %2314 = vset.pattern.permute.xlu0 0
        %2315 = vperm.xlu0 %2314, %v2216
        %v2316 = vpop.permute.xlu0 %2315
        %2319 = vset.pattern.permute.xlu0 0
        %2320 = vperm.xlu0 %2319, %v2217
        %v2321 = vpop.permute.xlu0 %2320
        %2324 = vset.pattern.permute.xlu0 0
        %2325 = vperm.xlu0 %2324, %v2218
        %v2326 = vpop.permute.xlu0 %2325
        %2329 = vset.pattern.permute.xlu0 0
        %2330 = vperm.xlu0 %2329, %v2219
        %v2331 = vpop.permute.xlu0 %2330
        %2334 = vset.pattern.permute.xlu0 0
        %2335 = vperm.xlu0 %2334, %v2220
        %v2336 = vpop.permute.xlu0 %2335
        %2339 = vset.pattern.permute.xlu0 0
        %2340 = vperm.xlu0 %2339, %v2221
        %v2341 = vpop.permute.xlu0 %2340
        %v2343 = vsel %vm2118, %v2306, 0.0
        %v2344 = vsel %vm2118, %v2311, 0.0
        %v2345 = vsel %vm2118, %v2316, 0.0
        %v2346 = vsel %vm2118, %v2321, 0.0
        %v2347 = vsel %vm2118, %v2326, 0.0
        %v2348 = vsel %vm2118, %v2331, 0.0
        %v2349 = vsel %vm2118, %v2336, 0.0
        %v2350 = vsel %vm2118, %v2341, 0.0
        %v2351 = vsel %vm2222, %v2343, 0.0
        %v2352 = vrot.slane %v2351, 4
        %v2353 = vadd.f32 %v2351, %v2352
        %v2354 = vrot.slane %v2353, 2
        %v2355 = vadd.f32 %v2353, %v2354
        %v2356 = vrot.slane %v2355, 1
        %v2357 = vadd.f32 %v2355, %v2356
        %v2358 = vsel %vm2222, %v2344, 0.0
        %v2359 = vrot.slane %v2358, 4
        %v2360 = vadd.f32 %v2358, %v2359
        %v2361 = vrot.slane %v2360, 2
        %v2362 = vadd.f32 %v2360, %v2361
        %v2363 = vrot.slane %v2362, 1
        %v2364 = vadd.f32 %v2362, %v2363
        %v2365 = vsel %vm2222, %v2345, 0.0
        %v2366 = vrot.slane %v2365, 4
        %v2367 = vadd.f32 %v2365, %v2366
        %v2368 = vrot.slane %v2367, 2
        %v2369 = vadd.f32 %v2367, %v2368
        %v2370 = vrot.slane %v2369, 1
        %v2371 = vadd.f32 %v2369, %v2370
        %v2372 = vsel %vm2222, %v2346, 0.0
        %v2373 = vrot.slane %v2372, 4
        %v2374 = vadd.f32 %v2372, %v2373
        %v2375 = vrot.slane %v2374, 2
        %v2376 = vadd.f32 %v2374, %v2375
        %v2377 = vrot.slane %v2376, 1
        %v2378 = vadd.f32 %v2376, %v2377
        %v2379 = vsel %vm2222, %v2347, 0.0
        %v2380 = vrot.slane %v2379, 4
        %v2381 = vadd.f32 %v2379, %v2380
        %v2382 = vrot.slane %v2381, 2
        %v2383 = vadd.f32 %v2381, %v2382
        %v2384 = vrot.slane %v2383, 1
        %v2385 = vadd.f32 %v2383, %v2384
        %v2386 = vsel %vm2222, %v2348, 0.0
        %v2387 = vrot.slane %v2386, 4
        %v2388 = vadd.f32 %v2386, %v2387
        %v2389 = vrot.slane %v2388, 2
        %v2390 = vadd.f32 %v2388, %v2389
        %v2391 = vrot.slane %v2390, 1
        %v2392 = vadd.f32 %v2390, %v2391
        %v2393 = vsel %vm2222, %v2349, 0.0
        %v2394 = vrot.slane %v2393, 4
        %v2395 = vadd.f32 %v2393, %v2394
        %v2396 = vrot.slane %v2395, 2
        %v2397 = vadd.f32 %v2395, %v2396
        %v2398 = vrot.slane %v2397, 1
        %v2399 = vadd.f32 %v2397, %v2398
        %v2400 = vsel %vm2222, %v2350, 0.0
        %v2401 = vrot.slane %v2400, 4
        %v2402 = vadd.f32 %v2400, %v2401
        %v2403 = vrot.slane %v2402, 2
        %v2404 = vadd.f32 %v2402, %v2403
        %v2405 = vrot.slane %v2404, 1
        %v2406 = vadd.f32 %v2404, %v2405
        %v2407 = vsub.f32 0.0, %v2119
        %v2408 = vsub.f32 0.0, %v2120
        %v2409 = vsub.f32 0.0, %v2121
        %v2410 = vsub.f32 0.0, %v2122
        %v2411 = vsub.f32 0.0, %v2123
        %v2412 = vsub.f32 0.0, %v2124
        %v2413 = vsub.f32 0.0, %v2125
        %v2414 = vsub.f32 0.0, %v2126
        %v2415 = vsel %vm2118, %v2229, %v2407
        %v2416 = vsel %vm2118, %v2236, %v2408
        %v2417 = vsel %vm2118, %v2243, %v2409
        %v2418 = vsel %vm2118, %v2250, %v2410
        %v2419 = vsel %vm2118, %v2257, %v2411
        %v2420 = vsel %vm2118, %v2264, %v2412
        %v2421 = vsel %vm2118, %v2271, %v2413
        %v2422 = vsel %vm2118, %v2278, %v2414
        %vm2423 = vcmp.eq.s32.totalorder %v539, 0
        %v2424 = vsel %vm2423, 1, 0
        %vm2425 = vcmp.eq.s32.totalorder %v2424, 1
        %v2426 = vsel %vm2425, %v2357, %v2415
        %v2427 = vsel %vm2425, %v2364, %v2416
        %v2428 = vsel %vm2425, %v2371, %v2417
        %v2429 = vsel %vm2425, %v2378, %v2418
        %v2430 = vsel %vm2425, %v2385, %v2419
        %v2431 = vsel %vm2425, %v2392, %v2420
        %v2432 = vsel %vm2425, %v2399, %v2421
        %v2433 = vsel %vm2425, %v2406, %v2422
        %vm2434 = vcmp.eq.f32.partialorder %v2426, 0.0
        %vm2435 = vcmp.eq.f32.partialorder %v2427, 0.0
        %vm2436 = vcmp.eq.f32.partialorder %v2428, 0.0
        %vm2437 = vcmp.eq.f32.partialorder %v2429, 0.0
        %vm2438 = vcmp.eq.f32.partialorder %v2430, 0.0
        %vm2439 = vcmp.eq.f32.partialorder %v2431, 0.0
        %vm2440 = vcmp.eq.f32.partialorder %v2432, 0.0
        %vm2441 = vcmp.eq.f32.partialorder %v2433, 0.0
        %vm2442 = vmand %vm2118, %vm2434
        %vm2443 = vmand %vm2118, %vm2435
        %vm2444 = vmand %vm2118, %vm2436
        %vm2445 = vmand %vm2118, %vm2437
        %vm2446 = vmand %vm2118, %vm2438
        %vm2447 = vmand %vm2118, %vm2439
        %vm2448 = vmand %vm2118, %vm2440
        %vm2449 = vmand %vm2118, %vm2441
        %v2450 = vsel %vm2442, 1.0, %v2426
        %v2451 = vsel %vm2443, 1.0, %v2427
        %v2452 = vsel %vm2444, 1.0, %v2428
        %v2453 = vsel %vm2445, 1.0, %v2429
        %v2454 = vsel %vm2446, 1.0, %v2430
        %v2455 = vsel %vm2447, 1.0, %v2431
        %v2456 = vsel %vm2448, 1.0, %v2432
        %v2457 = vsel %vm2449, 1.0, %v2433
        %v2458 = vsub.f32 0.0, %v2151
        %v2459 = vsub.f32 0.0, %v2152
        %v2460 = vsub.f32 0.0, %v2153
        %v2461 = vsub.f32 0.0, %v2154
        %v2462 = vsub.f32 0.0, %v2155
        %v2463 = vsub.f32 0.0, %v2156
        %v2464 = vsub.f32 0.0, %v2157
        %v2465 = vsub.f32 0.0, %v2158
        %v2466 = vsel %vm2118, %v2281, %v2458
        %v2467 = vsel %vm2118, %v2284, %v2459
        %v2468 = vsel %vm2118, %v2287, %v2460
        %v2469 = vsel %vm2118, %v2290, %v2461
        %v2470 = vsel %vm2118, %v2293, %v2462
        %v2471 = vsel %vm2118, %v2296, %v2463
        %v2472 = vsel %vm2118, %v2299, %v2464
        %v2473 = vsel %vm2118, %v2302, %v2465
        %vm2474 = vcmp.eq.s32.totalorder %v541, 0
        %v2475 = vsel %vm2474, 1, 0
        %vm2476 = vcmp.eq.s32.totalorder %v2475, 1
        %v2477 = vsel %vm2476, %v2306, %v2466
        %v2478 = vsel %vm2476, %v2311, %v2467
        %v2479 = vsel %vm2476, %v2316, %v2468
        %v2480 = vsel %vm2476, %v2321, %v2469
        %v2481 = vsel %vm2476, %v2326, %v2470
        %v2482 = vsel %vm2476, %v2331, %v2471
        %v2483 = vsel %vm2476, %v2336, %v2472
        %v2484 = vsel %vm2476, %v2341, %v2473
        %vm2485 = vcmp.eq.f32.partialorder %v2477, 0.0
        %vm2486 = vcmp.eq.f32.partialorder %v2478, 0.0
        %vm2487 = vcmp.eq.f32.partialorder %v2479, 0.0
        %vm2488 = vcmp.eq.f32.partialorder %v2480, 0.0
        %vm2489 = vcmp.eq.f32.partialorder %v2481, 0.0
        %vm2490 = vcmp.eq.f32.partialorder %v2482, 0.0
        %vm2491 = vcmp.eq.f32.partialorder %v2483, 0.0
        %vm2492 = vcmp.eq.f32.partialorder %v2484, 0.0
        %vm2493 = vmand %vm2118, %vm2485
        %vm2494 = vmand %vm2118, %vm2486
        %vm2495 = vmand %vm2118, %vm2487
        %vm2496 = vmand %vm2118, %vm2488
        %vm2497 = vmand %vm2118, %vm2489
        %vm2498 = vmand %vm2118, %vm2490
        %vm2499 = vmand %vm2118, %vm2491
        %vm2500 = vmand %vm2118, %vm2492
        %v2501 = vsel %vm2493, 1.0, %v2477
        %v2502 = vsel %vm2494, 1.0, %v2478
        %v2503 = vsel %vm2495, 1.0, %v2479
        %v2504 = vsel %vm2496, 1.0, %v2480
        %v2505 = vsel %vm2497, 1.0, %v2481
        %v2506 = vsel %vm2498, 1.0, %v2482
        %v2507 = vsel %vm2499, 1.0, %v2483
        %v2508 = vsel %vm2500, 1.0, %v2484
        %v2509 = vsel %vm542, 1.0, 0.0
        %v2510 = vrcp.pop %v2450
        %v2511 = vmul.f32 1.0, %v2510
        %v2512 = vrcp.pop %v2451
        %v2513 = vmul.f32 1.0, %v2512
        %v2514 = vrcp.pop %v2452
        %v2515 = vmul.f32 1.0, %v2514
        %v2516 = vrcp.pop %v2453
        %v2517 = vmul.f32 1.0, %v2516
        %v2518 = vrcp.pop %v2454
        %v2519 = vmul.f32 1.0, %v2518
        %v2520 = vrcp.pop %v2455
        %v2521 = vmul.f32 1.0, %v2520
        %v2522 = vrcp.pop %v2456
        %v2523 = vmul.f32 1.0, %v2522
        %v2524 = vrcp.pop %v2457
        %v2525 = vmul.f32 1.0, %v2524
        %v2526 = vrcp.pop %v2501
        %v2527 = vmul.f32 1.0, %v2526
        %v2528 = vrcp.pop %v2502
        %v2529 = vmul.f32 1.0, %v2528
        %v2530 = vrcp.pop %v2503
        %v2531 = vmul.f32 1.0, %v2530
        %v2532 = vrcp.pop %v2504
        %v2533 = vmul.f32 1.0, %v2532
        %v2534 = vrcp.pop %v2505
        %v2535 = vmul.f32 1.0, %v2534
        %v2536 = vrcp.pop %v2506
        %v2537 = vmul.f32 1.0, %v2536
        %v2538 = vrcp.pop %v2507
        %v2539 = vmul.f32 1.0, %v2538
        %v2540 = vrcp.pop %v2508
        %v2541 = vmul.f32 1.0, %v2540
        %2543 = vset.pattern.permute.xlu0 0
        %2544 = vperm.xlu0 %2543, %v2511
        %v2545 = vpop.permute.xlu0 %2544
        %2548 = vset.pattern.permute.xlu0 0
        %2549 = vperm.xlu0 %2548, %v2513
        %v2550 = vpop.permute.xlu0 %2549
        %2553 = vset.pattern.permute.xlu0 0
        %2554 = vperm.xlu0 %2553, %v2515
        %v2555 = vpop.permute.xlu0 %2554
        %2558 = vset.pattern.permute.xlu0 0
        %2559 = vperm.xlu0 %2558, %v2517
        %v2560 = vpop.permute.xlu0 %2559
        %2563 = vset.pattern.permute.xlu0 0
        %2564 = vperm.xlu0 %2563, %v2519
        %v2565 = vpop.permute.xlu0 %2564
        %2568 = vset.pattern.permute.xlu0 0
        %2569 = vperm.xlu0 %2568, %v2521
        %v2570 = vpop.permute.xlu0 %2569
        %2573 = vset.pattern.permute.xlu0 0
        %2574 = vperm.xlu0 %2573, %v2523
        %v2575 = vpop.permute.xlu0 %2574
        %2578 = vset.pattern.permute.xlu0 0
        %2579 = vperm.xlu0 %2578, %v2525
        %v2580 = vpop.permute.xlu0 %2579
        %2583 = vset.pattern.permute.xlu0 0
        %2584 = vperm.xlu0 %2583, %v2527
        %v2585 = vpop.permute.xlu0 %2584
        %2588 = vset.pattern.permute.xlu0 0
        %2589 = vperm.xlu0 %2588, %v2529
        %v2590 = vpop.permute.xlu0 %2589
        %2593 = vset.pattern.permute.xlu0 0
        %2594 = vperm.xlu0 %2593, %v2531
        %v2595 = vpop.permute.xlu0 %2594
        %2598 = vset.pattern.permute.xlu0 0
        %2599 = vperm.xlu0 %2598, %v2533
        %v2600 = vpop.permute.xlu0 %2599
        %2603 = vset.pattern.permute.xlu0 0
        %2604 = vperm.xlu0 %2603, %v2535
        %v2605 = vpop.permute.xlu0 %2604
        %2608 = vset.pattern.permute.xlu0 0
        %2609 = vperm.xlu0 %2608, %v2537
        %v2610 = vpop.permute.xlu0 %2609
        %2613 = vset.pattern.permute.xlu0 0
        %2614 = vperm.xlu0 %2613, %v2539
        %v2615 = vpop.permute.xlu0 %2614
        %2618 = vset.pattern.permute.xlu0 0
        %2619 = vperm.xlu0 %2618, %v2541
        %v2620 = vpop.permute.xlu0 %2619
        %v2622 = vmul.f32 %v2450, %v2545
        %v2623 = vmul.f32 %v2451, %v2550
        %v2624 = vmul.f32 %v2452, %v2555
        %v2625 = vmul.f32 %v2453, %v2560
        %v2626 = vmul.f32 %v2454, %v2565
        %v2627 = vmul.f32 %v2455, %v2570
        %v2628 = vmul.f32 %v2456, %v2575
        %v2629 = vmul.f32 %v2457, %v2580
        %v2630 = vmul.f32 %v2501, %v2585
        %v2631 = vmul.f32 %v2502, %v2590
        %v2632 = vmul.f32 %v2503, %v2595
        %v2633 = vmul.f32 %v2504, %v2600
        %v2634 = vmul.f32 %v2505, %v2605
        %v2635 = vmul.f32 %v2506, %v2610
        %v2636 = vmul.f32 %v2507, %v2615
        %v2637 = vmul.f32 %v2508, %v2620
        %v2638 = vmul.f32 %v2509, %v2545
        %v2639 = vmul.f32 %v2509, %v2550
        %v2640 = vmul.f32 %v2509, %v2555
        %v2641 = vmul.f32 %v2509, %v2560
        %v2642 = vmul.f32 %v2509, %v2565
        %v2643 = vmul.f32 %v2509, %v2570
        %v2644 = vmul.f32 %v2509, %v2575
        %v2645 = vmul.f32 %v2509, %v2580
        %v2646 = vmul.f32 %v2509, %v2585
        %v2647 = vmul.f32 %v2509, %v2590
        %v2648 = vmul.f32 %v2509, %v2595
        %v2649 = vmul.f32 %v2509, %v2600
        %v2650 = vmul.f32 %v2509, %v2605
        %v2651 = vmul.f32 %v2509, %v2610
        %v2652 = vmul.f32 %v2509, %v2615
        %v2653 = vmul.f32 %v2509, %v2620
        %v2654 = vsel %vm2425, 0.0, %v2450
        %v2655 = vsel %vm2425, 0.0, %v2451
        %v2656 = vsel %vm2425, 0.0, %v2452
        %v2657 = vsel %vm2425, 0.0, %v2453
        %v2658 = vsel %vm2425, 0.0, %v2454
        %v2659 = vsel %vm2425, 0.0, %v2455
        %v2660 = vsel %vm2425, 0.0, %v2456
        %v2661 = vsel %vm2425, 0.0, %v2457
        %v2662 = vsel %vm2425, 0.0, %v2501
        %v2663 = vsel %vm2425, 0.0, %v2502
        %v2664 = vsel %vm2425, 0.0, %v2503
        %v2665 = vsel %vm2425, 0.0, %v2504
        %v2666 = vsel %vm2425, 0.0, %v2505
        %v2667 = vsel %vm2425, 0.0, %v2506
        %v2668 = vsel %vm2425, 0.0, %v2507
        %v2669 = vsel %vm2425, 0.0, %v2508
        %2671 = vset.pattern.permute.xlu0 0
        %2672 = vperm.xlu0 %2671, %v2654
        %v2673 = vpop.permute.xlu0 %2672
        %2676 = vset.pattern.permute.xlu0 0
        %2677 = vperm.xlu0 %2676, %v2655
        %v2678 = vpop.permute.xlu0 %2677
        %2681 = vset.pattern.permute.xlu0 0
        %2682 = vperm.xlu0 %2681, %v2656
        %v2683 = vpop.permute.xlu0 %2682
        %2686 = vset.pattern.permute.xlu0 0
        %2687 = vperm.xlu0 %2686, %v2657
        %v2688 = vpop.permute.xlu0 %2687
        %2691 = vset.pattern.permute.xlu0 0
        %2692 = vperm.xlu0 %2691, %v2658
        %v2693 = vpop.permute.xlu0 %2692
        %2696 = vset.pattern.permute.xlu0 0
        %2697 = vperm.xlu0 %2696, %v2659
        %v2698 = vpop.permute.xlu0 %2697
        %2701 = vset.pattern.permute.xlu0 0
        %2702 = vperm.xlu0 %2701, %v2660
        %v2703 = vpop.permute.xlu0 %2702
        %2706 = vset.pattern.permute.xlu0 0
        %2707 = vperm.xlu0 %2706, %v2661
        %v2708 = vpop.permute.xlu0 %2707
        %2711 = vset.pattern.permute.xlu0 0
        %2712 = vperm.xlu0 %2711, %v2662
        %v2713 = vpop.permute.xlu0 %2712
        %2716 = vset.pattern.permute.xlu0 0
        %2717 = vperm.xlu0 %2716, %v2663
        %v2718 = vpop.permute.xlu0 %2717
        %2721 = vset.pattern.permute.xlu0 0
        %2722 = vperm.xlu0 %2721, %v2664
        %v2723 = vpop.permute.xlu0 %2722
        %2726 = vset.pattern.permute.xlu0 0
        %2727 = vperm.xlu0 %2726, %v2665
        %v2728 = vpop.permute.xlu0 %2727
        %2731 = vset.pattern.permute.xlu0 0
        %2732 = vperm.xlu0 %2731, %v2666
        %v2733 = vpop.permute.xlu0 %2732
        %2736 = vset.pattern.permute.xlu0 0
        %2737 = vperm.xlu0 %2736, %v2667
        %v2738 = vpop.permute.xlu0 %2737
        %2741 = vset.pattern.permute.xlu0 0
        %2742 = vperm.xlu0 %2741, %v2668
        %v2743 = vpop.permute.xlu0 %2742
        %2746 = vset.pattern.permute.xlu0 0
        %2747 = vperm.xlu0 %2746, %v2669
        %v2748 = vpop.permute.xlu0 %2747
        %v2750 = vlaneseq
        %v2751 = vshrl.u32 %v2750, 7
        %v2752 = vsub.s32 0, %v2751
        %v2753 = vrot.slane %v2622, %v2752
        %v2754 = vlaneseq
        %v2755 = vshrl.u32 %v2754, 7
        %v2756 = vsub.s32 0, %v2755
        %v2757 = vrot.slane %v2623, %v2756
        %v2758 = vlaneseq
        %v2759 = vshrl.u32 %v2758, 7
        %v2760 = vsub.s32 0, %v2759
        %v2761 = vrot.slane %v2624, %v2760
        %v2762 = vlaneseq
        %v2763 = vshrl.u32 %v2762, 7
        %v2764 = vsub.s32 0, %v2763
        %v2765 = vrot.slane %v2625, %v2764
        %v2766 = vlaneseq
        %v2767 = vshrl.u32 %v2766, 7
        %v2768 = vsub.s32 0, %v2767
        %v2769 = vrot.slane %v2626, %v2768
        %v2770 = vlaneseq
        %v2771 = vshrl.u32 %v2770, 7
        %v2772 = vsub.s32 0, %v2771
        %v2773 = vrot.slane %v2627, %v2772
        %v2774 = vlaneseq
        %v2775 = vshrl.u32 %v2774, 7
        %v2776 = vsub.s32 0, %v2775
        %v2777 = vrot.slane %v2628, %v2776
        %v2778 = vlaneseq
        %v2779 = vshrl.u32 %v2778, 7
        %v2780 = vsub.s32 0, %v2779
        %v2781 = vrot.slane %v2629, %v2780
        %v2782 = vlaneseq
        %v2783 = vshrl.u32 %v2782, 7
        %v2784 = vsub.s32 0, %v2783
        %v2785 = vrot.slane %v2630, %v2784
        %v2786 = vlaneseq
        %v2787 = vshrl.u32 %v2786, 7
        %v2788 = vsub.s32 0, %v2787
        %v2789 = vrot.slane %v2631, %v2788
        %v2790 = vlaneseq
        %v2791 = vshrl.u32 %v2790, 7
        %v2792 = vsub.s32 0, %v2791
        %v2793 = vrot.slane %v2632, %v2792
        %v2794 = vlaneseq
        %v2795 = vshrl.u32 %v2794, 7
        %v2796 = vsub.s32 0, %v2795
        %v2797 = vrot.slane %v2633, %v2796
        %v2798 = vlaneseq
        %v2799 = vshrl.u32 %v2798, 7
        %v2800 = vsub.s32 0, %v2799
        %v2801 = vrot.slane %v2634, %v2800
        %v2802 = vlaneseq
        %v2803 = vshrl.u32 %v2802, 7
        %v2804 = vsub.s32 0, %v2803
        %v2805 = vrot.slane %v2635, %v2804
        %v2806 = vlaneseq
        %v2807 = vshrl.u32 %v2806, 7
        %v2808 = vsub.s32 0, %v2807
        %v2809 = vrot.slane %v2636, %v2808
        %v2810 = vlaneseq
        %v2811 = vshrl.u32 %v2810, 7
        %v2812 = vsub.s32 0, %v2811
        %v2813 = vrot.slane %v2637, %v2812
        %v2814 = vmul.f32 %v2673, %v2753
        %v2815 = vmul.f32 %v2678, %v2757
        %v2816 = vmul.f32 %v2683, %v2761
        %v2817 = vmul.f32 %v2688, %v2765
        %v2818 = vmul.f32 %v2693, %v2769
        %v2819 = vmul.f32 %v2698, %v2773
        %v2820 = vmul.f32 %v2703, %v2777
        %v2821 = vmul.f32 %v2708, %v2781
        %v2822 = vmul.f32 %v2713, %v2785
        %v2823 = vmul.f32 %v2718, %v2789
        %v2824 = vmul.f32 %v2723, %v2793
        %v2825 = vmul.f32 %v2728, %v2797
        %v2826 = vmul.f32 %v2733, %v2801
        %v2827 = vmul.f32 %v2738, %v2805
        %v2828 = vmul.f32 %v2743, %v2809
        %v2829 = vmul.f32 %v2748, %v2813
        %v2830 = vsub.f32 %v2450, %v2814
        %v2831 = vsub.f32 %v2451, %v2815
        %v2832 = vsub.f32 %v2452, %v2816
        %v2833 = vsub.f32 %v2453, %v2817
        %v2834 = vsub.f32 %v2454, %v2818
        %v2835 = vsub.f32 %v2455, %v2819
        %v2836 = vsub.f32 %v2456, %v2820
        %v2837 = vsub.f32 %v2457, %v2821
        %v2838 = vsub.f32 %v2501, %v2822
        %v2839 = vsub.f32 %v2502, %v2823
        %v2840 = vsub.f32 %v2503, %v2824
        %v2841 = vsub.f32 %v2504, %v2825
        %v2842 = vsub.f32 %v2505, %v2826
        %v2843 = vsub.f32 %v2506, %v2827
        %v2844 = vsub.f32 %v2507, %v2828
        %v2845 = vsub.f32 %v2508, %v2829
        %v2846 = vsel %vm2425, %v2753, %v2830
        %v2847 = vsel %vm2425, %v2757, %v2831
        %v2848 = vsel %vm2425, %v2761, %v2832
        %v2849 = vsel %vm2425, %v2765, %v2833
        %v2850 = vsel %vm2425, %v2769, %v2834
        %v2851 = vsel %vm2425, %v2773, %v2835
        %v2852 = vsel %vm2425, %v2777, %v2836
        %v2853 = vsel %vm2425, %v2781, %v2837
        %v2854 = vsel %vm2425, %v2785, %v2838
        %v2855 = vsel %vm2425, %v2789, %v2839
        %v2856 = vsel %vm2425, %v2793, %v2840
        %v2857 = vsel %vm2425, %v2797, %v2841
        %v2858 = vsel %vm2425, %v2801, %v2842
        %v2859 = vsel %vm2425, %v2805, %v2843
        %v2860 = vsel %vm2425, %v2809, %v2844
        %v2861 = vsel %vm2425, %v2813, %v2845
        %v2862 = vlaneseq
        %v2863 = vshrl.u32 %v2862, 7
        %v2864 = vsub.s32 0, %v2863
        %v2865 = vrot.slane %v2638, %v2864
        %v2866 = vlaneseq
        %v2867 = vshrl.u32 %v2866, 7
        %v2868 = vsub.s32 0, %v2867
        %v2869 = vrot.slane %v2639, %v2868
        %v2870 = vlaneseq
        %v2871 = vshrl.u32 %v2870, 7
        %v2872 = vsub.s32 0, %v2871
        %v2873 = vrot.slane %v2640, %v2872
        %v2874 = vlaneseq
        %v2875 = vshrl.u32 %v2874, 7
        %v2876 = vsub.s32 0, %v2875
        %v2877 = vrot.slane %v2641, %v2876
        %v2878 = vlaneseq
        %v2879 = vshrl.u32 %v2878, 7
        %v2880 = vsub.s32 0, %v2879
        %v2881 = vrot.slane %v2642, %v2880
        %v2882 = vlaneseq
        %v2883 = vshrl.u32 %v2882, 7
        %v2884 = vsub.s32 0, %v2883
        %v2885 = vrot.slane %v2643, %v2884
        %v2886 = vlaneseq
        %v2887 = vshrl.u32 %v2886, 7
        %v2888 = vsub.s32 0, %v2887
        %v2889 = vrot.slane %v2644, %v2888
        %v2890 = vlaneseq
        %v2891 = vshrl.u32 %v2890, 7
        %v2892 = vsub.s32 0, %v2891
        %v2893 = vrot.slane %v2645, %v2892
        %v2894 = vlaneseq
        %v2895 = vshrl.u32 %v2894, 7
        %v2896 = vsub.s32 0, %v2895
        %v2897 = vrot.slane %v2646, %v2896
        %v2898 = vlaneseq
        %v2899 = vshrl.u32 %v2898, 7
        %v2900 = vsub.s32 0, %v2899
        %v2901 = vrot.slane %v2647, %v2900
        %v2902 = vlaneseq
        %v2903 = vshrl.u32 %v2902, 7
        %v2904 = vsub.s32 0, %v2903
        %v2905 = vrot.slane %v2648, %v2904
        %v2906 = vlaneseq
        %v2907 = vshrl.u32 %v2906, 7
        %v2908 = vsub.s32 0, %v2907
        %v2909 = vrot.slane %v2649, %v2908
        %v2910 = vlaneseq
        %v2911 = vshrl.u32 %v2910, 7
        %v2912 = vsub.s32 0, %v2911
        %v2913 = vrot.slane %v2650, %v2912
        %v2914 = vlaneseq
        %v2915 = vshrl.u32 %v2914, 7
        %v2916 = vsub.s32 0, %v2915
        %v2917 = vrot.slane %v2651, %v2916
        %v2918 = vlaneseq
        %v2919 = vshrl.u32 %v2918, 7
        %v2920 = vsub.s32 0, %v2919
        %v2921 = vrot.slane %v2652, %v2920
        %v2922 = vlaneseq
        %v2923 = vshrl.u32 %v2922, 7
        %v2924 = vsub.s32 0, %v2923
        %v2925 = vrot.slane %v2653, %v2924
        %v2926 = vmul.f32 %v2673, %v2865
        %v2927 = vmul.f32 %v2678, %v2869
        %v2928 = vmul.f32 %v2683, %v2873
        %v2929 = vmul.f32 %v2688, %v2877
        %v2930 = vmul.f32 %v2693, %v2881
        %v2931 = vmul.f32 %v2698, %v2885
        %v2932 = vmul.f32 %v2703, %v2889
        %v2933 = vmul.f32 %v2708, %v2893
        %v2934 = vmul.f32 %v2713, %v2897
        %v2935 = vmul.f32 %v2718, %v2901
        %v2936 = vmul.f32 %v2723, %v2905
        %v2937 = vmul.f32 %v2728, %v2909
        %v2938 = vmul.f32 %v2733, %v2913
        %v2939 = vmul.f32 %v2738, %v2917
        %v2940 = vmul.f32 %v2743, %v2921
        %v2941 = vmul.f32 %v2748, %v2925
        %v2942 = vsub.f32 %v2509, %v2926
        %v2943 = vsub.f32 %v2509, %v2927
        %v2944 = vsub.f32 %v2509, %v2928
        %v2945 = vsub.f32 %v2509, %v2929
        %v2946 = vsub.f32 %v2509, %v2930
        %v2947 = vsub.f32 %v2509, %v2931
        %v2948 = vsub.f32 %v2509, %v2932
        %v2949 = vsub.f32 %v2509, %v2933
        %v2950 = vsub.f32 %v2509, %v2934
        %v2951 = vsub.f32 %v2509, %v2935
        %v2952 = vsub.f32 %v2509, %v2936
        %v2953 = vsub.f32 %v2509, %v2937
        %v2954 = vsub.f32 %v2509, %v2938
        %v2955 = vsub.f32 %v2509, %v2939
        %v2956 = vsub.f32 %v2509, %v2940
        %v2957 = vsub.f32 %v2509, %v2941
        %v2958 = vsel %vm2425, %v2865, %v2942
        %v2959 = vsel %vm2425, %v2869, %v2943
        %v2960 = vsel %vm2425, %v2873, %v2944
        %v2961 = vsel %vm2425, %v2877, %v2945
        %v2962 = vsel %vm2425, %v2881, %v2946
        %v2963 = vsel %vm2425, %v2885, %v2947
        %v2964 = vsel %vm2425, %v2889, %v2948
        %v2965 = vsel %vm2425, %v2893, %v2949
        %v2966 = vsel %vm2425, %v2897, %v2950
        %v2967 = vsel %vm2425, %v2901, %v2951
        %v2968 = vsel %vm2425, %v2905, %v2952
        %v2969 = vsel %vm2425, %v2909, %v2953
        %v2970 = vsel %vm2425, %v2913, %v2954
        %v2971 = vsel %vm2425, %v2917, %v2955
        %v2972 = vsel %vm2425, %v2921, %v2956
        %v2973 = vsel %vm2425, %v2925, %v2957
        %v2974 = vrcp.pop %v2846
        %v2975 = vmul.f32 1.0, %v2974
        %v2976 = vrcp.pop %v2847
        %v2977 = vmul.f32 1.0, %v2976
        %v2978 = vrcp.pop %v2848
        %v2979 = vmul.f32 1.0, %v2978
        %v2980 = vrcp.pop %v2849
        %v2981 = vmul.f32 1.0, %v2980
        %v2982 = vrcp.pop %v2850
        %v2983 = vmul.f32 1.0, %v2982
        %v2984 = vrcp.pop %v2851
        %v2985 = vmul.f32 1.0, %v2984
        %v2986 = vrcp.pop %v2852
        %v2987 = vmul.f32 1.0, %v2986
        %v2988 = vrcp.pop %v2853
        %v2989 = vmul.f32 1.0, %v2988
        %v2990 = vrcp.pop %v2854
        %v2991 = vmul.f32 1.0, %v2990
        %v2992 = vrcp.pop %v2855
        %v2993 = vmul.f32 1.0, %v2992
        %v2994 = vrcp.pop %v2856
        %v2995 = vmul.f32 1.0, %v2994
        %v2996 = vrcp.pop %v2857
        %v2997 = vmul.f32 1.0, %v2996
        %v2998 = vrcp.pop %v2858
        %v2999 = vmul.f32 1.0, %v2998
        %v3000 = vrcp.pop %v2859
        %v3001 = vmul.f32 1.0, %v3000
        %v3002 = vrcp.pop %v2860
        %v3003 = vmul.f32 1.0, %v3002
        %v3004 = vrcp.pop %v2861
        %v3005 = vmul.f32 1.0, %v3004
        %3007 = vset.pattern.permute.xlu0 1
        %3008 = vperm.xlu0 %3007, %v2975
        %v3009 = vpop.permute.xlu0 %3008
        %3012 = vset.pattern.permute.xlu0 1
        %3013 = vperm.xlu0 %3012, %v2977
        %v3014 = vpop.permute.xlu0 %3013
        %3017 = vset.pattern.permute.xlu0 1
        %3018 = vperm.xlu0 %3017, %v2979
        %v3019 = vpop.permute.xlu0 %3018
        %3022 = vset.pattern.permute.xlu0 1
        %3023 = vperm.xlu0 %3022, %v2981
        %v3024 = vpop.permute.xlu0 %3023
        %3027 = vset.pattern.permute.xlu0 1
        %3028 = vperm.xlu0 %3027, %v2983
        %v3029 = vpop.permute.xlu0 %3028
        %3032 = vset.pattern.permute.xlu0 1
        %3033 = vperm.xlu0 %3032, %v2985
        %v3034 = vpop.permute.xlu0 %3033
        %3037 = vset.pattern.permute.xlu0 1
        %3038 = vperm.xlu0 %3037, %v2987
        %v3039 = vpop.permute.xlu0 %3038
        %3042 = vset.pattern.permute.xlu0 1
        %3043 = vperm.xlu0 %3042, %v2989
        %v3044 = vpop.permute.xlu0 %3043
        %3047 = vset.pattern.permute.xlu0 1
        %3048 = vperm.xlu0 %3047, %v2991
        %v3049 = vpop.permute.xlu0 %3048
        %3052 = vset.pattern.permute.xlu0 1
        %3053 = vperm.xlu0 %3052, %v2993
        %v3054 = vpop.permute.xlu0 %3053
        %3057 = vset.pattern.permute.xlu0 1
        %3058 = vperm.xlu0 %3057, %v2995
        %v3059 = vpop.permute.xlu0 %3058
        %3062 = vset.pattern.permute.xlu0 1
        %3063 = vperm.xlu0 %3062, %v2997
        %v3064 = vpop.permute.xlu0 %3063
        %3067 = vset.pattern.permute.xlu0 1
        %3068 = vperm.xlu0 %3067, %v2999
        %v3069 = vpop.permute.xlu0 %3068
        %3072 = vset.pattern.permute.xlu0 1
        %3073 = vperm.xlu0 %3072, %v3001
        %v3074 = vpop.permute.xlu0 %3073
        %3077 = vset.pattern.permute.xlu0 1
        %3078 = vperm.xlu0 %3077, %v3003
        %v3079 = vpop.permute.xlu0 %3078
        %3082 = vset.pattern.permute.xlu0 1
        %3083 = vperm.xlu0 %3082, %v3005
        %v3084 = vpop.permute.xlu0 %3083
        %v3086 = vmul.f32 %v2846, %v3009
        %v3087 = vmul.f32 %v2847, %v3014
        %v3088 = vmul.f32 %v2848, %v3019
        %v3089 = vmul.f32 %v2849, %v3024
        %v3090 = vmul.f32 %v2850, %v3029
        %v3091 = vmul.f32 %v2851, %v3034
        %v3092 = vmul.f32 %v2852, %v3039
        %v3093 = vmul.f32 %v2853, %v3044
        %v3094 = vmul.f32 %v2854, %v3049
        %v3095 = vmul.f32 %v2855, %v3054
        %v3096 = vmul.f32 %v2856, %v3059
        %v3097 = vmul.f32 %v2857, %v3064
        %v3098 = vmul.f32 %v2858, %v3069
        %v3099 = vmul.f32 %v2859, %v3074
        %v3100 = vmul.f32 %v2860, %v3079
        %v3101 = vmul.f32 %v2861, %v3084
        %v3102 = vmul.f32 %v2958, %v3009
        %v3103 = vmul.f32 %v2959, %v3014
        %v3104 = vmul.f32 %v2960, %v3019
        %v3105 = vmul.f32 %v2961, %v3024
        %v3106 = vmul.f32 %v2962, %v3029
        %v3107 = vmul.f32 %v2963, %v3034
        %v3108 = vmul.f32 %v2964, %v3039
        %v3109 = vmul.f32 %v2965, %v3044
        %v3110 = vmul.f32 %v2966, %v3049
        %v3111 = vmul.f32 %v2967, %v3054
        %v3112 = vmul.f32 %v2968, %v3059
        %v3113 = vmul.f32 %v2969, %v3064
        %v3114 = vmul.f32 %v2970, %v3069
        %v3115 = vmul.f32 %v2971, %v3074
        %v3116 = vmul.f32 %v2972, %v3079
        %v3117 = vmul.f32 %v2973, %v3084
        %vm3118 = vcmp.eq.s32.totalorder %v539, 1
        %v3119 = vsel %vm3118, 1, 0
        %vm3120 = vcmp.eq.s32.totalorder %v3119, 1
        %v3121 = vsel %vm3120, 0.0, %v2846
        %v3122 = vsel %vm3120, 0.0, %v2847
        %v3123 = vsel %vm3120, 0.0, %v2848
        %v3124 = vsel %vm3120, 0.0, %v2849
        %v3125 = vsel %vm3120, 0.0, %v2850
        %v3126 = vsel %vm3120, 0.0, %v2851
        %v3127 = vsel %vm3120, 0.0, %v2852
        %v3128 = vsel %vm3120, 0.0, %v2853
        %v3129 = vsel %vm3120, 0.0, %v2854
        %v3130 = vsel %vm3120, 0.0, %v2855
        %v3131 = vsel %vm3120, 0.0, %v2856
        %v3132 = vsel %vm3120, 0.0, %v2857
        %v3133 = vsel %vm3120, 0.0, %v2858
        %v3134 = vsel %vm3120, 0.0, %v2859
        %v3135 = vsel %vm3120, 0.0, %v2860
        %v3136 = vsel %vm3120, 0.0, %v2861
        %3138 = vset.pattern.permute.xlu0 1
        %3139 = vperm.xlu0 %3138, %v3121
        %v3140 = vpop.permute.xlu0 %3139
        %3143 = vset.pattern.permute.xlu0 1
        %3144 = vperm.xlu0 %3143, %v3122
        %v3145 = vpop.permute.xlu0 %3144
        %3148 = vset.pattern.permute.xlu0 1
        %3149 = vperm.xlu0 %3148, %v3123
        %v3150 = vpop.permute.xlu0 %3149
        %3153 = vset.pattern.permute.xlu0 1
        %3154 = vperm.xlu0 %3153, %v3124
        %v3155 = vpop.permute.xlu0 %3154
        %3158 = vset.pattern.permute.xlu0 1
        %3159 = vperm.xlu0 %3158, %v3125
        %v3160 = vpop.permute.xlu0 %3159
        %3163 = vset.pattern.permute.xlu0 1
        %3164 = vperm.xlu0 %3163, %v3126
        %v3165 = vpop.permute.xlu0 %3164
        %3168 = vset.pattern.permute.xlu0 1
        %3169 = vperm.xlu0 %3168, %v3127
        %v3170 = vpop.permute.xlu0 %3169
        %3173 = vset.pattern.permute.xlu0 1
        %3174 = vperm.xlu0 %3173, %v3128
        %v3175 = vpop.permute.xlu0 %3174
        %3178 = vset.pattern.permute.xlu0 1
        %3179 = vperm.xlu0 %3178, %v3129
        %v3180 = vpop.permute.xlu0 %3179
        %3183 = vset.pattern.permute.xlu0 1
        %3184 = vperm.xlu0 %3183, %v3130
        %v3185 = vpop.permute.xlu0 %3184
        %3188 = vset.pattern.permute.xlu0 1
        %3189 = vperm.xlu0 %3188, %v3131
        %v3190 = vpop.permute.xlu0 %3189
        %3193 = vset.pattern.permute.xlu0 1
        %3194 = vperm.xlu0 %3193, %v3132
        %v3195 = vpop.permute.xlu0 %3194
        %3198 = vset.pattern.permute.xlu0 1
        %3199 = vperm.xlu0 %3198, %v3133
        %v3200 = vpop.permute.xlu0 %3199
        %3203 = vset.pattern.permute.xlu0 1
        %3204 = vperm.xlu0 %3203, %v3134
        %v3205 = vpop.permute.xlu0 %3204
        %3208 = vset.pattern.permute.xlu0 1
        %3209 = vperm.xlu0 %3208, %v3135
        %v3210 = vpop.permute.xlu0 %3209
        %3213 = vset.pattern.permute.xlu0 1
        %3214 = vperm.xlu0 %3213, %v3136
        %v3215 = vpop.permute.xlu0 %3214
        %v3217 = vlaneseq
        %v3218 = vshrl.u32 %v3217, 7
        %v3219 = vsub.s32 1, %v3218
        %v3220 = vrot.slane %v3086, %v3219
        %v3221 = vlaneseq
        %v3222 = vshrl.u32 %v3221, 7
        %v3223 = vsub.s32 1, %v3222
        %v3224 = vrot.slane %v3087, %v3223
        %v3225 = vlaneseq
        %v3226 = vshrl.u32 %v3225, 7
        %v3227 = vsub.s32 1, %v3226
        %v3228 = vrot.slane %v3088, %v3227
        %v3229 = vlaneseq
        %v3230 = vshrl.u32 %v3229, 7
        %v3231 = vsub.s32 1, %v3230
        %v3232 = vrot.slane %v3089, %v3231
        %v3233 = vlaneseq
        %v3234 = vshrl.u32 %v3233, 7
        %v3235 = vsub.s32 1, %v3234
        %v3236 = vrot.slane %v3090, %v3235
        %v3237 = vlaneseq
        %v3238 = vshrl.u32 %v3237, 7
        %v3239 = vsub.s32 1, %v3238
        %v3240 = vrot.slane %v3091, %v3239
        %v3241 = vlaneseq
        %v3242 = vshrl.u32 %v3241, 7
        %v3243 = vsub.s32 1, %v3242
        %v3244 = vrot.slane %v3092, %v3243
        %v3245 = vlaneseq
        %v3246 = vshrl.u32 %v3245, 7
        %v3247 = vsub.s32 1, %v3246
        %v3248 = vrot.slane %v3093, %v3247
        %v3249 = vlaneseq
        %v3250 = vshrl.u32 %v3249, 7
        %v3251 = vsub.s32 1, %v3250
        %v3252 = vrot.slane %v3094, %v3251
        %v3253 = vlaneseq
        %v3254 = vshrl.u32 %v3253, 7
        %v3255 = vsub.s32 1, %v3254
        %v3256 = vrot.slane %v3095, %v3255
        %v3257 = vlaneseq
        %v3258 = vshrl.u32 %v3257, 7
        %v3259 = vsub.s32 1, %v3258
        %v3260 = vrot.slane %v3096, %v3259
        %v3261 = vlaneseq
        %v3262 = vshrl.u32 %v3261, 7
        %v3263 = vsub.s32 1, %v3262
        %v3264 = vrot.slane %v3097, %v3263
        %v3265 = vlaneseq
        %v3266 = vshrl.u32 %v3265, 7
        %v3267 = vsub.s32 1, %v3266
        %v3268 = vrot.slane %v3098, %v3267
        %v3269 = vlaneseq
        %v3270 = vshrl.u32 %v3269, 7
        %v3271 = vsub.s32 1, %v3270
        %v3272 = vrot.slane %v3099, %v3271
        %v3273 = vlaneseq
        %v3274 = vshrl.u32 %v3273, 7
        %v3275 = vsub.s32 1, %v3274
        %v3276 = vrot.slane %v3100, %v3275
        %v3277 = vlaneseq
        %v3278 = vshrl.u32 %v3277, 7
        %v3279 = vsub.s32 1, %v3278
        %v3280 = vrot.slane %v3101, %v3279
        %v3281 = vmul.f32 %v3140, %v3220
        %v3282 = vmul.f32 %v3145, %v3224
        %v3283 = vmul.f32 %v3150, %v3228
        %v3284 = vmul.f32 %v3155, %v3232
        %v3285 = vmul.f32 %v3160, %v3236
        %v3286 = vmul.f32 %v3165, %v3240
        %v3287 = vmul.f32 %v3170, %v3244
        %v3288 = vmul.f32 %v3175, %v3248
        %v3289 = vmul.f32 %v3180, %v3252
        %v3290 = vmul.f32 %v3185, %v3256
        %v3291 = vmul.f32 %v3190, %v3260
        %v3292 = vmul.f32 %v3195, %v3264
        %v3293 = vmul.f32 %v3200, %v3268
        %v3294 = vmul.f32 %v3205, %v3272
        %v3295 = vmul.f32 %v3210, %v3276
        %v3296 = vmul.f32 %v3215, %v3280
        %v3297 = vsub.f32 %v2846, %v3281
        %v3298 = vsub.f32 %v2847, %v3282
        %v3299 = vsub.f32 %v2848, %v3283
        %v3300 = vsub.f32 %v2849, %v3284
        %v3301 = vsub.f32 %v2850, %v3285
        %v3302 = vsub.f32 %v2851, %v3286
        %v3303 = vsub.f32 %v2852, %v3287
        %v3304 = vsub.f32 %v2853, %v3288
        %v3305 = vsub.f32 %v2854, %v3289
        %v3306 = vsub.f32 %v2855, %v3290
        %v3307 = vsub.f32 %v2856, %v3291
        %v3308 = vsub.f32 %v2857, %v3292
        %v3309 = vsub.f32 %v2858, %v3293
        %v3310 = vsub.f32 %v2859, %v3294
        %v3311 = vsub.f32 %v2860, %v3295
        %v3312 = vsub.f32 %v2861, %v3296
        %v3313 = vsel %vm3120, %v3220, %v3297
        %v3314 = vsel %vm3120, %v3224, %v3298
        %v3315 = vsel %vm3120, %v3228, %v3299
        %v3316 = vsel %vm3120, %v3232, %v3300
        %v3317 = vsel %vm3120, %v3236, %v3301
        %v3318 = vsel %vm3120, %v3240, %v3302
        %v3319 = vsel %vm3120, %v3244, %v3303
        %v3320 = vsel %vm3120, %v3248, %v3304
        %v3321 = vsel %vm3120, %v3252, %v3305
        %v3322 = vsel %vm3120, %v3256, %v3306
        %v3323 = vsel %vm3120, %v3260, %v3307
        %v3324 = vsel %vm3120, %v3264, %v3308
        %v3325 = vsel %vm3120, %v3268, %v3309
        %v3326 = vsel %vm3120, %v3272, %v3310
        %v3327 = vsel %vm3120, %v3276, %v3311
        %v3328 = vsel %vm3120, %v3280, %v3312
        %v3329 = vlaneseq
        %v3330 = vshrl.u32 %v3329, 7
        %v3331 = vsub.s32 1, %v3330
        %v3332 = vrot.slane %v3102, %v3331
        %v3333 = vlaneseq
        %v3334 = vshrl.u32 %v3333, 7
        %v3335 = vsub.s32 1, %v3334
        %v3336 = vrot.slane %v3103, %v3335
        %v3337 = vlaneseq
        %v3338 = vshrl.u32 %v3337, 7
        %v3339 = vsub.s32 1, %v3338
        %v3340 = vrot.slane %v3104, %v3339
        %v3341 = vlaneseq
        %v3342 = vshrl.u32 %v3341, 7
        %v3343 = vsub.s32 1, %v3342
        %v3344 = vrot.slane %v3105, %v3343
        %v3345 = vlaneseq
        %v3346 = vshrl.u32 %v3345, 7
        %v3347 = vsub.s32 1, %v3346
        %v3348 = vrot.slane %v3106, %v3347
        %v3349 = vlaneseq
        %v3350 = vshrl.u32 %v3349, 7
        %v3351 = vsub.s32 1, %v3350
        %v3352 = vrot.slane %v3107, %v3351
        %v3353 = vlaneseq
        %v3354 = vshrl.u32 %v3353, 7
        %v3355 = vsub.s32 1, %v3354
        %v3356 = vrot.slane %v3108, %v3355
        %v3357 = vlaneseq
        %v3358 = vshrl.u32 %v3357, 7
        %v3359 = vsub.s32 1, %v3358
        %v3360 = vrot.slane %v3109, %v3359
        %v3361 = vlaneseq
        %v3362 = vshrl.u32 %v3361, 7
        %v3363 = vsub.s32 1, %v3362
        %v3364 = vrot.slane %v3110, %v3363
        %v3365 = vlaneseq
        %v3366 = vshrl.u32 %v3365, 7
        %v3367 = vsub.s32 1, %v3366
        %v3368 = vrot.slane %v3111, %v3367
        %v3369 = vlaneseq
        %v3370 = vshrl.u32 %v3369, 7
        %v3371 = vsub.s32 1, %v3370
        %v3372 = vrot.slane %v3112, %v3371
        %v3373 = vlaneseq
        %v3374 = vshrl.u32 %v3373, 7
        %v3375 = vsub.s32 1, %v3374
        %v3376 = vrot.slane %v3113, %v3375
        %v3377 = vlaneseq
        %v3378 = vshrl.u32 %v3377, 7
        %v3379 = vsub.s32 1, %v3378
        %v3380 = vrot.slane %v3114, %v3379
        %v3381 = vlaneseq
        %v3382 = vshrl.u32 %v3381, 7
        %v3383 = vsub.s32 1, %v3382
        %v3384 = vrot.slane %v3115, %v3383
        %v3385 = vlaneseq
        %v3386 = vshrl.u32 %v3385, 7
        %v3387 = vsub.s32 1, %v3386
        %v3388 = vrot.slane %v3116, %v3387
        %v3389 = vlaneseq
        %v3390 = vshrl.u32 %v3389, 7
        %v3391 = vsub.s32 1, %v3390
        %v3392 = vrot.slane %v3117, %v3391
        %v3393 = vmul.f32 %v3140, %v3332
        %v3394 = vmul.f32 %v3145, %v3336
        %v3395 = vmul.f32 %v3150, %v3340
        %v3396 = vmul.f32 %v3155, %v3344
        %v3397 = vmul.f32 %v3160, %v3348
        %v3398 = vmul.f32 %v3165, %v3352
        %v3399 = vmul.f32 %v3170, %v3356
        %v3400 = vmul.f32 %v3175, %v3360
        %v3401 = vmul.f32 %v3180, %v3364
        %v3402 = vmul.f32 %v3185, %v3368
        %v3403 = vmul.f32 %v3190, %v3372
        %v3404 = vmul.f32 %v3195, %v3376
        %v3405 = vmul.f32 %v3200, %v3380
        %v3406 = vmul.f32 %v3205, %v3384
        %v3407 = vmul.f32 %v3210, %v3388
        %v3408 = vmul.f32 %v3215, %v3392
        %v3409 = vsub.f32 %v2958, %v3393
        %v3410 = vsub.f32 %v2959, %v3394
        %v3411 = vsub.f32 %v2960, %v3395
        %v3412 = vsub.f32 %v2961, %v3396
        %v3413 = vsub.f32 %v2962, %v3397
        %v3414 = vsub.f32 %v2963, %v3398
        %v3415 = vsub.f32 %v2964, %v3399
        %v3416 = vsub.f32 %v2965, %v3400
        %v3417 = vsub.f32 %v2966, %v3401
        %v3418 = vsub.f32 %v2967, %v3402
        %v3419 = vsub.f32 %v2968, %v3403
        %v3420 = vsub.f32 %v2969, %v3404
        %v3421 = vsub.f32 %v2970, %v3405
        %v3422 = vsub.f32 %v2971, %v3406
        %v3423 = vsub.f32 %v2972, %v3407
        %v3424 = vsub.f32 %v2973, %v3408
        %v3425 = vsel %vm3120, %v3332, %v3409
        %v3426 = vsel %vm3120, %v3336, %v3410
        %v3427 = vsel %vm3120, %v3340, %v3411
        %v3428 = vsel %vm3120, %v3344, %v3412
        %v3429 = vsel %vm3120, %v3348, %v3413
        %v3430 = vsel %vm3120, %v3352, %v3414
        %v3431 = vsel %vm3120, %v3356, %v3415
        %v3432 = vsel %vm3120, %v3360, %v3416
        %v3433 = vsel %vm3120, %v3364, %v3417
        %v3434 = vsel %vm3120, %v3368, %v3418
        %v3435 = vsel %vm3120, %v3372, %v3419
        %v3436 = vsel %vm3120, %v3376, %v3420
        %v3437 = vsel %vm3120, %v3380, %v3421
        %v3438 = vsel %vm3120, %v3384, %v3422
        %v3439 = vsel %vm3120, %v3388, %v3423
        %v3440 = vsel %vm3120, %v3392, %v3424
        %v3441 = vrcp.pop %v3313
        %v3442 = vmul.f32 1.0, %v3441
        %v3443 = vrcp.pop %v3314
        %v3444 = vmul.f32 1.0, %v3443
        %v3445 = vrcp.pop %v3315
        %v3446 = vmul.f32 1.0, %v3445
        %v3447 = vrcp.pop %v3316
        %v3448 = vmul.f32 1.0, %v3447
        %v3449 = vrcp.pop %v3317
        %v3450 = vmul.f32 1.0, %v3449
        %v3451 = vrcp.pop %v3318
        %v3452 = vmul.f32 1.0, %v3451
        %v3453 = vrcp.pop %v3319
        %v3454 = vmul.f32 1.0, %v3453
        %v3455 = vrcp.pop %v3320
        %v3456 = vmul.f32 1.0, %v3455
        %v3457 = vrcp.pop %v3321
        %v3458 = vmul.f32 1.0, %v3457
        %v3459 = vrcp.pop %v3322
        %v3460 = vmul.f32 1.0, %v3459
        %v3461 = vrcp.pop %v3323
        %v3462 = vmul.f32 1.0, %v3461
        %v3463 = vrcp.pop %v3324
        %v3464 = vmul.f32 1.0, %v3463
        %v3465 = vrcp.pop %v3325
        %v3466 = vmul.f32 1.0, %v3465
        %v3467 = vrcp.pop %v3326
        %v3468 = vmul.f32 1.0, %v3467
        %v3469 = vrcp.pop %v3327
        %v3470 = vmul.f32 1.0, %v3469
        %v3471 = vrcp.pop %v3328
        %v3472 = vmul.f32 1.0, %v3471
        %3474 = vset.pattern.permute.xlu0 2
        %3475 = vperm.xlu0 %3474, %v3442
        %v3476 = vpop.permute.xlu0 %3475
        %3479 = vset.pattern.permute.xlu0 2
        %3480 = vperm.xlu0 %3479, %v3444
        %v3481 = vpop.permute.xlu0 %3480
        %3484 = vset.pattern.permute.xlu0 2
        %3485 = vperm.xlu0 %3484, %v3446
        %v3486 = vpop.permute.xlu0 %3485
        %3489 = vset.pattern.permute.xlu0 2
        %3490 = vperm.xlu0 %3489, %v3448
        %v3491 = vpop.permute.xlu0 %3490
        %3494 = vset.pattern.permute.xlu0 2
        %3495 = vperm.xlu0 %3494, %v3450
        %v3496 = vpop.permute.xlu0 %3495
        %3499 = vset.pattern.permute.xlu0 2
        %3500 = vperm.xlu0 %3499, %v3452
        %v3501 = vpop.permute.xlu0 %3500
        %3504 = vset.pattern.permute.xlu0 2
        %3505 = vperm.xlu0 %3504, %v3454
        %v3506 = vpop.permute.xlu0 %3505
        %3509 = vset.pattern.permute.xlu0 2
        %3510 = vperm.xlu0 %3509, %v3456
        %v3511 = vpop.permute.xlu0 %3510
        %3514 = vset.pattern.permute.xlu0 2
        %3515 = vperm.xlu0 %3514, %v3458
        %v3516 = vpop.permute.xlu0 %3515
        %3519 = vset.pattern.permute.xlu0 2
        %3520 = vperm.xlu0 %3519, %v3460
        %v3521 = vpop.permute.xlu0 %3520
        %3524 = vset.pattern.permute.xlu0 2
        %3525 = vperm.xlu0 %3524, %v3462
        %v3526 = vpop.permute.xlu0 %3525
        %3529 = vset.pattern.permute.xlu0 2
        %3530 = vperm.xlu0 %3529, %v3464
        %v3531 = vpop.permute.xlu0 %3530
        %3534 = vset.pattern.permute.xlu0 2
        %3535 = vperm.xlu0 %3534, %v3466
        %v3536 = vpop.permute.xlu0 %3535
        %3539 = vset.pattern.permute.xlu0 2
        %3540 = vperm.xlu0 %3539, %v3468
        %v3541 = vpop.permute.xlu0 %3540
        %3544 = vset.pattern.permute.xlu0 2
        %3545 = vperm.xlu0 %3544, %v3470
        %v3546 = vpop.permute.xlu0 %3545
        %3549 = vset.pattern.permute.xlu0 2
        %3550 = vperm.xlu0 %3549, %v3472
        %v3551 = vpop.permute.xlu0 %3550
        %v3553 = vmul.f32 %v3313, %v3476
        %v3554 = vmul.f32 %v3314, %v3481
        %v3555 = vmul.f32 %v3315, %v3486
        %v3556 = vmul.f32 %v3316, %v3491
        %v3557 = vmul.f32 %v3317, %v3496
        %v3558 = vmul.f32 %v3318, %v3501
        %v3559 = vmul.f32 %v3319, %v3506
        %v3560 = vmul.f32 %v3320, %v3511
        %v3561 = vmul.f32 %v3321, %v3516
        %v3562 = vmul.f32 %v3322, %v3521
        %v3563 = vmul.f32 %v3323, %v3526
        %v3564 = vmul.f32 %v3324, %v3531
        %v3565 = vmul.f32 %v3325, %v3536
        %v3566 = vmul.f32 %v3326, %v3541
        %v3567 = vmul.f32 %v3327, %v3546
        %v3568 = vmul.f32 %v3328, %v3551
        %v3569 = vmul.f32 %v3425, %v3476
        %v3570 = vmul.f32 %v3426, %v3481
        %v3571 = vmul.f32 %v3427, %v3486
        %v3572 = vmul.f32 %v3428, %v3491
        %v3573 = vmul.f32 %v3429, %v3496
        %v3574 = vmul.f32 %v3430, %v3501
        %v3575 = vmul.f32 %v3431, %v3506
        %v3576 = vmul.f32 %v3432, %v3511
        %v3577 = vmul.f32 %v3433, %v3516
        %v3578 = vmul.f32 %v3434, %v3521
        %v3579 = vmul.f32 %v3435, %v3526
        %v3580 = vmul.f32 %v3436, %v3531
        %v3581 = vmul.f32 %v3437, %v3536
        %v3582 = vmul.f32 %v3438, %v3541
        %v3583 = vmul.f32 %v3439, %v3546
        %v3584 = vmul.f32 %v3440, %v3551
        %vm3585 = vcmp.eq.s32.totalorder %v539, 2
        %v3586 = vsel %vm3585, 1, 0
        %vm3587 = vcmp.eq.s32.totalorder %v3586, 1
        %v3588 = vsel %vm3587, 0.0, %v3313
        %v3589 = vsel %vm3587, 0.0, %v3314
        %v3590 = vsel %vm3587, 0.0, %v3315
        %v3591 = vsel %vm3587, 0.0, %v3316
        %v3592 = vsel %vm3587, 0.0, %v3317
        %v3593 = vsel %vm3587, 0.0, %v3318
        %v3594 = vsel %vm3587, 0.0, %v3319
        %v3595 = vsel %vm3587, 0.0, %v3320
        %v3596 = vsel %vm3587, 0.0, %v3321
        %v3597 = vsel %vm3587, 0.0, %v3322
        %v3598 = vsel %vm3587, 0.0, %v3323
        %v3599 = vsel %vm3587, 0.0, %v3324
        %v3600 = vsel %vm3587, 0.0, %v3325
        %v3601 = vsel %vm3587, 0.0, %v3326
        %v3602 = vsel %vm3587, 0.0, %v3327
        %v3603 = vsel %vm3587, 0.0, %v3328
        %3605 = vset.pattern.permute.xlu0 2
        %3606 = vperm.xlu0 %3605, %v3588
        %v3607 = vpop.permute.xlu0 %3606
        %3610 = vset.pattern.permute.xlu0 2
        %3611 = vperm.xlu0 %3610, %v3589
        %v3612 = vpop.permute.xlu0 %3611
        %3615 = vset.pattern.permute.xlu0 2
        %3616 = vperm.xlu0 %3615, %v3590
        %v3617 = vpop.permute.xlu0 %3616
        %3620 = vset.pattern.permute.xlu0 2
        %3621 = vperm.xlu0 %3620, %v3591
        %v3622 = vpop.permute.xlu0 %3621
        %3625 = vset.pattern.permute.xlu0 2
        %3626 = vperm.xlu0 %3625, %v3592
        %v3627 = vpop.permute.xlu0 %3626
        %3630 = vset.pattern.permute.xlu0 2
        %3631 = vperm.xlu0 %3630, %v3593
        %v3632 = vpop.permute.xlu0 %3631
        %3635 = vset.pattern.permute.xlu0 2
        %3636 = vperm.xlu0 %3635, %v3594
        %v3637 = vpop.permute.xlu0 %3636
        %3640 = vset.pattern.permute.xlu0 2
        %3641 = vperm.xlu0 %3640, %v3595
        %v3642 = vpop.permute.xlu0 %3641
        %3645 = vset.pattern.permute.xlu0 2
        %3646 = vperm.xlu0 %3645, %v3596
        %v3647 = vpop.permute.xlu0 %3646
        %3650 = vset.pattern.permute.xlu0 2
        %3651 = vperm.xlu0 %3650, %v3597
        %v3652 = vpop.permute.xlu0 %3651
        %3655 = vset.pattern.permute.xlu0 2
        %3656 = vperm.xlu0 %3655, %v3598
        %v3657 = vpop.permute.xlu0 %3656
        %3660 = vset.pattern.permute.xlu0 2
        %3661 = vperm.xlu0 %3660, %v3599
        %v3662 = vpop.permute.xlu0 %3661
        %3665 = vset.pattern.permute.xlu0 2
        %3666 = vperm.xlu0 %3665, %v3600
        %v3667 = vpop.permute.xlu0 %3666
        %3670 = vset.pattern.permute.xlu0 2
        %3671 = vperm.xlu0 %3670, %v3601
        %v3672 = vpop.permute.xlu0 %3671
        %3675 = vset.pattern.permute.xlu0 2
        %3676 = vperm.xlu0 %3675, %v3602
        %v3677 = vpop.permute.xlu0 %3676
        %3680 = vset.pattern.permute.xlu0 2
        %3681 = vperm.xlu0 %3680, %v3603
        %v3682 = vpop.permute.xlu0 %3681
        %v3684 = vlaneseq
        %v3685 = vshrl.u32 %v3684, 7
        %v3686 = vsub.s32 2, %v3685
        %v3687 = vrot.slane %v3553, %v3686
        %v3688 = vlaneseq
        %v3689 = vshrl.u32 %v3688, 7
        %v3690 = vsub.s32 2, %v3689
        %v3691 = vrot.slane %v3554, %v3690
        %v3692 = vlaneseq
        %v3693 = vshrl.u32 %v3692, 7
        %v3694 = vsub.s32 2, %v3693
        %v3695 = vrot.slane %v3555, %v3694
        %v3696 = vlaneseq
        %v3697 = vshrl.u32 %v3696, 7
        %v3698 = vsub.s32 2, %v3697
        %v3699 = vrot.slane %v3556, %v3698
        %v3700 = vlaneseq
        %v3701 = vshrl.u32 %v3700, 7
        %v3702 = vsub.s32 2, %v3701
        %v3703 = vrot.slane %v3557, %v3702
        %v3704 = vlaneseq
        %v3705 = vshrl.u32 %v3704, 7
        %v3706 = vsub.s32 2, %v3705
        %v3707 = vrot.slane %v3558, %v3706
        %v3708 = vlaneseq
        %v3709 = vshrl.u32 %v3708, 7
        %v3710 = vsub.s32 2, %v3709
        %v3711 = vrot.slane %v3559, %v3710
        %v3712 = vlaneseq
        %v3713 = vshrl.u32 %v3712, 7
        %v3714 = vsub.s32 2, %v3713
        %v3715 = vrot.slane %v3560, %v3714
        %v3716 = vlaneseq
        %v3717 = vshrl.u32 %v3716, 7
        %v3718 = vsub.s32 2, %v3717
        %v3719 = vrot.slane %v3561, %v3718
        %v3720 = vlaneseq
        %v3721 = vshrl.u32 %v3720, 7
        %v3722 = vsub.s32 2, %v3721
        %v3723 = vrot.slane %v3562, %v3722
        %v3724 = vlaneseq
        %v3725 = vshrl.u32 %v3724, 7
        %v3726 = vsub.s32 2, %v3725
        %v3727 = vrot.slane %v3563, %v3726
        %v3728 = vlaneseq
        %v3729 = vshrl.u32 %v3728, 7
        %v3730 = vsub.s32 2, %v3729
        %v3731 = vrot.slane %v3564, %v3730
        %v3732 = vlaneseq
        %v3733 = vshrl.u32 %v3732, 7
        %v3734 = vsub.s32 2, %v3733
        %v3735 = vrot.slane %v3565, %v3734
        %v3736 = vlaneseq
        %v3737 = vshrl.u32 %v3736, 7
        %v3738 = vsub.s32 2, %v3737
        %v3739 = vrot.slane %v3566, %v3738
        %v3740 = vlaneseq
        %v3741 = vshrl.u32 %v3740, 7
        %v3742 = vsub.s32 2, %v3741
        %v3743 = vrot.slane %v3567, %v3742
        %v3744 = vlaneseq
        %v3745 = vshrl.u32 %v3744, 7
        %v3746 = vsub.s32 2, %v3745
        %v3747 = vrot.slane %v3568, %v3746
        %v3748 = vmul.f32 %v3607, %v3687
        %v3749 = vmul.f32 %v3612, %v3691
        %v3750 = vmul.f32 %v3617, %v3695
        %v3751 = vmul.f32 %v3622, %v3699
        %v3752 = vmul.f32 %v3627, %v3703
        %v3753 = vmul.f32 %v3632, %v3707
        %v3754 = vmul.f32 %v3637, %v3711
        %v3755 = vmul.f32 %v3642, %v3715
        %v3756 = vmul.f32 %v3647, %v3719
        %v3757 = vmul.f32 %v3652, %v3723
        %v3758 = vmul.f32 %v3657, %v3727
        %v3759 = vmul.f32 %v3662, %v3731
        %v3760 = vmul.f32 %v3667, %v3735
        %v3761 = vmul.f32 %v3672, %v3739
        %v3762 = vmul.f32 %v3677, %v3743
        %v3763 = vmul.f32 %v3682, %v3747
        %v3764 = vsub.f32 %v3313, %v3748
        %v3765 = vsub.f32 %v3314, %v3749
        %v3766 = vsub.f32 %v3315, %v3750
        %v3767 = vsub.f32 %v3316, %v3751
        %v3768 = vsub.f32 %v3317, %v3752
        %v3769 = vsub.f32 %v3318, %v3753
        %v3770 = vsub.f32 %v3319, %v3754
        %v3771 = vsub.f32 %v3320, %v3755
        %v3772 = vsub.f32 %v3321, %v3756
        %v3773 = vsub.f32 %v3322, %v3757
        %v3774 = vsub.f32 %v3323, %v3758
        %v3775 = vsub.f32 %v3324, %v3759
        %v3776 = vsub.f32 %v3325, %v3760
        %v3777 = vsub.f32 %v3326, %v3761
        %v3778 = vsub.f32 %v3327, %v3762
        %v3779 = vsub.f32 %v3328, %v3763
        %v3780 = vsel %vm3587, %v3687, %v3764
        %v3781 = vsel %vm3587, %v3691, %v3765
        %v3782 = vsel %vm3587, %v3695, %v3766
        %v3783 = vsel %vm3587, %v3699, %v3767
        %v3784 = vsel %vm3587, %v3703, %v3768
        %v3785 = vsel %vm3587, %v3707, %v3769
        %v3786 = vsel %vm3587, %v3711, %v3770
        %v3787 = vsel %vm3587, %v3715, %v3771
        %v3788 = vsel %vm3587, %v3719, %v3772
        %v3789 = vsel %vm3587, %v3723, %v3773
        %v3790 = vsel %vm3587, %v3727, %v3774
        %v3791 = vsel %vm3587, %v3731, %v3775
        %v3792 = vsel %vm3587, %v3735, %v3776
        %v3793 = vsel %vm3587, %v3739, %v3777
        %v3794 = vsel %vm3587, %v3743, %v3778
        %v3795 = vsel %vm3587, %v3747, %v3779
        %v3796 = vlaneseq
        %v3797 = vshrl.u32 %v3796, 7
        %v3798 = vsub.s32 2, %v3797
        %v3799 = vrot.slane %v3569, %v3798
        %v3800 = vlaneseq
        %v3801 = vshrl.u32 %v3800, 7
        %v3802 = vsub.s32 2, %v3801
        %v3803 = vrot.slane %v3570, %v3802
        %v3804 = vlaneseq
        %v3805 = vshrl.u32 %v3804, 7
        %v3806 = vsub.s32 2, %v3805
        %v3807 = vrot.slane %v3571, %v3806
        %v3808 = vlaneseq
        %v3809 = vshrl.u32 %v3808, 7
        %v3810 = vsub.s32 2, %v3809
        %v3811 = vrot.slane %v3572, %v3810
        %v3812 = vlaneseq
        %v3813 = vshrl.u32 %v3812, 7
        %v3814 = vsub.s32 2, %v3813
        %v3815 = vrot.slane %v3573, %v3814
        %v3816 = vlaneseq
        %v3817 = vshrl.u32 %v3816, 7
        %v3818 = vsub.s32 2, %v3817
        %v3819 = vrot.slane %v3574, %v3818
        %v3820 = vlaneseq
        %v3821 = vshrl.u32 %v3820, 7
        %v3822 = vsub.s32 2, %v3821
        %v3823 = vrot.slane %v3575, %v3822
        %v3824 = vlaneseq
        %v3825 = vshrl.u32 %v3824, 7
        %v3826 = vsub.s32 2, %v3825
        %v3827 = vrot.slane %v3576, %v3826
        %v3828 = vlaneseq
        %v3829 = vshrl.u32 %v3828, 7
        %v3830 = vsub.s32 2, %v3829
        %v3831 = vrot.slane %v3577, %v3830
        %v3832 = vlaneseq
        %v3833 = vshrl.u32 %v3832, 7
        %v3834 = vsub.s32 2, %v3833
        %v3835 = vrot.slane %v3578, %v3834
        %v3836 = vlaneseq
        %v3837 = vshrl.u32 %v3836, 7
        %v3838 = vsub.s32 2, %v3837
        %v3839 = vrot.slane %v3579, %v3838
        %v3840 = vlaneseq
        %v3841 = vshrl.u32 %v3840, 7
        %v3842 = vsub.s32 2, %v3841
        %v3843 = vrot.slane %v3580, %v3842
        %v3844 = vlaneseq
        %v3845 = vshrl.u32 %v3844, 7
        %v3846 = vsub.s32 2, %v3845
        %v3847 = vrot.slane %v3581, %v3846
        %v3848 = vlaneseq
        %v3849 = vshrl.u32 %v3848, 7
        %v3850 = vsub.s32 2, %v3849
        %v3851 = vrot.slane %v3582, %v3850
        %v3852 = vlaneseq
        %v3853 = vshrl.u32 %v3852, 7
        %v3854 = vsub.s32 2, %v3853
        %v3855 = vrot.slane %v3583, %v3854
        %v3856 = vlaneseq
        %v3857 = vshrl.u32 %v3856, 7
        %v3858 = vsub.s32 2, %v3857
        %v3859 = vrot.slane %v3584, %v3858
        %v3860 = vmul.f32 %v3607, %v3799
        %v3861 = vmul.f32 %v3612, %v3803
        %v3862 = vmul.f32 %v3617, %v3807
        %v3863 = vmul.f32 %v3622, %v3811
        %v3864 = vmul.f32 %v3627, %v3815
        %v3865 = vmul.f32 %v3632, %v3819
        %v3866 = vmul.f32 %v3637, %v3823
        %v3867 = vmul.f32 %v3642, %v3827
        %v3868 = vmul.f32 %v3647, %v3831
        %v3869 = vmul.f32 %v3652, %v3835
        %v3870 = vmul.f32 %v3657, %v3839
        %v3871 = vmul.f32 %v3662, %v3843
        %v3872 = vmul.f32 %v3667, %v3847
        %v3873 = vmul.f32 %v3672, %v3851
        %v3874 = vmul.f32 %v3677, %v3855
        %v3875 = vmul.f32 %v3682, %v3859
        %v3876 = vsub.f32 %v3425, %v3860
        %v3877 = vsub.f32 %v3426, %v3861
        %v3878 = vsub.f32 %v3427, %v3862
        %v3879 = vsub.f32 %v3428, %v3863
        %v3880 = vsub.f32 %v3429, %v3864
        %v3881 = vsub.f32 %v3430, %v3865
        %v3882 = vsub.f32 %v3431, %v3866
        %v3883 = vsub.f32 %v3432, %v3867
        %v3884 = vsub.f32 %v3433, %v3868
        %v3885 = vsub.f32 %v3434, %v3869
        %v3886 = vsub.f32 %v3435, %v3870
        %v3887 = vsub.f32 %v3436, %v3871
        %v3888 = vsub.f32 %v3437, %v3872
        %v3889 = vsub.f32 %v3438, %v3873
        %v3890 = vsub.f32 %v3439, %v3874
        %v3891 = vsub.f32 %v3440, %v3875
        %v3892 = vsel %vm3587, %v3799, %v3876
        %v3893 = vsel %vm3587, %v3803, %v3877
        %v3894 = vsel %vm3587, %v3807, %v3878
        %v3895 = vsel %vm3587, %v3811, %v3879
        %v3896 = vsel %vm3587, %v3815, %v3880
        %v3897 = vsel %vm3587, %v3819, %v3881
        %v3898 = vsel %vm3587, %v3823, %v3882
        %v3899 = vsel %vm3587, %v3827, %v3883
        %v3900 = vsel %vm3587, %v3831, %v3884
        %v3901 = vsel %vm3587, %v3835, %v3885
        %v3902 = vsel %vm3587, %v3839, %v3886
        %v3903 = vsel %vm3587, %v3843, %v3887
        %v3904 = vsel %vm3587, %v3847, %v3888
        %v3905 = vsel %vm3587, %v3851, %v3889
        %v3906 = vsel %vm3587, %v3855, %v3890
        %v3907 = vsel %vm3587, %v3859, %v3891
        %v3908 = vrcp.pop %v3780
        %v3909 = vmul.f32 1.0, %v3908
        %v3910 = vrcp.pop %v3781
        %v3911 = vmul.f32 1.0, %v3910
        %v3912 = vrcp.pop %v3782
        %v3913 = vmul.f32 1.0, %v3912
        %v3914 = vrcp.pop %v3783
        %v3915 = vmul.f32 1.0, %v3914
        %v3916 = vrcp.pop %v3784
        %v3917 = vmul.f32 1.0, %v3916
        %v3918 = vrcp.pop %v3785
        %v3919 = vmul.f32 1.0, %v3918
        %v3920 = vrcp.pop %v3786
        %v3921 = vmul.f32 1.0, %v3920
        %v3922 = vrcp.pop %v3787
        %v3923 = vmul.f32 1.0, %v3922
        %v3924 = vrcp.pop %v3788
        %v3925 = vmul.f32 1.0, %v3924
        %v3926 = vrcp.pop %v3789
        %v3927 = vmul.f32 1.0, %v3926
        %v3928 = vrcp.pop %v3790
        %v3929 = vmul.f32 1.0, %v3928
        %v3930 = vrcp.pop %v3791
        %v3931 = vmul.f32 1.0, %v3930
        %v3932 = vrcp.pop %v3792
        %v3933 = vmul.f32 1.0, %v3932
        %v3934 = vrcp.pop %v3793
        %v3935 = vmul.f32 1.0, %v3934
        %v3936 = vrcp.pop %v3794
        %v3937 = vmul.f32 1.0, %v3936
        %v3938 = vrcp.pop %v3795
        %v3939 = vmul.f32 1.0, %v3938
        %3941 = vset.pattern.permute.xlu0 3
        %3942 = vperm.xlu0 %3941, %v3909
        %v3943 = vpop.permute.xlu0 %3942
        %3946 = vset.pattern.permute.xlu0 3
        %3947 = vperm.xlu0 %3946, %v3911
        %v3948 = vpop.permute.xlu0 %3947
        %3951 = vset.pattern.permute.xlu0 3
        %3952 = vperm.xlu0 %3951, %v3913
        %v3953 = vpop.permute.xlu0 %3952
        %3956 = vset.pattern.permute.xlu0 3
        %3957 = vperm.xlu0 %3956, %v3915
        %v3958 = vpop.permute.xlu0 %3957
        %3961 = vset.pattern.permute.xlu0 3
        %3962 = vperm.xlu0 %3961, %v3917
        %v3963 = vpop.permute.xlu0 %3962
        %3966 = vset.pattern.permute.xlu0 3
        %3967 = vperm.xlu0 %3966, %v3919
        %v3968 = vpop.permute.xlu0 %3967
        %3971 = vset.pattern.permute.xlu0 3
        %3972 = vperm.xlu0 %3971, %v3921
        %v3973 = vpop.permute.xlu0 %3972
        %3976 = vset.pattern.permute.xlu0 3
        %3977 = vperm.xlu0 %3976, %v3923
        %v3978 = vpop.permute.xlu0 %3977
        %3981 = vset.pattern.permute.xlu0 3
        %3982 = vperm.xlu0 %3981, %v3925
        %v3983 = vpop.permute.xlu0 %3982
        %3986 = vset.pattern.permute.xlu0 3
        %3987 = vperm.xlu0 %3986, %v3927
        %v3988 = vpop.permute.xlu0 %3987
        %3991 = vset.pattern.permute.xlu0 3
        %3992 = vperm.xlu0 %3991, %v3929
        %v3993 = vpop.permute.xlu0 %3992
        %3996 = vset.pattern.permute.xlu0 3
        %3997 = vperm.xlu0 %3996, %v3931
        %v3998 = vpop.permute.xlu0 %3997
        %4001 = vset.pattern.permute.xlu0 3
        %4002 = vperm.xlu0 %4001, %v3933
        %v4003 = vpop.permute.xlu0 %4002
        %4006 = vset.pattern.permute.xlu0 3
        %4007 = vperm.xlu0 %4006, %v3935
        %v4008 = vpop.permute.xlu0 %4007
        %4011 = vset.pattern.permute.xlu0 3
        %4012 = vperm.xlu0 %4011, %v3937
        %v4013 = vpop.permute.xlu0 %4012
        %4016 = vset.pattern.permute.xlu0 3
        %4017 = vperm.xlu0 %4016, %v3939
        %v4018 = vpop.permute.xlu0 %4017
        %v4020 = vmul.f32 %v3780, %v3943
        %v4021 = vmul.f32 %v3781, %v3948
        %v4022 = vmul.f32 %v3782, %v3953
        %v4023 = vmul.f32 %v3783, %v3958
        %v4024 = vmul.f32 %v3784, %v3963
        %v4025 = vmul.f32 %v3785, %v3968
        %v4026 = vmul.f32 %v3786, %v3973
        %v4027 = vmul.f32 %v3787, %v3978
        %v4028 = vmul.f32 %v3788, %v3983
        %v4029 = vmul.f32 %v3789, %v3988
        %v4030 = vmul.f32 %v3790, %v3993
        %v4031 = vmul.f32 %v3791, %v3998
        %v4032 = vmul.f32 %v3792, %v4003
        %v4033 = vmul.f32 %v3793, %v4008
        %v4034 = vmul.f32 %v3794, %v4013
        %v4035 = vmul.f32 %v3795, %v4018
        %v4036 = vmul.f32 %v3892, %v3943
        %v4037 = vmul.f32 %v3893, %v3948
        %v4038 = vmul.f32 %v3894, %v3953
        %v4039 = vmul.f32 %v3895, %v3958
        %v4040 = vmul.f32 %v3896, %v3963
        %v4041 = vmul.f32 %v3897, %v3968
        %v4042 = vmul.f32 %v3898, %v3973
        %v4043 = vmul.f32 %v3899, %v3978
        %v4044 = vmul.f32 %v3900, %v3983
        %v4045 = vmul.f32 %v3901, %v3988
        %v4046 = vmul.f32 %v3902, %v3993
        %v4047 = vmul.f32 %v3903, %v3998
        %v4048 = vmul.f32 %v3904, %v4003
        %v4049 = vmul.f32 %v3905, %v4008
        %v4050 = vmul.f32 %v3906, %v4013
        %v4051 = vmul.f32 %v3907, %v4018
        %vm4052 = vcmp.eq.s32.totalorder %v539, 3
        %v4053 = vsel %vm4052, 1, 0
        %vm4054 = vcmp.eq.s32.totalorder %v4053, 1
        %v4055 = vsel %vm4054, 0.0, %v3780
        %v4056 = vsel %vm4054, 0.0, %v3781
        %v4057 = vsel %vm4054, 0.0, %v3782
        %v4058 = vsel %vm4054, 0.0, %v3783
        %v4059 = vsel %vm4054, 0.0, %v3784
        %v4060 = vsel %vm4054, 0.0, %v3785
        %v4061 = vsel %vm4054, 0.0, %v3786
        %v4062 = vsel %vm4054, 0.0, %v3787
        %v4063 = vsel %vm4054, 0.0, %v3788
        %v4064 = vsel %vm4054, 0.0, %v3789
        %v4065 = vsel %vm4054, 0.0, %v3790
        %v4066 = vsel %vm4054, 0.0, %v3791
        %v4067 = vsel %vm4054, 0.0, %v3792
        %v4068 = vsel %vm4054, 0.0, %v3793
        %v4069 = vsel %vm4054, 0.0, %v3794
        %v4070 = vsel %vm4054, 0.0, %v3795
        %4072 = vset.pattern.permute.xlu0 3
        %4073 = vperm.xlu0 %4072, %v4055
        %v4074 = vpop.permute.xlu0 %4073
        %4077 = vset.pattern.permute.xlu0 3
        %4078 = vperm.xlu0 %4077, %v4056
        %v4079 = vpop.permute.xlu0 %4078
        %4082 = vset.pattern.permute.xlu0 3
        %4083 = vperm.xlu0 %4082, %v4057
        %v4084 = vpop.permute.xlu0 %4083
        %4087 = vset.pattern.permute.xlu0 3
        %4088 = vperm.xlu0 %4087, %v4058
        %v4089 = vpop.permute.xlu0 %4088
        %4092 = vset.pattern.permute.xlu0 3
        %4093 = vperm.xlu0 %4092, %v4059
        %v4094 = vpop.permute.xlu0 %4093
        %4097 = vset.pattern.permute.xlu0 3
        %4098 = vperm.xlu0 %4097, %v4060
        %v4099 = vpop.permute.xlu0 %4098
        %4102 = vset.pattern.permute.xlu0 3
        %4103 = vperm.xlu0 %4102, %v4061
        %v4104 = vpop.permute.xlu0 %4103
        %4107 = vset.pattern.permute.xlu0 3
        %4108 = vperm.xlu0 %4107, %v4062
        %v4109 = vpop.permute.xlu0 %4108
        %4112 = vset.pattern.permute.xlu0 3
        %4113 = vperm.xlu0 %4112, %v4063
        %v4114 = vpop.permute.xlu0 %4113
        %4117 = vset.pattern.permute.xlu0 3
        %4118 = vperm.xlu0 %4117, %v4064
        %v4119 = vpop.permute.xlu0 %4118
        %4122 = vset.pattern.permute.xlu0 3
        %4123 = vperm.xlu0 %4122, %v4065
        %v4124 = vpop.permute.xlu0 %4123
        %4127 = vset.pattern.permute.xlu0 3
        %4128 = vperm.xlu0 %4127, %v4066
        %v4129 = vpop.permute.xlu0 %4128
        %4132 = vset.pattern.permute.xlu0 3
        %4133 = vperm.xlu0 %4132, %v4067
        %v4134 = vpop.permute.xlu0 %4133
        %4137 = vset.pattern.permute.xlu0 3
        %4138 = vperm.xlu0 %4137, %v4068
        %v4139 = vpop.permute.xlu0 %4138
        %4142 = vset.pattern.permute.xlu0 3
        %4143 = vperm.xlu0 %4142, %v4069
        %v4144 = vpop.permute.xlu0 %4143
        %4147 = vset.pattern.permute.xlu0 3
        %4148 = vperm.xlu0 %4147, %v4070
        %v4149 = vpop.permute.xlu0 %4148
        %v4151 = vlaneseq
        %v4152 = vshrl.u32 %v4151, 7
        %v4153 = vsub.s32 3, %v4152
        %v4154 = vrot.slane %v4020, %v4153
        %v4155 = vlaneseq
        %v4156 = vshrl.u32 %v4155, 7
        %v4157 = vsub.s32 3, %v4156
        %v4158 = vrot.slane %v4021, %v4157
        %v4159 = vlaneseq
        %v4160 = vshrl.u32 %v4159, 7
        %v4161 = vsub.s32 3, %v4160
        %v4162 = vrot.slane %v4022, %v4161
        %v4163 = vlaneseq
        %v4164 = vshrl.u32 %v4163, 7
        %v4165 = vsub.s32 3, %v4164
        %v4166 = vrot.slane %v4023, %v4165
        %v4167 = vlaneseq
        %v4168 = vshrl.u32 %v4167, 7
        %v4169 = vsub.s32 3, %v4168
        %v4170 = vrot.slane %v4024, %v4169
        %v4171 = vlaneseq
        %v4172 = vshrl.u32 %v4171, 7
        %v4173 = vsub.s32 3, %v4172
        %v4174 = vrot.slane %v4025, %v4173
        %v4175 = vlaneseq
        %v4176 = vshrl.u32 %v4175, 7
        %v4177 = vsub.s32 3, %v4176
        %v4178 = vrot.slane %v4026, %v4177
        %v4179 = vlaneseq
        %v4180 = vshrl.u32 %v4179, 7
        %v4181 = vsub.s32 3, %v4180
        %v4182 = vrot.slane %v4027, %v4181
        %v4183 = vlaneseq
        %v4184 = vshrl.u32 %v4183, 7
        %v4185 = vsub.s32 3, %v4184
        %v4186 = vrot.slane %v4028, %v4185
        %v4187 = vlaneseq
        %v4188 = vshrl.u32 %v4187, 7
        %v4189 = vsub.s32 3, %v4188
        %v4190 = vrot.slane %v4029, %v4189
        %v4191 = vlaneseq
        %v4192 = vshrl.u32 %v4191, 7
        %v4193 = vsub.s32 3, %v4192
        %v4194 = vrot.slane %v4030, %v4193
        %v4195 = vlaneseq
        %v4196 = vshrl.u32 %v4195, 7
        %v4197 = vsub.s32 3, %v4196
        %v4198 = vrot.slane %v4031, %v4197
        %v4199 = vlaneseq
        %v4200 = vshrl.u32 %v4199, 7
        %v4201 = vsub.s32 3, %v4200
        %v4202 = vrot.slane %v4032, %v4201
        %v4203 = vlaneseq
        %v4204 = vshrl.u32 %v4203, 7
        %v4205 = vsub.s32 3, %v4204
        %v4206 = vrot.slane %v4033, %v4205
        %v4207 = vlaneseq
        %v4208 = vshrl.u32 %v4207, 7
        %v4209 = vsub.s32 3, %v4208
        %v4210 = vrot.slane %v4034, %v4209
        %v4211 = vlaneseq
        %v4212 = vshrl.u32 %v4211, 7
        %v4213 = vsub.s32 3, %v4212
        %v4214 = vrot.slane %v4035, %v4213
        %v4215 = vmul.f32 %v4074, %v4154
        %v4216 = vmul.f32 %v4079, %v4158
        %v4217 = vmul.f32 %v4084, %v4162
        %v4218 = vmul.f32 %v4089, %v4166
        %v4219 = vmul.f32 %v4094, %v4170
        %v4220 = vmul.f32 %v4099, %v4174
        %v4221 = vmul.f32 %v4104, %v4178
        %v4222 = vmul.f32 %v4109, %v4182
        %v4223 = vmul.f32 %v4114, %v4186
        %v4224 = vmul.f32 %v4119, %v4190
        %v4225 = vmul.f32 %v4124, %v4194
        %v4226 = vmul.f32 %v4129, %v4198
        %v4227 = vmul.f32 %v4134, %v4202
        %v4228 = vmul.f32 %v4139, %v4206
        %v4229 = vmul.f32 %v4144, %v4210
        %v4230 = vmul.f32 %v4149, %v4214
        %v4231 = vsub.f32 %v3780, %v4215
        %v4232 = vsub.f32 %v3781, %v4216
        %v4233 = vsub.f32 %v3782, %v4217
        %v4234 = vsub.f32 %v3783, %v4218
        %v4235 = vsub.f32 %v3784, %v4219
        %v4236 = vsub.f32 %v3785, %v4220
        %v4237 = vsub.f32 %v3786, %v4221
        %v4238 = vsub.f32 %v3787, %v4222
        %v4239 = vsub.f32 %v3788, %v4223
        %v4240 = vsub.f32 %v3789, %v4224
        %v4241 = vsub.f32 %v3790, %v4225
        %v4242 = vsub.f32 %v3791, %v4226
        %v4243 = vsub.f32 %v3792, %v4227
        %v4244 = vsub.f32 %v3793, %v4228
        %v4245 = vsub.f32 %v3794, %v4229
        %v4246 = vsub.f32 %v3795, %v4230
        %v4247 = vsel %vm4054, %v4154, %v4231
        %v4248 = vsel %vm4054, %v4158, %v4232
        %v4249 = vsel %vm4054, %v4162, %v4233
        %v4250 = vsel %vm4054, %v4166, %v4234
        %v4251 = vsel %vm4054, %v4170, %v4235
        %v4252 = vsel %vm4054, %v4174, %v4236
        %v4253 = vsel %vm4054, %v4178, %v4237
        %v4254 = vsel %vm4054, %v4182, %v4238
        %v4255 = vsel %vm4054, %v4186, %v4239
        %v4256 = vsel %vm4054, %v4190, %v4240
        %v4257 = vsel %vm4054, %v4194, %v4241
        %v4258 = vsel %vm4054, %v4198, %v4242
        %v4259 = vsel %vm4054, %v4202, %v4243
        %v4260 = vsel %vm4054, %v4206, %v4244
        %v4261 = vsel %vm4054, %v4210, %v4245
        %v4262 = vsel %vm4054, %v4214, %v4246
        %v4263 = vlaneseq
        %v4264 = vshrl.u32 %v4263, 7
        %v4265 = vsub.s32 3, %v4264
        %v4266 = vrot.slane %v4036, %v4265
        %v4267 = vlaneseq
        %v4268 = vshrl.u32 %v4267, 7
        %v4269 = vsub.s32 3, %v4268
        %v4270 = vrot.slane %v4037, %v4269
        %v4271 = vlaneseq
        %v4272 = vshrl.u32 %v4271, 7
        %v4273 = vsub.s32 3, %v4272
        %v4274 = vrot.slane %v4038, %v4273
        %v4275 = vlaneseq
        %v4276 = vshrl.u32 %v4275, 7
        %v4277 = vsub.s32 3, %v4276
        %v4278 = vrot.slane %v4039, %v4277
        %v4279 = vlaneseq
        %v4280 = vshrl.u32 %v4279, 7
        %v4281 = vsub.s32 3, %v4280
        %v4282 = vrot.slane %v4040, %v4281
        %v4283 = vlaneseq
        %v4284 = vshrl.u32 %v4283, 7
        %v4285 = vsub.s32 3, %v4284
        %v4286 = vrot.slane %v4041, %v4285
        %v4287 = vlaneseq
        %v4288 = vshrl.u32 %v4287, 7
        %v4289 = vsub.s32 3, %v4288
        %v4290 = vrot.slane %v4042, %v4289
        %v4291 = vlaneseq
        %v4292 = vshrl.u32 %v4291, 7
        %v4293 = vsub.s32 3, %v4292
        %v4294 = vrot.slane %v4043, %v4293
        %v4295 = vlaneseq
        %v4296 = vshrl.u32 %v4295, 7
        %v4297 = vsub.s32 3, %v4296
        %v4298 = vrot.slane %v4044, %v4297
        %v4299 = vlaneseq
        %v4300 = vshrl.u32 %v4299, 7
        %v4301 = vsub.s32 3, %v4300
        %v4302 = vrot.slane %v4045, %v4301
        %v4303 = vlaneseq
        %v4304 = vshrl.u32 %v4303, 7
        %v4305 = vsub.s32 3, %v4304
        %v4306 = vrot.slane %v4046, %v4305
        %v4307 = vlaneseq
        %v4308 = vshrl.u32 %v4307, 7
        %v4309 = vsub.s32 3, %v4308
        %v4310 = vrot.slane %v4047, %v4309
        %v4311 = vlaneseq
        %v4312 = vshrl.u32 %v4311, 7
        %v4313 = vsub.s32 3, %v4312
        %v4314 = vrot.slane %v4048, %v4313
        %v4315 = vlaneseq
        %v4316 = vshrl.u32 %v4315, 7
        %v4317 = vsub.s32 3, %v4316
        %v4318 = vrot.slane %v4049, %v4317
        %v4319 = vlaneseq
        %v4320 = vshrl.u32 %v4319, 7
        %v4321 = vsub.s32 3, %v4320
        %v4322 = vrot.slane %v4050, %v4321
        %v4323 = vlaneseq
        %v4324 = vshrl.u32 %v4323, 7
        %v4325 = vsub.s32 3, %v4324
        %v4326 = vrot.slane %v4051, %v4325
        %v4327 = vmul.f32 %v4074, %v4266
        %v4328 = vmul.f32 %v4079, %v4270
        %v4329 = vmul.f32 %v4084, %v4274
        %v4330 = vmul.f32 %v4089, %v4278
        %v4331 = vmul.f32 %v4094, %v4282
        %v4332 = vmul.f32 %v4099, %v4286
        %v4333 = vmul.f32 %v4104, %v4290
        %v4334 = vmul.f32 %v4109, %v4294
        %v4335 = vmul.f32 %v4114, %v4298
        %v4336 = vmul.f32 %v4119, %v4302
        %v4337 = vmul.f32 %v4124, %v4306
        %v4338 = vmul.f32 %v4129, %v4310
        %v4339 = vmul.f32 %v4134, %v4314
        %v4340 = vmul.f32 %v4139, %v4318
        %v4341 = vmul.f32 %v4144, %v4322
        %v4342 = vmul.f32 %v4149, %v4326
        %v4343 = vsub.f32 %v3892, %v4327
        %v4344 = vsub.f32 %v3893, %v4328
        %v4345 = vsub.f32 %v3894, %v4329
        %v4346 = vsub.f32 %v3895, %v4330
        %v4347 = vsub.f32 %v3896, %v4331
        %v4348 = vsub.f32 %v3897, %v4332
        %v4349 = vsub.f32 %v3898, %v4333
        %v4350 = vsub.f32 %v3899, %v4334
        %v4351 = vsub.f32 %v3900, %v4335
        %v4352 = vsub.f32 %v3901, %v4336
        %v4353 = vsub.f32 %v3902, %v4337
        %v4354 = vsub.f32 %v3903, %v4338
        %v4355 = vsub.f32 %v3904, %v4339
        %v4356 = vsub.f32 %v3905, %v4340
        %v4357 = vsub.f32 %v3906, %v4341
        %v4358 = vsub.f32 %v3907, %v4342
        %v4359 = vsel %vm4054, %v4266, %v4343
        %v4360 = vsel %vm4054, %v4270, %v4344
        %v4361 = vsel %vm4054, %v4274, %v4345
        %v4362 = vsel %vm4054, %v4278, %v4346
        %v4363 = vsel %vm4054, %v4282, %v4347
        %v4364 = vsel %vm4054, %v4286, %v4348
        %v4365 = vsel %vm4054, %v4290, %v4349
        %v4366 = vsel %vm4054, %v4294, %v4350
        %v4367 = vsel %vm4054, %v4298, %v4351
        %v4368 = vsel %vm4054, %v4302, %v4352
        %v4369 = vsel %vm4054, %v4306, %v4353
        %v4370 = vsel %vm4054, %v4310, %v4354
        %v4371 = vsel %vm4054, %v4314, %v4355
        %v4372 = vsel %vm4054, %v4318, %v4356
        %v4373 = vsel %vm4054, %v4322, %v4357
        %v4374 = vsel %vm4054, %v4326, %v4358
        %v4375 = vrcp.pop %v4247
        %v4376 = vmul.f32 1.0, %v4375
        %v4377 = vrcp.pop %v4248
        %v4378 = vmul.f32 1.0, %v4377
        %v4379 = vrcp.pop %v4249
        %v4380 = vmul.f32 1.0, %v4379
        %v4381 = vrcp.pop %v4250
        %v4382 = vmul.f32 1.0, %v4381
        %v4383 = vrcp.pop %v4251
        %v4384 = vmul.f32 1.0, %v4383
        %v4385 = vrcp.pop %v4252
        %v4386 = vmul.f32 1.0, %v4385
        %v4387 = vrcp.pop %v4253
        %v4388 = vmul.f32 1.0, %v4387
        %v4389 = vrcp.pop %v4254
        %v4390 = vmul.f32 1.0, %v4389
        %v4391 = vrcp.pop %v4255
        %v4392 = vmul.f32 1.0, %v4391
        %v4393 = vrcp.pop %v4256
        %v4394 = vmul.f32 1.0, %v4393
        %v4395 = vrcp.pop %v4257
        %v4396 = vmul.f32 1.0, %v4395
        %v4397 = vrcp.pop %v4258
        %v4398 = vmul.f32 1.0, %v4397
        %v4399 = vrcp.pop %v4259
        %v4400 = vmul.f32 1.0, %v4399
        %v4401 = vrcp.pop %v4260
        %v4402 = vmul.f32 1.0, %v4401
        %v4403 = vrcp.pop %v4261
        %v4404 = vmul.f32 1.0, %v4403
        %v4405 = vrcp.pop %v4262
        %v4406 = vmul.f32 1.0, %v4405
        %4408 = vset.pattern.permute.xlu0 4
        %4409 = vperm.xlu0 %4408, %v4376
        %v4410 = vpop.permute.xlu0 %4409
        %4413 = vset.pattern.permute.xlu0 4
        %4414 = vperm.xlu0 %4413, %v4378
        %v4415 = vpop.permute.xlu0 %4414
        %4418 = vset.pattern.permute.xlu0 4
        %4419 = vperm.xlu0 %4418, %v4380
        %v4420 = vpop.permute.xlu0 %4419
        %4423 = vset.pattern.permute.xlu0 4
        %4424 = vperm.xlu0 %4423, %v4382
        %v4425 = vpop.permute.xlu0 %4424
        %4428 = vset.pattern.permute.xlu0 4
        %4429 = vperm.xlu0 %4428, %v4384
        %v4430 = vpop.permute.xlu0 %4429
        %4433 = vset.pattern.permute.xlu0 4
        %4434 = vperm.xlu0 %4433, %v4386
        %v4435 = vpop.permute.xlu0 %4434
        %4438 = vset.pattern.permute.xlu0 4
        %4439 = vperm.xlu0 %4438, %v4388
        %v4440 = vpop.permute.xlu0 %4439
        %4443 = vset.pattern.permute.xlu0 4
        %4444 = vperm.xlu0 %4443, %v4390
        %v4445 = vpop.permute.xlu0 %4444
        %4448 = vset.pattern.permute.xlu0 4
        %4449 = vperm.xlu0 %4448, %v4392
        %v4450 = vpop.permute.xlu0 %4449
        %4453 = vset.pattern.permute.xlu0 4
        %4454 = vperm.xlu0 %4453, %v4394
        %v4455 = vpop.permute.xlu0 %4454
        %4458 = vset.pattern.permute.xlu0 4
        %4459 = vperm.xlu0 %4458, %v4396
        %v4460 = vpop.permute.xlu0 %4459
        %4463 = vset.pattern.permute.xlu0 4
        %4464 = vperm.xlu0 %4463, %v4398
        %v4465 = vpop.permute.xlu0 %4464
        %4468 = vset.pattern.permute.xlu0 4
        %4469 = vperm.xlu0 %4468, %v4400
        %v4470 = vpop.permute.xlu0 %4469
        %4473 = vset.pattern.permute.xlu0 4
        %4474 = vperm.xlu0 %4473, %v4402
        %v4475 = vpop.permute.xlu0 %4474
        %4478 = vset.pattern.permute.xlu0 4
        %4479 = vperm.xlu0 %4478, %v4404
        %v4480 = vpop.permute.xlu0 %4479
        %4483 = vset.pattern.permute.xlu0 4
        %4484 = vperm.xlu0 %4483, %v4406
        %v4485 = vpop.permute.xlu0 %4484
        %v4487 = vmul.f32 %v4247, %v4410
        %v4488 = vmul.f32 %v4248, %v4415
        %v4489 = vmul.f32 %v4249, %v4420
        %v4490 = vmul.f32 %v4250, %v4425
        %v4491 = vmul.f32 %v4251, %v4430
        %v4492 = vmul.f32 %v4252, %v4435
        %v4493 = vmul.f32 %v4253, %v4440
        %v4494 = vmul.f32 %v4254, %v4445
        %v4495 = vmul.f32 %v4255, %v4450
        %v4496 = vmul.f32 %v4256, %v4455
        %v4497 = vmul.f32 %v4257, %v4460
        %v4498 = vmul.f32 %v4258, %v4465
        %v4499 = vmul.f32 %v4259, %v4470
        %v4500 = vmul.f32 %v4260, %v4475
        %v4501 = vmul.f32 %v4261, %v4480
        %v4502 = vmul.f32 %v4262, %v4485
        %v4503 = vmul.f32 %v4359, %v4410
        %v4504 = vmul.f32 %v4360, %v4415
        %v4505 = vmul.f32 %v4361, %v4420
        %v4506 = vmul.f32 %v4362, %v4425
        %v4507 = vmul.f32 %v4363, %v4430
        %v4508 = vmul.f32 %v4364, %v4435
        %v4509 = vmul.f32 %v4365, %v4440
        %v4510 = vmul.f32 %v4366, %v4445
        %v4511 = vmul.f32 %v4367, %v4450
        %v4512 = vmul.f32 %v4368, %v4455
        %v4513 = vmul.f32 %v4369, %v4460
        %v4514 = vmul.f32 %v4370, %v4465
        %v4515 = vmul.f32 %v4371, %v4470
        %v4516 = vmul.f32 %v4372, %v4475
        %v4517 = vmul.f32 %v4373, %v4480
        %v4518 = vmul.f32 %v4374, %v4485
        %vm4519 = vcmp.eq.s32.totalorder %v539, 4
        %v4520 = vsel %vm4519, 1, 0
        %vm4521 = vcmp.eq.s32.totalorder %v4520, 1
        %v4522 = vsel %vm4521, 0.0, %v4247
        %v4523 = vsel %vm4521, 0.0, %v4248
        %v4524 = vsel %vm4521, 0.0, %v4249
        %v4525 = vsel %vm4521, 0.0, %v4250
        %v4526 = vsel %vm4521, 0.0, %v4251
        %v4527 = vsel %vm4521, 0.0, %v4252
        %v4528 = vsel %vm4521, 0.0, %v4253
        %v4529 = vsel %vm4521, 0.0, %v4254
        %v4530 = vsel %vm4521, 0.0, %v4255
        %v4531 = vsel %vm4521, 0.0, %v4256
        %v4532 = vsel %vm4521, 0.0, %v4257
        %v4533 = vsel %vm4521, 0.0, %v4258
        %v4534 = vsel %vm4521, 0.0, %v4259
        %v4535 = vsel %vm4521, 0.0, %v4260
        %v4536 = vsel %vm4521, 0.0, %v4261
        %v4537 = vsel %vm4521, 0.0, %v4262
        %4539 = vset.pattern.permute.xlu0 4
        %4540 = vperm.xlu0 %4539, %v4522
        %v4541 = vpop.permute.xlu0 %4540
        %4544 = vset.pattern.permute.xlu0 4
        %4545 = vperm.xlu0 %4544, %v4523
        %v4546 = vpop.permute.xlu0 %4545
        %4549 = vset.pattern.permute.xlu0 4
        %4550 = vperm.xlu0 %4549, %v4524
        %v4551 = vpop.permute.xlu0 %4550
        %4554 = vset.pattern.permute.xlu0 4
        %4555 = vperm.xlu0 %4554, %v4525
        %v4556 = vpop.permute.xlu0 %4555
        %4559 = vset.pattern.permute.xlu0 4
        %4560 = vperm.xlu0 %4559, %v4526
        %v4561 = vpop.permute.xlu0 %4560
        %4564 = vset.pattern.permute.xlu0 4
        %4565 = vperm.xlu0 %4564, %v4527
        %v4566 = vpop.permute.xlu0 %4565
        %4569 = vset.pattern.permute.xlu0 4
        %4570 = vperm.xlu0 %4569, %v4528
        %v4571 = vpop.permute.xlu0 %4570
        %4574 = vset.pattern.permute.xlu0 4
        %4575 = vperm.xlu0 %4574, %v4529
        %v4576 = vpop.permute.xlu0 %4575
        %4579 = vset.pattern.permute.xlu0 4
        %4580 = vperm.xlu0 %4579, %v4530
        %v4581 = vpop.permute.xlu0 %4580
        %4584 = vset.pattern.permute.xlu0 4
        %4585 = vperm.xlu0 %4584, %v4531
        %v4586 = vpop.permute.xlu0 %4585
        %4589 = vset.pattern.permute.xlu0 4
        %4590 = vperm.xlu0 %4589, %v4532
        %v4591 = vpop.permute.xlu0 %4590
        %4594 = vset.pattern.permute.xlu0 4
        %4595 = vperm.xlu0 %4594, %v4533
        %v4596 = vpop.permute.xlu0 %4595
        %4599 = vset.pattern.permute.xlu0 4
        %4600 = vperm.xlu0 %4599, %v4534
        %v4601 = vpop.permute.xlu0 %4600
        %4604 = vset.pattern.permute.xlu0 4
        %4605 = vperm.xlu0 %4604, %v4535
        %v4606 = vpop.permute.xlu0 %4605
        %4609 = vset.pattern.permute.xlu0 4
        %4610 = vperm.xlu0 %4609, %v4536
        %v4611 = vpop.permute.xlu0 %4610
        %4614 = vset.pattern.permute.xlu0 4
        %4615 = vperm.xlu0 %4614, %v4537
        %v4616 = vpop.permute.xlu0 %4615
        %v4618 = vlaneseq
        %v4619 = vshrl.u32 %v4618, 7
        %v4620 = vsub.s32 4, %v4619
        %v4621 = vrot.slane %v4487, %v4620
        %v4622 = vlaneseq
        %v4623 = vshrl.u32 %v4622, 7
        %v4624 = vsub.s32 4, %v4623
        %v4625 = vrot.slane %v4488, %v4624
        %v4626 = vlaneseq
        %v4627 = vshrl.u32 %v4626, 7
        %v4628 = vsub.s32 4, %v4627
        %v4629 = vrot.slane %v4489, %v4628
        %v4630 = vlaneseq
        %v4631 = vshrl.u32 %v4630, 7
        %v4632 = vsub.s32 4, %v4631
        %v4633 = vrot.slane %v4490, %v4632
        %v4634 = vlaneseq
        %v4635 = vshrl.u32 %v4634, 7
        %v4636 = vsub.s32 4, %v4635
        %v4637 = vrot.slane %v4491, %v4636
        %v4638 = vlaneseq
        %v4639 = vshrl.u32 %v4638, 7
        %v4640 = vsub.s32 4, %v4639
        %v4641 = vrot.slane %v4492, %v4640
        %v4642 = vlaneseq
        %v4643 = vshrl.u32 %v4642, 7
        %v4644 = vsub.s32 4, %v4643
        %v4645 = vrot.slane %v4493, %v4644
        %v4646 = vlaneseq
        %v4647 = vshrl.u32 %v4646, 7
        %v4648 = vsub.s32 4, %v4647
        %v4649 = vrot.slane %v4494, %v4648
        %v4650 = vlaneseq
        %v4651 = vshrl.u32 %v4650, 7
        %v4652 = vsub.s32 4, %v4651
        %v4653 = vrot.slane %v4495, %v4652
        %v4654 = vlaneseq
        %v4655 = vshrl.u32 %v4654, 7
        %v4656 = vsub.s32 4, %v4655
        %v4657 = vrot.slane %v4496, %v4656
        %v4658 = vlaneseq
        %v4659 = vshrl.u32 %v4658, 7
        %v4660 = vsub.s32 4, %v4659
        %v4661 = vrot.slane %v4497, %v4660
        %v4662 = vlaneseq
        %v4663 = vshrl.u32 %v4662, 7
        %v4664 = vsub.s32 4, %v4663
        %v4665 = vrot.slane %v4498, %v4664
        %v4666 = vlaneseq
        %v4667 = vshrl.u32 %v4666, 7
        %v4668 = vsub.s32 4, %v4667
        %v4669 = vrot.slane %v4499, %v4668
        %v4670 = vlaneseq
        %v4671 = vshrl.u32 %v4670, 7
        %v4672 = vsub.s32 4, %v4671
        %v4673 = vrot.slane %v4500, %v4672
        %v4674 = vlaneseq
        %v4675 = vshrl.u32 %v4674, 7
        %v4676 = vsub.s32 4, %v4675
        %v4677 = vrot.slane %v4501, %v4676
        %v4678 = vlaneseq
        %v4679 = vshrl.u32 %v4678, 7
        %v4680 = vsub.s32 4, %v4679
        %v4681 = vrot.slane %v4502, %v4680
        %v4682 = vmul.f32 %v4541, %v4621
        %v4683 = vmul.f32 %v4546, %v4625
        %v4684 = vmul.f32 %v4551, %v4629
        %v4685 = vmul.f32 %v4556, %v4633
        %v4686 = vmul.f32 %v4561, %v4637
        %v4687 = vmul.f32 %v4566, %v4641
        %v4688 = vmul.f32 %v4571, %v4645
        %v4689 = vmul.f32 %v4576, %v4649
        %v4690 = vmul.f32 %v4581, %v4653
        %v4691 = vmul.f32 %v4586, %v4657
        %v4692 = vmul.f32 %v4591, %v4661
        %v4693 = vmul.f32 %v4596, %v4665
        %v4694 = vmul.f32 %v4601, %v4669
        %v4695 = vmul.f32 %v4606, %v4673
        %v4696 = vmul.f32 %v4611, %v4677
        %v4697 = vmul.f32 %v4616, %v4681
        %v4698 = vsub.f32 %v4247, %v4682
        %v4699 = vsub.f32 %v4248, %v4683
        %v4700 = vsub.f32 %v4249, %v4684
        %v4701 = vsub.f32 %v4250, %v4685
        %v4702 = vsub.f32 %v4251, %v4686
        %v4703 = vsub.f32 %v4252, %v4687
        %v4704 = vsub.f32 %v4253, %v4688
        %v4705 = vsub.f32 %v4254, %v4689
        %v4706 = vsub.f32 %v4255, %v4690
        %v4707 = vsub.f32 %v4256, %v4691
        %v4708 = vsub.f32 %v4257, %v4692
        %v4709 = vsub.f32 %v4258, %v4693
        %v4710 = vsub.f32 %v4259, %v4694
        %v4711 = vsub.f32 %v4260, %v4695
        %v4712 = vsub.f32 %v4261, %v4696
        %v4713 = vsub.f32 %v4262, %v4697
        %v4714 = vsel %vm4521, %v4621, %v4698
        %v4715 = vsel %vm4521, %v4625, %v4699
        %v4716 = vsel %vm4521, %v4629, %v4700
        %v4717 = vsel %vm4521, %v4633, %v4701
        %v4718 = vsel %vm4521, %v4637, %v4702
        %v4719 = vsel %vm4521, %v4641, %v4703
        %v4720 = vsel %vm4521, %v4645, %v4704
        %v4721 = vsel %vm4521, %v4649, %v4705
        %v4722 = vsel %vm4521, %v4653, %v4706
        %v4723 = vsel %vm4521, %v4657, %v4707
        %v4724 = vsel %vm4521, %v4661, %v4708
        %v4725 = vsel %vm4521, %v4665, %v4709
        %v4726 = vsel %vm4521, %v4669, %v4710
        %v4727 = vsel %vm4521, %v4673, %v4711
        %v4728 = vsel %vm4521, %v4677, %v4712
        %v4729 = vsel %vm4521, %v4681, %v4713
        %v4730 = vlaneseq
        %v4731 = vshrl.u32 %v4730, 7
        %v4732 = vsub.s32 4, %v4731
        %v4733 = vrot.slane %v4503, %v4732
        %v4734 = vlaneseq
        %v4735 = vshrl.u32 %v4734, 7
        %v4736 = vsub.s32 4, %v4735
        %v4737 = vrot.slane %v4504, %v4736
        %v4738 = vlaneseq
        %v4739 = vshrl.u32 %v4738, 7
        %v4740 = vsub.s32 4, %v4739
        %v4741 = vrot.slane %v4505, %v4740
        %v4742 = vlaneseq
        %v4743 = vshrl.u32 %v4742, 7
        %v4744 = vsub.s32 4, %v4743
        %v4745 = vrot.slane %v4506, %v4744
        %v4746 = vlaneseq
        %v4747 = vshrl.u32 %v4746, 7
        %v4748 = vsub.s32 4, %v4747
        %v4749 = vrot.slane %v4507, %v4748
        %v4750 = vlaneseq
        %v4751 = vshrl.u32 %v4750, 7
        %v4752 = vsub.s32 4, %v4751
        %v4753 = vrot.slane %v4508, %v4752
        %v4754 = vlaneseq
        %v4755 = vshrl.u32 %v4754, 7
        %v4756 = vsub.s32 4, %v4755
        %v4757 = vrot.slane %v4509, %v4756
        %v4758 = vlaneseq
        %v4759 = vshrl.u32 %v4758, 7
        %v4760 = vsub.s32 4, %v4759
        %v4761 = vrot.slane %v4510, %v4760
        %v4762 = vlaneseq
        %v4763 = vshrl.u32 %v4762, 7
        %v4764 = vsub.s32 4, %v4763
        %v4765 = vrot.slane %v4511, %v4764
        %v4766 = vlaneseq
        %v4767 = vshrl.u32 %v4766, 7
        %v4768 = vsub.s32 4, %v4767
        %v4769 = vrot.slane %v4512, %v4768
        %v4770 = vlaneseq
        %v4771 = vshrl.u32 %v4770, 7
        %v4772 = vsub.s32 4, %v4771
        %v4773 = vrot.slane %v4513, %v4772
        %v4774 = vlaneseq
        %v4775 = vshrl.u32 %v4774, 7
        %v4776 = vsub.s32 4, %v4775
        %v4777 = vrot.slane %v4514, %v4776
        %v4778 = vlaneseq
        %v4779 = vshrl.u32 %v4778, 7
        %v4780 = vsub.s32 4, %v4779
        %v4781 = vrot.slane %v4515, %v4780
        %v4782 = vlaneseq
        %v4783 = vshrl.u32 %v4782, 7
        %v4784 = vsub.s32 4, %v4783
        %v4785 = vrot.slane %v4516, %v4784
        %v4786 = vlaneseq
        %v4787 = vshrl.u32 %v4786, 7
        %v4788 = vsub.s32 4, %v4787
        %v4789 = vrot.slane %v4517, %v4788
        %v4790 = vlaneseq
        %v4791 = vshrl.u32 %v4790, 7
        %v4792 = vsub.s32 4, %v4791
        %v4793 = vrot.slane %v4518, %v4792
        %v4794 = vmul.f32 %v4541, %v4733
        %v4795 = vmul.f32 %v4546, %v4737
        %v4796 = vmul.f32 %v4551, %v4741
        %v4797 = vmul.f32 %v4556, %v4745
        %v4798 = vmul.f32 %v4561, %v4749
        %v4799 = vmul.f32 %v4566, %v4753
        %v4800 = vmul.f32 %v4571, %v4757
        %v4801 = vmul.f32 %v4576, %v4761
        %v4802 = vmul.f32 %v4581, %v4765
        %v4803 = vmul.f32 %v4586, %v4769
        %v4804 = vmul.f32 %v4591, %v4773
        %v4805 = vmul.f32 %v4596, %v4777
        %v4806 = vmul.f32 %v4601, %v4781
        %v4807 = vmul.f32 %v4606, %v4785
        %v4808 = vmul.f32 %v4611, %v4789
        %v4809 = vmul.f32 %v4616, %v4793
        %v4810 = vsub.f32 %v4359, %v4794
        %v4811 = vsub.f32 %v4360, %v4795
        %v4812 = vsub.f32 %v4361, %v4796
        %v4813 = vsub.f32 %v4362, %v4797
        %v4814 = vsub.f32 %v4363, %v4798
        %v4815 = vsub.f32 %v4364, %v4799
        %v4816 = vsub.f32 %v4365, %v4800
        %v4817 = vsub.f32 %v4366, %v4801
        %v4818 = vsub.f32 %v4367, %v4802
        %v4819 = vsub.f32 %v4368, %v4803
        %v4820 = vsub.f32 %v4369, %v4804
        %v4821 = vsub.f32 %v4370, %v4805
        %v4822 = vsub.f32 %v4371, %v4806
        %v4823 = vsub.f32 %v4372, %v4807
        %v4824 = vsub.f32 %v4373, %v4808
        %v4825 = vsub.f32 %v4374, %v4809
        %v4826 = vsel %vm4521, %v4733, %v4810
        %v4827 = vsel %vm4521, %v4737, %v4811
        %v4828 = vsel %vm4521, %v4741, %v4812
        %v4829 = vsel %vm4521, %v4745, %v4813
        %v4830 = vsel %vm4521, %v4749, %v4814
        %v4831 = vsel %vm4521, %v4753, %v4815
        %v4832 = vsel %vm4521, %v4757, %v4816
        %v4833 = vsel %vm4521, %v4761, %v4817
        %v4834 = vsel %vm4521, %v4765, %v4818
        %v4835 = vsel %vm4521, %v4769, %v4819
        %v4836 = vsel %vm4521, %v4773, %v4820
        %v4837 = vsel %vm4521, %v4777, %v4821
        %v4838 = vsel %vm4521, %v4781, %v4822
        %v4839 = vsel %vm4521, %v4785, %v4823
        %v4840 = vsel %vm4521, %v4789, %v4824
        %v4841 = vsel %vm4521, %v4793, %v4825
        %v4842 = vrcp.pop %v4714
        %v4843 = vmul.f32 1.0, %v4842
        %v4844 = vrcp.pop %v4715
        %v4845 = vmul.f32 1.0, %v4844
        %v4846 = vrcp.pop %v4716
        %v4847 = vmul.f32 1.0, %v4846
        %v4848 = vrcp.pop %v4717
        %v4849 = vmul.f32 1.0, %v4848
        %v4850 = vrcp.pop %v4718
        %v4851 = vmul.f32 1.0, %v4850
        %v4852 = vrcp.pop %v4719
        %v4853 = vmul.f32 1.0, %v4852
        %v4854 = vrcp.pop %v4720
        %v4855 = vmul.f32 1.0, %v4854
        %v4856 = vrcp.pop %v4721
        %v4857 = vmul.f32 1.0, %v4856
        %v4858 = vrcp.pop %v4722
        %v4859 = vmul.f32 1.0, %v4858
        %v4860 = vrcp.pop %v4723
        %v4861 = vmul.f32 1.0, %v4860
        %v4862 = vrcp.pop %v4724
        %v4863 = vmul.f32 1.0, %v4862
        %v4864 = vrcp.pop %v4725
        %v4865 = vmul.f32 1.0, %v4864
        %v4866 = vrcp.pop %v4726
        %v4867 = vmul.f32 1.0, %v4866
        %v4868 = vrcp.pop %v4727
        %v4869 = vmul.f32 1.0, %v4868
        %v4870 = vrcp.pop %v4728
        %v4871 = vmul.f32 1.0, %v4870
        %v4872 = vrcp.pop %v4729
        %v4873 = vmul.f32 1.0, %v4872
        %4875 = vset.pattern.permute.xlu0 5
        %4876 = vperm.xlu0 %4875, %v4843
        %v4877 = vpop.permute.xlu0 %4876
        %4880 = vset.pattern.permute.xlu0 5
        %4881 = vperm.xlu0 %4880, %v4845
        %v4882 = vpop.permute.xlu0 %4881
        %4885 = vset.pattern.permute.xlu0 5
        %4886 = vperm.xlu0 %4885, %v4847
        %v4887 = vpop.permute.xlu0 %4886
        %4890 = vset.pattern.permute.xlu0 5
        %4891 = vperm.xlu0 %4890, %v4849
        %v4892 = vpop.permute.xlu0 %4891
        %4895 = vset.pattern.permute.xlu0 5
        %4896 = vperm.xlu0 %4895, %v4851
        %v4897 = vpop.permute.xlu0 %4896
        %4900 = vset.pattern.permute.xlu0 5
        %4901 = vperm.xlu0 %4900, %v4853
        %v4902 = vpop.permute.xlu0 %4901
        %4905 = vset.pattern.permute.xlu0 5
        %4906 = vperm.xlu0 %4905, %v4855
        %v4907 = vpop.permute.xlu0 %4906
        %4910 = vset.pattern.permute.xlu0 5
        %4911 = vperm.xlu0 %4910, %v4857
        %v4912 = vpop.permute.xlu0 %4911
        %4915 = vset.pattern.permute.xlu0 5
        %4916 = vperm.xlu0 %4915, %v4859
        %v4917 = vpop.permute.xlu0 %4916
        %4920 = vset.pattern.permute.xlu0 5
        %4921 = vperm.xlu0 %4920, %v4861
        %v4922 = vpop.permute.xlu0 %4921
        %4925 = vset.pattern.permute.xlu0 5
        %4926 = vperm.xlu0 %4925, %v4863
        %v4927 = vpop.permute.xlu0 %4926
        %4930 = vset.pattern.permute.xlu0 5
        %4931 = vperm.xlu0 %4930, %v4865
        %v4932 = vpop.permute.xlu0 %4931
        %4935 = vset.pattern.permute.xlu0 5
        %4936 = vperm.xlu0 %4935, %v4867
        %v4937 = vpop.permute.xlu0 %4936
        %4940 = vset.pattern.permute.xlu0 5
        %4941 = vperm.xlu0 %4940, %v4869
        %v4942 = vpop.permute.xlu0 %4941
        %4945 = vset.pattern.permute.xlu0 5
        %4946 = vperm.xlu0 %4945, %v4871
        %v4947 = vpop.permute.xlu0 %4946
        %4950 = vset.pattern.permute.xlu0 5
        %4951 = vperm.xlu0 %4950, %v4873
        %v4952 = vpop.permute.xlu0 %4951
        %v4954 = vmul.f32 %v4714, %v4877
        %v4955 = vmul.f32 %v4715, %v4882
        %v4956 = vmul.f32 %v4716, %v4887
        %v4957 = vmul.f32 %v4717, %v4892
        %v4958 = vmul.f32 %v4718, %v4897
        %v4959 = vmul.f32 %v4719, %v4902
        %v4960 = vmul.f32 %v4720, %v4907
        %v4961 = vmul.f32 %v4721, %v4912
        %v4962 = vmul.f32 %v4722, %v4917
        %v4963 = vmul.f32 %v4723, %v4922
        %v4964 = vmul.f32 %v4724, %v4927
        %v4965 = vmul.f32 %v4725, %v4932
        %v4966 = vmul.f32 %v4726, %v4937
        %v4967 = vmul.f32 %v4727, %v4942
        %v4968 = vmul.f32 %v4728, %v4947
        %v4969 = vmul.f32 %v4729, %v4952
        %v4970 = vmul.f32 %v4826, %v4877
        %v4971 = vmul.f32 %v4827, %v4882
        %v4972 = vmul.f32 %v4828, %v4887
        %v4973 = vmul.f32 %v4829, %v4892
        %v4974 = vmul.f32 %v4830, %v4897
        %v4975 = vmul.f32 %v4831, %v4902
        %v4976 = vmul.f32 %v4832, %v4907
        %v4977 = vmul.f32 %v4833, %v4912
        %v4978 = vmul.f32 %v4834, %v4917
        %v4979 = vmul.f32 %v4835, %v4922
        %v4980 = vmul.f32 %v4836, %v4927
        %v4981 = vmul.f32 %v4837, %v4932
        %v4982 = vmul.f32 %v4838, %v4937
        %v4983 = vmul.f32 %v4839, %v4942
        %v4984 = vmul.f32 %v4840, %v4947
        %v4985 = vmul.f32 %v4841, %v4952
        %vm4986 = vcmp.eq.s32.totalorder %v539, 5
        %v4987 = vsel %vm4986, 1, 0
        %vm4988 = vcmp.eq.s32.totalorder %v4987, 1
        %v4989 = vsel %vm4988, 0.0, %v4714
        %v4990 = vsel %vm4988, 0.0, %v4715
        %v4991 = vsel %vm4988, 0.0, %v4716
        %v4992 = vsel %vm4988, 0.0, %v4717
        %v4993 = vsel %vm4988, 0.0, %v4718
        %v4994 = vsel %vm4988, 0.0, %v4719
        %v4995 = vsel %vm4988, 0.0, %v4720
        %v4996 = vsel %vm4988, 0.0, %v4721
        %v4997 = vsel %vm4988, 0.0, %v4722
        %v4998 = vsel %vm4988, 0.0, %v4723
        %v4999 = vsel %vm4988, 0.0, %v4724
        %v5000 = vsel %vm4988, 0.0, %v4725
        %v5001 = vsel %vm4988, 0.0, %v4726
        %v5002 = vsel %vm4988, 0.0, %v4727
        %v5003 = vsel %vm4988, 0.0, %v4728
        %v5004 = vsel %vm4988, 0.0, %v4729
        %5006 = vset.pattern.permute.xlu0 5
        %5007 = vperm.xlu0 %5006, %v4989
        %v5008 = vpop.permute.xlu0 %5007
        %5011 = vset.pattern.permute.xlu0 5
        %5012 = vperm.xlu0 %5011, %v4990
        %v5013 = vpop.permute.xlu0 %5012
        %5016 = vset.pattern.permute.xlu0 5
        %5017 = vperm.xlu0 %5016, %v4991
        %v5018 = vpop.permute.xlu0 %5017
        %5021 = vset.pattern.permute.xlu0 5
        %5022 = vperm.xlu0 %5021, %v4992
        %v5023 = vpop.permute.xlu0 %5022
        %5026 = vset.pattern.permute.xlu0 5
        %5027 = vperm.xlu0 %5026, %v4993
        %v5028 = vpop.permute.xlu0 %5027
        %5031 = vset.pattern.permute.xlu0 5
        %5032 = vperm.xlu0 %5031, %v4994
        %v5033 = vpop.permute.xlu0 %5032
        %5036 = vset.pattern.permute.xlu0 5
        %5037 = vperm.xlu0 %5036, %v4995
        %v5038 = vpop.permute.xlu0 %5037
        %5041 = vset.pattern.permute.xlu0 5
        %5042 = vperm.xlu0 %5041, %v4996
        %v5043 = vpop.permute.xlu0 %5042
        %5046 = vset.pattern.permute.xlu0 5
        %5047 = vperm.xlu0 %5046, %v4997
        %v5048 = vpop.permute.xlu0 %5047
        %5051 = vset.pattern.permute.xlu0 5
        %5052 = vperm.xlu0 %5051, %v4998
        %v5053 = vpop.permute.xlu0 %5052
        %5056 = vset.pattern.permute.xlu0 5
        %5057 = vperm.xlu0 %5056, %v4999
        %v5058 = vpop.permute.xlu0 %5057
        %5061 = vset.pattern.permute.xlu0 5
        %5062 = vperm.xlu0 %5061, %v5000
        %v5063 = vpop.permute.xlu0 %5062
        %5066 = vset.pattern.permute.xlu0 5
        %5067 = vperm.xlu0 %5066, %v5001
        %v5068 = vpop.permute.xlu0 %5067
        %5071 = vset.pattern.permute.xlu0 5
        %5072 = vperm.xlu0 %5071, %v5002
        %v5073 = vpop.permute.xlu0 %5072
        %5076 = vset.pattern.permute.xlu0 5
        %5077 = vperm.xlu0 %5076, %v5003
        %v5078 = vpop.permute.xlu0 %5077
        %5081 = vset.pattern.permute.xlu0 5
        %5082 = vperm.xlu0 %5081, %v5004
        %v5083 = vpop.permute.xlu0 %5082
        %v5085 = vlaneseq
        %v5086 = vshrl.u32 %v5085, 7
        %v5087 = vsub.s32 5, %v5086
        %v5088 = vrot.slane %v4954, %v5087
        %v5089 = vlaneseq
        %v5090 = vshrl.u32 %v5089, 7
        %v5091 = vsub.s32 5, %v5090
        %v5092 = vrot.slane %v4955, %v5091
        %v5093 = vlaneseq
        %v5094 = vshrl.u32 %v5093, 7
        %v5095 = vsub.s32 5, %v5094
        %v5096 = vrot.slane %v4956, %v5095
        %v5097 = vlaneseq
        %v5098 = vshrl.u32 %v5097, 7
        %v5099 = vsub.s32 5, %v5098
        %v5100 = vrot.slane %v4957, %v5099
        %v5101 = vlaneseq
        %v5102 = vshrl.u32 %v5101, 7
        %v5103 = vsub.s32 5, %v5102
        %v5104 = vrot.slane %v4958, %v5103
        %v5105 = vlaneseq
        %v5106 = vshrl.u32 %v5105, 7
        %v5107 = vsub.s32 5, %v5106
        %v5108 = vrot.slane %v4959, %v5107
        %v5109 = vlaneseq
        %v5110 = vshrl.u32 %v5109, 7
        %v5111 = vsub.s32 5, %v5110
        %v5112 = vrot.slane %v4960, %v5111
        %v5113 = vlaneseq
        %v5114 = vshrl.u32 %v5113, 7
        %v5115 = vsub.s32 5, %v5114
        %v5116 = vrot.slane %v4961, %v5115
        %v5117 = vlaneseq
        %v5118 = vshrl.u32 %v5117, 7
        %v5119 = vsub.s32 5, %v5118
        %v5120 = vrot.slane %v4962, %v5119
        %v5121 = vlaneseq
        %v5122 = vshrl.u32 %v5121, 7
        %v5123 = vsub.s32 5, %v5122
        %v5124 = vrot.slane %v4963, %v5123
        %v5125 = vlaneseq
        %v5126 = vshrl.u32 %v5125, 7
        %v5127 = vsub.s32 5, %v5126
        %v5128 = vrot.slane %v4964, %v5127
        %v5129 = vlaneseq
        %v5130 = vshrl.u32 %v5129, 7
        %v5131 = vsub.s32 5, %v5130
        %v5132 = vrot.slane %v4965, %v5131
        %v5133 = vlaneseq
        %v5134 = vshrl.u32 %v5133, 7
        %v5135 = vsub.s32 5, %v5134
        %v5136 = vrot.slane %v4966, %v5135
        %v5137 = vlaneseq
        %v5138 = vshrl.u32 %v5137, 7
        %v5139 = vsub.s32 5, %v5138
        %v5140 = vrot.slane %v4967, %v5139
        %v5141 = vlaneseq
        %v5142 = vshrl.u32 %v5141, 7
        %v5143 = vsub.s32 5, %v5142
        %v5144 = vrot.slane %v4968, %v5143
        %v5145 = vlaneseq
        %v5146 = vshrl.u32 %v5145, 7
        %v5147 = vsub.s32 5, %v5146
        %v5148 = vrot.slane %v4969, %v5147
        %v5149 = vmul.f32 %v5008, %v5088
        %v5150 = vmul.f32 %v5013, %v5092
        %v5151 = vmul.f32 %v5018, %v5096
        %v5152 = vmul.f32 %v5023, %v5100
        %v5153 = vmul.f32 %v5028, %v5104
        %v5154 = vmul.f32 %v5033, %v5108
        %v5155 = vmul.f32 %v5038, %v5112
        %v5156 = vmul.f32 %v5043, %v5116
        %v5157 = vmul.f32 %v5048, %v5120
        %v5158 = vmul.f32 %v5053, %v5124
        %v5159 = vmul.f32 %v5058, %v5128
        %v5160 = vmul.f32 %v5063, %v5132
        %v5161 = vmul.f32 %v5068, %v5136
        %v5162 = vmul.f32 %v5073, %v5140
        %v5163 = vmul.f32 %v5078, %v5144
        %v5164 = vmul.f32 %v5083, %v5148
        %v5165 = vsub.f32 %v4714, %v5149
        %v5166 = vsub.f32 %v4715, %v5150
        %v5167 = vsub.f32 %v4716, %v5151
        %v5168 = vsub.f32 %v4717, %v5152
        %v5169 = vsub.f32 %v4718, %v5153
        %v5170 = vsub.f32 %v4719, %v5154
        %v5171 = vsub.f32 %v4720, %v5155
        %v5172 = vsub.f32 %v4721, %v5156
        %v5173 = vsub.f32 %v4722, %v5157
        %v5174 = vsub.f32 %v4723, %v5158
        %v5175 = vsub.f32 %v4724, %v5159
        %v5176 = vsub.f32 %v4725, %v5160
        %v5177 = vsub.f32 %v4726, %v5161
        %v5178 = vsub.f32 %v4727, %v5162
        %v5179 = vsub.f32 %v4728, %v5163
        %v5180 = vsub.f32 %v4729, %v5164
        %v5181 = vsel %vm4988, %v5088, %v5165
        %v5182 = vsel %vm4988, %v5092, %v5166
        %v5183 = vsel %vm4988, %v5096, %v5167
        %v5184 = vsel %vm4988, %v5100, %v5168
        %v5185 = vsel %vm4988, %v5104, %v5169
        %v5186 = vsel %vm4988, %v5108, %v5170
        %v5187 = vsel %vm4988, %v5112, %v5171
        %v5188 = vsel %vm4988, %v5116, %v5172
        %v5189 = vsel %vm4988, %v5120, %v5173
        %v5190 = vsel %vm4988, %v5124, %v5174
        %v5191 = vsel %vm4988, %v5128, %v5175
        %v5192 = vsel %vm4988, %v5132, %v5176
        %v5193 = vsel %vm4988, %v5136, %v5177
        %v5194 = vsel %vm4988, %v5140, %v5178
        %v5195 = vsel %vm4988, %v5144, %v5179
        %v5196 = vsel %vm4988, %v5148, %v5180
        %v5197 = vlaneseq
        %v5198 = vshrl.u32 %v5197, 7
        %v5199 = vsub.s32 5, %v5198
        %v5200 = vrot.slane %v4970, %v5199
        %v5201 = vlaneseq
        %v5202 = vshrl.u32 %v5201, 7
        %v5203 = vsub.s32 5, %v5202
        %v5204 = vrot.slane %v4971, %v5203
        %v5205 = vlaneseq
        %v5206 = vshrl.u32 %v5205, 7
        %v5207 = vsub.s32 5, %v5206
        %v5208 = vrot.slane %v4972, %v5207
        %v5209 = vlaneseq
        %v5210 = vshrl.u32 %v5209, 7
        %v5211 = vsub.s32 5, %v5210
        %v5212 = vrot.slane %v4973, %v5211
        %v5213 = vlaneseq
        %v5214 = vshrl.u32 %v5213, 7
        %v5215 = vsub.s32 5, %v5214
        %v5216 = vrot.slane %v4974, %v5215
        %v5217 = vlaneseq
        %v5218 = vshrl.u32 %v5217, 7
        %v5219 = vsub.s32 5, %v5218
        %v5220 = vrot.slane %v4975, %v5219
        %v5221 = vlaneseq
        %v5222 = vshrl.u32 %v5221, 7
        %v5223 = vsub.s32 5, %v5222
        %v5224 = vrot.slane %v4976, %v5223
        %v5225 = vlaneseq
        %v5226 = vshrl.u32 %v5225, 7
        %v5227 = vsub.s32 5, %v5226
        %v5228 = vrot.slane %v4977, %v5227
        %v5229 = vlaneseq
        %v5230 = vshrl.u32 %v5229, 7
        %v5231 = vsub.s32 5, %v5230
        %v5232 = vrot.slane %v4978, %v5231
        %v5233 = vlaneseq
        %v5234 = vshrl.u32 %v5233, 7
        %v5235 = vsub.s32 5, %v5234
        %v5236 = vrot.slane %v4979, %v5235
        %v5237 = vlaneseq
        %v5238 = vshrl.u32 %v5237, 7
        %v5239 = vsub.s32 5, %v5238
        %v5240 = vrot.slane %v4980, %v5239
        %v5241 = vlaneseq
        %v5242 = vshrl.u32 %v5241, 7
        %v5243 = vsub.s32 5, %v5242
        %v5244 = vrot.slane %v4981, %v5243
        %v5245 = vlaneseq
        %v5246 = vshrl.u32 %v5245, 7
        %v5247 = vsub.s32 5, %v5246
        %v5248 = vrot.slane %v4982, %v5247
        %v5249 = vlaneseq
        %v5250 = vshrl.u32 %v5249, 7
        %v5251 = vsub.s32 5, %v5250
        %v5252 = vrot.slane %v4983, %v5251
        %v5253 = vlaneseq
        %v5254 = vshrl.u32 %v5253, 7
        %v5255 = vsub.s32 5, %v5254
        %v5256 = vrot.slane %v4984, %v5255
        %v5257 = vlaneseq
        %v5258 = vshrl.u32 %v5257, 7
        %v5259 = vsub.s32 5, %v5258
        %v5260 = vrot.slane %v4985, %v5259
        %v5261 = vmul.f32 %v5008, %v5200
        %v5262 = vmul.f32 %v5013, %v5204
        %v5263 = vmul.f32 %v5018, %v5208
        %v5264 = vmul.f32 %v5023, %v5212
        %v5265 = vmul.f32 %v5028, %v5216
        %v5266 = vmul.f32 %v5033, %v5220
        %v5267 = vmul.f32 %v5038, %v5224
        %v5268 = vmul.f32 %v5043, %v5228
        %v5269 = vmul.f32 %v5048, %v5232
        %v5270 = vmul.f32 %v5053, %v5236
        %v5271 = vmul.f32 %v5058, %v5240
        %v5272 = vmul.f32 %v5063, %v5244
        %v5273 = vmul.f32 %v5068, %v5248
        %v5274 = vmul.f32 %v5073, %v5252
        %v5275 = vmul.f32 %v5078, %v5256
        %v5276 = vmul.f32 %v5083, %v5260
        %v5277 = vsub.f32 %v4826, %v5261
        %v5278 = vsub.f32 %v4827, %v5262
        %v5279 = vsub.f32 %v4828, %v5263
        %v5280 = vsub.f32 %v4829, %v5264
        %v5281 = vsub.f32 %v4830, %v5265
        %v5282 = vsub.f32 %v4831, %v5266
        %v5283 = vsub.f32 %v4832, %v5267
        %v5284 = vsub.f32 %v4833, %v5268
        %v5285 = vsub.f32 %v4834, %v5269
        %v5286 = vsub.f32 %v4835, %v5270
        %v5287 = vsub.f32 %v4836, %v5271
        %v5288 = vsub.f32 %v4837, %v5272
        %v5289 = vsub.f32 %v4838, %v5273
        %v5290 = vsub.f32 %v4839, %v5274
        %v5291 = vsub.f32 %v4840, %v5275
        %v5292 = vsub.f32 %v4841, %v5276
        %v5293 = vsel %vm4988, %v5200, %v5277
        %v5294 = vsel %vm4988, %v5204, %v5278
        %v5295 = vsel %vm4988, %v5208, %v5279
        %v5296 = vsel %vm4988, %v5212, %v5280
        %v5297 = vsel %vm4988, %v5216, %v5281
        %v5298 = vsel %vm4988, %v5220, %v5282
        %v5299 = vsel %vm4988, %v5224, %v5283
        %v5300 = vsel %vm4988, %v5228, %v5284
        %v5301 = vsel %vm4988, %v5232, %v5285
        %v5302 = vsel %vm4988, %v5236, %v5286
        %v5303 = vsel %vm4988, %v5240, %v5287
        %v5304 = vsel %vm4988, %v5244, %v5288
        %v5305 = vsel %vm4988, %v5248, %v5289
        %v5306 = vsel %vm4988, %v5252, %v5290
        %v5307 = vsel %vm4988, %v5256, %v5291
        %v5308 = vsel %vm4988, %v5260, %v5292
        %v5309 = vrcp.pop %v5181
        %v5310 = vmul.f32 1.0, %v5309
        %v5311 = vrcp.pop %v5182
        %v5312 = vmul.f32 1.0, %v5311
        %v5313 = vrcp.pop %v5183
        %v5314 = vmul.f32 1.0, %v5313
        %v5315 = vrcp.pop %v5184
        %v5316 = vmul.f32 1.0, %v5315
        %v5317 = vrcp.pop %v5185
        %v5318 = vmul.f32 1.0, %v5317
        %v5319 = vrcp.pop %v5186
        %v5320 = vmul.f32 1.0, %v5319
        %v5321 = vrcp.pop %v5187
        %v5322 = vmul.f32 1.0, %v5321
        %v5323 = vrcp.pop %v5188
        %v5324 = vmul.f32 1.0, %v5323
        %v5325 = vrcp.pop %v5189
        %v5326 = vmul.f32 1.0, %v5325
        %v5327 = vrcp.pop %v5190
        %v5328 = vmul.f32 1.0, %v5327
        %v5329 = vrcp.pop %v5191
        %v5330 = vmul.f32 1.0, %v5329
        %v5331 = vrcp.pop %v5192
        %v5332 = vmul.f32 1.0, %v5331
        %v5333 = vrcp.pop %v5193
        %v5334 = vmul.f32 1.0, %v5333
        %v5335 = vrcp.pop %v5194
        %v5336 = vmul.f32 1.0, %v5335
        %v5337 = vrcp.pop %v5195
        %v5338 = vmul.f32 1.0, %v5337
        %v5339 = vrcp.pop %v5196
        %v5340 = vmul.f32 1.0, %v5339
        %5342 = vset.pattern.permute.xlu0 6
        %5343 = vperm.xlu0 %5342, %v5310
        %v5344 = vpop.permute.xlu0 %5343
        %5347 = vset.pattern.permute.xlu0 6
        %5348 = vperm.xlu0 %5347, %v5312
        %v5349 = vpop.permute.xlu0 %5348
        %5352 = vset.pattern.permute.xlu0 6
        %5353 = vperm.xlu0 %5352, %v5314
        %v5354 = vpop.permute.xlu0 %5353
        %5357 = vset.pattern.permute.xlu0 6
        %5358 = vperm.xlu0 %5357, %v5316
        %v5359 = vpop.permute.xlu0 %5358
        %5362 = vset.pattern.permute.xlu0 6
        %5363 = vperm.xlu0 %5362, %v5318
        %v5364 = vpop.permute.xlu0 %5363
        %5367 = vset.pattern.permute.xlu0 6
        %5368 = vperm.xlu0 %5367, %v5320
        %v5369 = vpop.permute.xlu0 %5368
        %5372 = vset.pattern.permute.xlu0 6
        %5373 = vperm.xlu0 %5372, %v5322
        %v5374 = vpop.permute.xlu0 %5373
        %5377 = vset.pattern.permute.xlu0 6
        %5378 = vperm.xlu0 %5377, %v5324
        %v5379 = vpop.permute.xlu0 %5378
        %5382 = vset.pattern.permute.xlu0 6
        %5383 = vperm.xlu0 %5382, %v5326
        %v5384 = vpop.permute.xlu0 %5383
        %5387 = vset.pattern.permute.xlu0 6
        %5388 = vperm.xlu0 %5387, %v5328
        %v5389 = vpop.permute.xlu0 %5388
        %5392 = vset.pattern.permute.xlu0 6
        %5393 = vperm.xlu0 %5392, %v5330
        %v5394 = vpop.permute.xlu0 %5393
        %5397 = vset.pattern.permute.xlu0 6
        %5398 = vperm.xlu0 %5397, %v5332
        %v5399 = vpop.permute.xlu0 %5398
        %5402 = vset.pattern.permute.xlu0 6
        %5403 = vperm.xlu0 %5402, %v5334
        %v5404 = vpop.permute.xlu0 %5403
        %5407 = vset.pattern.permute.xlu0 6
        %5408 = vperm.xlu0 %5407, %v5336
        %v5409 = vpop.permute.xlu0 %5408
        %5412 = vset.pattern.permute.xlu0 6
        %5413 = vperm.xlu0 %5412, %v5338
        %v5414 = vpop.permute.xlu0 %5413
        %5417 = vset.pattern.permute.xlu0 6
        %5418 = vperm.xlu0 %5417, %v5340
        %v5419 = vpop.permute.xlu0 %5418
        %v5421 = vmul.f32 %v5181, %v5344
        %v5422 = vmul.f32 %v5182, %v5349
        %v5423 = vmul.f32 %v5183, %v5354
        %v5424 = vmul.f32 %v5184, %v5359
        %v5425 = vmul.f32 %v5185, %v5364
        %v5426 = vmul.f32 %v5186, %v5369
        %v5427 = vmul.f32 %v5187, %v5374
        %v5428 = vmul.f32 %v5188, %v5379
        %v5429 = vmul.f32 %v5189, %v5384
        %v5430 = vmul.f32 %v5190, %v5389
        %v5431 = vmul.f32 %v5191, %v5394
        %v5432 = vmul.f32 %v5192, %v5399
        %v5433 = vmul.f32 %v5193, %v5404
        %v5434 = vmul.f32 %v5194, %v5409
        %v5435 = vmul.f32 %v5195, %v5414
        %v5436 = vmul.f32 %v5196, %v5419
        %v5437 = vmul.f32 %v5293, %v5344
        %v5438 = vmul.f32 %v5294, %v5349
        %v5439 = vmul.f32 %v5295, %v5354
        %v5440 = vmul.f32 %v5296, %v5359
        %v5441 = vmul.f32 %v5297, %v5364
        %v5442 = vmul.f32 %v5298, %v5369
        %v5443 = vmul.f32 %v5299, %v5374
        %v5444 = vmul.f32 %v5300, %v5379
        %v5445 = vmul.f32 %v5301, %v5384
        %v5446 = vmul.f32 %v5302, %v5389
        %v5447 = vmul.f32 %v5303, %v5394
        %v5448 = vmul.f32 %v5304, %v5399
        %v5449 = vmul.f32 %v5305, %v5404
        %v5450 = vmul.f32 %v5306, %v5409
        %v5451 = vmul.f32 %v5307, %v5414
        %v5452 = vmul.f32 %v5308, %v5419
        %vm5453 = vcmp.eq.s32.totalorder %v539, 6
        %v5454 = vsel %vm5453, 1, 0
        %vm5455 = vcmp.eq.s32.totalorder %v5454, 1
        %v5456 = vsel %vm5455, 0.0, %v5181
        %v5457 = vsel %vm5455, 0.0, %v5182
        %v5458 = vsel %vm5455, 0.0, %v5183
        %v5459 = vsel %vm5455, 0.0, %v5184
        %v5460 = vsel %vm5455, 0.0, %v5185
        %v5461 = vsel %vm5455, 0.0, %v5186
        %v5462 = vsel %vm5455, 0.0, %v5187
        %v5463 = vsel %vm5455, 0.0, %v5188
        %v5464 = vsel %vm5455, 0.0, %v5189
        %v5465 = vsel %vm5455, 0.0, %v5190
        %v5466 = vsel %vm5455, 0.0, %v5191
        %v5467 = vsel %vm5455, 0.0, %v5192
        %v5468 = vsel %vm5455, 0.0, %v5193
        %v5469 = vsel %vm5455, 0.0, %v5194
        %v5470 = vsel %vm5455, 0.0, %v5195
        %v5471 = vsel %vm5455, 0.0, %v5196
        %5473 = vset.pattern.permute.xlu0 6
        %5474 = vperm.xlu0 %5473, %v5456
        %v5475 = vpop.permute.xlu0 %5474
        %5478 = vset.pattern.permute.xlu0 6
        %5479 = vperm.xlu0 %5478, %v5457
        %v5480 = vpop.permute.xlu0 %5479
        %5483 = vset.pattern.permute.xlu0 6
        %5484 = vperm.xlu0 %5483, %v5458
        %v5485 = vpop.permute.xlu0 %5484
        %5488 = vset.pattern.permute.xlu0 6
        %5489 = vperm.xlu0 %5488, %v5459
        %v5490 = vpop.permute.xlu0 %5489
        %5493 = vset.pattern.permute.xlu0 6
        %5494 = vperm.xlu0 %5493, %v5460
        %v5495 = vpop.permute.xlu0 %5494
        %5498 = vset.pattern.permute.xlu0 6
        %5499 = vperm.xlu0 %5498, %v5461
        %v5500 = vpop.permute.xlu0 %5499
        %5503 = vset.pattern.permute.xlu0 6
        %5504 = vperm.xlu0 %5503, %v5462
        %v5505 = vpop.permute.xlu0 %5504
        %5508 = vset.pattern.permute.xlu0 6
        %5509 = vperm.xlu0 %5508, %v5463
        %v5510 = vpop.permute.xlu0 %5509
        %5513 = vset.pattern.permute.xlu0 6
        %5514 = vperm.xlu0 %5513, %v5464
        %v5515 = vpop.permute.xlu0 %5514
        %5518 = vset.pattern.permute.xlu0 6
        %5519 = vperm.xlu0 %5518, %v5465
        %v5520 = vpop.permute.xlu0 %5519
        %5523 = vset.pattern.permute.xlu0 6
        %5524 = vperm.xlu0 %5523, %v5466
        %v5525 = vpop.permute.xlu0 %5524
        %5528 = vset.pattern.permute.xlu0 6
        %5529 = vperm.xlu0 %5528, %v5467
        %v5530 = vpop.permute.xlu0 %5529
        %5533 = vset.pattern.permute.xlu0 6
        %5534 = vperm.xlu0 %5533, %v5468
        %v5535 = vpop.permute.xlu0 %5534
        %5538 = vset.pattern.permute.xlu0 6
        %5539 = vperm.xlu0 %5538, %v5469
        %v5540 = vpop.permute.xlu0 %5539
        %5543 = vset.pattern.permute.xlu0 6
        %5544 = vperm.xlu0 %5543, %v5470
        %v5545 = vpop.permute.xlu0 %5544
        %5548 = vset.pattern.permute.xlu0 6
        %5549 = vperm.xlu0 %5548, %v5471
        %v5550 = vpop.permute.xlu0 %5549
        %v5552 = vlaneseq
        %v5553 = vshrl.u32 %v5552, 7
        %v5554 = vsub.s32 6, %v5553
        %v5555 = vrot.slane %v5421, %v5554
        %v5556 = vlaneseq
        %v5557 = vshrl.u32 %v5556, 7
        %v5558 = vsub.s32 6, %v5557
        %v5559 = vrot.slane %v5422, %v5558
        %v5560 = vlaneseq
        %v5561 = vshrl.u32 %v5560, 7
        %v5562 = vsub.s32 6, %v5561
        %v5563 = vrot.slane %v5423, %v5562
        %v5564 = vlaneseq
        %v5565 = vshrl.u32 %v5564, 7
        %v5566 = vsub.s32 6, %v5565
        %v5567 = vrot.slane %v5424, %v5566
        %v5568 = vlaneseq
        %v5569 = vshrl.u32 %v5568, 7
        %v5570 = vsub.s32 6, %v5569
        %v5571 = vrot.slane %v5425, %v5570
        %v5572 = vlaneseq
        %v5573 = vshrl.u32 %v5572, 7
        %v5574 = vsub.s32 6, %v5573
        %v5575 = vrot.slane %v5426, %v5574
        %v5576 = vlaneseq
        %v5577 = vshrl.u32 %v5576, 7
        %v5578 = vsub.s32 6, %v5577
        %v5579 = vrot.slane %v5427, %v5578
        %v5580 = vlaneseq
        %v5581 = vshrl.u32 %v5580, 7
        %v5582 = vsub.s32 6, %v5581
        %v5583 = vrot.slane %v5428, %v5582
        %v5584 = vlaneseq
        %v5585 = vshrl.u32 %v5584, 7
        %v5586 = vsub.s32 6, %v5585
        %v5587 = vrot.slane %v5429, %v5586
        %v5588 = vlaneseq
        %v5589 = vshrl.u32 %v5588, 7
        %v5590 = vsub.s32 6, %v5589
        %v5591 = vrot.slane %v5430, %v5590
        %v5592 = vlaneseq
        %v5593 = vshrl.u32 %v5592, 7
        %v5594 = vsub.s32 6, %v5593
        %v5595 = vrot.slane %v5431, %v5594
        %v5596 = vlaneseq
        %v5597 = vshrl.u32 %v5596, 7
        %v5598 = vsub.s32 6, %v5597
        %v5599 = vrot.slane %v5432, %v5598
        %v5600 = vlaneseq
        %v5601 = vshrl.u32 %v5600, 7
        %v5602 = vsub.s32 6, %v5601
        %v5603 = vrot.slane %v5433, %v5602
        %v5604 = vlaneseq
        %v5605 = vshrl.u32 %v5604, 7
        %v5606 = vsub.s32 6, %v5605
        %v5607 = vrot.slane %v5434, %v5606
        %v5608 = vlaneseq
        %v5609 = vshrl.u32 %v5608, 7
        %v5610 = vsub.s32 6, %v5609
        %v5611 = vrot.slane %v5435, %v5610
        %v5612 = vlaneseq
        %v5613 = vshrl.u32 %v5612, 7
        %v5614 = vsub.s32 6, %v5613
        %v5615 = vrot.slane %v5436, %v5614
        %v5616 = vmul.f32 %v5475, %v5555
        %v5617 = vmul.f32 %v5480, %v5559
        %v5618 = vmul.f32 %v5485, %v5563
        %v5619 = vmul.f32 %v5490, %v5567
        %v5620 = vmul.f32 %v5495, %v5571
        %v5621 = vmul.f32 %v5500, %v5575
        %v5622 = vmul.f32 %v5505, %v5579
        %v5623 = vmul.f32 %v5510, %v5583
        %v5624 = vmul.f32 %v5515, %v5587
        %v5625 = vmul.f32 %v5520, %v5591
        %v5626 = vmul.f32 %v5525, %v5595
        %v5627 = vmul.f32 %v5530, %v5599
        %v5628 = vmul.f32 %v5535, %v5603
        %v5629 = vmul.f32 %v5540, %v5607
        %v5630 = vmul.f32 %v5545, %v5611
        %v5631 = vmul.f32 %v5550, %v5615
        %v5632 = vsub.f32 %v5181, %v5616
        %v5633 = vsub.f32 %v5182, %v5617
        %v5634 = vsub.f32 %v5183, %v5618
        %v5635 = vsub.f32 %v5184, %v5619
        %v5636 = vsub.f32 %v5185, %v5620
        %v5637 = vsub.f32 %v5186, %v5621
        %v5638 = vsub.f32 %v5187, %v5622
        %v5639 = vsub.f32 %v5188, %v5623
        %v5640 = vsub.f32 %v5189, %v5624
        %v5641 = vsub.f32 %v5190, %v5625
        %v5642 = vsub.f32 %v5191, %v5626
        %v5643 = vsub.f32 %v5192, %v5627
        %v5644 = vsub.f32 %v5193, %v5628
        %v5645 = vsub.f32 %v5194, %v5629
        %v5646 = vsub.f32 %v5195, %v5630
        %v5647 = vsub.f32 %v5196, %v5631
        %v5648 = vsel %vm5455, %v5555, %v5632
        %v5649 = vsel %vm5455, %v5559, %v5633
        %v5650 = vsel %vm5455, %v5563, %v5634
        %v5651 = vsel %vm5455, %v5567, %v5635
        %v5652 = vsel %vm5455, %v5571, %v5636
        %v5653 = vsel %vm5455, %v5575, %v5637
        %v5654 = vsel %vm5455, %v5579, %v5638
        %v5655 = vsel %vm5455, %v5583, %v5639
        %v5656 = vsel %vm5455, %v5587, %v5640
        %v5657 = vsel %vm5455, %v5591, %v5641
        %v5658 = vsel %vm5455, %v5595, %v5642
        %v5659 = vsel %vm5455, %v5599, %v5643
        %v5660 = vsel %vm5455, %v5603, %v5644
        %v5661 = vsel %vm5455, %v5607, %v5645
        %v5662 = vsel %vm5455, %v5611, %v5646
        %v5663 = vsel %vm5455, %v5615, %v5647
        %v5664 = vlaneseq
        %v5665 = vshrl.u32 %v5664, 7
        %v5666 = vsub.s32 6, %v5665
        %v5667 = vrot.slane %v5437, %v5666
        %v5668 = vlaneseq
        %v5669 = vshrl.u32 %v5668, 7
        %v5670 = vsub.s32 6, %v5669
        %v5671 = vrot.slane %v5438, %v5670
        %v5672 = vlaneseq
        %v5673 = vshrl.u32 %v5672, 7
        %v5674 = vsub.s32 6, %v5673
        %v5675 = vrot.slane %v5439, %v5674
        %v5676 = vlaneseq
        %v5677 = vshrl.u32 %v5676, 7
        %v5678 = vsub.s32 6, %v5677
        %v5679 = vrot.slane %v5440, %v5678
        %v5680 = vlaneseq
        %v5681 = vshrl.u32 %v5680, 7
        %v5682 = vsub.s32 6, %v5681
        %v5683 = vrot.slane %v5441, %v5682
        %v5684 = vlaneseq
        %v5685 = vshrl.u32 %v5684, 7
        %v5686 = vsub.s32 6, %v5685
        %v5687 = vrot.slane %v5442, %v5686
        %v5688 = vlaneseq
        %v5689 = vshrl.u32 %v5688, 7
        %v5690 = vsub.s32 6, %v5689
        %v5691 = vrot.slane %v5443, %v5690
        %v5692 = vlaneseq
        %v5693 = vshrl.u32 %v5692, 7
        %v5694 = vsub.s32 6, %v5693
        %v5695 = vrot.slane %v5444, %v5694
        %v5696 = vlaneseq
        %v5697 = vshrl.u32 %v5696, 7
        %v5698 = vsub.s32 6, %v5697
        %v5699 = vrot.slane %v5445, %v5698
        %v5700 = vlaneseq
        %v5701 = vshrl.u32 %v5700, 7
        %v5702 = vsub.s32 6, %v5701
        %v5703 = vrot.slane %v5446, %v5702
        %v5704 = vlaneseq
        %v5705 = vshrl.u32 %v5704, 7
        %v5706 = vsub.s32 6, %v5705
        %v5707 = vrot.slane %v5447, %v5706
        %v5708 = vlaneseq
        %v5709 = vshrl.u32 %v5708, 7
        %v5710 = vsub.s32 6, %v5709
        %v5711 = vrot.slane %v5448, %v5710
        %v5712 = vlaneseq
        %v5713 = vshrl.u32 %v5712, 7
        %v5714 = vsub.s32 6, %v5713
        %v5715 = vrot.slane %v5449, %v5714
        %v5716 = vlaneseq
        %v5717 = vshrl.u32 %v5716, 7
        %v5718 = vsub.s32 6, %v5717
        %v5719 = vrot.slane %v5450, %v5718
        %v5720 = vlaneseq
        %v5721 = vshrl.u32 %v5720, 7
        %v5722 = vsub.s32 6, %v5721
        %v5723 = vrot.slane %v5451, %v5722
        %v5724 = vlaneseq
        %v5725 = vshrl.u32 %v5724, 7
        %v5726 = vsub.s32 6, %v5725
        %v5727 = vrot.slane %v5452, %v5726
        %v5728 = vmul.f32 %v5475, %v5667
        %v5729 = vmul.f32 %v5480, %v5671
        %v5730 = vmul.f32 %v5485, %v5675
        %v5731 = vmul.f32 %v5490, %v5679
        %v5732 = vmul.f32 %v5495, %v5683
        %v5733 = vmul.f32 %v5500, %v5687
        %v5734 = vmul.f32 %v5505, %v5691
        %v5735 = vmul.f32 %v5510, %v5695
        %v5736 = vmul.f32 %v5515, %v5699
        %v5737 = vmul.f32 %v5520, %v5703
        %v5738 = vmul.f32 %v5525, %v5707
        %v5739 = vmul.f32 %v5530, %v5711
        %v5740 = vmul.f32 %v5535, %v5715
        %v5741 = vmul.f32 %v5540, %v5719
        %v5742 = vmul.f32 %v5545, %v5723
        %v5743 = vmul.f32 %v5550, %v5727
        %v5744 = vsub.f32 %v5293, %v5728
        %v5745 = vsub.f32 %v5294, %v5729
        %v5746 = vsub.f32 %v5295, %v5730
        %v5747 = vsub.f32 %v5296, %v5731
        %v5748 = vsub.f32 %v5297, %v5732
        %v5749 = vsub.f32 %v5298, %v5733
        %v5750 = vsub.f32 %v5299, %v5734
        %v5751 = vsub.f32 %v5300, %v5735
        %v5752 = vsub.f32 %v5301, %v5736
        %v5753 = vsub.f32 %v5302, %v5737
        %v5754 = vsub.f32 %v5303, %v5738
        %v5755 = vsub.f32 %v5304, %v5739
        %v5756 = vsub.f32 %v5305, %v5740
        %v5757 = vsub.f32 %v5306, %v5741
        %v5758 = vsub.f32 %v5307, %v5742
        %v5759 = vsub.f32 %v5308, %v5743
        %v5760 = vsel %vm5455, %v5667, %v5744
        %v5761 = vsel %vm5455, %v5671, %v5745
        %v5762 = vsel %vm5455, %v5675, %v5746
        %v5763 = vsel %vm5455, %v5679, %v5747
        %v5764 = vsel %vm5455, %v5683, %v5748
        %v5765 = vsel %vm5455, %v5687, %v5749
        %v5766 = vsel %vm5455, %v5691, %v5750
        %v5767 = vsel %vm5455, %v5695, %v5751
        %v5768 = vsel %vm5455, %v5699, %v5752
        %v5769 = vsel %vm5455, %v5703, %v5753
        %v5770 = vsel %vm5455, %v5707, %v5754
        %v5771 = vsel %vm5455, %v5711, %v5755
        %v5772 = vsel %vm5455, %v5715, %v5756
        %v5773 = vsel %vm5455, %v5719, %v5757
        %v5774 = vsel %vm5455, %v5723, %v5758
        %v5775 = vsel %vm5455, %v5727, %v5759
        %v5776 = vrcp.pop %v5648
        %v5777 = vmul.f32 1.0, %v5776
        %v5778 = vrcp.pop %v5649
        %v5779 = vmul.f32 1.0, %v5778
        %v5780 = vrcp.pop %v5650
        %v5781 = vmul.f32 1.0, %v5780
        %v5782 = vrcp.pop %v5651
        %v5783 = vmul.f32 1.0, %v5782
        %v5784 = vrcp.pop %v5652
        %v5785 = vmul.f32 1.0, %v5784
        %v5786 = vrcp.pop %v5653
        %v5787 = vmul.f32 1.0, %v5786
        %v5788 = vrcp.pop %v5654
        %v5789 = vmul.f32 1.0, %v5788
        %v5790 = vrcp.pop %v5655
        %v5791 = vmul.f32 1.0, %v5790
        %v5792 = vrcp.pop %v5656
        %v5793 = vmul.f32 1.0, %v5792
        %v5794 = vrcp.pop %v5657
        %v5795 = vmul.f32 1.0, %v5794
        %v5796 = vrcp.pop %v5658
        %v5797 = vmul.f32 1.0, %v5796
        %v5798 = vrcp.pop %v5659
        %v5799 = vmul.f32 1.0, %v5798
        %v5800 = vrcp.pop %v5660
        %v5801 = vmul.f32 1.0, %v5800
        %v5802 = vrcp.pop %v5661
        %v5803 = vmul.f32 1.0, %v5802
        %v5804 = vrcp.pop %v5662
        %v5805 = vmul.f32 1.0, %v5804
        %v5806 = vrcp.pop %v5663
        %v5807 = vmul.f32 1.0, %v5806
        %5809 = vset.pattern.permute.xlu0 7
        %5810 = vperm.xlu0 %5809, %v5777
        %v5811 = vpop.permute.xlu0 %5810
        %5814 = vset.pattern.permute.xlu0 7
        %5815 = vperm.xlu0 %5814, %v5779
        %v5816 = vpop.permute.xlu0 %5815
        %5819 = vset.pattern.permute.xlu0 7
        %5820 = vperm.xlu0 %5819, %v5781
        %v5821 = vpop.permute.xlu0 %5820
        %5824 = vset.pattern.permute.xlu0 7
        %5825 = vperm.xlu0 %5824, %v5783
        %v5826 = vpop.permute.xlu0 %5825
        %5829 = vset.pattern.permute.xlu0 7
        %5830 = vperm.xlu0 %5829, %v5785
        %v5831 = vpop.permute.xlu0 %5830
        %5834 = vset.pattern.permute.xlu0 7
        %5835 = vperm.xlu0 %5834, %v5787
        %v5836 = vpop.permute.xlu0 %5835
        %5839 = vset.pattern.permute.xlu0 7
        %5840 = vperm.xlu0 %5839, %v5789
        %v5841 = vpop.permute.xlu0 %5840
        %5844 = vset.pattern.permute.xlu0 7
        %5845 = vperm.xlu0 %5844, %v5791
        %v5846 = vpop.permute.xlu0 %5845
        %5849 = vset.pattern.permute.xlu0 7
        %5850 = vperm.xlu0 %5849, %v5793
        %v5851 = vpop.permute.xlu0 %5850
        %5854 = vset.pattern.permute.xlu0 7
        %5855 = vperm.xlu0 %5854, %v5795
        %v5856 = vpop.permute.xlu0 %5855
        %5859 = vset.pattern.permute.xlu0 7
        %5860 = vperm.xlu0 %5859, %v5797
        %v5861 = vpop.permute.xlu0 %5860
        %5864 = vset.pattern.permute.xlu0 7
        %5865 = vperm.xlu0 %5864, %v5799
        %v5866 = vpop.permute.xlu0 %5865
        %5869 = vset.pattern.permute.xlu0 7
        %5870 = vperm.xlu0 %5869, %v5801
        %v5871 = vpop.permute.xlu0 %5870
        %5874 = vset.pattern.permute.xlu0 7
        %5875 = vperm.xlu0 %5874, %v5803
        %v5876 = vpop.permute.xlu0 %5875
        %5879 = vset.pattern.permute.xlu0 7
        %5880 = vperm.xlu0 %5879, %v5805
        %v5881 = vpop.permute.xlu0 %5880
        %5884 = vset.pattern.permute.xlu0 7
        %5885 = vperm.xlu0 %5884, %v5807
        %v5886 = vpop.permute.xlu0 %5885
        %v5888 = vmul.f32 %v5760, %v5811
        %v5889 = vmul.f32 %v5761, %v5816
        %v5890 = vmul.f32 %v5762, %v5821
        %v5891 = vmul.f32 %v5763, %v5826
        %v5892 = vmul.f32 %v5764, %v5831
        %v5893 = vmul.f32 %v5765, %v5836
        %v5894 = vmul.f32 %v5766, %v5841
        %v5895 = vmul.f32 %v5767, %v5846
        %v5896 = vmul.f32 %v5768, %v5851
        %v5897 = vmul.f32 %v5769, %v5856
        %v5898 = vmul.f32 %v5770, %v5861
        %v5899 = vmul.f32 %v5771, %v5866
        %v5900 = vmul.f32 %v5772, %v5871
        %v5901 = vmul.f32 %v5773, %v5876
        %v5902 = vmul.f32 %v5774, %v5881
        %v5903 = vmul.f32 %v5775, %v5886
        %vm5904 = vcmp.eq.s32.totalorder %v539, 7
        %v5905 = vsel %vm5904, 1, 0
        %vm5906 = vcmp.eq.s32.totalorder %v5905, 1
        %v5907 = vsel %vm5906, 0.0, %v5648
        %v5908 = vsel %vm5906, 0.0, %v5649
        %v5909 = vsel %vm5906, 0.0, %v5650
        %v5910 = vsel %vm5906, 0.0, %v5651
        %v5911 = vsel %vm5906, 0.0, %v5652
        %v5912 = vsel %vm5906, 0.0, %v5653
        %v5913 = vsel %vm5906, 0.0, %v5654
        %v5914 = vsel %vm5906, 0.0, %v5655
        %v5915 = vsel %vm5906, 0.0, %v5656
        %v5916 = vsel %vm5906, 0.0, %v5657
        %v5917 = vsel %vm5906, 0.0, %v5658
        %v5918 = vsel %vm5906, 0.0, %v5659
        %v5919 = vsel %vm5906, 0.0, %v5660
        %v5920 = vsel %vm5906, 0.0, %v5661
        %v5921 = vsel %vm5906, 0.0, %v5662
        %v5922 = vsel %vm5906, 0.0, %v5663
        %5924 = vset.pattern.permute.xlu0 7
        %5925 = vperm.xlu0 %5924, %v5907
        %v5926 = vpop.permute.xlu0 %5925
        %5929 = vset.pattern.permute.xlu0 7
        %5930 = vperm.xlu0 %5929, %v5908
        %v5931 = vpop.permute.xlu0 %5930
        %5934 = vset.pattern.permute.xlu0 7
        %5935 = vperm.xlu0 %5934, %v5909
        %v5936 = vpop.permute.xlu0 %5935
        %5939 = vset.pattern.permute.xlu0 7
        %5940 = vperm.xlu0 %5939, %v5910
        %v5941 = vpop.permute.xlu0 %5940
        %5944 = vset.pattern.permute.xlu0 7
        %5945 = vperm.xlu0 %5944, %v5911
        %v5946 = vpop.permute.xlu0 %5945
        %5949 = vset.pattern.permute.xlu0 7
        %5950 = vperm.xlu0 %5949, %v5912
        %v5951 = vpop.permute.xlu0 %5950
        %5954 = vset.pattern.permute.xlu0 7
        %5955 = vperm.xlu0 %5954, %v5913
        %v5956 = vpop.permute.xlu0 %5955
        %5959 = vset.pattern.permute.xlu0 7
        %5960 = vperm.xlu0 %5959, %v5914
        %v5961 = vpop.permute.xlu0 %5960
        %5964 = vset.pattern.permute.xlu0 7
        %5965 = vperm.xlu0 %5964, %v5915
        %v5966 = vpop.permute.xlu0 %5965
        %5969 = vset.pattern.permute.xlu0 7
        %5970 = vperm.xlu0 %5969, %v5916
        %v5971 = vpop.permute.xlu0 %5970
        %5974 = vset.pattern.permute.xlu0 7
        %5975 = vperm.xlu0 %5974, %v5917
        %v5976 = vpop.permute.xlu0 %5975
        %5979 = vset.pattern.permute.xlu0 7
        %5980 = vperm.xlu0 %5979, %v5918
        %v5981 = vpop.permute.xlu0 %5980
        %5984 = vset.pattern.permute.xlu0 7
        %5985 = vperm.xlu0 %5984, %v5919
        %v5986 = vpop.permute.xlu0 %5985
        %5989 = vset.pattern.permute.xlu0 7
        %5990 = vperm.xlu0 %5989, %v5920
        %v5991 = vpop.permute.xlu0 %5990
        %5994 = vset.pattern.permute.xlu0 7
        %5995 = vperm.xlu0 %5994, %v5921
        %v5996 = vpop.permute.xlu0 %5995
        %5999 = vset.pattern.permute.xlu0 7
        %6000 = vperm.xlu0 %5999, %v5922
        %v6001 = vpop.permute.xlu0 %6000
        %v6003 = vlaneseq
        %v6004 = vshrl.u32 %v6003, 7
        %v6005 = vsub.s32 7, %v6004
        %v6006 = vrot.slane %v5888, %v6005
        %v6007 = vlaneseq
        %v6008 = vshrl.u32 %v6007, 7
        %v6009 = vsub.s32 7, %v6008
        %v6010 = vrot.slane %v5889, %v6009
        %v6011 = vlaneseq
        %v6012 = vshrl.u32 %v6011, 7
        %v6013 = vsub.s32 7, %v6012
        %v6014 = vrot.slane %v5890, %v6013
        %v6015 = vlaneseq
        %v6016 = vshrl.u32 %v6015, 7
        %v6017 = vsub.s32 7, %v6016
        %v6018 = vrot.slane %v5891, %v6017
        %v6019 = vlaneseq
        %v6020 = vshrl.u32 %v6019, 7
        %v6021 = vsub.s32 7, %v6020
        %v6022 = vrot.slane %v5892, %v6021
        %v6023 = vlaneseq
        %v6024 = vshrl.u32 %v6023, 7
        %v6025 = vsub.s32 7, %v6024
        %v6026 = vrot.slane %v5893, %v6025
        %v6027 = vlaneseq
        %v6028 = vshrl.u32 %v6027, 7
        %v6029 = vsub.s32 7, %v6028
        %v6030 = vrot.slane %v5894, %v6029
        %v6031 = vlaneseq
        %v6032 = vshrl.u32 %v6031, 7
        %v6033 = vsub.s32 7, %v6032
        %v6034 = vrot.slane %v5895, %v6033
        %v6035 = vlaneseq
        %v6036 = vshrl.u32 %v6035, 7
        %v6037 = vsub.s32 7, %v6036
        %v6038 = vrot.slane %v5896, %v6037
        %v6039 = vlaneseq
        %v6040 = vshrl.u32 %v6039, 7
        %v6041 = vsub.s32 7, %v6040
        %v6042 = vrot.slane %v5897, %v6041
        %v6043 = vlaneseq
        %v6044 = vshrl.u32 %v6043, 7
        %v6045 = vsub.s32 7, %v6044
        %v6046 = vrot.slane %v5898, %v6045
        %v6047 = vlaneseq
        %v6048 = vshrl.u32 %v6047, 7
        %v6049 = vsub.s32 7, %v6048
        %v6050 = vrot.slane %v5899, %v6049
        %v6051 = vlaneseq
        %v6052 = vshrl.u32 %v6051, 7
        %v6053 = vsub.s32 7, %v6052
        %v6054 = vrot.slane %v5900, %v6053
        %v6055 = vlaneseq
        %v6056 = vshrl.u32 %v6055, 7
        %v6057 = vsub.s32 7, %v6056
        %v6058 = vrot.slane %v5901, %v6057
        %v6059 = vlaneseq
        %v6060 = vshrl.u32 %v6059, 7
        %v6061 = vsub.s32 7, %v6060
        %v6062 = vrot.slane %v5902, %v6061
        %v6063 = vlaneseq
        %v6064 = vshrl.u32 %v6063, 7
        %v6065 = vsub.s32 7, %v6064
        %v6066 = vrot.slane %v5903, %v6065
        %v6067 = vmul.f32 %v5926, %v6006
        %v6068 = vmul.f32 %v5931, %v6010
        %v6069 = vmul.f32 %v5936, %v6014
        %v6070 = vmul.f32 %v5941, %v6018
        %v6071 = vmul.f32 %v5946, %v6022
        %v6072 = vmul.f32 %v5951, %v6026
        %v6073 = vmul.f32 %v5956, %v6030
        %v6074 = vmul.f32 %v5961, %v6034
        %v6075 = vmul.f32 %v5966, %v6038
        %v6076 = vmul.f32 %v5971, %v6042
        %v6077 = vmul.f32 %v5976, %v6046
        %v6078 = vmul.f32 %v5981, %v6050
        %v6079 = vmul.f32 %v5986, %v6054
        %v6080 = vmul.f32 %v5991, %v6058
        %v6081 = vmul.f32 %v5996, %v6062
        %v6082 = vmul.f32 %v6001, %v6066
        %v6083 = vsub.f32 %v5760, %v6067
        %v6084 = vsub.f32 %v5761, %v6068
        %v6085 = vsub.f32 %v5762, %v6069
        %v6086 = vsub.f32 %v5763, %v6070
        %v6087 = vsub.f32 %v5764, %v6071
        %v6088 = vsub.f32 %v5765, %v6072
        %v6089 = vsub.f32 %v5766, %v6073
        %v6090 = vsub.f32 %v5767, %v6074
        %v6091 = vsub.f32 %v5768, %v6075
        %v6092 = vsub.f32 %v5769, %v6076
        %v6093 = vsub.f32 %v5770, %v6077
        %v6094 = vsub.f32 %v5771, %v6078
        %v6095 = vsub.f32 %v5772, %v6079
        %v6096 = vsub.f32 %v5773, %v6080
        %v6097 = vsub.f32 %v5774, %v6081
        %v6098 = vsub.f32 %v5775, %v6082
        %v6099 = vsel %vm5906, %v6006, %v6083
        %v6100 = vsel %vm5906, %v6010, %v6084
        %v6101 = vsel %vm5906, %v6014, %v6085
        %v6102 = vsel %vm5906, %v6018, %v6086
        %v6103 = vsel %vm5906, %v6022, %v6087
        %v6104 = vsel %vm5906, %v6026, %v6088
        %v6105 = vsel %vm5906, %v6030, %v6089
        %v6106 = vsel %vm5906, %v6034, %v6090
        %v6107 = vsel %vm5906, %v6038, %v6091
        %v6108 = vsel %vm5906, %v6042, %v6092
        %v6109 = vsel %vm5906, %v6046, %v6093
        %v6110 = vsel %vm5906, %v6050, %v6094
        %v6111 = vsel %vm5906, %v6054, %v6095
        %v6112 = vsel %vm5906, %v6058, %v6096
        %v6113 = vsel %vm5906, %v6062, %v6097
        %v6114 = vsel %vm5906, %v6066, %v6098
        %v6115 = vmul.f32 %v2214, %v6099
        %v6116 = vmul.f32 %v2215, %v6100
        %v6117 = vmul.f32 %v2216, %v6101
        %v6118 = vmul.f32 %v2217, %v6102
        %v6119 = vmul.f32 %v2218, %v6103
        %v6120 = vmul.f32 %v2219, %v6104
        %v6121 = vmul.f32 %v2220, %v6105
        %v6122 = vmul.f32 %v2221, %v6106
        %v6123 = vsel %vm2118, %v6099, 0.0
        %v6124 = vsel %vm2118, %v6100, 0.0
        %v6125 = vsel %vm2118, %v6101, 0.0
        %v6126 = vsel %vm2118, %v6102, 0.0
        %v6127 = vsel %vm2118, %v6103, 0.0
        %v6128 = vsel %vm2118, %v6104, 0.0
        %v6129 = vsel %vm2118, %v6105, 0.0
        %v6130 = vsel %vm2118, %v6106, 0.0
        %v6131 = vsel %vm2222, %v6123, 0.0
        %v6132 = vrot.slane %v6131, 4
        %v6133 = vadd.f32 %v6131, %v6132
        %v6134 = vrot.slane %v6133, 2
        %v6135 = vadd.f32 %v6133, %v6134
        %v6136 = vrot.slane %v6135, 1
        %v6137 = vadd.f32 %v6135, %v6136
        %v6138 = vsel %vm2222, %v6124, 0.0
        %v6139 = vrot.slane %v6138, 4
        %v6140 = vadd.f32 %v6138, %v6139
        %v6141 = vrot.slane %v6140, 2
        %v6142 = vadd.f32 %v6140, %v6141
        %v6143 = vrot.slane %v6142, 1
        %v6144 = vadd.f32 %v6142, %v6143
        %v6145 = vsel %vm2222, %v6125, 0.0
        %v6146 = vrot.slane %v6145, 4
        %v6147 = vadd.f32 %v6145, %v6146
        %v6148 = vrot.slane %v6147, 2
        %v6149 = vadd.f32 %v6147, %v6148
        %v6150 = vrot.slane %v6149, 1
        %v6151 = vadd.f32 %v6149, %v6150
        %v6152 = vsel %vm2222, %v6126, 0.0
        %v6153 = vrot.slane %v6152, 4
        %v6154 = vadd.f32 %v6152, %v6153
        %v6155 = vrot.slane %v6154, 2
        %v6156 = vadd.f32 %v6154, %v6155
        %v6157 = vrot.slane %v6156, 1
        %v6158 = vadd.f32 %v6156, %v6157
        %v6159 = vsel %vm2222, %v6127, 0.0
        %v6160 = vrot.slane %v6159, 4
        %v6161 = vadd.f32 %v6159, %v6160
        %v6162 = vrot.slane %v6161, 2
        %v6163 = vadd.f32 %v6161, %v6162
        %v6164 = vrot.slane %v6163, 1
        %v6165 = vadd.f32 %v6163, %v6164
        %v6166 = vsel %vm2222, %v6128, 0.0
        %v6167 = vrot.slane %v6166, 4
        %v6168 = vadd.f32 %v6166, %v6167
        %v6169 = vrot.slane %v6168, 2
        %v6170 = vadd.f32 %v6168, %v6169
        %v6171 = vrot.slane %v6170, 1
        %v6172 = vadd.f32 %v6170, %v6171
        %v6173 = vsel %vm2222, %v6129, 0.0
        %v6174 = vrot.slane %v6173, 4
        %v6175 = vadd.f32 %v6173, %v6174
        %v6176 = vrot.slane %v6175, 2
        %v6177 = vadd.f32 %v6175, %v6176
        %v6178 = vrot.slane %v6177, 1
        %v6179 = vadd.f32 %v6177, %v6178
        %v6180 = vsel %vm2222, %v6130, 0.0
        %v6181 = vrot.slane %v6180, 4
        %v6182 = vadd.f32 %v6180, %v6181
        %v6183 = vrot.slane %v6182, 2
        %v6184 = vadd.f32 %v6182, %v6183
        %v6185 = vrot.slane %v6184, 1
        %v6186 = vadd.f32 %v6184, %v6185
        %6187 = vadd.xlane.f32.xlu0 %v6131
        %v6188 = vpop.xlane.xlu0 %6187
        %6189 = vadd.xlane.f32.xlu0 %v6138
        %v6190 = vpop.xlane.xlu0 %6189
        %6191 = vadd.xlane.f32.xlu0 %v6145
        %v6192 = vpop.xlane.xlu0 %6191
        %6193 = vadd.xlane.f32.xlu0 %v6152
        %v6194 = vpop.xlane.xlu0 %6193
        %6195 = vadd.xlane.f32.xlu0 %v6159
        %v6196 = vpop.xlane.xlu0 %6195
        %6197 = vadd.xlane.f32.xlu0 %v6166
        %v6198 = vpop.xlane.xlu0 %6197
        %6199 = vadd.xlane.f32.xlu0 %v6173
        %v6200 = vpop.xlane.xlu0 %6199
        %6201 = vadd.xlane.f32.xlu0 %v6180
        %v6202 = vpop.xlane.xlu0 %6201
        %v6203 = vmul.f32 %v2119, %v6137
        %v6204 = vmul.f32 %v2120, %v6144
        %v6205 = vmul.f32 %v2121, %v6151
        %v6206 = vmul.f32 %v2122, %v6158
        %v6207 = vmul.f32 %v2123, %v6165
        %v6208 = vmul.f32 %v2124, %v6172
        %v6209 = vmul.f32 %v2125, %v6179
        %v6210 = vmul.f32 %v2126, %v6186
        %v6211 = vsel %vm2476, 0.0, %v6203
        %v6212 = vsel %vm2476, 0.0, %v6204
        %v6213 = vsel %vm2476, 0.0, %v6205
        %v6214 = vsel %vm2476, 0.0, %v6206
        %v6215 = vsel %vm2476, 0.0, %v6207
        %v6216 = vsel %vm2476, 0.0, %v6208
        %v6217 = vsel %vm2476, 0.0, %v6209
        %v6218 = vsel %vm2476, 0.0, %v6210
        %v6219 = vmul.f32 %v2119, %v6107
        %v6220 = vmul.f32 %v2120, %v6108
        %v6221 = vmul.f32 %v2121, %v6109
        %v6222 = vmul.f32 %v2122, %v6110
        %v6223 = vmul.f32 %v2123, %v6111
        %v6224 = vmul.f32 %v2124, %v6112
        %v6225 = vmul.f32 %v2125, %v6113
        %v6226 = vmul.f32 %v2126, %v6114
        %v6227 = vsel %vm2425, 0.0, %v6219
        %v6228 = vsel %vm2425, 0.0, %v6220
        %v6229 = vsel %vm2425, 0.0, %v6221
        %v6230 = vsel %vm2425, 0.0, %v6222
        %v6231 = vsel %vm2425, 0.0, %v6223
        %v6232 = vsel %vm2425, 0.0, %v6224
        %v6233 = vsel %vm2425, 0.0, %v6225
        %v6234 = vsel %vm2425, 0.0, %v6226
        %v6235 = vsub.f32 %v6211, %v6227
        %v6236 = vsub.f32 %v6212, %v6228
        %v6237 = vsub.f32 %v6213, %v6229
        %v6238 = vsub.f32 %v6214, %v6230
        %v6239 = vsub.f32 %v6215, %v6231
        %v6240 = vsub.f32 %v6216, %v6232
        %v6241 = vsub.f32 %v6217, %v6233
        %v6242 = vsub.f32 %v6218, %v6234
        %v6243 = vmul.f32 %v2151, %v6188
        %v6244 = vmul.f32 %v2152, %v6190
        %v6245 = vmul.f32 %v2153, %v6192
        %v6246 = vmul.f32 %v2154, %v6194
        %v6247 = vmul.f32 %v2155, %v6196
        %v6248 = vmul.f32 %v2156, %v6198
        %v6249 = vmul.f32 %v2157, %v6200
        %v6250 = vmul.f32 %v2158, %v6202
        %v6251 = vsel %vm2425, 0.0, %v6243
        %v6252 = vsel %vm2425, 0.0, %v6244
        %v6253 = vsel %vm2425, 0.0, %v6245
        %v6254 = vsel %vm2425, 0.0, %v6246
        %v6255 = vsel %vm2425, 0.0, %v6247
        %v6256 = vsel %vm2425, 0.0, %v6248
        %v6257 = vsel %vm2425, 0.0, %v6249
        %v6258 = vsel %vm2425, 0.0, %v6250
        %v6259 = vmul.f32 %v2151, %v6099
        %v6260 = vmul.f32 %v2152, %v6100
        %v6261 = vmul.f32 %v2153, %v6101
        %v6262 = vmul.f32 %v2154, %v6102
        %v6263 = vmul.f32 %v2155, %v6103
        %v6264 = vmul.f32 %v2156, %v6104
        %v6265 = vmul.f32 %v2157, %v6105
        %v6266 = vmul.f32 %v2158, %v6106
        %v6267 = vsel %vm2476, 0.0, %v6259
        %v6268 = vsel %vm2476, 0.0, %v6260
        %v6269 = vsel %vm2476, 0.0, %v6261
        %v6270 = vsel %vm2476, 0.0, %v6262
        %v6271 = vsel %vm2476, 0.0, %v6263
        %v6272 = vsel %vm2476, 0.0, %v6264
        %v6273 = vsel %vm2476, 0.0, %v6265
        %v6274 = vsel %vm2476, 0.0, %v6266
        %v6275 = vsub.f32 %v6251, %v6267
        %v6276 = vsub.f32 %v6252, %v6268
        %v6277 = vsub.f32 %v6253, %v6269
        %v6278 = vsub.f32 %v6254, %v6270
        %v6279 = vsub.f32 %v6255, %v6271
        %v6280 = vsub.f32 %v6256, %v6272
        %v6281 = vsub.f32 %v6257, %v6273
        %v6282 = vsub.f32 %v6258, %v6274
        %v6284 = vsel %vm2222, %v6235, 0
        %6286 = vmatprep.subr.mxu0 0.0
        %6287 = vmatpush1.msra.mxu0 0.0
        %6288 = vmatprep.subr.mxu0 0.0
        %6289 = vmatpush1.msra.mxu0 0.0
        %6290 = vmatprep.subr.mxu0 0.0
        %6291 = vmatpush1.msra.mxu0 0.0
        %6292 = vmatprep.subr.mxu0 0.0
        %6293 = vmatpush1.msra.mxu0 0.0
        %6294 = vmatprep.subr.mxu0 0.0
        %6295 = vmatpush1.msra.mxu0 0.0
        %6296 = vmatprep.subr.mxu0 0.0
        %6297 = vmatpush1.msra.mxu0 0.0
        %6298 = vmatprep.subr.mxu0 0.0
        %6299 = vmatpush1.msra.mxu0 0.0
        %6300 = vmatprep.subr.mxu0 0.0
        %6301 = vmatpush1.msra.mxu0 0.0
        %6302 = vmatprep.subr.mxu0 0.0
        %6303 = vmatpush1.msra.mxu0 0.0
        %6304 = vmatprep.subr.mxu0 0.0
        %6305 = vmatpush1.msra.mxu0 0.0
        %6306 = vmatprep.subr.mxu0 0.0
        %6307 = vmatpush1.msra.mxu0 0.0
        %6308 = vmatprep.subr.mxu0 0.0
        %6309 = vmatpush1.msra.mxu0 0.0
        %6310 = vmatprep.subr.mxu0 0.0
        %6311 = vmatpush1.msra.mxu0 0.0
        %6312 = vmatprep.subr.mxu0 0.0
        %6313 = vmatpush1.msra.mxu0 0.0
        %6314 = vmatprep.subr.mxu0 0.0
        %6315 = vmatpush1.msra.mxu0 0.0
        %6316 = vmatprep.subr.mxu0 0.0
        %6317 = vmatpush1.msra.mxu0 %v506
        %6318 = vmatprep.subr.mxu0 0.0
        %6319 = vmatpush2.msra.mxu0 0.0
        %6320 = vmatprep.subr.mxu0 0.0
        %6321 = vmatpush2.msra.mxu0 0.0
        %6322 = vmatprep.subr.mxu0 0.0
        %6323 = vmatpush2.msra.mxu0 0.0
        %6324 = vmatprep.subr.mxu0 0.0
        %6325 = vmatpush2.msra.mxu0 0.0
        %6326 = vmatprep.subr.mxu0 0.0
        %6327 = vmatpush2.msra.mxu0 0.0
        %6328 = vmatprep.subr.mxu0 0.0
        %6329 = vmatpush2.msra.mxu0 0.0
        %6330 = vmatprep.subr.mxu0 0.0
        %6331 = vmatpush2.msra.mxu0 0.0
        %6332 = vmatprep.subr.mxu0 0.0
        %6333 = vmatpush2.msra.mxu0 0.0
        %6334 = vmatprep.subr.mxu0 0.0
        %6335 = vmatpush2.msra.mxu0 0.0
        %6336 = vmatprep.subr.mxu0 0.0
        %6337 = vmatpush2.msra.mxu0 0.0
        %6338 = vmatprep.subr.mxu0 0.0
        %6339 = vmatpush2.msra.mxu0 0.0
        %6340 = vmatprep.subr.mxu0 0.0
        %6341 = vmatpush2.msra.mxu0 0.0
        %6342 = vmatprep.subr.mxu0 0.0
        %6343 = vmatpush2.msra.mxu0 0.0
        %6344 = vmatprep.subr.mxu0 0.0
        %6345 = vmatpush2.msra.mxu0 0.0
        %6346 = vmatprep.subr.mxu0 0.0
        %6347 = vmatpush2.msra.mxu0 0.0
        %6348 = vmatprep.subr.mxu0 0.0
        %6349 = vmatpush2.msra.mxu0 0.0
        %6350 = vmatprep.mubr.f32.mxu0 0.0
        %6351 = vmatmul.mubr.f32.gmra.mxu0 %v6284
        %v6352 = vpop.f32.mrf.mxu0
        %v6353 = vadd.f32 0.0, %v6352
        %v6354 = vpop.f32.mrf.mxu0
        %6355 = vdwg.mxu0
        %v6357 = vsel %vm2222, %v6236, 0
        %6359 = vmatprep.subr.mxu0 0.0
        %6360 = vmatpush1.msra.mxu0 0.0
        %6361 = vmatprep.subr.mxu0 0.0
        %6362 = vmatpush1.msra.mxu0 0.0
        %6363 = vmatprep.subr.mxu0 0.0
        %6364 = vmatpush1.msra.mxu0 0.0
        %6365 = vmatprep.subr.mxu0 0.0
        %6366 = vmatpush1.msra.mxu0 0.0
        %6367 = vmatprep.subr.mxu0 0.0
        %6368 = vmatpush1.msra.mxu0 0.0
        %6369 = vmatprep.subr.mxu0 0.0
        %6370 = vmatpush1.msra.mxu0 0.0
        %6371 = vmatprep.subr.mxu0 0.0
        %6372 = vmatpush1.msra.mxu0 0.0
        %6373 = vmatprep.subr.mxu0 0.0
        %6374 = vmatpush1.msra.mxu0 0.0
        %6375 = vmatprep.subr.mxu0 0.0
        %6376 = vmatpush1.msra.mxu0 0.0
        %6377 = vmatprep.subr.mxu0 0.0
        %6378 = vmatpush1.msra.mxu0 0.0
        %6379 = vmatprep.subr.mxu0 0.0
        %6380 = vmatpush1.msra.mxu0 0.0
        %6381 = vmatprep.subr.mxu0 0.0
        %6382 = vmatpush1.msra.mxu0 0.0
        %6383 = vmatprep.subr.mxu0 0.0
        %6384 = vmatpush1.msra.mxu0 0.0
        %6385 = vmatprep.subr.mxu0 0.0
        %6386 = vmatpush1.msra.mxu0 0.0
        %6387 = vmatprep.subr.mxu0 0.0
        %6388 = vmatpush1.msra.mxu0 0.0
        %6389 = vmatprep.subr.mxu0 0.0
        %6390 = vmatpush1.msra.mxu0 %v507
        %6391 = vmatprep.subr.mxu0 0.0
        %6392 = vmatpush2.msra.mxu0 0.0
        %6393 = vmatprep.subr.mxu0 0.0
        %6394 = vmatpush2.msra.mxu0 0.0
        %6395 = vmatprep.subr.mxu0 0.0
        %6396 = vmatpush2.msra.mxu0 0.0
        %6397 = vmatprep.subr.mxu0 0.0
        %6398 = vmatpush2.msra.mxu0 0.0
        %6399 = vmatprep.subr.mxu0 0.0
        %6400 = vmatpush2.msra.mxu0 0.0
        %6401 = vmatprep.subr.mxu0 0.0
        %6402 = vmatpush2.msra.mxu0 0.0
        %6403 = vmatprep.subr.mxu0 0.0
        %6404 = vmatpush2.msra.mxu0 0.0
        %6405 = vmatprep.subr.mxu0 0.0
        %6406 = vmatpush2.msra.mxu0 0.0
        %6407 = vmatprep.subr.mxu0 0.0
        %6408 = vmatpush2.msra.mxu0 0.0
        %6409 = vmatprep.subr.mxu0 0.0
        %6410 = vmatpush2.msra.mxu0 0.0
        %6411 = vmatprep.subr.mxu0 0.0
        %6412 = vmatpush2.msra.mxu0 0.0
        %6413 = vmatprep.subr.mxu0 0.0
        %6414 = vmatpush2.msra.mxu0 0.0
        %6415 = vmatprep.subr.mxu0 0.0
        %6416 = vmatpush2.msra.mxu0 0.0
        %6417 = vmatprep.subr.mxu0 0.0
        %6418 = vmatpush2.msra.mxu0 0.0
        %6419 = vmatprep.subr.mxu0 0.0
        %6420 = vmatpush2.msra.mxu0 0.0
        %6421 = vmatprep.subr.mxu0 0.0
        %6422 = vmatpush2.msra.mxu0 0.0
        %6423 = vmatprep.mubr.f32.mxu0 0.0
        %6424 = vmatmul.mubr.f32.gmra.mxu0 %v6357
        %v6425 = vpop.f32.mrf.mxu0
        %v6426 = vadd.f32 0.0, %v6425
        %v6427 = vpop.f32.mrf.mxu0
        %6428 = vdwg.mxu0
        %v6430 = vsel %vm2222, %v6237, 0
        %6432 = vmatprep.subr.mxu0 0.0
        %6433 = vmatpush1.msra.mxu0 0.0
        %6434 = vmatprep.subr.mxu0 0.0
        %6435 = vmatpush1.msra.mxu0 0.0
        %6436 = vmatprep.subr.mxu0 0.0
        %6437 = vmatpush1.msra.mxu0 0.0
        %6438 = vmatprep.subr.mxu0 0.0
        %6439 = vmatpush1.msra.mxu0 0.0
        %6440 = vmatprep.subr.mxu0 0.0
        %6441 = vmatpush1.msra.mxu0 0.0
        %6442 = vmatprep.subr.mxu0 0.0
        %6443 = vmatpush1.msra.mxu0 0.0
        %6444 = vmatprep.subr.mxu0 0.0
        %6445 = vmatpush1.msra.mxu0 0.0
        %6446 = vmatprep.subr.mxu0 0.0
        %6447 = vmatpush1.msra.mxu0 0.0
        %6448 = vmatprep.subr.mxu0 0.0
        %6449 = vmatpush1.msra.mxu0 0.0
        %6450 = vmatprep.subr.mxu0 0.0
        %6451 = vmatpush1.msra.mxu0 0.0
        %6452 = vmatprep.subr.mxu0 0.0
        %6453 = vmatpush1.msra.mxu0 0.0
        %6454 = vmatprep.subr.mxu0 0.0
        %6455 = vmatpush1.msra.mxu0 0.0
        %6456 = vmatprep.subr.mxu0 0.0
        %6457 = vmatpush1.msra.mxu0 0.0
        %6458 = vmatprep.subr.mxu0 0.0
        %6459 = vmatpush1.msra.mxu0 0.0
        %6460 = vmatprep.subr.mxu0 0.0
        %6461 = vmatpush1.msra.mxu0 0.0
        %6462 = vmatprep.subr.mxu0 0.0
        %6463 = vmatpush1.msra.mxu0 %v508
        %6464 = vmatprep.subr.mxu0 0.0
        %6465 = vmatpush2.msra.mxu0 0.0
        %6466 = vmatprep.subr.mxu0 0.0
        %6467 = vmatpush2.msra.mxu0 0.0
        %6468 = vmatprep.subr.mxu0 0.0
        %6469 = vmatpush2.msra.mxu0 0.0
        %6470 = vmatprep.subr.mxu0 0.0
        %6471 = vmatpush2.msra.mxu0 0.0
        %6472 = vmatprep.subr.mxu0 0.0
        %6473 = vmatpush2.msra.mxu0 0.0
        %6474 = vmatprep.subr.mxu0 0.0
        %6475 = vmatpush2.msra.mxu0 0.0
        %6476 = vmatprep.subr.mxu0 0.0
        %6477 = vmatpush2.msra.mxu0 0.0
        %6478 = vmatprep.subr.mxu0 0.0
        %6479 = vmatpush2.msra.mxu0 0.0
        %6480 = vmatprep.subr.mxu0 0.0
        %6481 = vmatpush2.msra.mxu0 0.0
        %6482 = vmatprep.subr.mxu0 0.0
        %6483 = vmatpush2.msra.mxu0 0.0
        %6484 = vmatprep.subr.mxu0 0.0
        %6485 = vmatpush2.msra.mxu0 0.0
        %6486 = vmatprep.subr.mxu0 0.0
        %6487 = vmatpush2.msra.mxu0 0.0
        %6488 = vmatprep.subr.mxu0 0.0
        %6489 = vmatpush2.msra.mxu0 0.0
        %6490 = vmatprep.subr.mxu0 0.0
        %6491 = vmatpush2.msra.mxu0 0.0
        %6492 = vmatprep.subr.mxu0 0.0
        %6493 = vmatpush2.msra.mxu0 0.0
        %6494 = vmatprep.subr.mxu0 0.0
        %6495 = vmatpush2.msra.mxu0 0.0
        %6496 = vmatprep.mubr.f32.mxu0 0.0
        %6497 = vmatmul.mubr.f32.gmra.mxu0 %v6430
        %v6498 = vpop.f32.mrf.mxu0
        %v6499 = vadd.f32 0.0, %v6498
        %v6500 = vpop.f32.mrf.mxu0
        %6501 = vdwg.mxu0
        %v6503 = vsel %vm2222, %v6238, 0
        %6505 = vmatprep.subr.mxu0 0.0
        %6506 = vmatpush1.msra.mxu0 0.0
        %6507 = vmatprep.subr.mxu0 0.0
        %6508 = vmatpush1.msra.mxu0 0.0
        %6509 = vmatprep.subr.mxu0 0.0
        %6510 = vmatpush1.msra.mxu0 0.0
        %6511 = vmatprep.subr.mxu0 0.0
        %6512 = vmatpush1.msra.mxu0 0.0
        %6513 = vmatprep.subr.mxu0 0.0
        %6514 = vmatpush1.msra.mxu0 0.0
        %6515 = vmatprep.subr.mxu0 0.0
        %6516 = vmatpush1.msra.mxu0 0.0
        %6517 = vmatprep.subr.mxu0 0.0
        %6518 = vmatpush1.msra.mxu0 0.0
        %6519 = vmatprep.subr.mxu0 0.0
        %6520 = vmatpush1.msra.mxu0 0.0
        %6521 = vmatprep.subr.mxu0 0.0
        %6522 = vmatpush1.msra.mxu0 0.0
        %6523 = vmatprep.subr.mxu0 0.0
        %6524 = vmatpush1.msra.mxu0 0.0
        %6525 = vmatprep.subr.mxu0 0.0
        %6526 = vmatpush1.msra.mxu0 0.0
        %6527 = vmatprep.subr.mxu0 0.0
        %6528 = vmatpush1.msra.mxu0 0.0
        %6529 = vmatprep.subr.mxu0 0.0
        %6530 = vmatpush1.msra.mxu0 0.0
        %6531 = vmatprep.subr.mxu0 0.0
        %6532 = vmatpush1.msra.mxu0 0.0
        %6533 = vmatprep.subr.mxu0 0.0
        %6534 = vmatpush1.msra.mxu0 0.0
        %6535 = vmatprep.subr.mxu0 0.0
        %6536 = vmatpush1.msra.mxu0 %v509
        %6537 = vmatprep.subr.mxu0 0.0
        %6538 = vmatpush2.msra.mxu0 0.0
        %6539 = vmatprep.subr.mxu0 0.0
        %6540 = vmatpush2.msra.mxu0 0.0
        %6541 = vmatprep.subr.mxu0 0.0
        %6542 = vmatpush2.msra.mxu0 0.0
        %6543 = vmatprep.subr.mxu0 0.0
        %6544 = vmatpush2.msra.mxu0 0.0
        %6545 = vmatprep.subr.mxu0 0.0
        %6546 = vmatpush2.msra.mxu0 0.0
        %6547 = vmatprep.subr.mxu0 0.0
        %6548 = vmatpush2.msra.mxu0 0.0
        %6549 = vmatprep.subr.mxu0 0.0
        %6550 = vmatpush2.msra.mxu0 0.0
        %6551 = vmatprep.subr.mxu0 0.0
        %6552 = vmatpush2.msra.mxu0 0.0
        %6553 = vmatprep.subr.mxu0 0.0
        %6554 = vmatpush2.msra.mxu0 0.0
        %6555 = vmatprep.subr.mxu0 0.0
        %6556 = vmatpush2.msra.mxu0 0.0
        %6557 = vmatprep.subr.mxu0 0.0
        %6558 = vmatpush2.msra.mxu0 0.0
        %6559 = vmatprep.subr.mxu0 0.0
        %6560 = vmatpush2.msra.mxu0 0.0
        %6561 = vmatprep.subr.mxu0 0.0
        %6562 = vmatpush2.msra.mxu0 0.0
        %6563 = vmatprep.subr.mxu0 0.0
        %6564 = vmatpush2.msra.mxu0 0.0
        %6565 = vmatprep.subr.mxu0 0.0
        %6566 = vmatpush2.msra.mxu0 0.0
        %6567 = vmatprep.subr.mxu0 0.0
        %6568 = vmatpush2.msra.mxu0 0.0
        %6569 = vmatprep.mubr.f32.mxu0 0.0
        %6570 = vmatmul.mubr.f32.gmra.mxu0 %v6503
        %v6571 = vpop.f32.mrf.mxu0
        %v6572 = vadd.f32 0.0, %v6571
        %v6573 = vpop.f32.mrf.mxu0
        %6574 = vdwg.mxu0
        %v6576 = vsel %vm2222, %v6239, 0
        %6578 = vmatprep.subr.mxu0 0.0
        %6579 = vmatpush1.msra.mxu0 0.0
        %6580 = vmatprep.subr.mxu0 0.0
        %6581 = vmatpush1.msra.mxu0 0.0
        %6582 = vmatprep.subr.mxu0 0.0
        %6583 = vmatpush1.msra.mxu0 0.0
        %6584 = vmatprep.subr.mxu0 0.0
        %6585 = vmatpush1.msra.mxu0 0.0
        %6586 = vmatprep.subr.mxu0 0.0
        %6587 = vmatpush1.msra.mxu0 0.0
        %6588 = vmatprep.subr.mxu0 0.0
        %6589 = vmatpush1.msra.mxu0 0.0
        %6590 = vmatprep.subr.mxu0 0.0
        %6591 = vmatpush1.msra.mxu0 0.0
        %6592 = vmatprep.subr.mxu0 0.0
        %6593 = vmatpush1.msra.mxu0 0.0
        %6594 = vmatprep.subr.mxu0 0.0
        %6595 = vmatpush1.msra.mxu0 0.0
        %6596 = vmatprep.subr.mxu0 0.0
        %6597 = vmatpush1.msra.mxu0 0.0
        %6598 = vmatprep.subr.mxu0 0.0
        %6599 = vmatpush1.msra.mxu0 0.0
        %6600 = vmatprep.subr.mxu0 0.0
        %6601 = vmatpush1.msra.mxu0 0.0
        %6602 = vmatprep.subr.mxu0 0.0
        %6603 = vmatpush1.msra.mxu0 0.0
        %6604 = vmatprep.subr.mxu0 0.0
        %6605 = vmatpush1.msra.mxu0 0.0
        %6606 = vmatprep.subr.mxu0 0.0
        %6607 = vmatpush1.msra.mxu0 0.0
        %6608 = vmatprep.subr.mxu0 0.0
        %6609 = vmatpush1.msra.mxu0 %v510
        %6610 = vmatprep.subr.mxu0 0.0
        %6611 = vmatpush2.msra.mxu0 0.0
        %6612 = vmatprep.subr.mxu0 0.0
        %6613 = vmatpush2.msra.mxu0 0.0
        %6614 = vmatprep.subr.mxu0 0.0
        %6615 = vmatpush2.msra.mxu0 0.0
        %6616 = vmatprep.subr.mxu0 0.0
        %6617 = vmatpush2.msra.mxu0 0.0
        %6618 = vmatprep.subr.mxu0 0.0
        %6619 = vmatpush2.msra.mxu0 0.0
        %6620 = vmatprep.subr.mxu0 0.0
        %6621 = vmatpush2.msra.mxu0 0.0
        %6622 = vmatprep.subr.mxu0 0.0
        %6623 = vmatpush2.msra.mxu0 0.0
        %6624 = vmatprep.subr.mxu0 0.0
        %6625 = vmatpush2.msra.mxu0 0.0
        %6626 = vmatprep.subr.mxu0 0.0
        %6627 = vmatpush2.msra.mxu0 0.0
        %6628 = vmatprep.subr.mxu0 0.0
        %6629 = vmatpush2.msra.mxu0 0.0
        %6630 = vmatprep.subr.mxu0 0.0
        %6631 = vmatpush2.msra.mxu0 0.0
        %6632 = vmatprep.subr.mxu0 0.0
        %6633 = vmatpush2.msra.mxu0 0.0
        %6634 = vmatprep.subr.mxu0 0.0
        %6635 = vmatpush2.msra.mxu0 0.0
        %6636 = vmatprep.subr.mxu0 0.0
        %6637 = vmatpush2.msra.mxu0 0.0
        %6638 = vmatprep.subr.mxu0 0.0
        %6639 = vmatpush2.msra.mxu0 0.0
        %6640 = vmatprep.subr.mxu0 0.0
        %6641 = vmatpush2.msra.mxu0 0.0
        %6642 = vmatprep.mubr.f32.mxu0 0.0
        %6643 = vmatmul.mubr.f32.gmra.mxu0 %v6576
        %v6644 = vpop.f32.mrf.mxu0
        %v6645 = vadd.f32 0.0, %v6644
        %v6646 = vpop.f32.mrf.mxu0
        %6647 = vdwg.mxu0
        %v6649 = vsel %vm2222, %v6240, 0
        %6651 = vmatprep.subr.mxu0 0.0
        %6652 = vmatpush1.msra.mxu0 0.0
        %6653 = vmatprep.subr.mxu0 0.0
        %6654 = vmatpush1.msra.mxu0 0.0
        %6655 = vmatprep.subr.mxu0 0.0
        %6656 = vmatpush1.msra.mxu0 0.0
        %6657 = vmatprep.subr.mxu0 0.0
        %6658 = vmatpush1.msra.mxu0 0.0
        %6659 = vmatprep.subr.mxu0 0.0
        %6660 = vmatpush1.msra.mxu0 0.0
        %6661 = vmatprep.subr.mxu0 0.0
        %6662 = vmatpush1.msra.mxu0 0.0
        %6663 = vmatprep.subr.mxu0 0.0
        %6664 = vmatpush1.msra.mxu0 0.0
        %6665 = vmatprep.subr.mxu0 0.0
        %6666 = vmatpush1.msra.mxu0 0.0
        %6667 = vmatprep.subr.mxu0 0.0
        %6668 = vmatpush1.msra.mxu0 0.0
        %6669 = vmatprep.subr.mxu0 0.0
        %6670 = vmatpush1.msra.mxu0 0.0
        %6671 = vmatprep.subr.mxu0 0.0
        %6672 = vmatpush1.msra.mxu0 0.0
        %6673 = vmatprep.subr.mxu0 0.0
        %6674 = vmatpush1.msra.mxu0 0.0
        %6675 = vmatprep.subr.mxu0 0.0
        %6676 = vmatpush1.msra.mxu0 0.0
        %6677 = vmatprep.subr.mxu0 0.0
        %6678 = vmatpush1.msra.mxu0 0.0
        %6679 = vmatprep.subr.mxu0 0.0
        %6680 = vmatpush1.msra.mxu0 0.0
        %6681 = vmatprep.subr.mxu0 0.0
        %6682 = vmatpush1.msra.mxu0 %v511
        %6683 = vmatprep.subr.mxu0 0.0
        %6684 = vmatpush2.msra.mxu0 0.0
        %6685 = vmatprep.subr.mxu0 0.0
        %6686 = vmatpush2.msra.mxu0 0.0
        %6687 = vmatprep.subr.mxu0 0.0
        %6688 = vmatpush2.msra.mxu0 0.0
        %6689 = vmatprep.subr.mxu0 0.0
        %6690 = vmatpush2.msra.mxu0 0.0
        %6691 = vmatprep.subr.mxu0 0.0
        %6692 = vmatpush2.msra.mxu0 0.0
        %6693 = vmatprep.subr.mxu0 0.0
        %6694 = vmatpush2.msra.mxu0 0.0
        %6695 = vmatprep.subr.mxu0 0.0
        %6696 = vmatpush2.msra.mxu0 0.0
        %6697 = vmatprep.subr.mxu0 0.0
        %6698 = vmatpush2.msra.mxu0 0.0
        %6699 = vmatprep.subr.mxu0 0.0
        %6700 = vmatpush2.msra.mxu0 0.0
        %6701 = vmatprep.subr.mxu0 0.0
        %6702 = vmatpush2.msra.mxu0 0.0
        %6703 = vmatprep.subr.mxu0 0.0
        %6704 = vmatpush2.msra.mxu0 0.0
        %6705 = vmatprep.subr.mxu0 0.0
        %6706 = vmatpush2.msra.mxu0 0.0
        %6707 = vmatprep.subr.mxu0 0.0
        %6708 = vmatpush2.msra.mxu0 0.0
        %6709 = vmatprep.subr.mxu0 0.0
        %6710 = vmatpush2.msra.mxu0 0.0
        %6711 = vmatprep.subr.mxu0 0.0
        %6712 = vmatpush2.msra.mxu0 0.0
        %6713 = vmatprep.subr.mxu0 0.0
        %6714 = vmatpush2.msra.mxu0 0.0
        %6715 = vmatprep.mubr.f32.mxu0 0.0
        %6716 = vmatmul.mubr.f32.gmra.mxu0 %v6649
        %v6717 = vpop.f32.mrf.mxu0
        %v6718 = vadd.f32 0.0, %v6717
        %v6719 = vpop.f32.mrf.mxu0
        %6720 = vdwg.mxu0
        %v6722 = vsel %vm2222, %v6241, 0
        %6724 = vmatprep.subr.mxu0 0.0
        %6725 = vmatpush1.msra.mxu0 0.0
        %6726 = vmatprep.subr.mxu0 0.0
        %6727 = vmatpush1.msra.mxu0 0.0
        %6728 = vmatprep.subr.mxu0 0.0
        %6729 = vmatpush1.msra.mxu0 0.0
        %6730 = vmatprep.subr.mxu0 0.0
        %6731 = vmatpush1.msra.mxu0 0.0
        %6732 = vmatprep.subr.mxu0 0.0
        %6733 = vmatpush1.msra.mxu0 0.0
        %6734 = vmatprep.subr.mxu0 0.0
        %6735 = vmatpush1.msra.mxu0 0.0
        %6736 = vmatprep.subr.mxu0 0.0
        %6737 = vmatpush1.msra.mxu0 0.0
        %6738 = vmatprep.subr.mxu0 0.0
        %6739 = vmatpush1.msra.mxu0 0.0
        %6740 = vmatprep.subr.mxu0 0.0
        %6741 = vmatpush1.msra.mxu0 0.0
        %6742 = vmatprep.subr.mxu0 0.0
        %6743 = vmatpush1.msra.mxu0 0.0
        %6744 = vmatprep.subr.mxu0 0.0
        %6745 = vmatpush1.msra.mxu0 0.0
        %6746 = vmatprep.subr.mxu0 0.0
        %6747 = vmatpush1.msra.mxu0 0.0
        %6748 = vmatprep.subr.mxu0 0.0
        %6749 = vmatpush1.msra.mxu0 0.0
        %6750 = vmatprep.subr.mxu0 0.0
        %6751 = vmatpush1.msra.mxu0 0.0
        %6752 = vmatprep.subr.mxu0 0.0
        %6753 = vmatpush1.msra.mxu0 0.0
        %6754 = vmatprep.subr.mxu0 0.0
        %6755 = vmatpush1.msra.mxu0 %v512
        %6756 = vmatprep.subr.mxu0 0.0
        %6757 = vmatpush2.msra.mxu0 0.0
        %6758 = vmatprep.subr.mxu0 0.0
        %6759 = vmatpush2.msra.mxu0 0.0
        %6760 = vmatprep.subr.mxu0 0.0
        %6761 = vmatpush2.msra.mxu0 0.0
        %6762 = vmatprep.subr.mxu0 0.0
        %6763 = vmatpush2.msra.mxu0 0.0
        %6764 = vmatprep.subr.mxu0 0.0
        %6765 = vmatpush2.msra.mxu0 0.0
        %6766 = vmatprep.subr.mxu0 0.0
        %6767 = vmatpush2.msra.mxu0 0.0
        %6768 = vmatprep.subr.mxu0 0.0
        %6769 = vmatpush2.msra.mxu0 0.0
        %6770 = vmatprep.subr.mxu0 0.0
        %6771 = vmatpush2.msra.mxu0 0.0
        %6772 = vmatprep.subr.mxu0 0.0
        %6773 = vmatpush2.msra.mxu0 0.0
        %6774 = vmatprep.subr.mxu0 0.0
        %6775 = vmatpush2.msra.mxu0 0.0
        %6776 = vmatprep.subr.mxu0 0.0
        %6777 = vmatpush2.msra.mxu0 0.0
        %6778 = vmatprep.subr.mxu0 0.0
        %6779 = vmatpush2.msra.mxu0 0.0
        %6780 = vmatprep.subr.mxu0 0.0
        %6781 = vmatpush2.msra.mxu0 0.0
        %6782 = vmatprep.subr.mxu0 0.0
        %6783 = vmatpush2.msra.mxu0 0.0
        %6784 = vmatprep.subr.mxu0 0.0
        %6785 = vmatpush2.msra.mxu0 0.0
        %6786 = vmatprep.subr.mxu0 0.0
        %6787 = vmatpush2.msra.mxu0 0.0
        %6788 = vmatprep.mubr.f32.mxu0 0.0
        %6789 = vmatmul.mubr.f32.gmra.mxu0 %v6722
        %v6790 = vpop.f32.mrf.mxu0
        %v6791 = vadd.f32 0.0, %v6790
        %v6792 = vpop.f32.mrf.mxu0
        %6793 = vdwg.mxu0
        %v6795 = vsel %vm2222, %v6242, 0
        %6797 = vmatprep.subr.mxu0 0.0
        %6798 = vmatpush1.msra.mxu0 0.0
        %6799 = vmatprep.subr.mxu0 0.0
        %6800 = vmatpush1.msra.mxu0 0.0
        %6801 = vmatprep.subr.mxu0 0.0
        %6802 = vmatpush1.msra.mxu0 0.0
        %6803 = vmatprep.subr.mxu0 0.0
        %6804 = vmatpush1.msra.mxu0 0.0
        %6805 = vmatprep.subr.mxu0 0.0
        %6806 = vmatpush1.msra.mxu0 0.0
        %6807 = vmatprep.subr.mxu0 0.0
        %6808 = vmatpush1.msra.mxu0 0.0
        %6809 = vmatprep.subr.mxu0 0.0
        %6810 = vmatpush1.msra.mxu0 0.0
        %6811 = vmatprep.subr.mxu0 0.0
        %6812 = vmatpush1.msra.mxu0 0.0
        %6813 = vmatprep.subr.mxu0 0.0
        %6814 = vmatpush1.msra.mxu0 0.0
        %6815 = vmatprep.subr.mxu0 0.0
        %6816 = vmatpush1.msra.mxu0 0.0
        %6817 = vmatprep.subr.mxu0 0.0
        %6818 = vmatpush1.msra.mxu0 0.0
        %6819 = vmatprep.subr.mxu0 0.0
        %6820 = vmatpush1.msra.mxu0 0.0
        %6821 = vmatprep.subr.mxu0 0.0
        %6822 = vmatpush1.msra.mxu0 0.0
        %6823 = vmatprep.subr.mxu0 0.0
        %6824 = vmatpush1.msra.mxu0 0.0
        %6825 = vmatprep.subr.mxu0 0.0
        %6826 = vmatpush1.msra.mxu0 0.0
        %6827 = vmatprep.subr.mxu0 0.0
        %6828 = vmatpush1.msra.mxu0 %v513
        %6829 = vmatprep.subr.mxu0 0.0
        %6830 = vmatpush2.msra.mxu0 0.0
        %6831 = vmatprep.subr.mxu0 0.0
        %6832 = vmatpush2.msra.mxu0 0.0
        %6833 = vmatprep.subr.mxu0 0.0
        %6834 = vmatpush2.msra.mxu0 0.0
        %6835 = vmatprep.subr.mxu0 0.0
        %6836 = vmatpush2.msra.mxu0 0.0
        %6837 = vmatprep.subr.mxu0 0.0
        %6838 = vmatpush2.msra.mxu0 0.0
        %6839 = vmatprep.subr.mxu0 0.0
        %6840 = vmatpush2.msra.mxu0 0.0
        %6841 = vmatprep.subr.mxu0 0.0
        %6842 = vmatpush2.msra.mxu0 0.0
        %6843 = vmatprep.subr.mxu0 0.0
        %6844 = vmatpush2.msra.mxu0 0.0
        %6845 = vmatprep.subr.mxu0 0.0
        %6846 = vmatpush2.msra.mxu0 0.0
        %6847 = vmatprep.subr.mxu0 0.0
        %6848 = vmatpush2.msra.mxu0 0.0
        %6849 = vmatprep.subr.mxu0 0.0
        %6850 = vmatpush2.msra.mxu0 0.0
        %6851 = vmatprep.subr.mxu0 0.0
        %6852 = vmatpush2.msra.mxu0 0.0
        %6853 = vmatprep.subr.mxu0 0.0
        %6854 = vmatpush2.msra.mxu0 0.0
        %6855 = vmatprep.subr.mxu0 0.0
        %6856 = vmatpush2.msra.mxu0 0.0
        %6857 = vmatprep.subr.mxu0 0.0
        %6858 = vmatpush2.msra.mxu0 0.0
        %6859 = vmatprep.subr.mxu0 0.0
        %6860 = vmatpush2.msra.mxu0 0.0
        %6861 = vmatprep.mubr.f32.mxu0 0.0
        %6862 = vmatmul.mubr.f32.gmra.mxu0 %v6795
        %v6863 = vpop.f32.mrf.mxu0
        %v6864 = vadd.f32 0.0, %v6863
        %v6865 = vpop.f32.mrf.mxu0
        %6866 = vdwg.mxu0
        %v6867 = vld [vmem:[#allocation7] sm:$0x1]
        %6869 = vset.pattern.permute.xlu0 0
        %6870 = vperm.xlu0 %6869, %v6115
        %v6871 = vpop.permute.xlu0 %6870
        %6874 = vset.pattern.permute.xlu0 0
        %6875 = vperm.xlu0 %6874, %v6116
        %v6876 = vpop.permute.xlu0 %6875
        %6879 = vset.pattern.permute.xlu0 0
        %6880 = vperm.xlu0 %6879, %v6117
        %v6881 = vpop.permute.xlu0 %6880
        %6884 = vset.pattern.permute.xlu0 0
        %6885 = vperm.xlu0 %6884, %v6118
        %v6886 = vpop.permute.xlu0 %6885
        %6889 = vset.pattern.permute.xlu0 0
        %6890 = vperm.xlu0 %6889, %v6119
        %v6891 = vpop.permute.xlu0 %6890
        %6894 = vset.pattern.permute.xlu0 0
        %6895 = vperm.xlu0 %6894, %v6120
        %v6896 = vpop.permute.xlu0 %6895
        %6899 = vset.pattern.permute.xlu0 0
        %6900 = vperm.xlu0 %6899, %v6121
        %v6901 = vpop.permute.xlu0 %6900
        %6904 = vset.pattern.permute.xlu0 0
        %6905 = vperm.xlu0 %6904, %v6122
        %v6906 = vpop.permute.xlu0 %6905
        %v6909 = vlaneseq
        %v6910 = vshrl.u32 %v6909, 7
        %v6911 = vsub.s32 0, %v6910
        %v6912 = vrot.slane %v6867, %v6911
        %v6914 = vmul.f32 %v6871, %v6912
        %v6915 = vmul.f32 %v6876, %v6912
        %v6916 = vmul.f32 %v6881, %v6912
        %v6917 = vmul.f32 %v6886, %v6912
        %v6918 = vmul.f32 %v6891, %v6912
        %v6919 = vmul.f32 %v6896, %v6912
        %v6920 = vmul.f32 %v6901, %v6912
        %v6921 = vmul.f32 %v6906, %v6912
        %v6923 = vsel %vm2222, %v6275, 0
        %6925 = vmatprep.subr.mxu0 0.0
        %6926 = vmatpush1.msra.mxu0 0.0
        %6927 = vmatprep.subr.mxu0 0.0
        %6928 = vmatpush1.msra.mxu0 0.0
        %6929 = vmatprep.subr.mxu0 0.0
        %6930 = vmatpush1.msra.mxu0 0.0
        %6931 = vmatprep.subr.mxu0 0.0
        %6932 = vmatpush1.msra.mxu0 0.0
        %6933 = vmatprep.subr.mxu0 0.0
        %6934 = vmatpush1.msra.mxu0 0.0
        %6935 = vmatprep.subr.mxu0 0.0
        %6936 = vmatpush1.msra.mxu0 0.0
        %6937 = vmatprep.subr.mxu0 0.0
        %6938 = vmatpush1.msra.mxu0 0.0
        %6939 = vmatprep.subr.mxu0 0.0
        %6940 = vmatpush1.msra.mxu0 0.0
        %6941 = vmatprep.subr.mxu0 0.0
        %6942 = vmatpush1.msra.mxu0 0.0
        %6943 = vmatprep.subr.mxu0 0.0
        %6944 = vmatpush1.msra.mxu0 0.0
        %6945 = vmatprep.subr.mxu0 0.0
        %6946 = vmatpush1.msra.mxu0 0.0
        %6947 = vmatprep.subr.mxu0 0.0
        %6948 = vmatpush1.msra.mxu0 0.0
        %6949 = vmatprep.subr.mxu0 0.0
        %6950 = vmatpush1.msra.mxu0 0.0
        %6951 = vmatprep.subr.mxu0 0.0
        %6952 = vmatpush1.msra.mxu0 0.0
        %6953 = vmatprep.subr.mxu0 0.0
        %6954 = vmatpush1.msra.mxu0 0.0
        %6955 = vmatprep.subr.mxu0 0.0
        %6956 = vmatpush1.msra.mxu0 %v506
        %6957 = vmatprep.subr.mxu0 0.0
        %6958 = vmatpush2.msra.mxu0 0.0
        %6959 = vmatprep.subr.mxu0 0.0
        %6960 = vmatpush2.msra.mxu0 0.0
        %6961 = vmatprep.subr.mxu0 0.0
        %6962 = vmatpush2.msra.mxu0 0.0
        %6963 = vmatprep.subr.mxu0 0.0
        %6964 = vmatpush2.msra.mxu0 0.0
        %6965 = vmatprep.subr.mxu0 0.0
        %6966 = vmatpush2.msra.mxu0 0.0
        %6967 = vmatprep.subr.mxu0 0.0
        %6968 = vmatpush2.msra.mxu0 0.0
        %6969 = vmatprep.subr.mxu0 0.0
        %6970 = vmatpush2.msra.mxu0 0.0
        %6971 = vmatprep.subr.mxu0 0.0
        %6972 = vmatpush2.msra.mxu0 0.0
        %6973 = vmatprep.subr.mxu0 0.0
        %6974 = vmatpush2.msra.mxu0 0.0
        %6975 = vmatprep.subr.mxu0 0.0
        %6976 = vmatpush2.msra.mxu0 0.0
        %6977 = vmatprep.subr.mxu0 0.0
        %6978 = vmatpush2.msra.mxu0 0.0
        %6979 = vmatprep.subr.mxu0 0.0
        %6980 = vmatpush2.msra.mxu0 0.0
        %6981 = vmatprep.subr.mxu0 0.0
        %6982 = vmatpush2.msra.mxu0 0.0
        %6983 = vmatprep.subr.mxu0 0.0
        %6984 = vmatpush2.msra.mxu0 0.0
        %6985 = vmatprep.subr.mxu0 0.0
        %6986 = vmatpush2.msra.mxu0 0.0
        %6987 = vmatprep.subr.mxu0 0.0
        %6988 = vmatpush2.msra.mxu0 0.0
        %6989 = vmatprep.mubr.f32.mxu0 0.0
        %6990 = vmatmul.mubr.f32.gmra.mxu0 %v6923
        %v6991 = vpop.f32.mrf.mxu0
        %v6992 = vadd.f32 0.0, %v6991
        %v6993 = vpop.f32.mrf.mxu0
        %6994 = vdwg.mxu0
        %v6996 = vsel %vm2222, %v6276, 0
        %6998 = vmatprep.subr.mxu0 0.0
        %6999 = vmatpush1.msra.mxu0 0.0
        %7000 = vmatprep.subr.mxu0 0.0
        %7001 = vmatpush1.msra.mxu0 0.0
        %7002 = vmatprep.subr.mxu0 0.0
        %7003 = vmatpush1.msra.mxu0 0.0
        %7004 = vmatprep.subr.mxu0 0.0
        %7005 = vmatpush1.msra.mxu0 0.0
        %7006 = vmatprep.subr.mxu0 0.0
        %7007 = vmatpush1.msra.mxu0 0.0
        %7008 = vmatprep.subr.mxu0 0.0
        %7009 = vmatpush1.msra.mxu0 0.0
        %7010 = vmatprep.subr.mxu0 0.0
        %7011 = vmatpush1.msra.mxu0 0.0
        %7012 = vmatprep.subr.mxu0 0.0
        %7013 = vmatpush1.msra.mxu0 0.0
        %7014 = vmatprep.subr.mxu0 0.0
        %7015 = vmatpush1.msra.mxu0 0.0
        %7016 = vmatprep.subr.mxu0 0.0
        %7017 = vmatpush1.msra.mxu0 0.0
        %7018 = vmatprep.subr.mxu0 0.0
        %7019 = vmatpush1.msra.mxu0 0.0
        %7020 = vmatprep.subr.mxu0 0.0
        %7021 = vmatpush1.msra.mxu0 0.0
        %7022 = vmatprep.subr.mxu0 0.0
        %7023 = vmatpush1.msra.mxu0 0.0
        %7024 = vmatprep.subr.mxu0 0.0
        %7025 = vmatpush1.msra.mxu0 0.0
        %7026 = vmatprep.subr.mxu0 0.0
        %7027 = vmatpush1.msra.mxu0 0.0
        %7028 = vmatprep.subr.mxu0 0.0
        %7029 = vmatpush1.msra.mxu0 %v507
        %7030 = vmatprep.subr.mxu0 0.0
        %7031 = vmatpush2.msra.mxu0 0.0
        %7032 = vmatprep.subr.mxu0 0.0
        %7033 = vmatpush2.msra.mxu0 0.0
        %7034 = vmatprep.subr.mxu0 0.0
        %7035 = vmatpush2.msra.mxu0 0.0
        %7036 = vmatprep.subr.mxu0 0.0
        %7037 = vmatpush2.msra.mxu0 0.0
        %7038 = vmatprep.subr.mxu0 0.0
        %7039 = vmatpush2.msra.mxu0 0.0
        %7040 = vmatprep.subr.mxu0 0.0
        %7041 = vmatpush2.msra.mxu0 0.0
        %7042 = vmatprep.subr.mxu0 0.0
        %7043 = vmatpush2.msra.mxu0 0.0
        %7044 = vmatprep.subr.mxu0 0.0
        %7045 = vmatpush2.msra.mxu0 0.0
        %7046 = vmatprep.subr.mxu0 0.0
        %7047 = vmatpush2.msra.mxu0 0.0
        %7048 = vmatprep.subr.mxu0 0.0
        %7049 = vmatpush2.msra.mxu0 0.0
        %7050 = vmatprep.subr.mxu0 0.0
        %7051 = vmatpush2.msra.mxu0 0.0
        %7052 = vmatprep.subr.mxu0 0.0
        %7053 = vmatpush2.msra.mxu0 0.0
        %7054 = vmatprep.subr.mxu0 0.0
        %7055 = vmatpush2.msra.mxu0 0.0
        %7056 = vmatprep.subr.mxu0 0.0
        %7057 = vmatpush2.msra.mxu0 0.0
        %7058 = vmatprep.subr.mxu0 0.0
        %7059 = vmatpush2.msra.mxu0 0.0
        %7060 = vmatprep.subr.mxu0 0.0
        %7061 = vmatpush2.msra.mxu0 0.0
        %7062 = vmatprep.mubr.f32.mxu0 0.0
        %7063 = vmatmul.mubr.f32.gmra.mxu0 %v6996
        %v7064 = vpop.f32.mrf.mxu0
        %v7065 = vadd.f32 0.0, %v7064
        %v7066 = vpop.f32.mrf.mxu0
        %7067 = vdwg.mxu0
        %v7069 = vsel %vm2222, %v6277, 0
        %7071 = vmatprep.subr.mxu0 0.0
        %7072 = vmatpush1.msra.mxu0 0.0
        %7073 = vmatprep.subr.mxu0 0.0
        %7074 = vmatpush1.msra.mxu0 0.0
        %7075 = vmatprep.subr.mxu0 0.0
        %7076 = vmatpush1.msra.mxu0 0.0
        %7077 = vmatprep.subr.mxu0 0.0
        %7078 = vmatpush1.msra.mxu0 0.0
        %7079 = vmatprep.subr.mxu0 0.0
        %7080 = vmatpush1.msra.mxu0 0.0
        %7081 = vmatprep.subr.mxu0 0.0
        %7082 = vmatpush1.msra.mxu0 0.0
        %7083 = vmatprep.subr.mxu0 0.0
        %7084 = vmatpush1.msra.mxu0 0.0
        %7085 = vmatprep.subr.mxu0 0.0
        %7086 = vmatpush1.msra.mxu0 0.0
        %7087 = vmatprep.subr.mxu0 0.0
        %7088 = vmatpush1.msra.mxu0 0.0
        %7089 = vmatprep.subr.mxu0 0.0
        %7090 = vmatpush1.msra.mxu0 0.0
        %7091 = vmatprep.subr.mxu0 0.0
        %7092 = vmatpush1.msra.mxu0 0.0
        %7093 = vmatprep.subr.mxu0 0.0
        %7094 = vmatpush1.msra.mxu0 0.0
        %7095 = vmatprep.subr.mxu0 0.0
        %7096 = vmatpush1.msra.mxu0 0.0
        %7097 = vmatprep.subr.mxu0 0.0
        %7098 = vmatpush1.msra.mxu0 0.0
        %7099 = vmatprep.subr.mxu0 0.0
        %7100 = vmatpush1.msra.mxu0 0.0
        %7101 = vmatprep.subr.mxu0 0.0
        %7102 = vmatpush1.msra.mxu0 %v508
        %7103 = vmatprep.subr.mxu0 0.0
        %7104 = vmatpush2.msra.mxu0 0.0
        %7105 = vmatprep.subr.mxu0 0.0
        %7106 = vmatpush2.msra.mxu0 0.0
        %7107 = vmatprep.subr.mxu0 0.0
        %7108 = vmatpush2.msra.mxu0 0.0
        %7109 = vmatprep.subr.mxu0 0.0
        %7110 = vmatpush2.msra.mxu0 0.0
        %7111 = vmatprep.subr.mxu0 0.0
        %7112 = vmatpush2.msra.mxu0 0.0
        %7113 = vmatprep.subr.mxu0 0.0
        %7114 = vmatpush2.msra.mxu0 0.0
        %7115 = vmatprep.subr.mxu0 0.0
        %7116 = vmatpush2.msra.mxu0 0.0
        %7117 = vmatprep.subr.mxu0 0.0
        %7118 = vmatpush2.msra.mxu0 0.0
        %7119 = vmatprep.subr.mxu0 0.0
        %7120 = vmatpush2.msra.mxu0 0.0
        %7121 = vmatprep.subr.mxu0 0.0
        %7122 = vmatpush2.msra.mxu0 0.0
        %7123 = vmatprep.subr.mxu0 0.0
        %7124 = vmatpush2.msra.mxu0 0.0
        %7125 = vmatprep.subr.mxu0 0.0
        %7126 = vmatpush2.msra.mxu0 0.0
        %7127 = vmatprep.subr.mxu0 0.0
        %7128 = vmatpush2.msra.mxu0 0.0
        %7129 = vmatprep.subr.mxu0 0.0
        %7130 = vmatpush2.msra.mxu0 0.0
        %7131 = vmatprep.subr.mxu0 0.0
        %7132 = vmatpush2.msra.mxu0 0.0
        %7133 = vmatprep.subr.mxu0 0.0
        %7134 = vmatpush2.msra.mxu0 0.0
        %7135 = vmatprep.mubr.f32.mxu0 0.0
        %7136 = vmatmul.mubr.f32.gmra.mxu0 %v7069
        %v7137 = vpop.f32.mrf.mxu0
        %v7138 = vadd.f32 0.0, %v7137
        %v7139 = vpop.f32.mrf.mxu0
        %7140 = vdwg.mxu0
        %v7142 = vsel %vm2222, %v6278, 0
        %7144 = vmatprep.subr.mxu0 0.0
        %7145 = vmatpush1.msra.mxu0 0.0
        %7146 = vmatprep.subr.mxu0 0.0
        %7147 = vmatpush1.msra.mxu0 0.0
        %7148 = vmatprep.subr.mxu0 0.0
        %7149 = vmatpush1.msra.mxu0 0.0
        %7150 = vmatprep.subr.mxu0 0.0
        %7151 = vmatpush1.msra.mxu0 0.0
        %7152 = vmatprep.subr.mxu0 0.0
        %7153 = vmatpush1.msra.mxu0 0.0
        %7154 = vmatprep.subr.mxu0 0.0
        %7155 = vmatpush1.msra.mxu0 0.0
        %7156 = vmatprep.subr.mxu0 0.0
        %7157 = vmatpush1.msra.mxu0 0.0
        %7158 = vmatprep.subr.mxu0 0.0
        %7159 = vmatpush1.msra.mxu0 0.0
        %7160 = vmatprep.subr.mxu0 0.0
        %7161 = vmatpush1.msra.mxu0 0.0
        %7162 = vmatprep.subr.mxu0 0.0
        %7163 = vmatpush1.msra.mxu0 0.0
        %7164 = vmatprep.subr.mxu0 0.0
        %7165 = vmatpush1.msra.mxu0 0.0
        %7166 = vmatprep.subr.mxu0 0.0
        %7167 = vmatpush1.msra.mxu0 0.0
        %7168 = vmatprep.subr.mxu0 0.0
        %7169 = vmatpush1.msra.mxu0 0.0
        %7170 = vmatprep.subr.mxu0 0.0
        %7171 = vmatpush1.msra.mxu0 0.0
        %7172 = vmatprep.subr.mxu0 0.0
        %7173 = vmatpush1.msra.mxu0 0.0
        %7174 = vmatprep.subr.mxu0 0.0
        %7175 = vmatpush1.msra.mxu0 %v509
        %7176 = vmatprep.subr.mxu0 0.0
        %7177 = vmatpush2.msra.mxu0 0.0
        %7178 = vmatprep.subr.mxu0 0.0
        %7179 = vmatpush2.msra.mxu0 0.0
        %7180 = vmatprep.subr.mxu0 0.0
        %7181 = vmatpush2.msra.mxu0 0.0
        %7182 = vmatprep.subr.mxu0 0.0
        %7183 = vmatpush2.msra.mxu0 0.0
        %7184 = vmatprep.subr.mxu0 0.0
        %7185 = vmatpush2.msra.mxu0 0.0
        %7186 = vmatprep.subr.mxu0 0.0
        %7187 = vmatpush2.msra.mxu0 0.0
        %7188 = vmatprep.subr.mxu0 0.0
        %7189 = vmatpush2.msra.mxu0 0.0
        %7190 = vmatprep.subr.mxu0 0.0
        %7191 = vmatpush2.msra.mxu0 0.0
        %7192 = vmatprep.subr.mxu0 0.0
        %7193 = vmatpush2.msra.mxu0 0.0
        %7194 = vmatprep.subr.mxu0 0.0
        %7195 = vmatpush2.msra.mxu0 0.0
        %7196 = vmatprep.subr.mxu0 0.0
        %7197 = vmatpush2.msra.mxu0 0.0
        %7198 = vmatprep.subr.mxu0 0.0
        %7199 = vmatpush2.msra.mxu0 0.0
        %7200 = vmatprep.subr.mxu0 0.0
        %7201 = vmatpush2.msra.mxu0 0.0
        %7202 = vmatprep.subr.mxu0 0.0
        %7203 = vmatpush2.msra.mxu0 0.0
        %7204 = vmatprep.subr.mxu0 0.0
        %7205 = vmatpush2.msra.mxu0 0.0
        %7206 = vmatprep.subr.mxu0 0.0
        %7207 = vmatpush2.msra.mxu0 0.0
        %7208 = vmatprep.mubr.f32.mxu0 0.0
        %7209 = vmatmul.mubr.f32.gmra.mxu0 %v7142
        %v7210 = vpop.f32.mrf.mxu0
        %v7211 = vadd.f32 0.0, %v7210
        %v7212 = vpop.f32.mrf.mxu0
        %7213 = vdwg.mxu0
        %v7215 = vsel %vm2222, %v6279, 0
        %7217 = vmatprep.subr.mxu0 0.0
        %7218 = vmatpush1.msra.mxu0 0.0
        %7219 = vmatprep.subr.mxu0 0.0
        %7220 = vmatpush1.msra.mxu0 0.0
        %7221 = vmatprep.subr.mxu0 0.0
        %7222 = vmatpush1.msra.mxu0 0.0
        %7223 = vmatprep.subr.mxu0 0.0
        %7224 = vmatpush1.msra.mxu0 0.0
        %7225 = vmatprep.subr.mxu0 0.0
        %7226 = vmatpush1.msra.mxu0 0.0
        %7227 = vmatprep.subr.mxu0 0.0
        %7228 = vmatpush1.msra.mxu0 0.0
        %7229 = vmatprep.subr.mxu0 0.0
        %7230 = vmatpush1.msra.mxu0 0.0
        %7231 = vmatprep.subr.mxu0 0.0
        %7232 = vmatpush1.msra.mxu0 0.0
        %7233 = vmatprep.subr.mxu0 0.0
        %7234 = vmatpush1.msra.mxu0 0.0
        %7235 = vmatprep.subr.mxu0 0.0
        %7236 = vmatpush1.msra.mxu0 0.0
        %7237 = vmatprep.subr.mxu0 0.0
        %7238 = vmatpush1.msra.mxu0 0.0
        %7239 = vmatprep.subr.mxu0 0.0
        %7240 = vmatpush1.msra.mxu0 0.0
        %7241 = vmatprep.subr.mxu0 0.0
        %7242 = vmatpush1.msra.mxu0 0.0
        %7243 = vmatprep.subr.mxu0 0.0
        %7244 = vmatpush1.msra.mxu0 0.0
        %7245 = vmatprep.subr.mxu0 0.0
        %7246 = vmatpush1.msra.mxu0 0.0
        %7247 = vmatprep.subr.mxu0 0.0
        %7248 = vmatpush1.msra.mxu0 %v510
        %7249 = vmatprep.subr.mxu0 0.0
        %7250 = vmatpush2.msra.mxu0 0.0
        %7251 = vmatprep.subr.mxu0 0.0
        %7252 = vmatpush2.msra.mxu0 0.0
        %7253 = vmatprep.subr.mxu0 0.0
        %7254 = vmatpush2.msra.mxu0 0.0
        %7255 = vmatprep.subr.mxu0 0.0
        %7256 = vmatpush2.msra.mxu0 0.0
        %7257 = vmatprep.subr.mxu0 0.0
        %7258 = vmatpush2.msra.mxu0 0.0
        %7259 = vmatprep.subr.mxu0 0.0
        %7260 = vmatpush2.msra.mxu0 0.0
        %7261 = vmatprep.subr.mxu0 0.0
        %7262 = vmatpush2.msra.mxu0 0.0
        %7263 = vmatprep.subr.mxu0 0.0
        %7264 = vmatpush2.msra.mxu0 0.0
        %7265 = vmatprep.subr.mxu0 0.0
        %7266 = vmatpush2.msra.mxu0 0.0
        %7267 = vmatprep.subr.mxu0 0.0
        %7268 = vmatpush2.msra.mxu0 0.0
        %7269 = vmatprep.subr.mxu0 0.0
        %7270 = vmatpush2.msra.mxu0 0.0
        %7271 = vmatprep.subr.mxu0 0.0
        %7272 = vmatpush2.msra.mxu0 0.0
        %7273 = vmatprep.subr.mxu0 0.0
        %7274 = vmatpush2.msra.mxu0 0.0
        %7275 = vmatprep.subr.mxu0 0.0
        %7276 = vmatpush2.msra.mxu0 0.0
        %7277 = vmatprep.subr.mxu0 0.0
        %7278 = vmatpush2.msra.mxu0 0.0
        %7279 = vmatprep.subr.mxu0 0.0
        %7280 = vmatpush2.msra.mxu0 0.0
        %7281 = vmatprep.mubr.f32.mxu0 0.0
        %7282 = vmatmul.mubr.f32.gmra.mxu0 %v7215
        %v7283 = vpop.f32.mrf.mxu0
        %v7284 = vadd.f32 0.0, %v7283
        %v7285 = vpop.f32.mrf.mxu0
        %7286 = vdwg.mxu0
        %v7288 = vsel %vm2222, %v6280, 0
        %7290 = vmatprep.subr.mxu0 0.0
        %7291 = vmatpush1.msra.mxu0 0.0
        %7292 = vmatprep.subr.mxu0 0.0
        %7293 = vmatpush1.msra.mxu0 0.0
        %7294 = vmatprep.subr.mxu0 0.0
        %7295 = vmatpush1.msra.mxu0 0.0
        %7296 = vmatprep.subr.mxu0 0.0
        %7297 = vmatpush1.msra.mxu0 0.0
        %7298 = vmatprep.subr.mxu0 0.0
        %7299 = vmatpush1.msra.mxu0 0.0
        %7300 = vmatprep.subr.mxu0 0.0
        %7301 = vmatpush1.msra.mxu0 0.0
        %7302 = vmatprep.subr.mxu0 0.0
        %7303 = vmatpush1.msra.mxu0 0.0
        %7304 = vmatprep.subr.mxu0 0.0
        %7305 = vmatpush1.msra.mxu0 0.0
        %7306 = vmatprep.subr.mxu0 0.0
        %7307 = vmatpush1.msra.mxu0 0.0
        %7308 = vmatprep.subr.mxu0 0.0
        %7309 = vmatpush1.msra.mxu0 0.0
        %7310 = vmatprep.subr.mxu0 0.0
        %7311 = vmatpush1.msra.mxu0 0.0
        %7312 = vmatprep.subr.mxu0 0.0
        %7313 = vmatpush1.msra.mxu0 0.0
        %7314 = vmatprep.subr.mxu0 0.0
        %7315 = vmatpush1.msra.mxu0 0.0
        %7316 = vmatprep.subr.mxu0 0.0
        %7317 = vmatpush1.msra.mxu0 0.0
        %7318 = vmatprep.subr.mxu0 0.0
        %7319 = vmatpush1.msra.mxu0 0.0
        %7320 = vmatprep.subr.mxu0 0.0
        %7321 = vmatpush1.msra.mxu0 %v511
        %7322 = vmatprep.subr.mxu0 0.0
        %7323 = vmatpush2.msra.mxu0 0.0
        %7324 = vmatprep.subr.mxu0 0.0
        %7325 = vmatpush2.msra.mxu0 0.0
        %7326 = vmatprep.subr.mxu0 0.0
        %7327 = vmatpush2.msra.mxu0 0.0
        %7328 = vmatprep.subr.mxu0 0.0
        %7329 = vmatpush2.msra.mxu0 0.0
        %7330 = vmatprep.subr.mxu0 0.0
        %7331 = vmatpush2.msra.mxu0 0.0
        %7332 = vmatprep.subr.mxu0 0.0
        %7333 = vmatpush2.msra.mxu0 0.0
        %7334 = vmatprep.subr.mxu0 0.0
        %7335 = vmatpush2.msra.mxu0 0.0
        %7336 = vmatprep.subr.mxu0 0.0
        %7337 = vmatpush2.msra.mxu0 0.0
        %7338 = vmatprep.subr.mxu0 0.0
        %7339 = vmatpush2.msra.mxu0 0.0
        %7340 = vmatprep.subr.mxu0 0.0
        %7341 = vmatpush2.msra.mxu0 0.0
        %7342 = vmatprep.subr.mxu0 0.0
        %7343 = vmatpush2.msra.mxu0 0.0
        %7344 = vmatprep.subr.mxu0 0.0
        %7345 = vmatpush2.msra.mxu0 0.0
        %7346 = vmatprep.subr.mxu0 0.0
        %7347 = vmatpush2.msra.mxu0 0.0
        %7348 = vmatprep.subr.mxu0 0.0
        %7349 = vmatpush2.msra.mxu0 0.0
        %7350 = vmatprep.subr.mxu0 0.0
        %7351 = vmatpush2.msra.mxu0 0.0
        %7352 = vmatprep.subr.mxu0 0.0
        %7353 = vmatpush2.msra.mxu0 0.0
        %7354 = vmatprep.mubr.f32.mxu0 0.0
        %7355 = vmatmul.mubr.f32.gmra.mxu0 %v7288
        %v7356 = vpop.f32.mrf.mxu0
        %v7357 = vadd.f32 0.0, %v7356
        %v7358 = vpop.f32.mrf.mxu0
        %7359 = vdwg.mxu0
        %v7361 = vsel %vm2222, %v6281, 0
        %7363 = vmatprep.subr.mxu0 0.0
        %7364 = vmatpush1.msra.mxu0 0.0
        %7365 = vmatprep.subr.mxu0 0.0
        %7366 = vmatpush1.msra.mxu0 0.0
        %7367 = vmatprep.subr.mxu0 0.0
        %7368 = vmatpush1.msra.mxu0 0.0
        %7369 = vmatprep.subr.mxu0 0.0
        %7370 = vmatpush1.msra.mxu0 0.0
        %7371 = vmatprep.subr.mxu0 0.0
        %7372 = vmatpush1.msra.mxu0 0.0
        %7373 = vmatprep.subr.mxu0 0.0
        %7374 = vmatpush1.msra.mxu0 0.0
        %7375 = vmatprep.subr.mxu0 0.0
        %7376 = vmatpush1.msra.mxu0 0.0
        %7377 = vmatprep.subr.mxu0 0.0
        %7378 = vmatpush1.msra.mxu0 0.0
        %7379 = vmatprep.subr.mxu0 0.0
        %7380 = vmatpush1.msra.mxu0 0.0
        %7381 = vmatprep.subr.mxu0 0.0
        %7382 = vmatpush1.msra.mxu0 0.0
        %7383 = vmatprep.subr.mxu0 0.0
        %7384 = vmatpush1.msra.mxu0 0.0
        %7385 = vmatprep.subr.mxu0 0.0
        %7386 = vmatpush1.msra.mxu0 0.0
        %7387 = vmatprep.subr.mxu0 0.0
        %7388 = vmatpush1.msra.mxu0 0.0
        %7389 = vmatprep.subr.mxu0 0.0
        %7390 = vmatpush1.msra.mxu0 0.0
        %7391 = vmatprep.subr.mxu0 0.0
        %7392 = vmatpush1.msra.mxu0 0.0
        %7393 = vmatprep.subr.mxu0 0.0
        %7394 = vmatpush1.msra.mxu0 %v512
        %7395 = vmatprep.subr.mxu0 0.0
        %7396 = vmatpush2.msra.mxu0 0.0
        %7397 = vmatprep.subr.mxu0 0.0
        %7398 = vmatpush2.msra.mxu0 0.0
        %7399 = vmatprep.subr.mxu0 0.0
        %7400 = vmatpush2.msra.mxu0 0.0
        %7401 = vmatprep.subr.mxu0 0.0
        %7402 = vmatpush2.msra.mxu0 0.0
        %7403 = vmatprep.subr.mxu0 0.0
        %7404 = vmatpush2.msra.mxu0 0.0
        %7405 = vmatprep.subr.mxu0 0.0
        %7406 = vmatpush2.msra.mxu0 0.0
        %7407 = vmatprep.subr.mxu0 0.0
        %7408 = vmatpush2.msra.mxu0 0.0
        %7409 = vmatprep.subr.mxu0 0.0
        %7410 = vmatpush2.msra.mxu0 0.0
        %7411 = vmatprep.subr.mxu0 0.0
        %7412 = vmatpush2.msra.mxu0 0.0
        %7413 = vmatprep.subr.mxu0 0.0
        %7414 = vmatpush2.msra.mxu0 0.0
        %7415 = vmatprep.subr.mxu0 0.0
        %7416 = vmatpush2.msra.mxu0 0.0
        %7417 = vmatprep.subr.mxu0 0.0
        %7418 = vmatpush2.msra.mxu0 0.0
        %7419 = vmatprep.subr.mxu0 0.0
        %7420 = vmatpush2.msra.mxu0 0.0
        %7421 = vmatprep.subr.mxu0 0.0
        %7422 = vmatpush2.msra.mxu0 0.0
        %7423 = vmatprep.subr.mxu0 0.0
        %7424 = vmatpush2.msra.mxu0 0.0
        %7425 = vmatprep.subr.mxu0 0.0
        %7426 = vmatpush2.msra.mxu0 0.0
        %7427 = vmatprep.mubr.f32.mxu0 0.0
        %7428 = vmatmul.mubr.f32.gmra.mxu0 %v7361
        %v7429 = vpop.f32.mrf.mxu0
        %v7430 = vadd.f32 0.0, %v7429
        %v7431 = vpop.f32.mrf.mxu0
        %7432 = vdwg.mxu0
        %v7434 = vsel %vm2222, %v6282, 0
        %7436 = vmatprep.subr.mxu0 0.0
        %7437 = vmatpush1.msra.mxu0 0.0
        %7438 = vmatprep.subr.mxu0 0.0
        %7439 = vmatpush1.msra.mxu0 0.0
        %7440 = vmatprep.subr.mxu0 0.0
        %7441 = vmatpush1.msra.mxu0 0.0
        %7442 = vmatprep.subr.mxu0 0.0
        %7443 = vmatpush1.msra.mxu0 0.0
        %7444 = vmatprep.subr.mxu0 0.0
        %7445 = vmatpush1.msra.mxu0 0.0
        %7446 = vmatprep.subr.mxu0 0.0
        %7447 = vmatpush1.msra.mxu0 0.0
        %7448 = vmatprep.subr.mxu0 0.0
        %7449 = vmatpush1.msra.mxu0 0.0
        %7450 = vmatprep.subr.mxu0 0.0
        %7451 = vmatpush1.msra.mxu0 0.0
        %7452 = vmatprep.subr.mxu0 0.0
        %7453 = vmatpush1.msra.mxu0 0.0
        %7454 = vmatprep.subr.mxu0 0.0
        %7455 = vmatpush1.msra.mxu0 0.0
        %7456 = vmatprep.subr.mxu0 0.0
        %7457 = vmatpush1.msra.mxu0 0.0
        %7458 = vmatprep.subr.mxu0 0.0
        %7459 = vmatpush1.msra.mxu0 0.0
        %7460 = vmatprep.subr.mxu0 0.0
        %7461 = vmatpush1.msra.mxu0 0.0
        %7462 = vmatprep.subr.mxu0 0.0
        %7463 = vmatpush1.msra.mxu0 0.0
        %7464 = vmatprep.subr.mxu0 0.0
        %7465 = vmatpush1.msra.mxu0 0.0
        %7466 = vmatprep.subr.mxu0 0.0
        %7467 = vmatpush1.msra.mxu0 %v513
        %7468 = vmatprep.subr.mxu0 0.0
        %7469 = vmatpush2.msra.mxu0 0.0
        %7470 = vmatprep.subr.mxu0 0.0
        %7471 = vmatpush2.msra.mxu0 0.0
        %7472 = vmatprep.subr.mxu0 0.0
        %7473 = vmatpush2.msra.mxu0 0.0
        %7474 = vmatprep.subr.mxu0 0.0
        %7475 = vmatpush2.msra.mxu0 0.0
        %7476 = vmatprep.subr.mxu0 0.0
        %7477 = vmatpush2.msra.mxu0 0.0
        %7478 = vmatprep.subr.mxu0 0.0
        %7479 = vmatpush2.msra.mxu0 0.0
        %7480 = vmatprep.subr.mxu0 0.0
        %7481 = vmatpush2.msra.mxu0 0.0
        %7482 = vmatprep.subr.mxu0 0.0
        %7483 = vmatpush2.msra.mxu0 0.0
        %7484 = vmatprep.subr.mxu0 0.0
        %7485 = vmatpush2.msra.mxu0 0.0
        %7486 = vmatprep.subr.mxu0 0.0
        %7487 = vmatpush2.msra.mxu0 0.0
        %7488 = vmatprep.subr.mxu0 0.0
        %7489 = vmatpush2.msra.mxu0 0.0
        %7490 = vmatprep.subr.mxu0 0.0
        %7491 = vmatpush2.msra.mxu0 0.0
        %7492 = vmatprep.subr.mxu0 0.0
        %7493 = vmatpush2.msra.mxu0 0.0
        %7494 = vmatprep.subr.mxu0 0.0
        %7495 = vmatpush2.msra.mxu0 0.0
        %7496 = vmatprep.subr.mxu0 0.0
        %7497 = vmatpush2.msra.mxu0 0.0
        %7498 = vmatprep.subr.mxu0 0.0
        %7499 = vmatpush2.msra.mxu0 0.0
        %7500 = vmatprep.mubr.f32.mxu0 0.0
        %7501 = vmatmul.mubr.f32.gmra.mxu0 %v7434
        %v7502 = vpop.f32.mrf.mxu0
        %v7503 = vadd.f32 0.0, %v7502
        %v7504 = vpop.f32.mrf.mxu0
        %7505 = vdwg.mxu0
        %v7506 = vadd.f32 %v6914, %v6992
        %v7507 = vadd.f32 %v6915, %v7065
        %v7508 = vadd.f32 %v6916, %v7138
        %v7509 = vadd.f32 %v6917, %v7211
        %v7510 = vadd.f32 %v6918, %v7284
        %v7511 = vadd.f32 %v6919, %v7357
        %v7512 = vadd.f32 %v6920, %v7430
        %v7513 = vadd.f32 %v6921, %v7503
        %7522 = vrot.lane.b32.xlu0 %v7506, 32
        %v7523 = vpop.permute.xlu0 %7522
        %7524 = vrot.lane.b32.xlu0 %v7507, 32
        %v7525 = vpop.permute.xlu0 %7524
        %7526 = vrot.lane.b32.xlu0 %v7508, 32
        %v7527 = vpop.permute.xlu0 %7526
        %7528 = vrot.lane.b32.xlu0 %v7509, 32
        %v7529 = vpop.permute.xlu0 %7528
        %7530 = vrot.lane.b32.xlu0 %v7510, 32
        %v7531 = vpop.permute.xlu0 %7530
        %7532 = vrot.lane.b32.xlu0 %v7511, 32
        %v7533 = vpop.permute.xlu0 %7532
        %7534 = vrot.lane.b32.xlu0 %v7512, 32
        %v7535 = vpop.permute.xlu0 %7534
        %7536 = vrot.lane.b32.xlu0 %v7513, 32
        %v7537 = vpop.permute.xlu0 %7536
        %7554 = vrot.lane.b32.xlu0 %v6353, 64
        %v7555 = vpop.permute.xlu0 %7554
        %7556 = vrot.lane.b32.xlu0 %v6426, 64
        %v7557 = vpop.permute.xlu0 %7556
        %7558 = vrot.lane.b32.xlu0 %v6499, 64
        %v7559 = vpop.permute.xlu0 %7558
        %7560 = vrot.lane.b32.xlu0 %v6572, 64
        %v7561 = vpop.permute.xlu0 %7560
        %7562 = vrot.lane.b32.xlu0 %v6645, 64
        %v7563 = vpop.permute.xlu0 %7562
        %7564 = vrot.lane.b32.xlu0 %v6718, 64
        %v7565 = vpop.permute.xlu0 %7564
        %7566 = vrot.lane.b32.xlu0 %v6791, 64
        %v7567 = vpop.permute.xlu0 %7566
        %7568 = vrot.lane.b32.xlu0 %v6864, 64
        %v7569 = vpop.permute.xlu0 %7568
        %vm7578 = vcmask 261120
        %v7579 = vsel %vm7578, %v506, %v7523
        %v7580 = vsel %vm7578, %v507, %v7525
        %v7581 = vsel %vm7578, %v508, %v7527
        %v7582 = vsel %vm7578, %v509, %v7529
        %v7583 = vsel %vm7578, %v510, %v7531
        %v7584 = vsel %vm7578, %v511, %v7533
        %v7585 = vsel %vm7578, %v512, %v7535
        %v7586 = vsel %vm7578, %v513, %v7537
        %vm7587 = vcmask 523264
        %v7588 = vsel %vm7587, %v7579, %v7555
        %v7589 = vsel %vm7587, %v7580, %v7557
        %v7590 = vsel %vm7587, %v7581, %v7559
        %v7591 = vsel %vm7587, %v7582, %v7561
        %v7592 = vsel %vm7587, %v7583, %v7563
        %v7593 = vsel %vm7587, %v7584, %v7565
        %v7594 = vsel %vm7587, %v7585, %v7567
        %v7595 = vsel %vm7587, %v7586, %v7569
        %v7596 = vld [vmem:[%s9] sm:$0xff]
        %v7597 = vld [vmem:[%s9 + $0x8] sm:$0xff]
        %v7598 = vld [vmem:[%s9 + $0x10] sm:$0xff]
        %v7599 = vld [vmem:[%s9 + $0x18] sm:$0xff]
        %v7600 = vld [vmem:[%s9 + $0x20] sm:$0xff]
        %v7601 = vld [vmem:[%s9 + $0x28] sm:$0xff]
        %v7602 = vld [vmem:[%s9 + $0x30] sm:$0xff]
        %v7603 = vld [vmem:[%s9 + $0x38] sm:$0xff]
        %v7604 = vld [vmem:[%s9 + $0x40] sm:$0xff]
        %v7605 = vld [vmem:[%s9 + $0x48] sm:$0xff]
        %v7606 = vld [vmem:[%s9 + $0x50] sm:$0xff]
        %v7607 = vld [vmem:[%s9 + $0x58] sm:$0xff]
        %v7608 = vld [vmem:[%s10] sm:$0x1]
        %v7610 = vlaneseq
        %v7611 = vshrl.u32 %v7610, 7
        %v7612 = vsub.s32 0, %v7611
        %v7613 = vrot.slane %v7608, %v7612
        %vm7615 = vcmask 785408
        %v7617 = vsel %vm7615, %v7588, 0
        %v7620 = vsel %vm7615, %v7589, 0
        %v7623 = vsel %vm7615, %v7590, 0
        %v7626 = vsel %vm7615, %v7591, 0
        %v7629 = vsel %vm7615, %v7592, 0
        %v7632 = vsel %vm7615, %v7593, 0
        %v7635 = vsel %vm7615, %v7594, 0
        %v7638 = vsel %vm7615, %v7595, 0
        %7640 = vmatprep.subr.mxu0 0.0
        %7641 = vmatpush1.msra.mxu0 0.0
        %7642 = vmatprep.subr.mxu0 0.0
        %7643 = vmatpush1.msra.mxu0 0.0
        %7644 = vmatprep.subr.mxu0 0.0
        %7645 = vmatpush1.msra.mxu0 0.0
        %7646 = vmatprep.subr.mxu0 0.0
        %7647 = vmatpush1.msra.mxu0 0.0
        %7648 = vmatprep.subr.mxu0 0.0
        %7649 = vmatpush1.msra.mxu0 %v7607
        %7650 = vmatprep.subr.mxu0 0.0
        %7651 = vmatpush1.msra.mxu0 %v7606
        %7652 = vmatprep.subr.mxu0 0.0
        %7653 = vmatpush1.msra.mxu0 %v7605
        %7654 = vmatprep.subr.mxu0 0.0
        %7655 = vmatpush1.msra.mxu0 %v7604
        %7656 = vmatprep.subr.mxu0 0.0
        %7657 = vmatpush1.msra.mxu0 %v7603
        %7658 = vmatprep.subr.mxu0 0.0
        %7659 = vmatpush1.msra.mxu0 %v7602
        %7660 = vmatprep.subr.mxu0 0.0
        %7661 = vmatpush1.msra.mxu0 %v7601
        %7662 = vmatprep.subr.mxu0 0.0
        %7663 = vmatpush1.msra.mxu0 %v7600
        %7664 = vmatprep.subr.mxu0 0.0
        %7665 = vmatpush1.msra.mxu0 %v7599
        %7666 = vmatprep.subr.mxu0 0.0
        %7667 = vmatpush1.msra.mxu0 %v7598
        %7668 = vmatprep.subr.mxu0 0.0
        %7669 = vmatpush1.msra.mxu0 %v7597
        %7670 = vmatprep.subr.mxu0 0.0
        %7671 = vmatpush1.msra.mxu0 %v7596
        %7672 = vmatprep.subr.mxu0 0.0
        %7673 = vmatpush2.msra.mxu0 0.0
        %7674 = vmatprep.subr.mxu0 0.0
        %7675 = vmatpush2.msra.mxu0 0.0
        %7676 = vmatprep.subr.mxu0 0.0
        %7677 = vmatpush2.msra.mxu0 0.0
        %7678 = vmatprep.subr.mxu0 0.0
        %7679 = vmatpush2.msra.mxu0 0.0
        %7680 = vmatprep.subr.mxu0 0.0
        %7681 = vmatpush2.msra.mxu0 0.0
        %7682 = vmatprep.subr.mxu0 0.0
        %7683 = vmatpush2.msra.mxu0 0.0
        %7684 = vmatprep.subr.mxu0 0.0
        %7685 = vmatpush2.msra.mxu0 0.0
        %7686 = vmatprep.subr.mxu0 0.0
        %7687 = vmatpush2.msra.mxu0 0.0
        %7688 = vmatprep.subr.mxu0 0.0
        %7689 = vmatpush2.msra.mxu0 0.0
        %7690 = vmatprep.subr.mxu0 0.0
        %7691 = vmatpush2.msra.mxu0 0.0
        %7692 = vmatprep.subr.mxu0 0.0
        %7693 = vmatpush2.msra.mxu0 0.0
        %7694 = vmatprep.subr.mxu0 0.0
        %7695 = vmatpush2.msra.mxu0 0.0
        %7696 = vmatprep.subr.mxu0 0.0
        %7697 = vmatpush2.msra.mxu0 0.0
        %7698 = vmatprep.subr.mxu0 0.0
        %7699 = vmatpush2.msra.mxu0 0.0
        %7700 = vmatprep.subr.mxu0 0.0
        %7701 = vmatpush2.msra.mxu0 0.0
        %7702 = vmatprep.subr.mxu0 0.0
        %7703 = vmatpush2.msra.mxu0 0.0
        %7704 = vmatprep.mubr.f32.mxu0 0.0
        %7705 = vmatmul.mubr.f32.gmra.mxu0 %v7617
        %v7706 = vpop.f32.mrf.mxu0
        %v7707 = vadd.f32 %v7613, %v7706
        %v7708 = vpop.f32.mrf.mxu0
        %7709 = vmatprep.mubr.f32.mxu0 0.0
        %7710 = vmatmul.mubr.f32.gmra.mxu0 %v7620
        %v7711 = vpop.f32.mrf.mxu0
        %v7712 = vadd.f32 %v7613, %v7711
        %v7713 = vpop.f32.mrf.mxu0
        %7714 = vmatprep.mubr.f32.mxu0 0.0
        %7715 = vmatmul.mubr.f32.gmra.mxu0 %v7623
        %v7716 = vpop.f32.mrf.mxu0
        %v7717 = vadd.f32 %v7613, %v7716
        %v7718 = vpop.f32.mrf.mxu0
        %7719 = vmatprep.mubr.f32.mxu0 0.0
        %7720 = vmatmul.mubr.f32.gmra.mxu0 %v7626
        %v7721 = vpop.f32.mrf.mxu0
        %v7722 = vadd.f32 %v7613, %v7721
        %v7723 = vpop.f32.mrf.mxu0
        %7724 = vmatprep.mubr.f32.mxu0 0.0
        %7725 = vmatmul.mubr.f32.gmra.mxu0 %v7629
        %v7726 = vpop.f32.mrf.mxu0
        %v7727 = vadd.f32 %v7613, %v7726
        %v7728 = vpop.f32.mrf.mxu0
        %7729 = vmatprep.mubr.f32.mxu0 0.0
        %7730 = vmatmul.mubr.f32.gmra.mxu0 %v7632
        %v7731 = vpop.f32.mrf.mxu0
        %v7732 = vadd.f32 %v7613, %v7731
        %v7733 = vpop.f32.mrf.mxu0
        %7734 = vmatprep.mubr.f32.mxu0 0.0
        %7735 = vmatmul.mubr.f32.gmra.mxu0 %v7635
        %v7736 = vpop.f32.mrf.mxu0
        %v7737 = vadd.f32 %v7613, %v7736
        %v7738 = vpop.f32.mrf.mxu0
        %7739 = vmatprep.mubr.f32.mxu0 0.0
        %7740 = vmatmul.mubr.f32.gmra.mxu0 %v7638
        %v7741 = vpop.f32.mrf.mxu0
        %v7742 = vadd.f32 %v7613, %v7741
        %v7743 = vpop.f32.mrf.mxu0
        %7744 = vdwg.mxu0
        %v7745 = vtanh.pop %v7707
        %v7746 = vtanh.pop %v7712
        %v7747 = vtanh.pop %v7717
        %v7748 = vtanh.pop %v7722
        %v7749 = vtanh.pop %v7727
        %v7750 = vtanh.pop %v7732
        %v7751 = vtanh.pop %v7737
        %v7752 = vtanh.pop %v7742
        %v7753 = vmul.f32 %v7745, %v824
        %v7754 = vmul.f32 %v7746, %v829
        %v7755 = vmul.f32 %v7747, %v834
        %v7756 = vmul.f32 %v7748, %v839
        %v7757 = vmul.f32 %v7749, %v844
        %v7758 = vmul.f32 %v7750, %v849
        %v7759 = vmul.f32 %v7751, %v854
        %v7760 = vmul.f32 %v7752, %v859
        %7761 = vst.msk [vmem:[%s504] sm:$0xff] %vm7578, %v7753
        %7762 = vst.msk [vmem:[%s504 + $0x8] sm:$0xff] %vm7578, %v7754
        %7763 = vst.msk [vmem:[%s504 + $0x10] sm:$0xff] %vm7578, %v7755
        %7764 = vst.msk [vmem:[%s504 + $0x18] sm:$0xff] %vm7578, %v7756
        %7765 = vst.msk [vmem:[%s504 + $0x20] sm:$0xff] %vm7578, %v7757
        %7766 = vst.msk [vmem:[%s504 + $0x28] sm:$0xff] %vm7578, %v7758
        %7767 = vst.msk [vmem:[%s504 + $0x30] sm:$0xff] %vm7578, %v7759
        %7768 = vst.msk [vmem:[%s504 + $0x38] sm:$0xff] %vm7578, %v7760
        %s7769 = smul.u32 8, %s25
        %p7770 = scmp.lt.s32.totalorder %s7769, 15
        %s7771 = scalar_select %p7770, %s7769, 15
        %s7772 = smul.addr %s7771, 8
        %s7773 = scalar_lea.vmem %s11, %s7772
        // Predicated region
        $region81: #{tpu_custom_call.1} parent=63 // pred_check
          %p7774 = pneg %p294
        $region82: #{tpu_custom_call.1} parent=63 // pred_check_branch
          %7776 = sbr.rel (%p7774) target = $region84
        $region83: #{tpu_custom_call.1} parent=63 // pred_region
          %s7777 = smul.u32 8, %s25
        $region84: #{tpu_custom_call.1} parent=63 // pred_fallthru
          _
      $region64: #{tpu_custom_call.1} parent=5 // pred_fallthru
        _
      %p7778 = scmp.le.s32.totalorder 2, %s20
      // Predicated region
      $region85: #{tpu_custom_call.1} parent=5 // pred_check
        %p7779 = pneg %p7778
      $region86: #{tpu_custom_call.1} parent=5 // pred_check_branch
        %7781 = sbr.rel (%p7779) target = $region88
      $region87: #{tpu_custom_call.1} parent=5 // pred_region
        %s7782 = ssub.s32 %s20, 2
        // Predicated region
        $region89: #{tpu_custom_call.1} parent=87 // pred_check
          %p7783 = pneg %p300
        $region90: #{tpu_custom_call.1} parent=87 // pred_check_branch
          %7785 = sbr.rel (%p7783) target = $region92
        $region91: #{tpu_custom_call.1} parent=87 // pred_region
          %s7786 = smul.u32 8, %s26
          %p7787 = scmp.lt.s32.totalorder %s7786, 15
          %s7788 = scalar_select %p7787, %s7786, 15
          %s7789 = smul.addr %s7788, 8
          %s7790 = scalar_lea.vmem %s11, %s7789
        $region92: #{tpu_custom_call.1} parent=87 // pred_fallthru
          _
      $region88: #{tpu_custom_call.1} parent=5 // pred_fallthru
        _
    $region6: #{tpu_custom_call.1} parent=1 // loop_footer
      %s24 = sadd.s32 1, %s20
    $region7: #{tpu_custom_call.1} parent=1 // loop_footer_branch
      %19 = sbr.rel target = $region3
    $region8: #{tpu_custom_call.1} parent=1 // loop_exit
      _
    %7791 = vsyncpa [#allocation3], 1
    %s7792 = scalar_lea.sflag [#allocation3], 1
    %7793 = vsyncpa %s7792, 1
    %7794 = vsyncpa [#allocation5], 1
    %7795 = vsyncpa [#allocation8], 1

</llo_original>
